<compile_context>
chip_gen: v5e
topology: v5e:2x2
jax: 0.10.0
libtpu: 0.0.40
codegen_flags: <defaults>
</compile_context>

<pallas_src>
import functools
import math

import jax
import jax.numpy as jnp
from jax.experimental import pallas as pl
from jax.experimental.pallas import tpu as pltpu


# ---------------------------------------------------------------------------
# Kernel 1: fused channel compressor + context encoder + softmax + transpose
# ---------------------------------------------------------------------------
def _kp_kernel(xpf_ref, w1_ref, w2_ref, out_ref, comp_ref, col_ref, enc_ref,
               *, H, W, Wp, ke, Cm, Ck, Ckp, rate):
    # xpf_ref : (1, Hp*Wp, C)        zero-padded input, flattened wide rows, bf16
    # w1_ref  : (C, Cm)              1x1 compressor weight, bf16
    # w2_ref  : (ke*ke*Cm, Ckp)      encoder weight, tap-major stacked, bf16
    # out_ref : (1, Ck, H*W)         softmaxed kernels, channel-major, f32
    # comp_ref: (Hp*Wp, Cm)  f32     compressed features (VMEM scratch)
    # col_ref : (M, ke*ke*Cm) bf16   im2col buffer (VMEM scratch)
    # enc_ref : (H, Wp, Ckp) f32     encoder output on the wide-row grid
    M = H * Wp

    # 1x1 conv + ReLU (zero padding stays zero: no bias).
    comp_ref[...] = jnp.maximum(
        jnp.dot(xpf_ref[0], w1_ref[...], preferred_element_type=jnp.float32),
        0.0)

    # ke x ke conv as ONE K-stacked matmul: build the im2col buffer in VMEM
    # (ke*ke shifted copies), then a single (M, ke*ke*Cm) x (ke*ke*Cm, Ckp)
    # MXU matmul with a full 128-wide N dimension.
    for t in range(ke * ke):
        dy, dx = divmod(t, ke)
        off = dy * Wp + dx
        col_ref[:, t * Cm:(t + 1) * Cm] = (
            comp_ref[off:off + M, :].astype(col_ref.dtype))

    enc = jnp.dot(col_ref[...], w2_ref[...],
                  preferred_element_type=jnp.float32)
    enc_ref[...] = jnp.maximum(enc, 0.0).reshape(H, Wp, Ckp)

    # softmax over the raw .view(b, kup^2, r*H, r*W)'s last dim.  In encoder
    # layout each softmax group is (one channel, `rate` consecutive rows, all
    # W columns) -> a sublane reduction over axis 1 of the reshaped slab.
    ev = enc_ref[:, :W, :].reshape(H // rate, rate * W, Ckp)
    m = jnp.max(ev, axis=1, keepdims=True)
    e = jnp.exp(ev - m)
    s = jnp.sum(e, axis=1, keepdims=True)
    p = (e * pl.reciprocal(s, approx=True)).reshape(H * W, Ckp)

    # Channel-major, lane-dense store: out[ck, i*W + j].  The wrapper's free
    # row-major reshape of this is exactly softmax(view(b, kup^2, r*H, r*W)).
    out_ref[0] = p.T[:Ck, :]


def _kernel_prediction(x_nchw, w_compress, w_encode, *, kup, ke, rate):
    """Returns the softmaxed CARAFE kernels: (B, kup^2, r*H, r*W), f32."""
    B, C, H, W = x_nchw.shape
    assert H % rate == 0, "raw .view semantics require H % rate == 0"
    Cm = w_compress.shape[1]
    Ck = w_encode.shape[-1]                     # rate^2 * kup^2  (= 100)
    Ckp = pl.cdiv(Ck, 128) * 128                # lane-padded     (= 128)
    pad = (ke - 1) // 2
    Wp = W + 2 * pad
    Hp = H + 2 * pad + 1                        # +1 slack row for wide slices
    M = H * Wp

    # NHWC, zero-padded, flattened wide rows, bf16 for the MXU.
    x_nhwc = jnp.transpose(x_nchw, (0, 2, 3, 1))
    xpad = jnp.pad(x_nhwc, ((0, 0), (pad, pad + 1), (pad, pad), (0, 0)))
    xpf = xpad.reshape(B, Hp * Wp, C).astype(jnp.bfloat16)

    w1 = w_compress.astype(jnp.bfloat16)                        # (C, Cm)
    # tap-major stack + zero-pad the output channels to a full lane tile.
    w2f = jnp.pad(w_encode, ((0, 0), (0, 0), (0, Ckp - Ck)))
    w2f = w2f.reshape(ke * ke * Cm, Ckp).astype(jnp.bfloat16)   # (K, Ckp)

    kern = functools.partial(_kp_kernel, H=H, W=W, Wp=Wp, ke=ke, Cm=Cm,
                             Ck=Ck, Ckp=Ckp, rate=rate)
    kp = pl.pallas_call(
        kern,
        out_shape=jax.ShapeDtypeStruct((B, Ck, H * W), jnp.float32),
        grid=(B,),
        in_specs=[
            pl.BlockSpec((1, Hp * Wp, C), lambda b: (b, 0, 0)),
            pl.BlockSpec((C, Cm), lambda b: (0, 0)),
            pl.BlockSpec((ke * ke * Cm, Ckp), lambda b: (0, 0)),
        ],
        out_specs=pl.BlockSpec((1, Ck, H * W), lambda b: (b, 0, 0)),
        scratch_shapes=[
            pltpu.VMEM((Hp * Wp, Cm), jnp.float32),
            pltpu.VMEM((M, ke * ke * Cm), jnp.bfloat16),
            pltpu.VMEM((H, Wp, Ckp), jnp.float32),
        ],
        compiler_params=pltpu.CompilerParams(
            dimension_semantics=("parallel",)),
    )(xpf, w1, w2f)

    # Free row-major reshape == the reference's raw contiguous .view.
    return kp.reshape(B, kup * kup, rate * H, rate * W)


# ---------------------------------------------------------------------------
# Kernel 2: CARAFE weighted reassembly, writing NCHW output rows directly
# ---------------------------------------------------------------------------
def _combine_kernel(kp_ref, xu_ref, o_ref, *, kup, rate):
    # kp_ref: (1, kup^2, TU, r*W)                 softmaxed weights (row slab)
    # xu_ref: (1, C, r*(H+2p), r*(W+2p))          nearest-up, padded input
    # o_ref : (1, C, TU, r*W)                     final NCHW output rows
    C, TU, W2 = o_ref.shape[1], o_ref.shape[2], o_ref.shape[3]
    row0 = pl.multiple_of(pl.program_id(1) * TU, TU)

    acc = jnp.zeros((C, TU, W2), jnp.float32)
    for k in range(kup * kup):                                  # unrolled taps
        ky, kx = divmod(k, kup)
        wk = kp_ref[0, k]                                       # (TU, W2)
        xs = xu_ref[0, :, pl.ds(row0 + rate * ky, TU),
                    pl.ds(rate * kx, W2)]                       # (C, TU, W2)
        acc = acc + wk[None, :, :] * xs           # leading-axis bcast: free
    o_ref[0] = acc.astype(o_ref.dtype)


def _carafe_combine(x_nchw, kp, *, kup, rate):
    B, C, H, W = x_nchw.shape
    K2 = kup * kup
    rpad = kup // 2
    TU = 8 if (rate * H) % 8 == 0 else rate * H
    n_row_blocks = (rate * H) // TU

    # Nearest-neighbour upsample of the zero-padded input (tiny, done once);
    # replaces per-tap in-kernel upsampling and the reference's x_mat tensor.
    xpad = jnp.pad(x_nchw, ((0, 0), (0, 0), (rpad, rpad), (rpad, rpad)))
    xu = jnp.repeat(jnp.repeat(xpad, rate, axis=2), rate, axis=3)
    xu = xu.astype(jnp.float32)

    kern = functools.partial(_combine_kernel, kup=kup, rate=rate)
    return pl.pallas_call(
        kern,
        out_shape=jax.ShapeDtypeStruct((B, C, rate * H, rate * W),
                                       jnp.float32),
        grid=(B, n_row_blocks),
        in_specs=[
            pl.BlockSpec((1, K2, TU, rate * W), lambda b, s: (b, 0, s, 0)),
            pl.BlockSpec((1, C, rate * (H + 2 * rpad), rate * (W + 2 * rpad)),
                         lambda b, s: (b, 0, 0, 0)),
        ],
        out_specs=pl.BlockSpec((1, C, TU, rate * W),
                               lambda b, s: (b, 0, s, 0)),
        compiler_params=pltpu.CompilerParams(
            dimension_semantics=("parallel", "parallel")),
    )(kp, xu)


# ---------------------------------------------------------------------------
# Full module forward + parameters
# ---------------------------------------------------------------------------
def carafe_forward(x_nchw, params, *, kup=5, ke=3, rate=2):
    x = x_nchw.astype(jnp.float32)
    kp = _kernel_prediction(x, params["w_compress"], params["w_encode"],
                            kup=kup, ke=ke, rate=rate)
    return _carafe_combine(x, kp, kup=kup, rate=rate)             # (B,C,rH,rW)


def init_carafe_params(key, in_channels, channel_cm=64, kup=5, ke=3, rate=2):
    k1, k2 = jax.random.split(key)
    ck = rate * rate * kup * kup
    b1 = 1.0 / math.sqrt(in_channels)
    w_compress = jax.random.uniform(k1, (in_channels, channel_cm),
                                    jnp.float32, minval=-b1, maxval=b1)
    b2 = 1.0 / math.sqrt(ke * ke * channel_cm)
    # tap-major layout: w_encode[dy*ke+dx] == torch_weight[:, :, dy, dx].T
    w_encode = jax.random.uniform(k2, (ke * ke, channel_cm, ck),
                                  jnp.float32, minval=-b2, maxval=b2)
    return {"w_compress": w_compress, "w_encode": w_encode}


# ---------------------------------------------------------------------------
# Pure-JAX reference (direct transcription of the PyTorch math) for self-check
# ---------------------------------------------------------------------------
def carafe_reference(x_nchw, params, *, kup=5, ke=3, rate=2):
    hi = jax.lax.Precision.HIGHEST
    B, C, H, W = x_nchw.shape
    w1 = params["w_compress"]
    w2 = params["w_encode"]
    comp = jnp.maximum(jnp.einsum("bchw,cm->bmhw", x_nchw, w1, precision=hi), 0.0)
    pad = (ke - 1) // 2
    cpad = jnp.pad(comp, ((0, 0), (0, 0), (pad, pad), (pad, pad)))
    enc = jnp.zeros((B, w2.shape[-1], H, W), jnp.float32)
    for t in range(ke * ke):
        dy, dx = divmod(t, ke)
        enc = enc + jnp.einsum("bmhw,mo->bohw",
                               cpad[:, :, dy:dy + H, dx:dx + W], w2[t],
                               precision=hi)
    enc = jnp.maximum(enc, 0.0)
    kp = jax.nn.softmax(enc.reshape(B, kup * kup, rate * H, rate * W), axis=-1)
    rpad = kup // 2
    xpad = jnp.pad(x_nchw, ((0, 0), (0, 0), (rpad, rpad), (rpad, rpad)))
    out = jnp.zeros((B, C, rate * H, rate * W), jnp.float32)
    for k in range(kup * kup):
        ky, kx = divmod(k, kup)
        xs = xpad[:, :, ky:ky + H, kx:kx + W]
        xs_up = jnp.repeat(jnp.repeat(xs, rate, axis=2), rate, axis=3)
        out = out + xs_up * kp[:, k][:, None]
    return out


# ---------------------------------------------------------------------------
if __name__ == "__main__":
    B, C, H, W = 2, 16, 16, 16
    KUP, KE, RATE, CM = 5, 3, 2, 64

    key = jax.random.PRNGKey(0)
    k_param, k_x = jax.random.split(key)
    params = init_carafe_params(k_param, C, channel_cm=CM,
                                kup=KUP, ke=KE, rate=RATE)
    x = jax.random.normal(k_x, (B, C, H, W), dtype=jnp.float32)

    fwd = jax.jit(lambda inp: carafe_forward(inp, params,
                                             kup=KUP, ke=KE, rate=RATE))
    out = jax.block_until_ready(fwd(x))

    assert out.shape == (B, C, RATE * H, RATE * W), out.shape
    assert out.dtype == jnp.float32

    ref = carafe_reference(x, params, kup=KUP, ke=KE, rate=RATE)
    rel_err = float(jnp.max(jnp.abs(out - ref)) /
                    (jnp.max(jnp.abs(ref)) + 1e-6))
    assert rel_err < 3e-2, f"mismatch vs reference: rel_err={rel_err}"

    print("KERNEL_OK")
</pallas_src>

<mosaic_0001>
module attributes {stable_mosaic.version = 11 : i64} {
  func.func @_kp_kernel(%arg0: i32, %arg1: memref<1x342x16xbf16, #tpu.memory_space<vmem>>, %arg2: memref<16x64xbf16, #tpu.memory_space<vmem>>, %arg3: memref<576x128xbf16, #tpu.memory_space<vmem>>, %arg4: memref<1x100x256xf32, #tpu.memory_space<vmem>>, %arg5: memref<342x64xf32, #tpu.memory_space<vmem>>, %arg6: memref<288x576xbf16, #tpu.memory_space<vmem>>, %arg7: memref<16x18x128xf32, #tpu.memory_space<vmem>>) attributes {dimension_semantics = [#tpu.dimension_semantics<parallel>], iteration_bounds = array<i64: 2>, scalar_prefetch = 0 : i64, scratch_operands = 3 : i64, tpu.core_type = #tpu.core_type<tc>, window_params = [{transform_indices = @transform_0, window_bounds = array<i64: 1, 342, 16>}, {pipeline_mode = #tpu.pipeline_mode<synchronous>, transform_indices = @transform_1, window_bounds = array<i64: 16, 64>}, {pipeline_mode = #tpu.pipeline_mode<synchronous>, transform_indices = @transform_2, window_bounds = array<i64: 576, 128>}, {transform_indices = @transform_3, window_bounds = array<i64: 1, 100, 256>}]} {
    %c0 = arith.constant 0 : index
    %c0_0 = arith.constant 0 : index
    %c0_1 = arith.constant 0 : index
    %0 = vector.load %arg1[%c0, %c0_0, %c0_1] : memref<1x342x16xbf16, #tpu.memory_space<vmem>>, vector<1x342x16xbf16>
    %1 = vector.shape_cast %0 : vector<1x342x16xbf16> to vector<342x16xbf16>
    %c0_2 = arith.constant 0 : index
    %c0_3 = arith.constant 0 : index
    %2 = vector.load %arg2[%c0_2, %c0_3] : memref<16x64xbf16, #tpu.memory_space<vmem>>, vector<16x64xbf16>
    %cst = arith.constant dense<0.000000e+00> : vector<342x64xf32>
    %3 = tpu.matmul %1, %2, %cst {dimension_numbers = #tpu.dot_dimension_numbers<[1], [0], [0], [1], [0, 0, 1, 1], [], []>} : vector<342x16xbf16>, vector<16x64xbf16>, vector<342x64xf32> -> vector<342x64xf32>
    %cst_4 = arith.constant 0.000000e+00 : f32
    %4 = vector.broadcast %cst_4 : f32 to vector<342x64xf32>
    %5 = arith.maximumf %3, %4 : vector<342x64xf32>
    %c0_5 = arith.constant 0 : index
    %c0_6 = arith.constant 0 : index
    %6 = vector.load %arg5[%c0_5, %c0_6] : memref<342x64xf32, #tpu.memory_space<vmem>>, vector<342x64xf32>
    tpu.vector_store %arg5[%c0_5, %c0_6], %5 {strides = array<i32>} : memref<342x64xf32, #tpu.memory_space<vmem>>, vector<342x64xf32>,
    %c0_7 = arith.constant 0 : index
    %c0_8 = arith.constant 0 : index
    %7 = vector.load %arg5[%c0_7, %c0_8] : memref<342x64xf32, #tpu.memory_space<vmem>>, vector<288x64xf32>
    %8 = arith.truncf %7 : vector<288x64xf32> to vector<288x64xbf16>
    %c0_9 = arith.constant 0 : index
    %c0_10 = arith.constant 0 : index
    %9 = vector.load %arg6[%c0_9, %c0_10] : memref<288x576xbf16, #tpu.memory_space<vmem>>, vector<288x64xbf16>
    tpu.vector_store %arg6[%c0_9, %c0_10], %8 {strides = array<i32>} : memref<288x576xbf16, #tpu.memory_space<vmem>>, vector<288x64xbf16>,
    %c1 = arith.constant 1 : index
    %c0_11 = arith.constant 0 : index
    %10 = vector.load %arg5[%c1, %c0_11] : memref<342x64xf32, #tpu.memory_space<vmem>>, vector<288x64xf32>
    %11 = arith.truncf %10 : vector<288x64xf32> to vector<288x64xbf16>
    %c0_12 = arith.constant 0 : index
    %c64 = arith.constant 64 : index
    %12 = vector.load %arg6[%c0_12, %c64] : memref<288x576xbf16, #tpu.memory_space<vmem>>, vector<288x64xbf16>
    tpu.vector_store %arg6[%c0_12, %c64], %11 {strides = array<i32>} : memref<288x576xbf16, #tpu.memory_space<vmem>>, vector<288x64xbf16>,
    %c2 = arith.constant 2 : index
    %c0_13 = arith.constant 0 : index
    %13 = vector.load %arg5[%c2, %c0_13] : memref<342x64xf32, #tpu.memory_space<vmem>>, vector<288x64xf32>
    %14 = arith.truncf %13 : vector<288x64xf32> to vector<288x64xbf16>
    %c0_14 = arith.constant 0 : index
    %c128 = arith.constant 128 : index
    %15 = vector.load %arg6[%c0_14, %c128] : memref<288x576xbf16, #tpu.memory_space<vmem>>, vector<288x64xbf16>
    tpu.vector_store %arg6[%c0_14, %c128], %14 {strides = array<i32>} : memref<288x576xbf16, #tpu.memory_space<vmem>>, vector<288x64xbf16>,
    %c18 = arith.constant 18 : index
    %c0_15 = arith.constant 0 : index
    %16 = vector.load %arg5[%c18, %c0_15] : memref<342x64xf32, #tpu.memory_space<vmem>>, vector<288x64xf32>
    %17 = arith.truncf %16 : vector<288x64xf32> to vector<288x64xbf16>
    %c0_16 = arith.constant 0 : index
    %c192 = arith.constant 192 : index
    %18 = vector.load %arg6[%c0_16, %c192] : memref<288x576xbf16, #tpu.memory_space<vmem>>, vector<288x64xbf16>
    tpu.vector_store %arg6[%c0_16, %c192], %17 {strides = array<i32>} : memref<288x576xbf16, #tpu.memory_space<vmem>>, vector<288x64xbf16>,
    %c19 = arith.constant 19 : index
    %c0_17 = arith.constant 0 : index
    %19 = vector.load %arg5[%c19, %c0_17] : memref<342x64xf32, #tpu.memory_space<vmem>>, vector<288x64xf32>
    %20 = arith.truncf %19 : vector<288x64xf32> to vector<288x64xbf16>
    %c0_18 = arith.constant 0 : index
    %c256 = arith.constant 256 : index
    %21 = vector.load %arg6[%c0_18, %c256] : memref<288x576xbf16, #tpu.memory_space<vmem>>, vector<288x64xbf16>
    tpu.vector_store %arg6[%c0_18, %c256], %20 {strides = array<i32>} : memref<288x576xbf16, #tpu.memory_space<vmem>>, vector<288x64xbf16>,
    %c20 = arith.constant 20 : index
    %c0_19 = arith.constant 0 : index
    %22 = vector.load %arg5[%c20, %c0_19] : memref<342x64xf32, #tpu.memory_space<vmem>>, vector<288x64xf32>
    %23 = arith.truncf %22 : vector<288x64xf32> to vector<288x64xbf16>
    %c0_20 = arith.constant 0 : index
    %c320 = arith.constant 320 : index
    %24 = vector.load %arg6[%c0_20, %c320] : memref<288x576xbf16, #tpu.memory_space<vmem>>, vector<288x64xbf16>
    tpu.vector_store %arg6[%c0_20, %c320], %23 {strides = array<i32>} : memref<288x576xbf16, #tpu.memory_space<vmem>>, vector<288x64xbf16>,
    %c36 = arith.constant 36 : index
    %c0_21 = arith.constant 0 : index
    %25 = vector.load %arg5[%c36, %c0_21] : memref<342x64xf32, #tpu.memory_space<vmem>>, vector<288x64xf32>
    %26 = arith.truncf %25 : vector<288x64xf32> to vector<288x64xbf16>
    %c0_22 = arith.constant 0 : index
    %c384 = arith.constant 384 : index
    %27 = vector.load %arg6[%c0_22, %c384] : memref<288x576xbf16, #tpu.memory_space<vmem>>, vector<288x64xbf16>
    tpu.vector_store %arg6[%c0_22, %c384], %26 {strides = array<i32>} : memref<288x576xbf16, #tpu.memory_space<vmem>>, vector<288x64xbf16>,
    %c37 = arith.constant 37 : index
    %c0_23 = arith.constant 0 : index
    %28 = vector.load %arg5[%c37, %c0_23] : memref<342x64xf32, #tpu.memory_space<vmem>>, vector<288x64xf32>
    %29 = arith.truncf %28 : vector<288x64xf32> to vector<288x64xbf16>
    %c0_24 = arith.constant 0 : index
    %c448 = arith.constant 448 : index
    %30 = vector.load %arg6[%c0_24, %c448] : memref<288x576xbf16, #tpu.memory_space<vmem>>, vector<288x64xbf16>
    tpu.vector_store %arg6[%c0_24, %c448], %29 {strides = array<i32>} : memref<288x576xbf16, #tpu.memory_space<vmem>>, vector<288x64xbf16>,
    %c38 = arith.constant 38 : index
    %c0_25 = arith.constant 0 : index
    %31 = vector.load %arg5[%c38, %c0_25] : memref<342x64xf32, #tpu.memory_space<vmem>>, vector<288x64xf32>
    %32 = arith.truncf %31 : vector<288x64xf32> to vector<288x64xbf16>
    %c0_26 = arith.constant 0 : index
    %c512 = arith.constant 512 : index
    %33 = vector.load %arg6[%c0_26, %c512] : memref<288x576xbf16, #tpu.memory_space<vmem>>, vector<288x64xbf16>
    tpu.vector_store %arg6[%c0_26, %c512], %32 {strides = array<i32>} : memref<288x576xbf16, #tpu.memory_space<vmem>>, vector<288x64xbf16>,
    %c0_27 = arith.constant 0 : index
    %c0_28 = arith.constant 0 : index
    %34 = vector.load %arg6[%c0_27, %c0_28] : memref<288x576xbf16, #tpu.memory_space<vmem>>, vector<288x576xbf16>
    %c0_29 = arith.constant 0 : index
    %c0_30 = arith.constant 0 : index
    %35 = vector.load %arg3[%c0_29, %c0_30] : memref<576x128xbf16, #tpu.memory_space<vmem>>, vector<576x128xbf16>
    %cst_31 = arith.constant dense<0.000000e+00> : vector<288x128xf32>
    %36 = tpu.matmul %34, %35, %cst_31 {dimension_numbers = #tpu.dot_dimension_numbers<[1], [0], [0], [1], [0, 0, 1, 1], [], []>} : vector<288x576xbf16>, vector<576x128xbf16>, vector<288x128xf32> -> vector<288x128xf32>
    %cst_32 = arith.constant 0.000000e+00 : f32
    %37 = vector.broadcast %cst_32 : f32 to vector<288x128xf32>
    %38 = arith.maximumf %36, %37 : vector<288x128xf32>
    %39 = vector.shape_cast %38 : vector<288x128xf32> to vector<16x18x128xf32>
    %c0_33 = arith.constant 0 : index
    %c0_34 = arith.constant 0 : index
    %c0_35 = arith.constant 0 : index
    %40 = vector.load %arg7[%c0_33, %c0_34, %c0_35] : memref<16x18x128xf32, #tpu.memory_space<vmem>>, vector<16x18x128xf32>
    tpu.vector_store %arg7[%c0_33, %c0_34, %c0_35], %39 {strides = array<i32>} : memref<16x18x128xf32, #tpu.memory_space<vmem>>, vector<16x18x128xf32>,
    %c0_36 = arith.constant 0 : index
    %c0_37 = arith.constant 0 : index
    %c0_38 = arith.constant 0 : index
    %41 = vector.load %arg7[%c0_36, %c0_37, %c0_38] : memref<16x18x128xf32, #tpu.memory_space<vmem>>, vector<16x16x128xf32>
    %42 = vector.shape_cast %41 : vector<16x16x128xf32> to vector<8x32x128xf32>
    %cst_39 = arith.constant dense<0xFF800000> : vector<8x128xf32>
    %43 = vector.multi_reduction <maximumf>, %42, %cst_39 [1] : vector<8x32x128xf32> to vector<8x128xf32>
    %44 = vector.shape_cast %43 : vector<8x128xf32> to vector<8x1x128xf32>
    %45 = vector.broadcast %44 : vector<8x1x128xf32> to vector<8x32x128xf32>
    %46 = arith.subf %42, %45 : vector<8x32x128xf32>
    %47 = math.exp %46 : vector<8x32x128xf32>
    %cst_40 = arith.constant dense<0.000000e+00> : vector<8x128xf32>
    %48 = vector.multi_reduction <add>, %47, %cst_40 [1] : vector<8x32x128xf32> to vector<8x128xf32>
    %49 = vector.shape_cast %48 : vector<8x128xf32> to vector<8x1x128xf32>
    %50 = tpu.reciprocal %49 {approx = true} : vector<8x1x128xf32> -> vector<8x1x128xf32>
    %51 = vector.broadcast %50 : vector<8x1x128xf32> to vector<8x32x128xf32>
    %52 = arith.mulf %47, %51 : vector<8x32x128xf32>
    %53 = vector.shape_cast %52 : vector<8x32x128xf32> to vector<256x128xf32>
    %54 = tpu.transpose %53, [1, 0] : vector<256x128xf32> -> vector<128x256xf32>
    %55 = vector.extract_strided_slice %54 {offsets = [0, 0], sizes = [100, 256], strides = [1, 1]} : vector<128x256xf32> to vector<100x256xf32>
    %c0_41 = arith.constant 0 : index
    %c0_42 = arith.constant 0 : index
    %c0_43 = arith.constant 0 : index
    %56 = vector.load %arg4[%c0_41, %c0_42, %c0_43] : memref<1x100x256xf32, #tpu.memory_space<vmem>>, vector<1x100x256xf32>
    %57 = vector.shape_cast %56 : vector<1x100x256xf32> to vector<100x256xf32>
    %58 = vector.shape_cast %55 : vector<100x256xf32> to vector<1x100x256xf32>
    tpu.vector_store %arg4[%c0_41, %c0_42, %c0_43], %58 {strides = array<i32>} : memref<1x100x256xf32, #tpu.memory_space<vmem>>, vector<1x100x256xf32>,
    return
  }
  func.func @transform_0(%arg0: i32) -> (i32, i32, i32) {
    %c0_i32 = arith.constant 0 : i32
    %c0_i32_0 = arith.constant 0 : i32
    %c0_i32_1 = arith.constant 0 : i32
    return %arg0, %c0_i32, %c0_i32_0 : i32, i32, i32
  }
  func.func @transform_1(%arg0: i32) -> (i32, i32) {
    %c0_i32 = arith.constant 0 : i32
    %c0_i32_0 = arith.constant 0 : i32
    %c0_i32_1 = arith.constant 0 : i32
    return %c0_i32, %c0_i32_0 : i32, i32
  }
  func.func @transform_2(%arg0: i32) -> (i32, i32) {
    %c0_i32 = arith.constant 0 : i32
    %c0_i32_0 = arith.constant 0 : i32
    %c0_i32_1 = arith.constant 0 : i32
    return %c0_i32, %c0_i32_0 : i32, i32
  }
  func.func @transform_3(%arg0: i32) -> (i32, i32, i32) {
    %c0_i32 = arith.constant 0 : i32
    %c0_i32_0 = arith.constant 0 : i32
    %c0_i32_1 = arith.constant 0 : i32
    return %arg0, %c0_i32, %c0_i32_0 : i32, i32, i32
  }
}

module attributes {stable_mosaic.version = 11 : i64} {
  func.func @_combine_kernel(%arg0: i32, %arg1: i32, %arg2: memref<1x25x8x32xf32, #tpu.memory_space<vmem>>, %arg3: memref<1x16x40x40xf32, #tpu.memory_space<vmem>>, %arg4: memref<1x16x8x32xf32, #tpu.memory_space<vmem>>) attributes {dimension_semantics = [#tpu.dimension_semantics<parallel>, #tpu.dimension_semantics<parallel>], iteration_bounds = array<i64: 2, 4>, scalar_prefetch = 0 : i64, scratch_operands = 0 : i64, tpu.core_type = #tpu.core_type<tc>, window_params = [{transform_indices = @transform_0, window_bounds = array<i64: 1, 25, 8, 32>}, {transform_indices = @transform_1, window_bounds = array<i64: 1, 16, 40, 40>}, {transform_indices = @transform_2, window_bounds = array<i64: 1, 16, 8, 32>}]} {
    %c8_i32 = arith.constant 8 : i32
    %0 = arith.muli %arg1, %c8_i32 : i32
    %1 = tpu.assume_multiple %0, 8 : i32
    %cst = arith.constant 0.000000e+00 : f32
    %2 = vector.broadcast %cst : f32 to vector<16x8x32xf32>
    %c0 = arith.constant 0 : index
    %c0_0 = arith.constant 0 : index
    %c0_1 = arith.constant 0 : index
    %c0_2 = arith.constant 0 : index
    %3 = vector.load %arg2[%c0, %c0_0, %c0_1, %c0_2] : memref<1x25x8x32xf32, #tpu.memory_space<vmem>>, vector<1x1x8x32xf32>
    %4 = vector.shape_cast %3 : vector<1x1x8x32xf32> to vector<8x32xf32>
    %c0_i32 = arith.constant 0 : i32
    %5 = arith.addi %1, %c0_i32 : i32
    %c0_3 = arith.constant 0 : index
    %c0_4 = arith.constant 0 : index
    %6 = arith.index_cast %5 : i32 to index
    %c0_5 = arith.constant 0 : index
    %7 = vector.load %arg3[%c0_3, %c0_4, %6, %c0_5] : memref<1x16x40x40xf32, #tpu.memory_space<vmem>>, vector<1x16x8x32xf32>
    %8 = vector.shape_cast %7 : vector<1x16x8x32xf32> to vector<16x8x32xf32>
    %9 = vector.shape_cast %4 : vector<8x32xf32> to vector<1x8x32xf32>
    %10 = vector.broadcast %9 : vector<1x8x32xf32> to vector<16x8x32xf32>
    %11 = arith.mulf %10, %8 : vector<16x8x32xf32>
    %12 = arith.addf %2, %11 : vector<16x8x32xf32>
    %c0_6 = arith.constant 0 : index
    %c1 = arith.constant 1 : index
    %c0_7 = arith.constant 0 : index
    %c0_8 = arith.constant 0 : index
    %13 = vector.load %arg2[%c0_6, %c1, %c0_7, %c0_8] : memref<1x25x8x32xf32, #tpu.memory_space<vmem>>, vector<1x1x8x32xf32>
    %14 = vector.shape_cast %13 : vector<1x1x8x32xf32> to vector<8x32xf32>
    %c0_i32_9 = arith.constant 0 : i32
    %15 = arith.addi %1, %c0_i32_9 : i32
    %c0_10 = arith.constant 0 : index
    %c0_11 = arith.constant 0 : index
    %16 = arith.index_cast %15 : i32 to index
    %c2 = arith.constant 2 : index
    %17 = vector.load %arg3[%c0_10, %c0_11, %16, %c2] : memref<1x16x40x40xf32, #tpu.memory_space<vmem>>, vector<1x16x8x32xf32>
    %18 = vector.shape_cast %17 : vector<1x16x8x32xf32> to vector<16x8x32xf32>
    %19 = vector.shape_cast %14 : vector<8x32xf32> to vector<1x8x32xf32>
    %20 = vector.broadcast %19 : vector<1x8x32xf32> to vector<16x8x32xf32>
    %21 = arith.mulf %20, %18 : vector<16x8x32xf32>
    %22 = arith.addf %12, %21 : vector<16x8x32xf32>
    %c0_12 = arith.constant 0 : index
    %c2_13 = arith.constant 2 : index
    %c0_14 = arith.constant 0 : index
    %c0_15 = arith.constant 0 : index
    %23 = vector.load %arg2[%c0_12, %c2_13, %c0_14, %c0_15] : memref<1x25x8x32xf32, #tpu.memory_space<vmem>>, vector<1x1x8x32xf32>
    %24 = vector.shape_cast %23 : vector<1x1x8x32xf32> to vector<8x32xf32>
    %c0_i32_16 = arith.constant 0 : i32
    %25 = arith.addi %1, %c0_i32_16 : i32
    %c0_17 = arith.constant 0 : index
    %c0_18 = arith.constant 0 : index
    %26 = arith.index_cast %25 : i32 to index
    %c4 = arith.constant 4 : index
    %27 = vector.load %arg3[%c0_17, %c0_18, %26, %c4] : memref<1x16x40x40xf32, #tpu.memory_space<vmem>>, vector<1x16x8x32xf32>
    %28 = vector.shape_cast %27 : vector<1x16x8x32xf32> to vector<16x8x32xf32>
    %29 = vector.shape_cast %24 : vector<8x32xf32> to vector<1x8x32xf32>
    %30 = vector.broadcast %29 : vector<1x8x32xf32> to vector<16x8x32xf32>
    %31 = arith.mulf %30, %28 : vector<16x8x32xf32>
    %32 = arith.addf %22, %31 : vector<16x8x32xf32>
    %c0_19 = arith.constant 0 : index
    %c3 = arith.constant 3 : index
    %c0_20 = arith.constant 0 : index
    %c0_21 = arith.constant 0 : index
    %33 = vector.load %arg2[%c0_19, %c3, %c0_20, %c0_21] : memref<1x25x8x32xf32, #tpu.memory_space<vmem>>, vector<1x1x8x32xf32>
    %34 = vector.shape_cast %33 : vector<1x1x8x32xf32> to vector<8x32xf32>
    %c0_i32_22 = arith.constant 0 : i32
    %35 = arith.addi %1, %c0_i32_22 : i32
    %c0_23 = arith.constant 0 : index
    %c0_24 = arith.constant 0 : index
    %36 = arith.index_cast %35 : i32 to index
    %c6 = arith.constant 6 : index
    %37 = vector.load %arg3[%c0_23, %c0_24, %36, %c6] : memref<1x16x40x40xf32, #tpu.memory_space<vmem>>, vector<1x16x8x32xf32>
    %38 = vector.shape_cast %37 : vector<1x16x8x32xf32> to vector<16x8x32xf32>
    %39 = vector.shape_cast %34 : vector<8x32xf32> to vector<1x8x32xf32>
    %40 = vector.broadcast %39 : vector<1x8x32xf32> to vector<16x8x32xf32>
    %41 = arith.mulf %40, %38 : vector<16x8x32xf32>
    %42 = arith.addf %32, %41 : vector<16x8x32xf32>
    %c0_25 = arith.constant 0 : index
    %c4_26 = arith.constant 4 : index
    %c0_27 = arith.constant 0 : index
    %c0_28 = arith.constant 0 : index
    %43 = vector.load %arg2[%c0_25, %c4_26, %c0_27, %c0_28] : memref<1x25x8x32xf32, #tpu.memory_space<vmem>>, vector<1x1x8x32xf32>
    %44 = vector.shape_cast %43 : vector<1x1x8x32xf32> to vector<8x32xf32>
    %c0_i32_29 = arith.constant 0 : i32
    %45 = arith.addi %1, %c0_i32_29 : i32
    %c0_30 = arith.constant 0 : index
    %c0_31 = arith.constant 0 : index
    %46 = arith.index_cast %45 : i32 to index
    %c8 = arith.constant 8 : index
    %47 = vector.load %arg3[%c0_30, %c0_31, %46, %c8] : memref<1x16x40x40xf32, #tpu.memory_space<vmem>>, vector<1x16x8x32xf32>
    %48 = vector.shape_cast %47 : vector<1x16x8x32xf32> to vector<16x8x32xf32>
    %49 = vector.shape_cast %44 : vector<8x32xf32> to vector<1x8x32xf32>
    %50 = vector.broadcast %49 : vector<1x8x32xf32> to vector<16x8x32xf32>
    %51 = arith.mulf %50, %48 : vector<16x8x32xf32>
    %52 = arith.addf %42, %51 : vector<16x8x32xf32>
    %c0_32 = arith.constant 0 : index
    %c5 = arith.constant 5 : index
    %c0_33 = arith.constant 0 : index
    %c0_34 = arith.constant 0 : index
    %53 = vector.load %arg2[%c0_32, %c5, %c0_33, %c0_34] : memref<1x25x8x32xf32, #tpu.memory_space<vmem>>, vector<1x1x8x32xf32>
    %54 = vector.shape_cast %53 : vector<1x1x8x32xf32> to vector<8x32xf32>
    %c2_i32 = arith.constant 2 : i32
    %55 = arith.addi %1, %c2_i32 : i32
    %c0_35 = arith.constant 0 : index
    %c0_36 = arith.constant 0 : index
    %56 = arith.index_cast %55 : i32 to index
    %c0_37 = arith.constant 0 : index
    %57 = vector.load %arg3[%c0_35, %c0_36, %56, %c0_37] : memref<1x16x40x40xf32, #tpu.memory_space<vmem>>, vector<1x16x8x32xf32>
    %58 = vector.shape_cast %57 : vector<1x16x8x32xf32> to vector<16x8x32xf32>
    %59 = vector.shape_cast %54 : vector<8x32xf32> to vector<1x8x32xf32>
    %60 = vector.broadcast %59 : vector<1x8x32xf32> to vector<16x8x32xf32>
    %61 = arith.mulf %60, %58 : vector<16x8x32xf32>
    %62 = arith.addf %52, %61 : vector<16x8x32xf32>
    %c0_38 = arith.constant 0 : index
    %c6_39 = arith.constant 6 : index
    %c0_40 = arith.constant 0 : index
    %c0_41 = arith.constant 0 : index
    %63 = vector.load %arg2[%c0_38, %c6_39, %c0_40, %c0_41] : memref<1x25x8x32xf32, #tpu.memory_space<vmem>>, vector<1x1x8x32xf32>
    %64 = vector.shape_cast %63 : vector<1x1x8x32xf32> to vector<8x32xf32>
    %c2_i32_42 = arith.constant 2 : i32
    %65 = arith.addi %1, %c2_i32_42 : i32
    %c0_43 = arith.constant 0 : index
    %c0_44 = arith.constant 0 : index
    %66 = arith.index_cast %65 : i32 to index
    %c2_45 = arith.constant 2 : index
    %67 = vector.load %arg3[%c0_43, %c0_44, %66, %c2_45] : memref<1x16x40x40xf32, #tpu.memory_space<vmem>>, vector<1x16x8x32xf32>
    %68 = vector.shape_cast %67 : vector<1x16x8x32xf32> to vector<16x8x32xf32>
    %69 = vector.shape_cast %64 : vector<8x32xf32> to vector<1x8x32xf32>
    %70 = vector.broadcast %69 : vector<1x8x32xf32> to vector<16x8x32xf32>
    %71 = arith.mulf %70, %68 : vector<16x8x32xf32>
    %72 = arith.addf %62, %71 : vector<16x8x32xf32>
    %c0_46 = arith.constant 0 : index
    %c7 = arith.constant 7 : index
    %c0_47 = arith.constant 0 : index
    %c0_48 = arith.constant 0 : index
    %73 = vector.load %arg2[%c0_46, %c7, %c0_47, %c0_48] : memref<1x25x8x32xf32, #tpu.memory_space<vmem>>, vector<1x1x8x32xf32>
    %74 = vector.shape_cast %73 : vector<1x1x8x32xf32> to vector<8x32xf32>
    %c2_i32_49 = arith.constant 2 : i32
    %75 = arith.addi %1, %c2_i32_49 : i32
    %c0_50 = arith.constant 0 : index
    %c0_51 = arith.constant 0 : index
    %76 = arith.index_cast %75 : i32 to index
    %c4_52 = arith.constant 4 : index
    %77 = vector.load %arg3[%c0_50, %c0_51, %76, %c4_52] : memref<1x16x40x40xf32, #tpu.memory_space<vmem>>, vector<1x16x8x32xf32>
    %78 = vector.shape_cast %77 : vector<1x16x8x32xf32> to vector<16x8x32xf32>
    %79 = vector.shape_cast %74 : vector<8x32xf32> to vector<1x8x32xf32>
    %80 = vector.broadcast %79 : vector<1x8x32xf32> to vector<16x8x32xf32>
    %81 = arith.mulf %80, %78 : vector<16x8x32xf32>
    %82 = arith.addf %72, %81 : vector<16x8x32xf32>
    %c0_53 = arith.constant 0 : index
    %c8_54 = arith.constant 8 : index
    %c0_55 = arith.constant 0 : index
    %c0_56 = arith.constant 0 : index
    %83 = vector.load %arg2[%c0_53, %c8_54, %c0_55, %c0_56] : memref<1x25x8x32xf32, #tpu.memory_space<vmem>>, vector<1x1x8x32xf32>
    %84 = vector.shape_cast %83 : vector<1x1x8x32xf32> to vector<8x32xf32>
    %c2_i32_57 = arith.constant 2 : i32
    %85 = arith.addi %1, %c2_i32_57 : i32
    %c0_58 = arith.constant 0 : index
    %c0_59 = arith.constant 0 : index
    %86 = arith.index_cast %85 : i32 to index
    %c6_60 = arith.constant 6 : index
    %87 = vector.load %arg3[%c0_58, %c0_59, %86, %c6_60] : memref<1x16x40x40xf32, #tpu.memory_space<vmem>>, vector<1x16x8x32xf32>
    %88 = vector.shape_cast %87 : vector<1x16x8x32xf32> to vector<16x8x32xf32>
    %89 = vector.shape_cast %84 : vector<8x32xf32> to vector<1x8x32xf32>
    %90 = vector.broadcast %89 : vector<1x8x32xf32> to vector<16x8x32xf32>
    %91 = arith.mulf %90, %88 : vector<16x8x32xf32>
    %92 = arith.addf %82, %91 : vector<16x8x32xf32>
    %c0_61 = arith.constant 0 : index
    %c9 = arith.constant 9 : index
    %c0_62 = arith.constant 0 : index
    %c0_63 = arith.constant 0 : index
    %93 = vector.load %arg2[%c0_61, %c9, %c0_62, %c0_63] : memref<1x25x8x32xf32, #tpu.memory_space<vmem>>, vector<1x1x8x32xf32>
    %94 = vector.shape_cast %93 : vector<1x1x8x32xf32> to vector<8x32xf32>
    %c2_i32_64 = arith.constant 2 : i32
    %95 = arith.addi %1, %c2_i32_64 : i32
    %c0_65 = arith.constant 0 : index
    %c0_66 = arith.constant 0 : index
    %96 = arith.index_cast %95 : i32 to index
    %c8_67 = arith.constant 8 : index
    %97 = vector.load %arg3[%c0_65, %c0_66, %96, %c8_67] : memref<1x16x40x40xf32, #tpu.memory_space<vmem>>, vector<1x16x8x32xf32>
    %98 = vector.shape_cast %97 : vector<1x16x8x32xf32> to vector<16x8x32xf32>
    %99 = vector.shape_cast %94 : vector<8x32xf32> to vector<1x8x32xf32>
    %100 = vector.broadcast %99 : vector<1x8x32xf32> to vector<16x8x32xf32>
    %101 = arith.mulf %100, %98 : vector<16x8x32xf32>
    %102 = arith.addf %92, %101 : vector<16x8x32xf32>
    %c0_68 = arith.constant 0 : index
    %c10 = arith.constant 10 : index
    %c0_69 = arith.constant 0 : index
    %c0_70 = arith.constant 0 : index
    %103 = vector.load %arg2[%c0_68, %c10, %c0_69, %c0_70] : memref<1x25x8x32xf32, #tpu.memory_space<vmem>>, vector<1x1x8x32xf32>
    %104 = vector.shape_cast %103 : vector<1x1x8x32xf32> to vector<8x32xf32>
    %c4_i32 = arith.constant 4 : i32
    %105 = arith.addi %1, %c4_i32 : i32
    %c0_71 = arith.constant 0 : index
    %c0_72 = arith.constant 0 : index
    %106 = arith.index_cast %105 : i32 to index
    %c0_73 = arith.constant 0 : index
    %107 = vector.load %arg3[%c0_71, %c0_72, %106, %c0_73] : memref<1x16x40x40xf32, #tpu.memory_space<vmem>>, vector<1x16x8x32xf32>
    %108 = vector.shape_cast %107 : vector<1x16x8x32xf32> to vector<16x8x32xf32>
    %109 = vector.shape_cast %104 : vector<8x32xf32> to vector<1x8x32xf32>
    %110 = vector.broadcast %109 : vector<1x8x32xf32> to vector<16x8x32xf32>
    %111 = arith.mulf %110, %108 : vector<16x8x32xf32>
    %112 = arith.addf %102, %111 : vector<16x8x32xf32>
    %c0_74 = arith.constant 0 : index
    %c11 = arith.constant 11 : index
    %c0_75 = arith.constant 0 : index
    %c0_76 = arith.constant 0 : index
    %113 = vector.load %arg2[%c0_74, %c11, %c0_75, %c0_76] : memref<1x25x8x32xf32, #tpu.memory_space<vmem>>, vector<1x1x8x32xf32>
    %114 = vector.shape_cast %113 : vector<1x1x8x32xf32> to vector<8x32xf32>
    %c4_i32_77 = arith.constant 4 : i32
    %115 = arith.addi %1, %c4_i32_77 : i32
    %c0_78 = arith.constant 0 : index
    %c0_79 = arith.constant 0 : index
    %116 = arith.index_cast %115 : i32 to index
    %c2_80 = arith.constant 2 : index
    %117 = vector.load %arg3[%c0_78, %c0_79, %116, %c2_80] : memref<1x16x40x40xf32, #tpu.memory_space<vmem>>, vector<1x16x8x32xf32>
    %118 = vector.shape_cast %117 : vector<1x16x8x32xf32> to vector<16x8x32xf32>
    %119 = vector.shape_cast %114 : vector<8x32xf32> to vector<1x8x32xf32>
    %120 = vector.broadcast %119 : vector<1x8x32xf32> to vector<16x8x32xf32>
    %121 = arith.mulf %120, %118 : vector<16x8x32xf32>
    %122 = arith.addf %112, %121 : vector<16x8x32xf32>
    %c0_81 = arith.constant 0 : index
    %c12 = arith.constant 12 : index
    %c0_82 = arith.constant 0 : index
    %c0_83 = arith.constant 0 : index
    %123 = vector.load %arg2[%c0_81, %c12, %c0_82, %c0_83] : memref<1x25x8x32xf32, #tpu.memory_space<vmem>>, vector<1x1x8x32xf32>
    %124 = vector.shape_cast %123 : vector<1x1x8x32xf32> to vector<8x32xf32>
    %c4_i32_84 = arith.constant 4 : i32
    %125 = arith.addi %1, %c4_i32_84 : i32
    %c0_85 = arith.constant 0 : index
    %c0_86 = arith.constant 0 : index
    %126 = arith.index_cast %125 : i32 to index
    %c4_87 = arith.constant 4 : index
    %127 = vector.load %arg3[%c0_85, %c0_86, %126, %c4_87] : memref<1x16x40x40xf32, #tpu.memory_space<vmem>>, vector<1x16x8x32xf32>
    %128 = vector.shape_cast %127 : vector<1x16x8x32xf32> to vector<16x8x32xf32>
    %129 = vector.shape_cast %124 : vector<8x32xf32> to vector<1x8x32xf32>
    %130 = vector.broadcast %129 : vector<1x8x32xf32> to vector<16x8x32xf32>
    %131 = arith.mulf %130, %128 : vector<16x8x32xf32>
    %132 = arith.addf %122, %131 : vector<16x8x32xf32>
    %c0_88 = arith.constant 0 : index
    %c13 = arith.constant 13 : index
    %c0_89 = arith.constant 0 : index
    %c0_90 = arith.constant 0 : index
    %133 = vector.load %arg2[%c0_88, %c13, %c0_89, %c0_90] : memref<1x25x8x32xf32, #tpu.memory_space<vmem>>, vector<1x1x8x32xf32>
    %134 = vector.shape_cast %133 : vector<1x1x8x32xf32> to vector<8x32xf32>
    %c4_i32_91 = arith.constant 4 : i32
    %135 = arith.addi %1, %c4_i32_91 : i32
    %c0_92 = arith.constant 0 : index
    %c0_93 = arith.constant 0 : index
    %136 = arith.index_cast %135 : i32 to index
    %c6_94 = arith.constant 6 : index
    %137 = vector.load %arg3[%c0_92, %c0_93, %136, %c6_94] : memref<1x16x40x40xf32, #tpu.memory_space<vmem>>, vector<1x16x8x32xf32>
    %138 = vector.shape_cast %137 : vector<1x16x8x32xf32> to vector<16x8x32xf32>
    %139 = vector.shape_cast %134 : vector<8x32xf32> to vector<1x8x32xf32>
    %140 = vector.broadcast %139 : vector<1x8x32xf32> to vector<16x8x32xf32>
    %141 = arith.mulf %140, %138 : vector<16x8x32xf32>
    %142 = arith.addf %132, %141 : vector<16x8x32xf32>
    %c0_95 = arith.constant 0 : index
    %c14 = arith.constant 14 : index
    %c0_96 = arith.constant 0 : index
    %c0_97 = arith.constant 0 : index
    %143 = vector.load %arg2[%c0_95, %c14, %c0_96, %c0_97] : memref<1x25x8x32xf32, #tpu.memory_space<vmem>>, vector<1x1x8x32xf32>
    %144 = vector.shape_cast %143 : vector<1x1x8x32xf32> to vector<8x32xf32>
    %c4_i32_98 = arith.constant 4 : i32
    %145 = arith.addi %1, %c4_i32_98 : i32
    %c0_99 = arith.constant 0 : index
    %c0_100 = arith.constant 0 : index
    %146 = arith.index_cast %145 : i32 to index
    %c8_101 = arith.constant 8 : index
    %147 = vector.load %arg3[%c0_99, %c0_100, %146, %c8_101] : memref<1x16x40x40xf32, #tpu.memory_space<vmem>>, vector<1x16x8x32xf32>
    %148 = vector.shape_cast %147 : vector<1x16x8x32xf32> to vector<16x8x32xf32>
    %149 = vector.shape_cast %144 : vector<8x32xf32> to vector<1x8x32xf32>
    %150 = vector.broadcast %149 : vector<1x8x32xf32> to vector<16x8x32xf32>
    %151 = arith.mulf %150, %148 : vector<16x8x32xf32>
    %152 = arith.addf %142, %151 : vector<16x8x32xf32>
    %c0_102 = arith.constant 0 : index
    %c15 = arith.constant 15 : index
    %c0_103 = arith.constant 0 : index
    %c0_104 = arith.constant 0 : index
    %153 = vector.load %arg2[%c0_102, %c15, %c0_103, %c0_104] : memref<1x25x8x32xf32, #tpu.memory_space<vmem>>, vector<1x1x8x32xf32>
    %154 = vector.shape_cast %153 : vector<1x1x8x32xf32> to vector<8x32xf32>
    %c6_i32 = arith.constant 6 : i32
    %155 = arith.addi %1, %c6_i32 : i32
    %c0_105 = arith.constant 0 : index
    %c0_106 = arith.constant 0 : index
    %156 = arith.index_cast %155 : i32 to index
    %c0_107 = arith.constant 0 : index
    %157 = vector.load %arg3[%c0_105, %c0_106, %156, %c0_107] : memref<1x16x40x40xf32, #tpu.memory_space<vmem>>, vector<1x16x8x32xf32>
    %158 = vector.shape_cast %157 : vector<1x16x8x32xf32> to vector<16x8x32xf32>
    %159 = vector.shape_cast %154 : vector<8x32xf32> to vector<1x8x32xf32>
    %160 = vector.broadcast %159 : vector<1x8x32xf32> to vector<16x8x32xf32>
    %161 = arith.mulf %160, %158 : vector<16x8x32xf32>
    %162 = arith.addf %152, %161 : vector<16x8x32xf32>
    %c0_108 = arith.constant 0 : index
    %c16 = arith.constant 16 : index
    %c0_109 = arith.constant 0 : index
    %c0_110 = arith.constant 0 : index
    %163 = vector.load %arg2[%c0_108, %c16, %c0_109, %c0_110] : memref<1x25x8x32xf32, #tpu.memory_space<vmem>>, vector<1x1x8x32xf32>
    %164 = vector.shape_cast %163 : vector<1x1x8x32xf32> to vector<8x32xf32>
    %c6_i32_111 = arith.constant 6 : i32
    %165 = arith.addi %1, %c6_i32_111 : i32
    %c0_112 = arith.constant 0 : index
    %c0_113 = arith.constant 0 : index
    %166 = arith.index_cast %165 : i32 to index
    %c2_114 = arith.constant 2 : index
    %167 = vector.load %arg3[%c0_112, %c0_113, %166, %c2_114] : memref<1x16x40x40xf32, #tpu.memory_space<vmem>>, vector<1x16x8x32xf32>
    %168 = vector.shape_cast %167 : vector<1x16x8x32xf32> to vector<16x8x32xf32>
    %169 = vector.shape_cast %164 : vector<8x32xf32> to vector<1x8x32xf32>
    %170 = vector.broadcast %169 : vector<1x8x32xf32> to vector<16x8x32xf32>
    %171 = arith.mulf %170, %168 : vector<16x8x32xf32>
    %172 = arith.addf %162, %171 : vector<16x8x32xf32>
    %c0_115 = arith.constant 0 : index
    %c17 = arith.constant 17 : index
    %c0_116 = arith.constant 0 : index
    %c0_117 = arith.constant 0 : index
    %173 = vector.load %arg2[%c0_115, %c17, %c0_116, %c0_117] : memref<1x25x8x32xf32, #tpu.memory_space<vmem>>, vector<1x1x8x32xf32>
    %174 = vector.shape_cast %173 : vector<1x1x8x32xf32> to vector<8x32xf32>
    %c6_i32_118 = arith.constant 6 : i32
    %175 = arith.addi %1, %c6_i32_118 : i32
    %c0_119 = arith.constant 0 : index
    %c0_120 = arith.constant 0 : index
    %176 = arith.index_cast %175 : i32 to index
    %c4_121 = arith.constant 4 : index
    %177 = vector.load %arg3[%c0_119, %c0_120, %176, %c4_121] : memref<1x16x40x40xf32, #tpu.memory_space<vmem>>, vector<1x16x8x32xf32>
    %178 = vector.shape_cast %177 : vector<1x16x8x32xf32> to vector<16x8x32xf32>
    %179 = vector.shape_cast %174 : vector<8x32xf32> to vector<1x8x32xf32>
    %180 = vector.broadcast %179 : vector<1x8x32xf32> to vector<16x8x32xf32>
    %181 = arith.mulf %180, %178 : vector<16x8x32xf32>
    %182 = arith.addf %172, %181 : vector<16x8x32xf32>
    %c0_122 = arith.constant 0 : index
    %c18 = arith.constant 18 : index
    %c0_123 = arith.constant 0 : index
    %c0_124 = arith.constant 0 : index
    %183 = vector.load %arg2[%c0_122, %c18, %c0_123, %c0_124] : memref<1x25x8x32xf32, #tpu.memory_space<vmem>>, vector<1x1x8x32xf32>
    %184 = vector.shape_cast %183 : vector<1x1x8x32xf32> to vector<8x32xf32>
    %c6_i32_125 = arith.constant 6 : i32
    %185 = arith.addi %1, %c6_i32_125 : i32
    %c0_126 = arith.constant 0 : index
    %c0_127 = arith.constant 0 : index
    %186 = arith.index_cast %185 : i32 to index
    %c6_128 = arith.constant 6 : index
    %187 = vector.load %arg3[%c0_126, %c0_127, %186, %c6_128] : memref<1x16x40x40xf32, #tpu.memory_space<vmem>>, vector<1x16x8x32xf32>
    %188 = vector.shape_cast %187 : vector<1x16x8x32xf32> to vector<16x8x32xf32>
    %189 = vector.shape_cast %184 : vector<8x32xf32> to vector<1x8x32xf32>
    %190 = vector.broadcast %189 : vector<1x8x32xf32> to vector<16x8x32xf32>
    %191 = arith.mulf %190, %188 : vector<16x8x32xf32>
    %192 = arith.addf %182, %191 : vector<16x8x32xf32>
    %c0_129 = arith.constant 0 : index
    %c19 = arith.constant 19 : index
    %c0_130 = arith.constant 0 : index
    %c0_131 = arith.constant 0 : index
    %193 = vector.load %arg2[%c0_129, %c19, %c0_130, %c0_131] : memref<1x25x8x32xf32, #tpu.memory_space<vmem>>, vector<1x1x8x32xf32>
    %194 = vector.shape_cast %193 : vector<1x1x8x32xf32> to vector<8x32xf32>
    %c6_i32_132 = arith.constant 6 : i32
    %195 = arith.addi %1, %c6_i32_132 : i32
    %c0_133 = arith.constant 0 : index
    %c0_134 = arith.constant 0 : index
    %196 = arith.index_cast %195 : i32 to index
    %c8_135 = arith.constant 8 : index
    %197 = vector.load %arg3[%c0_133, %c0_134, %196, %c8_135] : memref<1x16x40x40xf32, #tpu.memory_space<vmem>>, vector<1x16x8x32xf32>
    %198 = vector.shape_cast %197 : vector<1x16x8x32xf32> to vector<16x8x32xf32>
    %199 = vector.shape_cast %194 : vector<8x32xf32> to vector<1x8x32xf32>
    %200 = vector.broadcast %199 : vector<1x8x32xf32> to vector<16x8x32xf32>
    %201 = arith.mulf %200, %198 : vector<16x8x32xf32>
    %202 = arith.addf %192, %201 : vector<16x8x32xf32>
    %c0_136 = arith.constant 0 : index
    %c20 = arith.constant 20 : index
    %c0_137 = arith.constant 0 : index
    %c0_138 = arith.constant 0 : index
    %203 = vector.load %arg2[%c0_136, %c20, %c0_137, %c0_138] : memref<1x25x8x32xf32, #tpu.memory_space<vmem>>, vector<1x1x8x32xf32>
    %204 = vector.shape_cast %203 : vector<1x1x8x32xf32> to vector<8x32xf32>
    %c8_i32_139 = arith.constant 8 : i32
    %205 = arith.addi %1, %c8_i32_139 : i32
    %c0_140 = arith.constant 0 : index
    %c0_141 = arith.constant 0 : index
    %206 = arith.index_cast %205 : i32 to index
    %c0_142 = arith.constant 0 : index
    %207 = vector.load %arg3[%c0_140, %c0_141, %206, %c0_142] : memref<1x16x40x40xf32, #tpu.memory_space<vmem>>, vector<1x16x8x32xf32>
    %208 = vector.shape_cast %207 : vector<1x16x8x32xf32> to vector<16x8x32xf32>
    %209 = vector.shape_cast %204 : vector<8x32xf32> to vector<1x8x32xf32>
    %210 = vector.broadcast %209 : vector<1x8x32xf32> to vector<16x8x32xf32>
    %211 = arith.mulf %210, %208 : vector<16x8x32xf32>
    %212 = arith.addf %202, %211 : vector<16x8x32xf32>
    %c0_143 = arith.constant 0 : index
    %c21 = arith.constant 21 : index
    %c0_144 = arith.constant 0 : index
    %c0_145 = arith.constant 0 : index
    %213 = vector.load %arg2[%c0_143, %c21, %c0_144, %c0_145] : memref<1x25x8x32xf32, #tpu.memory_space<vmem>>, vector<1x1x8x32xf32>
    %214 = vector.shape_cast %213 : vector<1x1x8x32xf32> to vector<8x32xf32>
    %c8_i32_146 = arith.constant 8 : i32
    %215 = arith.addi %1, %c8_i32_146 : i32
    %c0_147 = arith.constant 0 : index
    %c0_148 = arith.constant 0 : index
    %216 = arith.index_cast %215 : i32 to index
    %c2_149 = arith.constant 2 : index
    %217 = vector.load %arg3[%c0_147, %c0_148, %216, %c2_149] : memref<1x16x40x40xf32, #tpu.memory_space<vmem>>, vector<1x16x8x32xf32>
    %218 = vector.shape_cast %217 : vector<1x16x8x32xf32> to vector<16x8x32xf32>
    %219 = vector.shape_cast %214 : vector<8x32xf32> to vector<1x8x32xf32>
    %220 = vector.broadcast %219 : vector<1x8x32xf32> to vector<16x8x32xf32>
    %221 = arith.mulf %220, %218 : vector<16x8x32xf32>
    %222 = arith.addf %212, %221 : vector<16x8x32xf32>
    %c0_150 = arith.constant 0 : index
    %c22 = arith.constant 22 : index
    %c0_151 = arith.constant 0 : index
    %c0_152 = arith.constant 0 : index
    %223 = vector.load %arg2[%c0_150, %c22, %c0_151, %c0_152] : memref<1x25x8x32xf32, #tpu.memory_space<vmem>>, vector<1x1x8x32xf32>
    %224 = vector.shape_cast %223 : vector<1x1x8x32xf32> to vector<8x32xf32>
    %c8_i32_153 = arith.constant 8 : i32
    %225 = arith.addi %1, %c8_i32_153 : i32
    %c0_154 = arith.constant 0 : index
    %c0_155 = arith.constant 0 : index
    %226 = arith.index_cast %225 : i32 to index
    %c4_156 = arith.constant 4 : index
    %227 = vector.load %arg3[%c0_154, %c0_155, %226, %c4_156] : memref<1x16x40x40xf32, #tpu.memory_space<vmem>>, vector<1x16x8x32xf32>
    %228 = vector.shape_cast %227 : vector<1x16x8x32xf32> to vector<16x8x32xf32>
    %229 = vector.shape_cast %224 : vector<8x32xf32> to vector<1x8x32xf32>
    %230 = vector.broadcast %229 : vector<1x8x32xf32> to vector<16x8x32xf32>
    %231 = arith.mulf %230, %228 : vector<16x8x32xf32>
    %232 = arith.addf %222, %231 : vector<16x8x32xf32>
    %c0_157 = arith.constant 0 : index
    %c23 = arith.constant 23 : index
    %c0_158 = arith.constant 0 : index
    %c0_159 = arith.constant 0 : index
    %233 = vector.load %arg2[%c0_157, %c23, %c0_158, %c0_159] : memref<1x25x8x32xf32, #tpu.memory_space<vmem>>, vector<1x1x8x32xf32>
    %234 = vector.shape_cast %233 : vector<1x1x8x32xf32> to vector<8x32xf32>
    %c8_i32_160 = arith.constant 8 : i32
    %235 = arith.addi %1, %c8_i32_160 : i32
    %c0_161 = arith.constant 0 : index
    %c0_162 = arith.constant 0 : index
    %236 = arith.index_cast %235 : i32 to index
    %c6_163 = arith.constant 6 : index
    %237 = vector.load %arg3[%c0_161, %c0_162, %236, %c6_163] : memref<1x16x40x40xf32, #tpu.memory_space<vmem>>, vector<1x16x8x32xf32>
    %238 = vector.shape_cast %237 : vector<1x16x8x32xf32> to vector<16x8x32xf32>
    %239 = vector.shape_cast %234 : vector<8x32xf32> to vector<1x8x32xf32>
    %240 = vector.broadcast %239 : vector<1x8x32xf32> to vector<16x8x32xf32>
    %241 = arith.mulf %240, %238 : vector<16x8x32xf32>
    %242 = arith.addf %232, %241 : vector<16x8x32xf32>
    %c0_164 = arith.constant 0 : index
    %c24 = arith.constant 24 : index
    %c0_165 = arith.constant 0 : index
    %c0_166 = arith.constant 0 : index
    %243 = vector.load %arg2[%c0_164, %c24, %c0_165, %c0_166] : memref<1x25x8x32xf32, #tpu.memory_space<vmem>>, vector<1x1x8x32xf32>
    %244 = vector.shape_cast %243 : vector<1x1x8x32xf32> to vector<8x32xf32>
    %c8_i32_167 = arith.constant 8 : i32
    %245 = arith.addi %1, %c8_i32_167 : i32
    %c0_168 = arith.constant 0 : index
    %c0_169 = arith.constant 0 : index
    %246 = arith.index_cast %245 : i32 to index
    %c8_170 = arith.constant 8 : index
    %247 = vector.load %arg3[%c0_168, %c0_169, %246, %c8_170] : memref<1x16x40x40xf32, #tpu.memory_space<vmem>>, vector<1x16x8x32xf32>
    %248 = vector.shape_cast %247 : vector<1x16x8x32xf32> to vector<16x8x32xf32>
    %249 = vector.shape_cast %244 : vector<8x32xf32> to vector<1x8x32xf32>
    %250 = vector.broadcast %249 : vector<1x8x32xf32> to vector<16x8x32xf32>
    %251 = arith.mulf %250, %248 : vector<16x8x32xf32>
    %252 = arith.addf %242, %251 : vector<16x8x32xf32>
    %c0_171 = arith.constant 0 : index
    %c0_172 = arith.constant 0 : index
    %c0_173 = arith.constant 0 : index
    %c0_174 = arith.constant 0 : index
    %253 = vector.load %arg4[%c0_171, %c0_172, %c0_173, %c0_174] : memref<1x16x8x32xf32, #tpu.memory_space<vmem>>, vector<1x16x8x32xf32>
    %254 = vector.shape_cast %253 : vector<1x16x8x32xf32> to vector<16x8x32xf32>
    %255 = vector.shape_cast %252 : vector<16x8x32xf32> to vector<1x16x8x32xf32>
    tpu.vector_store %arg4[%c0_171, %c0_172, %c0_173, %c0_174], %255 {strides = array<i32>} : memref<1x16x8x32xf32, #tpu.memory_space<vmem>>, vector<1x16x8x32xf32>,
    return
  }
  func.func @transform_0(%arg0: i32, %arg1: i32) -> (i32, i32, i32, i32) {
    %c0_i32 = arith.constant 0 : i32
    %c0_i32_0 = arith.constant 0 : i32
    %c0_i32_1 = arith.constant 0 : i32
    return %arg0, %c0_i32, %arg1, %c0_i32_0 : i32, i32, i32, i32
  }
  func.func @transform_1(%arg0: i32, %arg1: i32) -> (i32, i32, i32, i32) {
    %c0_i32 = arith.constant 0 : i32
    %c0_i32_0 = arith.constant 0 : i32
    %c0_i32_1 = arith.constant 0 : i32
    %c0_i32_2 = arith.constant 0 : i32
    return %arg0, %c0_i32, %c0_i32_0, %c0_i32_1 : i32, i32, i32, i32
  }
  func.func @transform_2(%arg0: i32, %arg1: i32) -> (i32, i32, i32, i32) {
    %c0_i32 = arith.constant 0 : i32
    %c0_i32_0 = arith.constant 0 : i32
    %c0_i32_1 = arith.constant 0 : i32
    return %arg0, %c0_i32, %arg1, %c0_i32_0 : i32, i32, i32, i32
  }
}

</mosaic_0001>

<llo_original>
// kernel: _lambda_.3
$region0: #{_lambda_.3}
  #allocation0 [shape = 'u32[]', space=smem, size = 0x4, offset = 0x4, fixed_abs, tag = 'smem constant byte address 0x4 - core index']
  #allocation1 [shape = 'u32[72,128]{1,0:T(1,128)}', space=vmem, size = 0x9000, scoped, tag = 'internal scratch']
  %s0 = inlined_call_operand.vmem [shape: f32[2,25,32,32], index: 0, kind: input, shape index: {}]
  %s1 = inlined_call_operand.vmem [shape: f32[2,16,40,40], index: 1, kind: input, shape index: {}]
  %s2 = inlined_call_operand.hbm [shape: f32[2,16,32,32], index: 2, kind: output, shape index: {}]
  %s3 = sld [smem:[#allocation0]]
  $region79: #{_lambda_.3} parent=0
    _
  %s5 = ssub.s32 1, %s3
  %s6 = scalar_select 0, %s5, %s3
  $region1: #{_lambda_.3} parent=0
    #allocation2 [shape = 'u8[204800]{0}', space=vmem, size = 0x32000, scoped, tag = 'input window, operand 0']
    #allocation3 [shape = 'u8[131072]{0}', space=vmem, size = 0x20000, scoped, tag = 'output window, operand 0']
    #allocation4 [shape = 's32[2]{0}', space=sflag, size = 0x8, scoped, tag = 'scoped memory for _lambda_.3']
    %7 = vsyncpa [#allocation4], 0
    %s8 = scalar_lea.sflag [#allocation4], 1
    %9 = vsyncpa %s8, 0
    loop: start=0, step=1, limit=10
    $region2: #{_lambda_.3} parent=1 // loop_pre_header
      _
    $region3: #{_lambda_.3} parent=1 // loop_header
      %s11 = sphi 0, %s15
      %p12 = scmp.ge.s32.totalorder %s11, 10
      %s18 = sphi 0, %s30
      %s19 = sphi 0, %s26
      %s20 = sphi 0, %s18
      %s21 = sphi 0, %s19
      %s22 = sphi 0, %s20
      %s23 = sphi 0, %s21
      %s35 = sphi 0, %s37
      %s38 = sphi 0, %s35
      %s39 = sphi 0, %s38
      %s55 = sphi 0, %s39
      %s61 = sphi 0, %s63
      %s64 = sphi 0, %s61
      %s65 = sphi 0, %s64
      %s81 = sphi 0, %s65
      %s89 = sphi 0, %s91
      %s92 = sphi 0, %s89
      %s93 = sphi 0, %s92
      %s109 = sphi 0, %s93
    $region4: #{_lambda_.3} parent=1 // loop_header_branch
      %14 = sbr.rel (%p12) target = $region8
    $region5: #{_lambda_.3} parent=1 // loop_body
      %s16 = ssub.s32 %s11, 1
      %s17 = ssub.s32 %s11, 2
      %s24 = sadd.s32 1, %s19
      %p25 = scmp.ge.s32.totalorder %s24, 4
      %s26 = scalar_select %p25, 0, %s24
      %s27 = sadd.s32 1, %s18
      %s28 = scalar_select %p25, %s27, %s18
      %p29 = scmp.ge.s32.totalorder %s28, 2
      %s30 = scalar_select %p29, 0, %s28
      %s31 = ssub.s32 %s18, %s30
      %s32 = ssub.s32 %s19, %s26
      %s33 = sor.u32 %s31, %s32
      %p34 = scmp.eq.s32.totalorder %s33, 0
      %s36 = sadd.s32 %s35, 1
      %s37 = scalar_select %p34, %s35, %s36
      %p40 = pneg %p34
      %p41 = scmp.eq.s32.totalorder %s11, 7
      %p42 = por %p40, %p41
      %p43 = scmp.ne.s32.totalorder %s35, %s38
      %p44 = scmp.eq.s32.totalorder %s11, 0
      %p45 = por %p43, %p44
      %p46 = scmp.ne.s32.totalorder %s35, %s38
      %p47 = scmp.eq.s32.totalorder %s16, 7
      %p48 = por %p46, %p47
      %p49 = scmp.ne.s32.totalorder %s38, %s39
      %p50 = scmp.eq.s32.totalorder %s16, 0
      %p51 = por %p49, %p50
      %p52 = scmp.ne.s32.totalorder %s38, %s39
      %p53 = scmp.eq.s32.totalorder %s17, 7
      %p54 = por %p52, %p53
      %p56 = scmp.ne.s32.totalorder %s39, %s55
      %p57 = scmp.eq.s32.totalorder %s17, 0
      %p58 = por %p56, %p57
      %s59 = ssub.s32 %s18, %s30
      %p60 = scmp.eq.s32.totalorder %s59, 0
      %s62 = sadd.s32 %s61, 1
      %s63 = scalar_select %p60, %s61, %s62
      %p66 = pneg %p60
      %p67 = scmp.eq.s32.totalorder %s11, 7
      %p68 = por %p66, %p67
      %p69 = scmp.ne.s32.totalorder %s61, %s64
      %p70 = scmp.eq.s32.totalorder %s11, 0
      %p71 = por %p69, %p70
      %p72 = scmp.ne.s32.totalorder %s61, %s64
      %p73 = scmp.eq.s32.totalorder %s16, 7
      %p74 = por %p72, %p73
      %p75 = scmp.ne.s32.totalorder %s64, %s65
      %p76 = scmp.eq.s32.totalorder %s16, 0
      %p77 = por %p75, %p76
      %p78 = scmp.ne.s32.totalorder %s64, %s65
      %p79 = scmp.eq.s32.totalorder %s17, 7
      %p80 = por %p78, %p79
      %p82 = scmp.ne.s32.totalorder %s65, %s81
      %p83 = scmp.eq.s32.totalorder %s17, 0
      %p84 = por %p82, %p83
      %s85 = ssub.s32 %s18, %s30
      %s86 = ssub.s32 %s19, %s26
      %s87 = sor.u32 %s85, %s86
      %p88 = scmp.eq.s32.totalorder %s87, 0
      %s90 = sadd.s32 %s89, 1
      %s91 = scalar_select %p88, %s89, %s90
      %p94 = pneg %p88
      %p95 = scmp.eq.s32.totalorder %s11, 7
      %p96 = por %p94, %p95
      %p97 = scmp.ne.s32.totalorder %s89, %s92
      %p98 = scmp.eq.s32.totalorder %s11, 0
      %p99 = por %p97, %p98
      %p100 = scmp.ne.s32.totalorder %s89, %s92
      %p101 = scmp.eq.s32.totalorder %s16, 7
      %p102 = por %p100, %p101
      %p103 = scmp.ne.s32.totalorder %s92, %s93
      %p104 = scmp.eq.s32.totalorder %s16, 0
      %p105 = por %p103, %p104
      %p106 = scmp.ne.s32.totalorder %s92, %s93
      %p107 = scmp.eq.s32.totalorder %s17, 7
      %p108 = por %p106, %p107
      %p110 = scmp.ne.s32.totalorder %s93, %s109
      %p111 = scmp.eq.s32.totalorder %s17, 0
      %p112 = por %p110, %p111
      %p113 = scmp.le.s32.totalorder 1, %s11
      %p114 = scmp.lt.s32.totalorder %s11, 9
      %p115 = pnand %p113, %p114
      %p116 = pneg %p115
      // Predicated region
      $region9: #{_lambda_.3} parent=5 // pred_check
        _
      $region10: #{_lambda_.3} parent=5 // pred_check_branch
        %118 = sbr.rel (%p115) target = $region12
      $region11: #{_lambda_.3} parent=5 // pred_region
        %s119 = ssub.s32 %s11, 1
      $region12: #{_lambda_.3} parent=5 // pred_fallthru
        _
      %p120 = scmp.lt.s32.totalorder %s11, 8
      // Predicated region
      $region13: #{_lambda_.3} parent=5 // pred_check
        %p121 = pneg %p120
      $region14: #{_lambda_.3} parent=5 // pred_check_branch
        %123 = sbr.rel (%p121) target = $region16
      $region15: #{_lambda_.3} parent=5 // pred_region
        // Predicated region
        $region17: #{_lambda_.3} parent=15 // pred_check
          %p124 = pneg %p45
        $region18: #{_lambda_.3} parent=15 // pred_check_branch
          %126 = sbr.rel (%p124) target = $region20
        $region19: #{_lambda_.3} parent=15 // pred_region
          %s127 = sand.u32 %s35, 1
          %s128 = sand.u32 %s35, 1
          %s129 = smul.addr %s128, 200
          %s130 = scalar_lea.vmem [#allocation2], %s129
          %s131 = smul.addr %s18, 100
          %s132 = sadd.s32 %s19, %s131
          %s133 = smul.addr %s132, 8
          %s134 = scalar_lea.vmem %s0, %s133
          // Predicated region
          $region21: #{_lambda_.3} parent=19 // pred_check
            _
          $region22: #{_lambda_.3} parent=19 // pred_check_branch
            %136 = sbr.rel (0) target = $region24
          $region23: #{_lambda_.3} parent=19 // pred_region
            // Predicated region
            $region25: #{_lambda_.3} parent=23 // pred_check
              _
            $region26: #{_lambda_.3} parent=23 // pred_check_branch
              %138 = sbr.rel (0) target = $region28
            $region27: #{_lambda_.3} parent=23 // pred_region
              // Predicated region
              $region40: #{_lambda_.3} parent=27 // pred_check
                _
              $region41: #{_lambda_.3} parent=27 // pred_check_branch
                %202 = sbr.rel (0) target = $region43
              $region42: #{_lambda_.3} parent=27 // pred_region
                loop: start=0, step=1, limit=1
                $region44: #{_lambda_.3} parent=42 // loop_pre_header
                  _
                $region45: #{_lambda_.3} parent=42 // loop_header
                  %s204 = sphi 0, %s208
                  %p205 = scmp.ge.s32.totalorder %s204, 1
                  %s209 = sphi %s134, %s134
                  %s210 = sphi %s130, %s130
                $region46: #{_lambda_.3} parent=42 // loop_header_branch
                  %207 = sbr.rel (%p205) target = $region50
                $region47: #{_lambda_.3} parent=42 // loop_body
                  %v211 = vld [vmem:[%s209] sm:$0xff]
                  %212 = vst [vmem:[%s210] sm:$0xff] %v211
                  %v213 = vld [vmem:[%s209 + $0x20] sm:$0xff]
                  %214 = vst [vmem:[%s210 + $0x8] sm:$0xff] %v213
                  %v215 = vld [vmem:[%s209 + $0x40] sm:$0xff]
                  %216 = vst [vmem:[%s210 + $0x10] sm:$0xff] %v215
                  %v217 = vld [vmem:[%s209 + $0x60] sm:$0xff]
                  %218 = vst [vmem:[%s210 + $0x18] sm:$0xff] %v217
                  %v219 = vld [vmem:[%s209 + $0x80] sm:$0xff]
                  %220 = vst [vmem:[%s210 + $0x20] sm:$0xff] %v219
                  %v221 = vld [vmem:[%s209 + $0xa0] sm:$0xff]
                  %222 = vst [vmem:[%s210 + $0x28] sm:$0xff] %v221
                  %v223 = vld [vmem:[%s209 + $0xc0] sm:$0xff]
                  %224 = vst [vmem:[%s210 + $0x30] sm:$0xff] %v223
                  %v225 = vld [vmem:[%s209 + $0xe0] sm:$0xff]
                  %226 = vst [vmem:[%s210 + $0x38] sm:$0xff] %v225
                  %v227 = vld [vmem:[%s209 + $0x100] sm:$0xff]
                  %228 = vst [vmem:[%s210 + $0x40] sm:$0xff] %v227
                  %v229 = vld [vmem:[%s209 + $0x120] sm:$0xff]
                  %230 = vst [vmem:[%s210 + $0x48] sm:$0xff] %v229
                  %v231 = vld [vmem:[%s209 + $0x140] sm:$0xff]
                  %232 = vst [vmem:[%s210 + $0x50] sm:$0xff] %v231
                  %v233 = vld [vmem:[%s209 + $0x160] sm:$0xff]
                  %234 = vst [vmem:[%s210 + $0x58] sm:$0xff] %v233
                  %v235 = vld [vmem:[%s209 + $0x180] sm:$0xff]
                  %236 = vst [vmem:[%s210 + $0x60] sm:$0xff] %v235
                  %v237 = vld [vmem:[%s209 + $0x1a0] sm:$0xff]
                  %238 = vst [vmem:[%s210 + $0x68] sm:$0xff] %v237
                  %v239 = vld [vmem:[%s209 + $0x1c0] sm:$0xff]
                  %240 = vst [vmem:[%s210 + $0x70] sm:$0xff] %v239
                  %v241 = vld [vmem:[%s209 + $0x1e0] sm:$0xff]
                  %242 = vst [vmem:[%s210 + $0x78] sm:$0xff] %v241
                  %v243 = vld [vmem:[%s209 + $0x200] sm:$0xff]
                  %244 = vst [vmem:[%s210 + $0x80] sm:$0xff] %v243
                  %v245 = vld [vmem:[%s209 + $0x220] sm:$0xff]
                  %246 = vst [vmem:[%s210 + $0x88] sm:$0xff] %v245
                  %v247 = vld [vmem:[%s209 + $0x240] sm:$0xff]
                  %248 = vst [vmem:[%s210 + $0x90] sm:$0xff] %v247
                  %v249 = vld [vmem:[%s209 + $0x260] sm:$0xff]
                  %250 = vst [vmem:[%s210 + $0x98] sm:$0xff] %v249
                  %v251 = vld [vmem:[%s209 + $0x280] sm:$0xff]
                  %252 = vst [vmem:[%s210 + $0xa0] sm:$0xff] %v251
                  %v253 = vld [vmem:[%s209 + $0x2a0] sm:$0xff]
                  %254 = vst [vmem:[%s210 + $0xa8] sm:$0xff] %v253
                  %v255 = vld [vmem:[%s209 + $0x2c0] sm:$0xff]
                  %256 = vst [vmem:[%s210 + $0xb0] sm:$0xff] %v255
                  %v257 = vld [vmem:[%s209 + $0x2e0] sm:$0xff]
                  %258 = vst [vmem:[%s210 + $0xb8] sm:$0xff] %v257
                  %v259 = vld [vmem:[%s209 + $0x300] sm:$0xff]
                  %260 = vst [vmem:[%s210 + $0xc0] sm:$0xff] %v259
                $region48: #{_lambda_.3} parent=42 // loop_footer
                  %s208 = sadd.s32 1, %s204
                $region49: #{_lambda_.3} parent=42 // loop_footer_branch
                  %203 = sbr.rel target = $region45
                $region50: #{_lambda_.3} parent=42 // loop_exit
                  _
              $region43: #{_lambda_.3} parent=27 // pred_fallthru
                _
              // Predicated region
              $region51: #{_lambda_.3} parent=27 // pred_check
                _
              $region52: #{_lambda_.3} parent=27 // pred_check_branch
                %262 = sbr.rel target = $region54
              $region53: #{_lambda_.3} parent=27 // pred_region
                _
              $region54: #{_lambda_.3} parent=27 // pred_fallthru
                _
            $region28: #{_lambda_.3} parent=23 // pred_fallthru
              _
            // Predicated region
            $region29: #{_lambda_.3} parent=23 // pred_check
              _
            $region30: #{_lambda_.3} parent=23 // pred_check_branch
              %140 = sbr.rel target = $region32
            $region31: #{_lambda_.3} parent=23 // pred_region
              %s142 = ssub.s32 256, 1
              loop: start=0, step=1, limit=1
              $region33: #{_lambda_.3} parent=31 // loop_pre_header
                _
              $region34: #{_lambda_.3} parent=31 // loop_header
                %s144 = sphi 0, %s148
                %p145 = scmp.ge.s32.totalorder %s144, 1
                %s149 = sphi %s134, %s134
                %s150 = sphi %s130, %s130
              $region35: #{_lambda_.3} parent=31 // loop_header_branch
                %147 = sbr.rel (%p145) target = $region39
              $region36: #{_lambda_.3} parent=31 // loop_body
                %v151 = vld [vmem:[%s149] sm:%s142]
                %152 = vst [vmem:[%s150] sm:%s142] %v151
                %v153 = vld [vmem:[%s149 + $0x20] sm:%s142]
                %154 = vst [vmem:[%s150 + $0x8] sm:%s142] %v153
                %v155 = vld [vmem:[%s149 + $0x40] sm:%s142]
                %156 = vst [vmem:[%s150 + $0x10] sm:%s142] %v155
                %v157 = vld [vmem:[%s149 + $0x60] sm:%s142]
                %158 = vst [vmem:[%s150 + $0x18] sm:%s142] %v157
                %v159 = vld [vmem:[%s149 + $0x80] sm:%s142]
                %160 = vst [vmem:[%s150 + $0x20] sm:%s142] %v159
                %v161 = vld [vmem:[%s149 + $0xa0] sm:%s142]
                %162 = vst [vmem:[%s150 + $0x28] sm:%s142] %v161
                %v163 = vld [vmem:[%s149 + $0xc0] sm:%s142]
                %164 = vst [vmem:[%s150 + $0x30] sm:%s142] %v163
                %v165 = vld [vmem:[%s149 + $0xe0] sm:%s142]
                %166 = vst [vmem:[%s150 + $0x38] sm:%s142] %v165
                %v167 = vld [vmem:[%s149 + $0x100] sm:%s142]
                %168 = vst [vmem:[%s150 + $0x40] sm:%s142] %v167
                %v169 = vld [vmem:[%s149 + $0x120] sm:%s142]
                %170 = vst [vmem:[%s150 + $0x48] sm:%s142] %v169
                %v171 = vld [vmem:[%s149 + $0x140] sm:%s142]
                %172 = vst [vmem:[%s150 + $0x50] sm:%s142] %v171
                %v173 = vld [vmem:[%s149 + $0x160] sm:%s142]
                %174 = vst [vmem:[%s150 + $0x58] sm:%s142] %v173
                %v175 = vld [vmem:[%s149 + $0x180] sm:%s142]
                %176 = vst [vmem:[%s150 + $0x60] sm:%s142] %v175
                %v177 = vld [vmem:[%s149 + $0x1a0] sm:%s142]
                %178 = vst [vmem:[%s150 + $0x68] sm:%s142] %v177
                %v179 = vld [vmem:[%s149 + $0x1c0] sm:%s142]
                %180 = vst [vmem:[%s150 + $0x70] sm:%s142] %v179
                %v181 = vld [vmem:[%s149 + $0x1e0] sm:%s142]
                %182 = vst [vmem:[%s150 + $0x78] sm:%s142] %v181
                %v183 = vld [vmem:[%s149 + $0x200] sm:%s142]
                %184 = vst [vmem:[%s150 + $0x80] sm:%s142] %v183
                %v185 = vld [vmem:[%s149 + $0x220] sm:%s142]
                %186 = vst [vmem:[%s150 + $0x88] sm:%s142] %v185
                %v187 = vld [vmem:[%s149 + $0x240] sm:%s142]
                %188 = vst [vmem:[%s150 + $0x90] sm:%s142] %v187
                %v189 = vld [vmem:[%s149 + $0x260] sm:%s142]
                %190 = vst [vmem:[%s150 + $0x98] sm:%s142] %v189
                %v191 = vld [vmem:[%s149 + $0x280] sm:%s142]
                %192 = vst [vmem:[%s150 + $0xa0] sm:%s142] %v191
                %v193 = vld [vmem:[%s149 + $0x2a0] sm:%s142]
                %194 = vst [vmem:[%s150 + $0xa8] sm:%s142] %v193
                %v195 = vld [vmem:[%s149 + $0x2c0] sm:%s142]
                %196 = vst [vmem:[%s150 + $0xb0] sm:%s142] %v195
                %v197 = vld [vmem:[%s149 + $0x2e0] sm:%s142]
                %198 = vst [vmem:[%s150 + $0xb8] sm:%s142] %v197
                %v199 = vld [vmem:[%s149 + $0x300] sm:%s142]
                %200 = vst [vmem:[%s150 + $0xc0] sm:%s142] %v199
              $region37: #{_lambda_.3} parent=31 // loop_footer
                %s148 = sadd.s32 1, %s144
              $region38: #{_lambda_.3} parent=31 // loop_footer_branch
                %143 = sbr.rel target = $region34
              $region39: #{_lambda_.3} parent=31 // loop_exit
                _
            $region32: #{_lambda_.3} parent=23 // pred_fallthru
              _
          $region24: #{_lambda_.3} parent=19 // pred_fallthru
            _
          %263 = vnop
        $region20: #{_lambda_.3} parent=15 // pred_fallthru
          _
        // Predicated region
        $region55: #{_lambda_.3} parent=15 // pred_check
          %p264 = pneg %p71
        $region56: #{_lambda_.3} parent=15 // pred_check_branch
          %266 = sbr.rel (%p264) target = $region58
        $region57: #{_lambda_.3} parent=15 // pred_region
          %p267 = scmp.lt.s32.totalorder %s18, 1
          %s268 = scalar_select %p267, %s18, 1
          %s269 = smul.addr %s268, 80
          %s270 = smul.addr %s269, 8
          %s271 = scalar_lea.vmem %s1, %s270
        $region58: #{_lambda_.3} parent=15 // pred_fallthru
          _
      $region16: #{_lambda_.3} parent=5 // pred_fallthru
        _
      %p272 = scmp.le.s32.totalorder 1, %s11
      %p273 = scmp.lt.s32.totalorder %s11, 9
      %p274 = pnand %p272, %p273
      %p275 = pneg %p274
      // Predicated region
      $region59: #{_lambda_.3} parent=5 // pred_check
        _
      $region60: #{_lambda_.3} parent=5 // pred_check_branch
        %277 = sbr.rel (%p274) target = $region62
      $region61: #{_lambda_.3} parent=5 // pred_region
        %s278 = ssub.s32 %s11, 1
        %s279 = sand.u32 %s38, 1
        %s280 = sand.u32 %s38, 1
        %s281 = smul.addr %s280, 200
        %s282 = scalar_lea.vmem [#allocation2], %s281
        // Predicated region
        $region63: #{_lambda_.3} parent=61 // pred_check
          %p283 = pneg %p51
        $region64: #{_lambda_.3} parent=61 // pred_check_branch
          %285 = sbr.rel (%p283) target = $region66
        $region65: #{_lambda_.3} parent=61 // pred_region
          _
        $region66: #{_lambda_.3} parent=61 // pred_fallthru
          _
        %s286 = sand.u32 %s38, 1
        %s287 = sand.u32 %s38, 1
        %s288 = smul.addr %s287, 200
        %s289 = scalar_lea.vmem [#allocation2], %s288
        %p290 = pneg %p51
        %p291 = pneg %p48
        %p292 = scmp.lt.s32.totalorder %s20, 1
        %s293 = scalar_select %p292, %s20, 1
        %s294 = smul.addr %s293, 80
        %s295 = smul.addr %s294, 8
        %s296 = scalar_lea.vmem %s1, %s295
        %p297 = pneg %p77
        %p298 = pneg %p74
        %p299 = pneg %p105
        %p300 = pneg %p102
        %s301 = sand.u32 %s92, 1
        %s302 = scalar_lea.sflag [#allocation4], %s301
        %s303 = sand.u32 %s92, 1
        %s304 = smul.addr %s303, 128
        %s305 = scalar_lea.vmem [#allocation3], %s304
        %p306 = scmp.lt.s32.totalorder %s20, 1
        %s307 = scalar_select %p306, %s20, 1
        %s308 = smul.addr %s307, 80
        %s309 = smul.addr %s308, 8
        %s310 = scalar_lea.vmem %s1, %s309
        %s311 = smul.u32 %s21, 8
        %v312 = vld [vmem:[%s282] sm:$0xff]
        %s313 = scalar_lea.vmem %s310, %s311
        %v314 = vld [vmem:[%s313] sm:$0xff]
        %v315 = vld [vmem:[%s313 + $0x28] sm:$0xff]
        %v316 = vld [vmem:[%s313 + $0x50] sm:$0xff]
        %v317 = vld [vmem:[%s313 + $0x78] sm:$0xff]
        %v318 = vld [vmem:[%s313 + $0xa0] sm:$0xff]
        %v319 = vld [vmem:[%s313 + $0xc8] sm:$0xff]
        %v320 = vld [vmem:[%s313 + $0xf0] sm:$0xff]
        %v321 = vld [vmem:[%s313 + $0x118] sm:$0xff]
        %v322 = vld [vmem:[%s313 + $0x140] sm:$0xff]
        %v323 = vld [vmem:[%s313 + $0x168] sm:$0xff]
        %v324 = vld [vmem:[%s313 + $0x190] sm:$0xff]
        %v325 = vld [vmem:[%s313 + $0x1b8] sm:$0xff]
        %v326 = vld [vmem:[%s313 + $0x1e0] sm:$0xff]
        %v327 = vld [vmem:[%s313 + $0x208] sm:$0xff]
        %v328 = vld [vmem:[%s313 + $0x230] sm:$0xff]
        %v329 = vld [vmem:[%s313 + $0x258] sm:$0xff]
        %v330 = vmul.f32 %v312, %v314
        %v331 = vmul.f32 %v312, %v315
        %v332 = vmul.f32 %v312, %v316
        %v333 = vmul.f32 %v312, %v317
        %v334 = vmul.f32 %v312, %v318
        %v335 = vmul.f32 %v312, %v319
        %v336 = vmul.f32 %v312, %v320
        %v337 = vmul.f32 %v312, %v321
        %v338 = vmul.f32 %v312, %v322
        %v339 = vmul.f32 %v312, %v323
        %v340 = vmul.f32 %v312, %v324
        %v341 = vmul.f32 %v312, %v325
        %v342 = vmul.f32 %v312, %v326
        %v343 = vmul.f32 %v312, %v327
        %v344 = vmul.f32 %v312, %v328
        %v345 = vmul.f32 %v312, %v329
        %v346 = vadd.f32 %v330, 0.0
        %v347 = vadd.f32 %v331, 0.0
        %v348 = vadd.f32 %v332, 0.0
        %v349 = vadd.f32 %v333, 0.0
        %v350 = vadd.f32 %v334, 0.0
        %v351 = vadd.f32 %v335, 0.0
        %v352 = vadd.f32 %v336, 0.0
        %v353 = vadd.f32 %v337, 0.0
        %v354 = vadd.f32 %v338, 0.0
        %v355 = vadd.f32 %v339, 0.0
        %v356 = vadd.f32 %v340, 0.0
        %v357 = vadd.f32 %v341, 0.0
        %v358 = vadd.f32 %v342, 0.0
        %v359 = vadd.f32 %v343, 0.0
        %v360 = vadd.f32 %v344, 0.0
        %v361 = vadd.f32 %v345, 0.0
        %s362 = scalar_lea.vmem %s282, 8 [#allocation2]
        %v363 = vld [vmem:[%s362] sm:$0xff]
        %380 = vrot.lane.b32.xlu0 %v314, 126
        %v381 = vpop.permute.xlu0 %380
        %382 = vrot.lane.b32.xlu0 %v315, 126
        %v383 = vpop.permute.xlu0 %382
        %384 = vrot.lane.b32.xlu0 %v316, 126
        %v385 = vpop.permute.xlu0 %384
        %386 = vrot.lane.b32.xlu0 %v317, 126
        %v387 = vpop.permute.xlu0 %386
        %388 = vrot.lane.b32.xlu0 %v318, 126
        %v389 = vpop.permute.xlu0 %388
        %390 = vrot.lane.b32.xlu0 %v319, 126
        %v391 = vpop.permute.xlu0 %390
        %392 = vrot.lane.b32.xlu0 %v320, 126
        %v393 = vpop.permute.xlu0 %392
        %394 = vrot.lane.b32.xlu0 %v321, 126
        %v395 = vpop.permute.xlu0 %394
        %396 = vrot.lane.b32.xlu0 %v322, 126
        %v397 = vpop.permute.xlu0 %396
        %398 = vrot.lane.b32.xlu0 %v323, 126
        %v399 = vpop.permute.xlu0 %398
        %400 = vrot.lane.b32.xlu0 %v324, 126
        %v401 = vpop.permute.xlu0 %400
        %402 = vrot.lane.b32.xlu0 %v325, 126
        %v403 = vpop.permute.xlu0 %402
        %404 = vrot.lane.b32.xlu0 %v326, 126
        %v405 = vpop.permute.xlu0 %404
        %406 = vrot.lane.b32.xlu0 %v327, 126
        %v407 = vpop.permute.xlu0 %406
        %408 = vrot.lane.b32.xlu0 %v328, 126
        %v409 = vpop.permute.xlu0 %408
        %410 = vrot.lane.b32.xlu0 %v329, 126
        %v411 = vpop.permute.xlu0 %410
        %v428 = vmul.f32 %v363, %v381
        %v429 = vmul.f32 %v363, %v383
        %v430 = vmul.f32 %v363, %v385
        %v431 = vmul.f32 %v363, %v387
        %v432 = vmul.f32 %v363, %v389
        %v433 = vmul.f32 %v363, %v391
        %v434 = vmul.f32 %v363, %v393
        %v435 = vmul.f32 %v363, %v395
        %v436 = vmul.f32 %v363, %v397
        %v437 = vmul.f32 %v363, %v399
        %v438 = vmul.f32 %v363, %v401
        %v439 = vmul.f32 %v363, %v403
        %v440 = vmul.f32 %v363, %v405
        %v441 = vmul.f32 %v363, %v407
        %v442 = vmul.f32 %v363, %v409
        %v443 = vmul.f32 %v363, %v411
        %v444 = vadd.f32 %v346, %v428
        %v445 = vadd.f32 %v347, %v429
        %v446 = vadd.f32 %v348, %v430
        %v447 = vadd.f32 %v349, %v431
        %v448 = vadd.f32 %v350, %v432
        %v449 = vadd.f32 %v351, %v433
        %v450 = vadd.f32 %v352, %v434
        %v451 = vadd.f32 %v353, %v435
        %v452 = vadd.f32 %v354, %v436
        %v453 = vadd.f32 %v355, %v437
        %v454 = vadd.f32 %v356, %v438
        %v455 = vadd.f32 %v357, %v439
        %v456 = vadd.f32 %v358, %v440
        %v457 = vadd.f32 %v359, %v441
        %v458 = vadd.f32 %v360, %v442
        %v459 = vadd.f32 %v361, %v443
        %s460 = scalar_lea.vmem %s282, 16 [#allocation2]
        %v461 = vld [vmem:[%s460] sm:$0xff]
        %462 = vrot.lane.b32.xlu0 %v314, 124
        %v463 = vpop.permute.xlu0 %462
        %464 = vrot.lane.b32.xlu0 %v315, 124
        %v465 = vpop.permute.xlu0 %464
        %466 = vrot.lane.b32.xlu0 %v316, 124
        %v467 = vpop.permute.xlu0 %466
        %468 = vrot.lane.b32.xlu0 %v317, 124
        %v469 = vpop.permute.xlu0 %468
        %470 = vrot.lane.b32.xlu0 %v318, 124
        %v471 = vpop.permute.xlu0 %470
        %472 = vrot.lane.b32.xlu0 %v319, 124
        %v473 = vpop.permute.xlu0 %472
        %474 = vrot.lane.b32.xlu0 %v320, 124
        %v475 = vpop.permute.xlu0 %474
        %476 = vrot.lane.b32.xlu0 %v321, 124
        %v477 = vpop.permute.xlu0 %476
        %478 = vrot.lane.b32.xlu0 %v322, 124
        %v479 = vpop.permute.xlu0 %478
        %480 = vrot.lane.b32.xlu0 %v323, 124
        %v481 = vpop.permute.xlu0 %480
        %482 = vrot.lane.b32.xlu0 %v324, 124
        %v483 = vpop.permute.xlu0 %482
        %484 = vrot.lane.b32.xlu0 %v325, 124
        %v485 = vpop.permute.xlu0 %484
        %486 = vrot.lane.b32.xlu0 %v326, 124
        %v487 = vpop.permute.xlu0 %486
        %488 = vrot.lane.b32.xlu0 %v327, 124
        %v489 = vpop.permute.xlu0 %488
        %490 = vrot.lane.b32.xlu0 %v328, 124
        %v491 = vpop.permute.xlu0 %490
        %492 = vrot.lane.b32.xlu0 %v329, 124
        %v493 = vpop.permute.xlu0 %492
        %v510 = vmul.f32 %v461, %v463
        %v511 = vmul.f32 %v461, %v465
        %v512 = vmul.f32 %v461, %v467
        %v513 = vmul.f32 %v461, %v469
        %v514 = vmul.f32 %v461, %v471
        %v515 = vmul.f32 %v461, %v473
        %v516 = vmul.f32 %v461, %v475
        %v517 = vmul.f32 %v461, %v477
        %v518 = vmul.f32 %v461, %v479
        %v519 = vmul.f32 %v461, %v481
        %v520 = vmul.f32 %v461, %v483
        %v521 = vmul.f32 %v461, %v485
        %v522 = vmul.f32 %v461, %v487
        %v523 = vmul.f32 %v461, %v489
        %v524 = vmul.f32 %v461, %v491
        %v525 = vmul.f32 %v461, %v493
        %v526 = vadd.f32 %v444, %v510
        %v527 = vadd.f32 %v445, %v511
        %v528 = vadd.f32 %v446, %v512
        %v529 = vadd.f32 %v447, %v513
        %v530 = vadd.f32 %v448, %v514
        %v531 = vadd.f32 %v449, %v515
        %v532 = vadd.f32 %v450, %v516
        %v533 = vadd.f32 %v451, %v517
        %v534 = vadd.f32 %v452, %v518
        %v535 = vadd.f32 %v453, %v519
        %v536 = vadd.f32 %v454, %v520
        %v537 = vadd.f32 %v455, %v521
        %v538 = vadd.f32 %v456, %v522
        %v539 = vadd.f32 %v457, %v523
        %v540 = vadd.f32 %v458, %v524
        %v541 = vadd.f32 %v459, %v525
        %s542 = scalar_lea.vmem %s282, 24 [#allocation2]
        %v543 = vld [vmem:[%s542] sm:$0xff]
        %544 = vrot.lane.b32.xlu0 %v314, 122
        %v545 = vpop.permute.xlu0 %544
        %546 = vrot.lane.b32.xlu0 %v315, 122
        %v547 = vpop.permute.xlu0 %546
        %548 = vrot.lane.b32.xlu0 %v316, 122
        %v549 = vpop.permute.xlu0 %548
        %550 = vrot.lane.b32.xlu0 %v317, 122
        %v551 = vpop.permute.xlu0 %550
        %552 = vrot.lane.b32.xlu0 %v318, 122
        %v553 = vpop.permute.xlu0 %552
        %554 = vrot.lane.b32.xlu0 %v319, 122
        %v555 = vpop.permute.xlu0 %554
        %556 = vrot.lane.b32.xlu0 %v320, 122
        %v557 = vpop.permute.xlu0 %556
        %558 = vrot.lane.b32.xlu0 %v321, 122
        %v559 = vpop.permute.xlu0 %558
        %560 = vrot.lane.b32.xlu0 %v322, 122
        %v561 = vpop.permute.xlu0 %560
        %562 = vrot.lane.b32.xlu0 %v323, 122
        %v563 = vpop.permute.xlu0 %562
        %564 = vrot.lane.b32.xlu0 %v324, 122
        %v565 = vpop.permute.xlu0 %564
        %566 = vrot.lane.b32.xlu0 %v325, 122
        %v567 = vpop.permute.xlu0 %566
        %568 = vrot.lane.b32.xlu0 %v326, 122
        %v569 = vpop.permute.xlu0 %568
        %570 = vrot.lane.b32.xlu0 %v327, 122
        %v571 = vpop.permute.xlu0 %570
        %572 = vrot.lane.b32.xlu0 %v328, 122
        %v573 = vpop.permute.xlu0 %572
        %574 = vrot.lane.b32.xlu0 %v329, 122
        %v575 = vpop.permute.xlu0 %574
        %v592 = vmul.f32 %v543, %v545
        %v593 = vmul.f32 %v543, %v547
        %v594 = vmul.f32 %v543, %v549
        %v595 = vmul.f32 %v543, %v551
        %v596 = vmul.f32 %v543, %v553
        %v597 = vmul.f32 %v543, %v555
        %v598 = vmul.f32 %v543, %v557
        %v599 = vmul.f32 %v543, %v559
        %v600 = vmul.f32 %v543, %v561
        %v601 = vmul.f32 %v543, %v563
        %v602 = vmul.f32 %v543, %v565
        %v603 = vmul.f32 %v543, %v567
        %v604 = vmul.f32 %v543, %v569
        %v605 = vmul.f32 %v543, %v571
        %v606 = vmul.f32 %v543, %v573
        %v607 = vmul.f32 %v543, %v575
        %v608 = vadd.f32 %v526, %v592
        %v609 = vadd.f32 %v527, %v593
        %v610 = vadd.f32 %v528, %v594
        %v611 = vadd.f32 %v529, %v595
        %v612 = vadd.f32 %v530, %v596
        %v613 = vadd.f32 %v531, %v597
        %v614 = vadd.f32 %v532, %v598
        %v615 = vadd.f32 %v533, %v599
        %v616 = vadd.f32 %v534, %v600
        %v617 = vadd.f32 %v535, %v601
        %v618 = vadd.f32 %v536, %v602
        %v619 = vadd.f32 %v537, %v603
        %v620 = vadd.f32 %v538, %v604
        %v621 = vadd.f32 %v539, %v605
        %v622 = vadd.f32 %v540, %v606
        %v623 = vadd.f32 %v541, %v607
        %s624 = scalar_lea.vmem %s282, 32 [#allocation2]
        %v625 = vld [vmem:[%s624] sm:$0xff]
        %626 = vrot.lane.b32.xlu0 %v314, 120
        %v627 = vpop.permute.xlu0 %626
        %628 = vrot.lane.b32.xlu0 %v315, 120
        %v629 = vpop.permute.xlu0 %628
        %630 = vrot.lane.b32.xlu0 %v316, 120
        %v631 = vpop.permute.xlu0 %630
        %632 = vrot.lane.b32.xlu0 %v317, 120
        %v633 = vpop.permute.xlu0 %632
        %634 = vrot.lane.b32.xlu0 %v318, 120
        %v635 = vpop.permute.xlu0 %634
        %636 = vrot.lane.b32.xlu0 %v319, 120
        %v637 = vpop.permute.xlu0 %636
        %638 = vrot.lane.b32.xlu0 %v320, 120
        %v639 = vpop.permute.xlu0 %638
        %640 = vrot.lane.b32.xlu0 %v321, 120
        %v641 = vpop.permute.xlu0 %640
        %642 = vrot.lane.b32.xlu0 %v322, 120
        %v643 = vpop.permute.xlu0 %642
        %644 = vrot.lane.b32.xlu0 %v323, 120
        %v645 = vpop.permute.xlu0 %644
        %646 = vrot.lane.b32.xlu0 %v324, 120
        %v647 = vpop.permute.xlu0 %646
        %648 = vrot.lane.b32.xlu0 %v325, 120
        %v649 = vpop.permute.xlu0 %648
        %650 = vrot.lane.b32.xlu0 %v326, 120
        %v651 = vpop.permute.xlu0 %650
        %652 = vrot.lane.b32.xlu0 %v327, 120
        %v653 = vpop.permute.xlu0 %652
        %654 = vrot.lane.b32.xlu0 %v328, 120
        %v655 = vpop.permute.xlu0 %654
        %656 = vrot.lane.b32.xlu0 %v329, 120
        %v657 = vpop.permute.xlu0 %656
        %v674 = vmul.f32 %v625, %v627
        %v675 = vmul.f32 %v625, %v629
        %v676 = vmul.f32 %v625, %v631
        %v677 = vmul.f32 %v625, %v633
        %v678 = vmul.f32 %v625, %v635
        %v679 = vmul.f32 %v625, %v637
        %v680 = vmul.f32 %v625, %v639
        %v681 = vmul.f32 %v625, %v641
        %v682 = vmul.f32 %v625, %v643
        %v683 = vmul.f32 %v625, %v645
        %v684 = vmul.f32 %v625, %v647
        %v685 = vmul.f32 %v625, %v649
        %v686 = vmul.f32 %v625, %v651
        %v687 = vmul.f32 %v625, %v653
        %v688 = vmul.f32 %v625, %v655
        %v689 = vmul.f32 %v625, %v657
        %v690 = vadd.f32 %v608, %v674
        %v691 = vadd.f32 %v609, %v675
        %v692 = vadd.f32 %v610, %v676
        %v693 = vadd.f32 %v611, %v677
        %v694 = vadd.f32 %v612, %v678
        %v695 = vadd.f32 %v613, %v679
        %v696 = vadd.f32 %v614, %v680
        %v697 = vadd.f32 %v615, %v681
        %v698 = vadd.f32 %v616, %v682
        %v699 = vadd.f32 %v617, %v683
        %v700 = vadd.f32 %v618, %v684
        %v701 = vadd.f32 %v619, %v685
        %v702 = vadd.f32 %v620, %v686
        %v703 = vadd.f32 %v621, %v687
        %v704 = vadd.f32 %v622, %v688
        %v705 = vadd.f32 %v623, %v689
        %s706 = scalar_lea.vmem %s282, 40 [#allocation2]
        %v707 = vld [vmem:[%s706] sm:$0xff]
        %s708 = sadd.s32 %s311, 2
        %s709 = scalar_lea.vmem %s310, %s708
        %v710 = vld [vmem:[%s709] sm:$0xff]
        %v711 = vld [vmem:[%s709 + $0x28] sm:$0xff]
        %v712 = vld [vmem:[%s709 + $0x50] sm:$0xff]
        %v713 = vld [vmem:[%s709 + $0x78] sm:$0xff]
        %v714 = vld [vmem:[%s709 + $0xa0] sm:$0xff]
        %v715 = vld [vmem:[%s709 + $0xc8] sm:$0xff]
        %v716 = vld [vmem:[%s709 + $0xf0] sm:$0xff]
        %v717 = vld [vmem:[%s709 + $0x118] sm:$0xff]
        %v718 = vld [vmem:[%s709 + $0x140] sm:$0xff]
        %v719 = vld [vmem:[%s709 + $0x168] sm:$0xff]
        %v720 = vld [vmem:[%s709 + $0x190] sm:$0xff]
        %v721 = vld [vmem:[%s709 + $0x1b8] sm:$0xff]
        %v722 = vld [vmem:[%s709 + $0x1e0] sm:$0xff]
        %v723 = vld [vmem:[%s709 + $0x208] sm:$0xff]
        %v724 = vld [vmem:[%s709 + $0x230] sm:$0xff]
        %v725 = vld [vmem:[%s709 + $0x258] sm:$0xff]
        %v726 = vmul.f32 %v707, %v710
        %v727 = vmul.f32 %v707, %v711
        %v728 = vmul.f32 %v707, %v712
        %v729 = vmul.f32 %v707, %v713
        %v730 = vmul.f32 %v707, %v714
        %v731 = vmul.f32 %v707, %v715
        %v732 = vmul.f32 %v707, %v716
        %v733 = vmul.f32 %v707, %v717
        %v734 = vmul.f32 %v707, %v718
        %v735 = vmul.f32 %v707, %v719
        %v736 = vmul.f32 %v707, %v720
        %v737 = vmul.f32 %v707, %v721
        %v738 = vmul.f32 %v707, %v722
        %v739 = vmul.f32 %v707, %v723
        %v740 = vmul.f32 %v707, %v724
        %v741 = vmul.f32 %v707, %v725
        %v742 = vadd.f32 %v690, %v726
        %v743 = vadd.f32 %v691, %v727
        %v744 = vadd.f32 %v692, %v728
        %v745 = vadd.f32 %v693, %v729
        %v746 = vadd.f32 %v694, %v730
        %v747 = vadd.f32 %v695, %v731
        %v748 = vadd.f32 %v696, %v732
        %v749 = vadd.f32 %v697, %v733
        %v750 = vadd.f32 %v698, %v734
        %v751 = vadd.f32 %v699, %v735
        %v752 = vadd.f32 %v700, %v736
        %v753 = vadd.f32 %v701, %v737
        %v754 = vadd.f32 %v702, %v738
        %v755 = vadd.f32 %v703, %v739
        %v756 = vadd.f32 %v704, %v740
        %v757 = vadd.f32 %v705, %v741
        %s758 = scalar_lea.vmem %s282, 48 [#allocation2]
        %v759 = vld [vmem:[%s758] sm:$0xff]
        %776 = vrot.lane.b32.xlu0 %v710, 126
        %v777 = vpop.permute.xlu0 %776
        %778 = vrot.lane.b32.xlu0 %v711, 126
        %v779 = vpop.permute.xlu0 %778
        %780 = vrot.lane.b32.xlu0 %v712, 126
        %v781 = vpop.permute.xlu0 %780
        %782 = vrot.lane.b32.xlu0 %v713, 126
        %v783 = vpop.permute.xlu0 %782
        %784 = vrot.lane.b32.xlu0 %v714, 126
        %v785 = vpop.permute.xlu0 %784
        %786 = vrot.lane.b32.xlu0 %v715, 126
        %v787 = vpop.permute.xlu0 %786
        %788 = vrot.lane.b32.xlu0 %v716, 126
        %v789 = vpop.permute.xlu0 %788
        %790 = vrot.lane.b32.xlu0 %v717, 126
        %v791 = vpop.permute.xlu0 %790
        %792 = vrot.lane.b32.xlu0 %v718, 126
        %v793 = vpop.permute.xlu0 %792
        %794 = vrot.lane.b32.xlu0 %v719, 126
        %v795 = vpop.permute.xlu0 %794
        %796 = vrot.lane.b32.xlu0 %v720, 126
        %v797 = vpop.permute.xlu0 %796
        %798 = vrot.lane.b32.xlu0 %v721, 126
        %v799 = vpop.permute.xlu0 %798
        %800 = vrot.lane.b32.xlu0 %v722, 126
        %v801 = vpop.permute.xlu0 %800
        %802 = vrot.lane.b32.xlu0 %v723, 126
        %v803 = vpop.permute.xlu0 %802
        %804 = vrot.lane.b32.xlu0 %v724, 126
        %v805 = vpop.permute.xlu0 %804
        %806 = vrot.lane.b32.xlu0 %v725, 126
        %v807 = vpop.permute.xlu0 %806
        %v824 = vmul.f32 %v759, %v777
        %v825 = vmul.f32 %v759, %v779
        %v826 = vmul.f32 %v759, %v781
        %v827 = vmul.f32 %v759, %v783
        %v828 = vmul.f32 %v759, %v785
        %v829 = vmul.f32 %v759, %v787
        %v830 = vmul.f32 %v759, %v789
        %v831 = vmul.f32 %v759, %v791
        %v832 = vmul.f32 %v759, %v793
        %v833 = vmul.f32 %v759, %v795
        %v834 = vmul.f32 %v759, %v797
        %v835 = vmul.f32 %v759, %v799
        %v836 = vmul.f32 %v759, %v801
        %v837 = vmul.f32 %v759, %v803
        %v838 = vmul.f32 %v759, %v805
        %v839 = vmul.f32 %v759, %v807
        %v840 = vadd.f32 %v742, %v824
        %v841 = vadd.f32 %v743, %v825
        %v842 = vadd.f32 %v744, %v826
        %v843 = vadd.f32 %v745, %v827
        %v844 = vadd.f32 %v746, %v828
        %v845 = vadd.f32 %v747, %v829
        %v846 = vadd.f32 %v748, %v830
        %v847 = vadd.f32 %v749, %v831
        %v848 = vadd.f32 %v750, %v832
        %v849 = vadd.f32 %v751, %v833
        %v850 = vadd.f32 %v752, %v834
        %v851 = vadd.f32 %v753, %v835
        %v852 = vadd.f32 %v754, %v836
        %v853 = vadd.f32 %v755, %v837
        %v854 = vadd.f32 %v756, %v838
        %v855 = vadd.f32 %v757, %v839
        %s856 = scalar_lea.vmem %s282, 56 [#allocation2]
        %v857 = vld [vmem:[%s856] sm:$0xff]
        %858 = vrot.lane.b32.xlu0 %v710, 124
        %v859 = vpop.permute.xlu0 %858
        %860 = vrot.lane.b32.xlu0 %v711, 124
        %v861 = vpop.permute.xlu0 %860
        %862 = vrot.lane.b32.xlu0 %v712, 124
        %v863 = vpop.permute.xlu0 %862
        %864 = vrot.lane.b32.xlu0 %v713, 124
        %v865 = vpop.permute.xlu0 %864
        %866 = vrot.lane.b32.xlu0 %v714, 124
        %v867 = vpop.permute.xlu0 %866
        %868 = vrot.lane.b32.xlu0 %v715, 124
        %v869 = vpop.permute.xlu0 %868
        %870 = vrot.lane.b32.xlu0 %v716, 124
        %v871 = vpop.permute.xlu0 %870
        %872 = vrot.lane.b32.xlu0 %v717, 124
        %v873 = vpop.permute.xlu0 %872
        %874 = vrot.lane.b32.xlu0 %v718, 124
        %v875 = vpop.permute.xlu0 %874
        %876 = vrot.lane.b32.xlu0 %v719, 124
        %v877 = vpop.permute.xlu0 %876
        %878 = vrot.lane.b32.xlu0 %v720, 124
        %v879 = vpop.permute.xlu0 %878
        %880 = vrot.lane.b32.xlu0 %v721, 124
        %v881 = vpop.permute.xlu0 %880
        %882 = vrot.lane.b32.xlu0 %v722, 124
        %v883 = vpop.permute.xlu0 %882
        %884 = vrot.lane.b32.xlu0 %v723, 124
        %v885 = vpop.permute.xlu0 %884
        %886 = vrot.lane.b32.xlu0 %v724, 124
        %v887 = vpop.permute.xlu0 %886
        %888 = vrot.lane.b32.xlu0 %v725, 124
        %v889 = vpop.permute.xlu0 %888
        %v906 = vmul.f32 %v857, %v859
        %v907 = vmul.f32 %v857, %v861
        %v908 = vmul.f32 %v857, %v863
        %v909 = vmul.f32 %v857, %v865
        %v910 = vmul.f32 %v857, %v867
        %v911 = vmul.f32 %v857, %v869
        %v912 = vmul.f32 %v857, %v871
        %v913 = vmul.f32 %v857, %v873
        %v914 = vmul.f32 %v857, %v875
        %v915 = vmul.f32 %v857, %v877
        %v916 = vmul.f32 %v857, %v879
        %v917 = vmul.f32 %v857, %v881
        %v918 = vmul.f32 %v857, %v883
        %v919 = vmul.f32 %v857, %v885
        %v920 = vmul.f32 %v857, %v887
        %v921 = vmul.f32 %v857, %v889
        %v922 = vadd.f32 %v840, %v906
        %v923 = vadd.f32 %v841, %v907
        %v924 = vadd.f32 %v842, %v908
        %v925 = vadd.f32 %v843, %v909
        %v926 = vadd.f32 %v844, %v910
        %v927 = vadd.f32 %v845, %v911
        %v928 = vadd.f32 %v846, %v912
        %v929 = vadd.f32 %v847, %v913
        %v930 = vadd.f32 %v848, %v914
        %v931 = vadd.f32 %v849, %v915
        %v932 = vadd.f32 %v850, %v916
        %v933 = vadd.f32 %v851, %v917
        %v934 = vadd.f32 %v852, %v918
        %v935 = vadd.f32 %v853, %v919
        %v936 = vadd.f32 %v854, %v920
        %v937 = vadd.f32 %v855, %v921
        %s938 = scalar_lea.vmem %s282, 64 [#allocation2]
        %v939 = vld [vmem:[%s938] sm:$0xff]
        %940 = vrot.lane.b32.xlu0 %v710, 122
        %v941 = vpop.permute.xlu0 %940
        %942 = vrot.lane.b32.xlu0 %v711, 122
        %v943 = vpop.permute.xlu0 %942
        %944 = vrot.lane.b32.xlu0 %v712, 122
        %v945 = vpop.permute.xlu0 %944
        %946 = vrot.lane.b32.xlu0 %v713, 122
        %v947 = vpop.permute.xlu0 %946
        %948 = vrot.lane.b32.xlu0 %v714, 122
        %v949 = vpop.permute.xlu0 %948
        %950 = vrot.lane.b32.xlu0 %v715, 122
        %v951 = vpop.permute.xlu0 %950
        %952 = vrot.lane.b32.xlu0 %v716, 122
        %v953 = vpop.permute.xlu0 %952
        %954 = vrot.lane.b32.xlu0 %v717, 122
        %v955 = vpop.permute.xlu0 %954
        %956 = vrot.lane.b32.xlu0 %v718, 122
        %v957 = vpop.permute.xlu0 %956
        %958 = vrot.lane.b32.xlu0 %v719, 122
        %v959 = vpop.permute.xlu0 %958
        %960 = vrot.lane.b32.xlu0 %v720, 122
        %v961 = vpop.permute.xlu0 %960
        %962 = vrot.lane.b32.xlu0 %v721, 122
        %v963 = vpop.permute.xlu0 %962
        %964 = vrot.lane.b32.xlu0 %v722, 122
        %v965 = vpop.permute.xlu0 %964
        %966 = vrot.lane.b32.xlu0 %v723, 122
        %v967 = vpop.permute.xlu0 %966
        %968 = vrot.lane.b32.xlu0 %v724, 122
        %v969 = vpop.permute.xlu0 %968
        %970 = vrot.lane.b32.xlu0 %v725, 122
        %v971 = vpop.permute.xlu0 %970
        %v988 = vmul.f32 %v939, %v941
        %v989 = vmul.f32 %v939, %v943
        %v990 = vmul.f32 %v939, %v945
        %v991 = vmul.f32 %v939, %v947
        %v992 = vmul.f32 %v939, %v949
        %v993 = vmul.f32 %v939, %v951
        %v994 = vmul.f32 %v939, %v953
        %v995 = vmul.f32 %v939, %v955
        %v996 = vmul.f32 %v939, %v957
        %v997 = vmul.f32 %v939, %v959
        %v998 = vmul.f32 %v939, %v961
        %v999 = vmul.f32 %v939, %v963
        %v1000 = vmul.f32 %v939, %v965
        %v1001 = vmul.f32 %v939, %v967
        %v1002 = vmul.f32 %v939, %v969
        %v1003 = vmul.f32 %v939, %v971
        %v1004 = vadd.f32 %v922, %v988
        %v1005 = vadd.f32 %v923, %v989
        %v1006 = vadd.f32 %v924, %v990
        %v1007 = vadd.f32 %v925, %v991
        %v1008 = vadd.f32 %v926, %v992
        %v1009 = vadd.f32 %v927, %v993
        %v1010 = vadd.f32 %v928, %v994
        %v1011 = vadd.f32 %v929, %v995
        %v1012 = vadd.f32 %v930, %v996
        %v1013 = vadd.f32 %v931, %v997
        %v1014 = vadd.f32 %v932, %v998
        %v1015 = vadd.f32 %v933, %v999
        %v1016 = vadd.f32 %v934, %v1000
        %v1017 = vadd.f32 %v935, %v1001
        %v1018 = vadd.f32 %v936, %v1002
        %v1019 = vadd.f32 %v937, %v1003
        %s1020 = scalar_lea.vmem %s282, 72 [#allocation2]
        %v1021 = vld [vmem:[%s1020] sm:$0xff]
        %1022 = vrot.lane.b32.xlu0 %v710, 120
        %v1023 = vpop.permute.xlu0 %1022
        %1024 = vrot.lane.b32.xlu0 %v711, 120
        %v1025 = vpop.permute.xlu0 %1024
        %1026 = vrot.lane.b32.xlu0 %v712, 120
        %v1027 = vpop.permute.xlu0 %1026
        %1028 = vrot.lane.b32.xlu0 %v713, 120
        %v1029 = vpop.permute.xlu0 %1028
        %1030 = vrot.lane.b32.xlu0 %v714, 120
        %v1031 = vpop.permute.xlu0 %1030
        %1032 = vrot.lane.b32.xlu0 %v715, 120
        %v1033 = vpop.permute.xlu0 %1032
        %1034 = vrot.lane.b32.xlu0 %v716, 120
        %v1035 = vpop.permute.xlu0 %1034
        %1036 = vrot.lane.b32.xlu0 %v717, 120
        %v1037 = vpop.permute.xlu0 %1036
        %1038 = vrot.lane.b32.xlu0 %v718, 120
        %v1039 = vpop.permute.xlu0 %1038
        %1040 = vrot.lane.b32.xlu0 %v719, 120
        %v1041 = vpop.permute.xlu0 %1040
        %1042 = vrot.lane.b32.xlu0 %v720, 120
        %v1043 = vpop.permute.xlu0 %1042
        %1044 = vrot.lane.b32.xlu0 %v721, 120
        %v1045 = vpop.permute.xlu0 %1044
        %1046 = vrot.lane.b32.xlu0 %v722, 120
        %v1047 = vpop.permute.xlu0 %1046
        %1048 = vrot.lane.b32.xlu0 %v723, 120
        %v1049 = vpop.permute.xlu0 %1048
        %1050 = vrot.lane.b32.xlu0 %v724, 120
        %v1051 = vpop.permute.xlu0 %1050
        %1052 = vrot.lane.b32.xlu0 %v725, 120
        %v1053 = vpop.permute.xlu0 %1052
        %v1070 = vmul.f32 %v1021, %v1023
        %v1071 = vmul.f32 %v1021, %v1025
        %v1072 = vmul.f32 %v1021, %v1027
        %v1073 = vmul.f32 %v1021, %v1029
        %v1074 = vmul.f32 %v1021, %v1031
        %v1075 = vmul.f32 %v1021, %v1033
        %v1076 = vmul.f32 %v1021, %v1035
        %v1077 = vmul.f32 %v1021, %v1037
        %v1078 = vmul.f32 %v1021, %v1039
        %v1079 = vmul.f32 %v1021, %v1041
        %v1080 = vmul.f32 %v1021, %v1043
        %v1081 = vmul.f32 %v1021, %v1045
        %v1082 = vmul.f32 %v1021, %v1047
        %v1083 = vmul.f32 %v1021, %v1049
        %v1084 = vmul.f32 %v1021, %v1051
        %v1085 = vmul.f32 %v1021, %v1053
        %v1086 = vadd.f32 %v1004, %v1070
        %v1087 = vadd.f32 %v1005, %v1071
        %v1088 = vadd.f32 %v1006, %v1072
        %v1089 = vadd.f32 %v1007, %v1073
        %v1090 = vadd.f32 %v1008, %v1074
        %v1091 = vadd.f32 %v1009, %v1075
        %v1092 = vadd.f32 %v1010, %v1076
        %v1093 = vadd.f32 %v1011, %v1077
        %v1094 = vadd.f32 %v1012, %v1078
        %v1095 = vadd.f32 %v1013, %v1079
        %v1096 = vadd.f32 %v1014, %v1080
        %v1097 = vadd.f32 %v1015, %v1081
        %v1098 = vadd.f32 %v1016, %v1082
        %v1099 = vadd.f32 %v1017, %v1083
        %v1100 = vadd.f32 %v1018, %v1084
        %v1101 = vadd.f32 %v1019, %v1085
        %s1102 = scalar_lea.vmem %s282, 80 [#allocation2]
        %v1103 = vld [vmem:[%s1102] sm:$0xff]
        %s1104 = sadd.s32 %s311, 4
        %s1105 = scalar_lea.vmem %s310, %s1104
        %v1106 = vld [vmem:[%s1105] sm:$0xff]
        %v1107 = vld [vmem:[%s1105 + $0x28] sm:$0xff]
        %v1108 = vld [vmem:[%s1105 + $0x50] sm:$0xff]
        %v1109 = vld [vmem:[%s1105 + $0x78] sm:$0xff]
        %v1110 = vld [vmem:[%s1105 + $0xa0] sm:$0xff]
        %v1111 = vld [vmem:[%s1105 + $0xc8] sm:$0xff]
        %v1112 = vld [vmem:[%s1105 + $0xf0] sm:$0xff]
        %v1113 = vld [vmem:[%s1105 + $0x118] sm:$0xff]
        %v1114 = vld [vmem:[%s1105 + $0x140] sm:$0xff]
        %v1115 = vld [vmem:[%s1105 + $0x168] sm:$0xff]
        %v1116 = vld [vmem:[%s1105 + $0x190] sm:$0xff]
        %v1117 = vld [vmem:[%s1105 + $0x1b8] sm:$0xff]
        %v1118 = vld [vmem:[%s1105 + $0x1e0] sm:$0xff]
        %v1119 = vld [vmem:[%s1105 + $0x208] sm:$0xff]
        %v1120 = vld [vmem:[%s1105 + $0x230] sm:$0xff]
        %v1121 = vld [vmem:[%s1105 + $0x258] sm:$0xff]
        %v1122 = vmul.f32 %v1103, %v1106
        %v1123 = vmul.f32 %v1103, %v1107
        %v1124 = vmul.f32 %v1103, %v1108
        %v1125 = vmul.f32 %v1103, %v1109
        %v1126 = vmul.f32 %v1103, %v1110
        %v1127 = vmul.f32 %v1103, %v1111
        %v1128 = vmul.f32 %v1103, %v1112
        %v1129 = vmul.f32 %v1103, %v1113
        %v1130 = vmul.f32 %v1103, %v1114
        %v1131 = vmul.f32 %v1103, %v1115
        %v1132 = vmul.f32 %v1103, %v1116
        %v1133 = vmul.f32 %v1103, %v1117
        %v1134 = vmul.f32 %v1103, %v1118
        %v1135 = vmul.f32 %v1103, %v1119
        %v1136 = vmul.f32 %v1103, %v1120
        %v1137 = vmul.f32 %v1103, %v1121
        %v1138 = vadd.f32 %v1086, %v1122
        %v1139 = vadd.f32 %v1087, %v1123
        %v1140 = vadd.f32 %v1088, %v1124
        %v1141 = vadd.f32 %v1089, %v1125
        %v1142 = vadd.f32 %v1090, %v1126
        %v1143 = vadd.f32 %v1091, %v1127
        %v1144 = vadd.f32 %v1092, %v1128
        %v1145 = vadd.f32 %v1093, %v1129
        %v1146 = vadd.f32 %v1094, %v1130
        %v1147 = vadd.f32 %v1095, %v1131
        %v1148 = vadd.f32 %v1096, %v1132
        %v1149 = vadd.f32 %v1097, %v1133
        %v1150 = vadd.f32 %v1098, %v1134
        %v1151 = vadd.f32 %v1099, %v1135
        %v1152 = vadd.f32 %v1100, %v1136
        %v1153 = vadd.f32 %v1101, %v1137
        %s1154 = scalar_lea.vmem %s282, 88 [#allocation2]
        %v1155 = vld [vmem:[%s1154] sm:$0xff]
        %1172 = vrot.lane.b32.xlu0 %v1106, 126
        %v1173 = vpop.permute.xlu0 %1172
        %1174 = vrot.lane.b32.xlu0 %v1107, 126
        %v1175 = vpop.permute.xlu0 %1174
        %1176 = vrot.lane.b32.xlu0 %v1108, 126
        %v1177 = vpop.permute.xlu0 %1176
        %1178 = vrot.lane.b32.xlu0 %v1109, 126
        %v1179 = vpop.permute.xlu0 %1178
        %1180 = vrot.lane.b32.xlu0 %v1110, 126
        %v1181 = vpop.permute.xlu0 %1180
        %1182 = vrot.lane.b32.xlu0 %v1111, 126
        %v1183 = vpop.permute.xlu0 %1182
        %1184 = vrot.lane.b32.xlu0 %v1112, 126
        %v1185 = vpop.permute.xlu0 %1184
        %1186 = vrot.lane.b32.xlu0 %v1113, 126
        %v1187 = vpop.permute.xlu0 %1186
        %1188 = vrot.lane.b32.xlu0 %v1114, 126
        %v1189 = vpop.permute.xlu0 %1188
        %1190 = vrot.lane.b32.xlu0 %v1115, 126
        %v1191 = vpop.permute.xlu0 %1190
        %1192 = vrot.lane.b32.xlu0 %v1116, 126
        %v1193 = vpop.permute.xlu0 %1192
        %1194 = vrot.lane.b32.xlu0 %v1117, 126
        %v1195 = vpop.permute.xlu0 %1194
        %1196 = vrot.lane.b32.xlu0 %v1118, 126
        %v1197 = vpop.permute.xlu0 %1196
        %1198 = vrot.lane.b32.xlu0 %v1119, 126
        %v1199 = vpop.permute.xlu0 %1198
        %1200 = vrot.lane.b32.xlu0 %v1120, 126
        %v1201 = vpop.permute.xlu0 %1200
        %1202 = vrot.lane.b32.xlu0 %v1121, 126
        %v1203 = vpop.permute.xlu0 %1202
        %v1220 = vmul.f32 %v1155, %v1173
        %v1221 = vmul.f32 %v1155, %v1175
        %v1222 = vmul.f32 %v1155, %v1177
        %v1223 = vmul.f32 %v1155, %v1179
        %v1224 = vmul.f32 %v1155, %v1181
        %v1225 = vmul.f32 %v1155, %v1183
        %v1226 = vmul.f32 %v1155, %v1185
        %v1227 = vmul.f32 %v1155, %v1187
        %v1228 = vmul.f32 %v1155, %v1189
        %v1229 = vmul.f32 %v1155, %v1191
        %v1230 = vmul.f32 %v1155, %v1193
        %v1231 = vmul.f32 %v1155, %v1195
        %v1232 = vmul.f32 %v1155, %v1197
        %v1233 = vmul.f32 %v1155, %v1199
        %v1234 = vmul.f32 %v1155, %v1201
        %v1235 = vmul.f32 %v1155, %v1203
        %v1236 = vadd.f32 %v1138, %v1220
        %v1237 = vadd.f32 %v1139, %v1221
        %v1238 = vadd.f32 %v1140, %v1222
        %v1239 = vadd.f32 %v1141, %v1223
        %v1240 = vadd.f32 %v1142, %v1224
        %v1241 = vadd.f32 %v1143, %v1225
        %v1242 = vadd.f32 %v1144, %v1226
        %v1243 = vadd.f32 %v1145, %v1227
        %v1244 = vadd.f32 %v1146, %v1228
        %v1245 = vadd.f32 %v1147, %v1229
        %v1246 = vadd.f32 %v1148, %v1230
        %v1247 = vadd.f32 %v1149, %v1231
        %v1248 = vadd.f32 %v1150, %v1232
        %v1249 = vadd.f32 %v1151, %v1233
        %v1250 = vadd.f32 %v1152, %v1234
        %v1251 = vadd.f32 %v1153, %v1235
        %s1252 = scalar_lea.vmem %s282, 96 [#allocation2]
        %v1253 = vld [vmem:[%s1252] sm:$0xff]
        %1254 = vrot.lane.b32.xlu0 %v1106, 124
        %v1255 = vpop.permute.xlu0 %1254
        %1256 = vrot.lane.b32.xlu0 %v1107, 124
        %v1257 = vpop.permute.xlu0 %1256
        %1258 = vrot.lane.b32.xlu0 %v1108, 124
        %v1259 = vpop.permute.xlu0 %1258
        %1260 = vrot.lane.b32.xlu0 %v1109, 124
        %v1261 = vpop.permute.xlu0 %1260
        %1262 = vrot.lane.b32.xlu0 %v1110, 124
        %v1263 = vpop.permute.xlu0 %1262
        %1264 = vrot.lane.b32.xlu0 %v1111, 124
        %v1265 = vpop.permute.xlu0 %1264
        %1266 = vrot.lane.b32.xlu0 %v1112, 124
        %v1267 = vpop.permute.xlu0 %1266
        %1268 = vrot.lane.b32.xlu0 %v1113, 124
        %v1269 = vpop.permute.xlu0 %1268
        %1270 = vrot.lane.b32.xlu0 %v1114, 124
        %v1271 = vpop.permute.xlu0 %1270
        %1272 = vrot.lane.b32.xlu0 %v1115, 124
        %v1273 = vpop.permute.xlu0 %1272
        %1274 = vrot.lane.b32.xlu0 %v1116, 124
        %v1275 = vpop.permute.xlu0 %1274
        %1276 = vrot.lane.b32.xlu0 %v1117, 124
        %v1277 = vpop.permute.xlu0 %1276
        %1278 = vrot.lane.b32.xlu0 %v1118, 124
        %v1279 = vpop.permute.xlu0 %1278
        %1280 = vrot.lane.b32.xlu0 %v1119, 124
        %v1281 = vpop.permute.xlu0 %1280
        %1282 = vrot.lane.b32.xlu0 %v1120, 124
        %v1283 = vpop.permute.xlu0 %1282
        %1284 = vrot.lane.b32.xlu0 %v1121, 124
        %v1285 = vpop.permute.xlu0 %1284
        %v1302 = vmul.f32 %v1253, %v1255
        %v1303 = vmul.f32 %v1253, %v1257
        %v1304 = vmul.f32 %v1253, %v1259
        %v1305 = vmul.f32 %v1253, %v1261
        %v1306 = vmul.f32 %v1253, %v1263
        %v1307 = vmul.f32 %v1253, %v1265
        %v1308 = vmul.f32 %v1253, %v1267
        %v1309 = vmul.f32 %v1253, %v1269
        %v1310 = vmul.f32 %v1253, %v1271
        %v1311 = vmul.f32 %v1253, %v1273
        %v1312 = vmul.f32 %v1253, %v1275
        %v1313 = vmul.f32 %v1253, %v1277
        %v1314 = vmul.f32 %v1253, %v1279
        %v1315 = vmul.f32 %v1253, %v1281
        %v1316 = vmul.f32 %v1253, %v1283
        %v1317 = vmul.f32 %v1253, %v1285
        %v1318 = vadd.f32 %v1236, %v1302
        %v1319 = vadd.f32 %v1237, %v1303
        %v1320 = vadd.f32 %v1238, %v1304
        %v1321 = vadd.f32 %v1239, %v1305
        %v1322 = vadd.f32 %v1240, %v1306
        %v1323 = vadd.f32 %v1241, %v1307
        %v1324 = vadd.f32 %v1242, %v1308
        %v1325 = vadd.f32 %v1243, %v1309
        %v1326 = vadd.f32 %v1244, %v1310
        %v1327 = vadd.f32 %v1245, %v1311
        %v1328 = vadd.f32 %v1246, %v1312
        %v1329 = vadd.f32 %v1247, %v1313
        %v1330 = vadd.f32 %v1248, %v1314
        %v1331 = vadd.f32 %v1249, %v1315
        %v1332 = vadd.f32 %v1250, %v1316
        %v1333 = vadd.f32 %v1251, %v1317
        %s1334 = scalar_lea.vmem %s282, 104 [#allocation2]
        %v1335 = vld [vmem:[%s1334] sm:$0xff]
        %1336 = vrot.lane.b32.xlu0 %v1106, 122
        %v1337 = vpop.permute.xlu0 %1336
        %1338 = vrot.lane.b32.xlu0 %v1107, 122
        %v1339 = vpop.permute.xlu0 %1338
        %1340 = vrot.lane.b32.xlu0 %v1108, 122
        %v1341 = vpop.permute.xlu0 %1340
        %1342 = vrot.lane.b32.xlu0 %v1109, 122
        %v1343 = vpop.permute.xlu0 %1342
        %1344 = vrot.lane.b32.xlu0 %v1110, 122
        %v1345 = vpop.permute.xlu0 %1344
        %1346 = vrot.lane.b32.xlu0 %v1111, 122
        %v1347 = vpop.permute.xlu0 %1346
        %1348 = vrot.lane.b32.xlu0 %v1112, 122
        %v1349 = vpop.permute.xlu0 %1348
        %1350 = vrot.lane.b32.xlu0 %v1113, 122
        %v1351 = vpop.permute.xlu0 %1350
        %1352 = vrot.lane.b32.xlu0 %v1114, 122
        %v1353 = vpop.permute.xlu0 %1352
        %1354 = vrot.lane.b32.xlu0 %v1115, 122
        %v1355 = vpop.permute.xlu0 %1354
        %1356 = vrot.lane.b32.xlu0 %v1116, 122
        %v1357 = vpop.permute.xlu0 %1356
        %1358 = vrot.lane.b32.xlu0 %v1117, 122
        %v1359 = vpop.permute.xlu0 %1358
        %1360 = vrot.lane.b32.xlu0 %v1118, 122
        %v1361 = vpop.permute.xlu0 %1360
        %1362 = vrot.lane.b32.xlu0 %v1119, 122
        %v1363 = vpop.permute.xlu0 %1362
        %1364 = vrot.lane.b32.xlu0 %v1120, 122
        %v1365 = vpop.permute.xlu0 %1364
        %1366 = vrot.lane.b32.xlu0 %v1121, 122
        %v1367 = vpop.permute.xlu0 %1366
        %v1384 = vmul.f32 %v1335, %v1337
        %v1385 = vmul.f32 %v1335, %v1339
        %v1386 = vmul.f32 %v1335, %v1341
        %v1387 = vmul.f32 %v1335, %v1343
        %v1388 = vmul.f32 %v1335, %v1345
        %v1389 = vmul.f32 %v1335, %v1347
        %v1390 = vmul.f32 %v1335, %v1349
        %v1391 = vmul.f32 %v1335, %v1351
        %v1392 = vmul.f32 %v1335, %v1353
        %v1393 = vmul.f32 %v1335, %v1355
        %v1394 = vmul.f32 %v1335, %v1357
        %v1395 = vmul.f32 %v1335, %v1359
        %v1396 = vmul.f32 %v1335, %v1361
        %v1397 = vmul.f32 %v1335, %v1363
        %v1398 = vmul.f32 %v1335, %v1365
        %v1399 = vmul.f32 %v1335, %v1367
        %v1400 = vadd.f32 %v1318, %v1384
        %v1401 = vadd.f32 %v1319, %v1385
        %v1402 = vadd.f32 %v1320, %v1386
        %v1403 = vadd.f32 %v1321, %v1387
        %v1404 = vadd.f32 %v1322, %v1388
        %v1405 = vadd.f32 %v1323, %v1389
        %v1406 = vadd.f32 %v1324, %v1390
        %v1407 = vadd.f32 %v1325, %v1391
        %v1408 = vadd.f32 %v1326, %v1392
        %v1409 = vadd.f32 %v1327, %v1393
        %v1410 = vadd.f32 %v1328, %v1394
        %v1411 = vadd.f32 %v1329, %v1395
        %v1412 = vadd.f32 %v1330, %v1396
        %v1413 = vadd.f32 %v1331, %v1397
        %v1414 = vadd.f32 %v1332, %v1398
        %v1415 = vadd.f32 %v1333, %v1399
        %s1416 = scalar_lea.vmem %s282, 112 [#allocation2]
        %v1417 = vld [vmem:[%s1416] sm:$0xff]
        %1418 = vrot.lane.b32.xlu0 %v1106, 120
        %v1419 = vpop.permute.xlu0 %1418
        %1420 = vrot.lane.b32.xlu0 %v1107, 120
        %v1421 = vpop.permute.xlu0 %1420
        %1422 = vrot.lane.b32.xlu0 %v1108, 120
        %v1423 = vpop.permute.xlu0 %1422
        %1424 = vrot.lane.b32.xlu0 %v1109, 120
        %v1425 = vpop.permute.xlu0 %1424
        %1426 = vrot.lane.b32.xlu0 %v1110, 120
        %v1427 = vpop.permute.xlu0 %1426
        %1428 = vrot.lane.b32.xlu0 %v1111, 120
        %v1429 = vpop.permute.xlu0 %1428
        %1430 = vrot.lane.b32.xlu0 %v1112, 120
        %v1431 = vpop.permute.xlu0 %1430
        %1432 = vrot.lane.b32.xlu0 %v1113, 120
        %v1433 = vpop.permute.xlu0 %1432
        %1434 = vrot.lane.b32.xlu0 %v1114, 120
        %v1435 = vpop.permute.xlu0 %1434
        %1436 = vrot.lane.b32.xlu0 %v1115, 120
        %v1437 = vpop.permute.xlu0 %1436
        %1438 = vrot.lane.b32.xlu0 %v1116, 120
        %v1439 = vpop.permute.xlu0 %1438
        %1440 = vrot.lane.b32.xlu0 %v1117, 120
        %v1441 = vpop.permute.xlu0 %1440
        %1442 = vrot.lane.b32.xlu0 %v1118, 120
        %v1443 = vpop.permute.xlu0 %1442
        %1444 = vrot.lane.b32.xlu0 %v1119, 120
        %v1445 = vpop.permute.xlu0 %1444
        %1446 = vrot.lane.b32.xlu0 %v1120, 120
        %v1447 = vpop.permute.xlu0 %1446
        %1448 = vrot.lane.b32.xlu0 %v1121, 120
        %v1449 = vpop.permute.xlu0 %1448
        %v1466 = vmul.f32 %v1417, %v1419
        %v1467 = vmul.f32 %v1417, %v1421
        %v1468 = vmul.f32 %v1417, %v1423
        %v1469 = vmul.f32 %v1417, %v1425
        %v1470 = vmul.f32 %v1417, %v1427
        %v1471 = vmul.f32 %v1417, %v1429
        %v1472 = vmul.f32 %v1417, %v1431
        %v1473 = vmul.f32 %v1417, %v1433
        %v1474 = vmul.f32 %v1417, %v1435
        %v1475 = vmul.f32 %v1417, %v1437
        %v1476 = vmul.f32 %v1417, %v1439
        %v1477 = vmul.f32 %v1417, %v1441
        %v1478 = vmul.f32 %v1417, %v1443
        %v1479 = vmul.f32 %v1417, %v1445
        %v1480 = vmul.f32 %v1417, %v1447
        %v1481 = vmul.f32 %v1417, %v1449
        %v1482 = vadd.f32 %v1400, %v1466
        %v1483 = vadd.f32 %v1401, %v1467
        %v1484 = vadd.f32 %v1402, %v1468
        %v1485 = vadd.f32 %v1403, %v1469
        %v1486 = vadd.f32 %v1404, %v1470
        %v1487 = vadd.f32 %v1405, %v1471
        %v1488 = vadd.f32 %v1406, %v1472
        %v1489 = vadd.f32 %v1407, %v1473
        %v1490 = vadd.f32 %v1408, %v1474
        %v1491 = vadd.f32 %v1409, %v1475
        %v1492 = vadd.f32 %v1410, %v1476
        %v1493 = vadd.f32 %v1411, %v1477
        %v1494 = vadd.f32 %v1412, %v1478
        %v1495 = vadd.f32 %v1413, %v1479
        %v1496 = vadd.f32 %v1414, %v1480
        %v1497 = vadd.f32 %v1415, %v1481
        %s1498 = scalar_lea.vmem %s282, 120 [#allocation2]
        %v1499 = vld [vmem:[%s1498] sm:$0xff]
        %s1500 = sadd.s32 %s311, 6
        %s1501 = scalar_lea.vmem %s310, %s1500
        %v1502 = vld [vmem:[%s1501] sm:$0xff]
        %v1503 = vld [vmem:[%s1501 + $0x28] sm:$0xff]
        %v1504 = vld [vmem:[%s1501 + $0x50] sm:$0xff]
        %v1505 = vld [vmem:[%s1501 + $0x78] sm:$0xff]
        %v1506 = vld [vmem:[%s1501 + $0xa0] sm:$0xff]
        %v1507 = vld [vmem:[%s1501 + $0xc8] sm:$0xff]
        %v1508 = vld [vmem:[%s1501 + $0xf0] sm:$0xff]
        %v1509 = vld [vmem:[%s1501 + $0x118] sm:$0xff]
        %v1510 = vld [vmem:[%s1501 + $0x140] sm:$0xff]
        %v1511 = vld [vmem:[%s1501 + $0x168] sm:$0xff]
        %v1512 = vld [vmem:[%s1501 + $0x190] sm:$0xff]
        %v1513 = vld [vmem:[%s1501 + $0x1b8] sm:$0xff]
        %v1514 = vld [vmem:[%s1501 + $0x1e0] sm:$0xff]
        %v1515 = vld [vmem:[%s1501 + $0x208] sm:$0xff]
        %v1516 = vld [vmem:[%s1501 + $0x230] sm:$0xff]
        %v1517 = vld [vmem:[%s1501 + $0x258] sm:$0xff]
        %v1518 = vmul.f32 %v1499, %v1502
        %v1519 = vmul.f32 %v1499, %v1503
        %v1520 = vmul.f32 %v1499, %v1504
        %v1521 = vmul.f32 %v1499, %v1505
        %v1522 = vmul.f32 %v1499, %v1506
        %v1523 = vmul.f32 %v1499, %v1507
        %v1524 = vmul.f32 %v1499, %v1508
        %v1525 = vmul.f32 %v1499, %v1509
        %v1526 = vmul.f32 %v1499, %v1510
        %v1527 = vmul.f32 %v1499, %v1511
        %v1528 = vmul.f32 %v1499, %v1512
        %v1529 = vmul.f32 %v1499, %v1513
        %v1530 = vmul.f32 %v1499, %v1514
        %v1531 = vmul.f32 %v1499, %v1515
        %v1532 = vmul.f32 %v1499, %v1516
        %v1533 = vmul.f32 %v1499, %v1517
        %v1534 = vadd.f32 %v1482, %v1518
        %v1535 = vadd.f32 %v1483, %v1519
        %v1536 = vadd.f32 %v1484, %v1520
        %v1537 = vadd.f32 %v1485, %v1521
        %v1538 = vadd.f32 %v1486, %v1522
        %v1539 = vadd.f32 %v1487, %v1523
        %v1540 = vadd.f32 %v1488, %v1524
        %v1541 = vadd.f32 %v1489, %v1525
        %v1542 = vadd.f32 %v1490, %v1526
        %v1543 = vadd.f32 %v1491, %v1527
        %v1544 = vadd.f32 %v1492, %v1528
        %v1545 = vadd.f32 %v1493, %v1529
        %v1546 = vadd.f32 %v1494, %v1530
        %v1547 = vadd.f32 %v1495, %v1531
        %v1548 = vadd.f32 %v1496, %v1532
        %v1549 = vadd.f32 %v1497, %v1533
        %s1550 = scalar_lea.vmem %s282, 128 [#allocation2]
        %v1551 = vld [vmem:[%s1550] sm:$0xff]
        %1568 = vrot.lane.b32.xlu0 %v1502, 126
        %v1569 = vpop.permute.xlu0 %1568
        %1570 = vrot.lane.b32.xlu0 %v1503, 126
        %v1571 = vpop.permute.xlu0 %1570
        %1572 = vrot.lane.b32.xlu0 %v1504, 126
        %v1573 = vpop.permute.xlu0 %1572
        %1574 = vrot.lane.b32.xlu0 %v1505, 126
        %v1575 = vpop.permute.xlu0 %1574
        %1576 = vrot.lane.b32.xlu0 %v1506, 126
        %v1577 = vpop.permute.xlu0 %1576
        %1578 = vrot.lane.b32.xlu0 %v1507, 126
        %v1579 = vpop.permute.xlu0 %1578
        %1580 = vrot.lane.b32.xlu0 %v1508, 126
        %v1581 = vpop.permute.xlu0 %1580
        %1582 = vrot.lane.b32.xlu0 %v1509, 126
        %v1583 = vpop.permute.xlu0 %1582
        %1584 = vrot.lane.b32.xlu0 %v1510, 126
        %v1585 = vpop.permute.xlu0 %1584
        %1586 = vrot.lane.b32.xlu0 %v1511, 126
        %v1587 = vpop.permute.xlu0 %1586
        %1588 = vrot.lane.b32.xlu0 %v1512, 126
        %v1589 = vpop.permute.xlu0 %1588
        %1590 = vrot.lane.b32.xlu0 %v1513, 126
        %v1591 = vpop.permute.xlu0 %1590
        %1592 = vrot.lane.b32.xlu0 %v1514, 126
        %v1593 = vpop.permute.xlu0 %1592
        %1594 = vrot.lane.b32.xlu0 %v1515, 126
        %v1595 = vpop.permute.xlu0 %1594
        %1596 = vrot.lane.b32.xlu0 %v1516, 126
        %v1597 = vpop.permute.xlu0 %1596
        %1598 = vrot.lane.b32.xlu0 %v1517, 126
        %v1599 = vpop.permute.xlu0 %1598
        %v1616 = vmul.f32 %v1551, %v1569
        %v1617 = vmul.f32 %v1551, %v1571
        %v1618 = vmul.f32 %v1551, %v1573
        %v1619 = vmul.f32 %v1551, %v1575
        %v1620 = vmul.f32 %v1551, %v1577
        %v1621 = vmul.f32 %v1551, %v1579
        %v1622 = vmul.f32 %v1551, %v1581
        %v1623 = vmul.f32 %v1551, %v1583
        %v1624 = vmul.f32 %v1551, %v1585
        %v1625 = vmul.f32 %v1551, %v1587
        %v1626 = vmul.f32 %v1551, %v1589
        %v1627 = vmul.f32 %v1551, %v1591
        %v1628 = vmul.f32 %v1551, %v1593
        %v1629 = vmul.f32 %v1551, %v1595
        %v1630 = vmul.f32 %v1551, %v1597
        %v1631 = vmul.f32 %v1551, %v1599
        %v1632 = vadd.f32 %v1534, %v1616
        %v1633 = vadd.f32 %v1535, %v1617
        %v1634 = vadd.f32 %v1536, %v1618
        %v1635 = vadd.f32 %v1537, %v1619
        %v1636 = vadd.f32 %v1538, %v1620
        %v1637 = vadd.f32 %v1539, %v1621
        %v1638 = vadd.f32 %v1540, %v1622
        %v1639 = vadd.f32 %v1541, %v1623
        %v1640 = vadd.f32 %v1542, %v1624
        %v1641 = vadd.f32 %v1543, %v1625
        %v1642 = vadd.f32 %v1544, %v1626
        %v1643 = vadd.f32 %v1545, %v1627
        %v1644 = vadd.f32 %v1546, %v1628
        %v1645 = vadd.f32 %v1547, %v1629
        %v1646 = vadd.f32 %v1548, %v1630
        %v1647 = vadd.f32 %v1549, %v1631
        %s1648 = scalar_lea.vmem %s282, 136 [#allocation2]
        %v1649 = vld [vmem:[%s1648] sm:$0xff]
        %1650 = vrot.lane.b32.xlu0 %v1502, 124
        %v1651 = vpop.permute.xlu0 %1650
        %1652 = vrot.lane.b32.xlu0 %v1503, 124
        %v1653 = vpop.permute.xlu0 %1652
        %1654 = vrot.lane.b32.xlu0 %v1504, 124
        %v1655 = vpop.permute.xlu0 %1654
        %1656 = vrot.lane.b32.xlu0 %v1505, 124
        %v1657 = vpop.permute.xlu0 %1656
        %1658 = vrot.lane.b32.xlu0 %v1506, 124
        %v1659 = vpop.permute.xlu0 %1658
        %1660 = vrot.lane.b32.xlu0 %v1507, 124
        %v1661 = vpop.permute.xlu0 %1660
        %1662 = vrot.lane.b32.xlu0 %v1508, 124
        %v1663 = vpop.permute.xlu0 %1662
        %1664 = vrot.lane.b32.xlu0 %v1509, 124
        %v1665 = vpop.permute.xlu0 %1664
        %1666 = vrot.lane.b32.xlu0 %v1510, 124
        %v1667 = vpop.permute.xlu0 %1666
        %1668 = vrot.lane.b32.xlu0 %v1511, 124
        %v1669 = vpop.permute.xlu0 %1668
        %1670 = vrot.lane.b32.xlu0 %v1512, 124
        %v1671 = vpop.permute.xlu0 %1670
        %1672 = vrot.lane.b32.xlu0 %v1513, 124
        %v1673 = vpop.permute.xlu0 %1672
        %1674 = vrot.lane.b32.xlu0 %v1514, 124
        %v1675 = vpop.permute.xlu0 %1674
        %1676 = vrot.lane.b32.xlu0 %v1515, 124
        %v1677 = vpop.permute.xlu0 %1676
        %1678 = vrot.lane.b32.xlu0 %v1516, 124
        %v1679 = vpop.permute.xlu0 %1678
        %1680 = vrot.lane.b32.xlu0 %v1517, 124
        %v1681 = vpop.permute.xlu0 %1680
        %v1698 = vmul.f32 %v1649, %v1651
        %v1699 = vmul.f32 %v1649, %v1653
        %v1700 = vmul.f32 %v1649, %v1655
        %v1701 = vmul.f32 %v1649, %v1657
        %v1702 = vmul.f32 %v1649, %v1659
        %v1703 = vmul.f32 %v1649, %v1661
        %v1704 = vmul.f32 %v1649, %v1663
        %v1705 = vmul.f32 %v1649, %v1665
        %v1706 = vmul.f32 %v1649, %v1667
        %v1707 = vmul.f32 %v1649, %v1669
        %v1708 = vmul.f32 %v1649, %v1671
        %v1709 = vmul.f32 %v1649, %v1673
        %v1710 = vmul.f32 %v1649, %v1675
        %v1711 = vmul.f32 %v1649, %v1677
        %v1712 = vmul.f32 %v1649, %v1679
        %v1713 = vmul.f32 %v1649, %v1681
        %v1714 = vadd.f32 %v1632, %v1698
        %v1715 = vadd.f32 %v1633, %v1699
        %v1716 = vadd.f32 %v1634, %v1700
        %v1717 = vadd.f32 %v1635, %v1701
        %v1718 = vadd.f32 %v1636, %v1702
        %v1719 = vadd.f32 %v1637, %v1703
        %v1720 = vadd.f32 %v1638, %v1704
        %v1721 = vadd.f32 %v1639, %v1705
        %v1722 = vadd.f32 %v1640, %v1706
        %v1723 = vadd.f32 %v1641, %v1707
        %v1724 = vadd.f32 %v1642, %v1708
        %v1725 = vadd.f32 %v1643, %v1709
        %v1726 = vadd.f32 %v1644, %v1710
        %v1727 = vadd.f32 %v1645, %v1711
        %v1728 = vadd.f32 %v1646, %v1712
        %v1729 = vadd.f32 %v1647, %v1713
        %s1730 = scalar_lea.vmem %s282, 144 [#allocation2]
        %v1731 = vld [vmem:[%s1730] sm:$0xff]
        %1732 = vrot.lane.b32.xlu0 %v1502, 122
        %v1733 = vpop.permute.xlu0 %1732
        %1734 = vrot.lane.b32.xlu0 %v1503, 122
        %v1735 = vpop.permute.xlu0 %1734
        %1736 = vrot.lane.b32.xlu0 %v1504, 122
        %v1737 = vpop.permute.xlu0 %1736
        %1738 = vrot.lane.b32.xlu0 %v1505, 122
        %v1739 = vpop.permute.xlu0 %1738
        %1740 = vrot.lane.b32.xlu0 %v1506, 122
        %v1741 = vpop.permute.xlu0 %1740
        %1742 = vrot.lane.b32.xlu0 %v1507, 122
        %v1743 = vpop.permute.xlu0 %1742
        %1744 = vrot.lane.b32.xlu0 %v1508, 122
        %v1745 = vpop.permute.xlu0 %1744
        %1746 = vrot.lane.b32.xlu0 %v1509, 122
        %v1747 = vpop.permute.xlu0 %1746
        %1748 = vrot.lane.b32.xlu0 %v1510, 122
        %v1749 = vpop.permute.xlu0 %1748
        %1750 = vrot.lane.b32.xlu0 %v1511, 122
        %v1751 = vpop.permute.xlu0 %1750
        %1752 = vrot.lane.b32.xlu0 %v1512, 122
        %v1753 = vpop.permute.xlu0 %1752
        %1754 = vrot.lane.b32.xlu0 %v1513, 122
        %v1755 = vpop.permute.xlu0 %1754
        %1756 = vrot.lane.b32.xlu0 %v1514, 122
        %v1757 = vpop.permute.xlu0 %1756
        %1758 = vrot.lane.b32.xlu0 %v1515, 122
        %v1759 = vpop.permute.xlu0 %1758
        %1760 = vrot.lane.b32.xlu0 %v1516, 122
        %v1761 = vpop.permute.xlu0 %1760
        %1762 = vrot.lane.b32.xlu0 %v1517, 122
        %v1763 = vpop.permute.xlu0 %1762
        %v1780 = vmul.f32 %v1731, %v1733
        %v1781 = vmul.f32 %v1731, %v1735
        %v1782 = vmul.f32 %v1731, %v1737
        %v1783 = vmul.f32 %v1731, %v1739
        %v1784 = vmul.f32 %v1731, %v1741
        %v1785 = vmul.f32 %v1731, %v1743
        %v1786 = vmul.f32 %v1731, %v1745
        %v1787 = vmul.f32 %v1731, %v1747
        %v1788 = vmul.f32 %v1731, %v1749
        %v1789 = vmul.f32 %v1731, %v1751
        %v1790 = vmul.f32 %v1731, %v1753
        %v1791 = vmul.f32 %v1731, %v1755
        %v1792 = vmul.f32 %v1731, %v1757
        %v1793 = vmul.f32 %v1731, %v1759
        %v1794 = vmul.f32 %v1731, %v1761
        %v1795 = vmul.f32 %v1731, %v1763
        %v1796 = vadd.f32 %v1714, %v1780
        %v1797 = vadd.f32 %v1715, %v1781
        %v1798 = vadd.f32 %v1716, %v1782
        %v1799 = vadd.f32 %v1717, %v1783
        %v1800 = vadd.f32 %v1718, %v1784
        %v1801 = vadd.f32 %v1719, %v1785
        %v1802 = vadd.f32 %v1720, %v1786
        %v1803 = vadd.f32 %v1721, %v1787
        %v1804 = vadd.f32 %v1722, %v1788
        %v1805 = vadd.f32 %v1723, %v1789
        %v1806 = vadd.f32 %v1724, %v1790
        %v1807 = vadd.f32 %v1725, %v1791
        %v1808 = vadd.f32 %v1726, %v1792
        %v1809 = vadd.f32 %v1727, %v1793
        %v1810 = vadd.f32 %v1728, %v1794
        %v1811 = vadd.f32 %v1729, %v1795
        %s1812 = scalar_lea.vmem %s282, 152 [#allocation2]
        %v1813 = vld [vmem:[%s1812] sm:$0xff]
        %1814 = vrot.lane.b32.xlu0 %v1502, 120
        %v1815 = vpop.permute.xlu0 %1814
        %1816 = vrot.lane.b32.xlu0 %v1503, 120
        %v1817 = vpop.permute.xlu0 %1816
        %1818 = vrot.lane.b32.xlu0 %v1504, 120
        %v1819 = vpop.permute.xlu0 %1818
        %1820 = vrot.lane.b32.xlu0 %v1505, 120
        %v1821 = vpop.permute.xlu0 %1820
        %1822 = vrot.lane.b32.xlu0 %v1506, 120
        %v1823 = vpop.permute.xlu0 %1822
        %1824 = vrot.lane.b32.xlu0 %v1507, 120
        %v1825 = vpop.permute.xlu0 %1824
        %1826 = vrot.lane.b32.xlu0 %v1508, 120
        %v1827 = vpop.permute.xlu0 %1826
        %1828 = vrot.lane.b32.xlu0 %v1509, 120
        %v1829 = vpop.permute.xlu0 %1828
        %1830 = vrot.lane.b32.xlu0 %v1510, 120
        %v1831 = vpop.permute.xlu0 %1830
        %1832 = vrot.lane.b32.xlu0 %v1511, 120
        %v1833 = vpop.permute.xlu0 %1832
        %1834 = vrot.lane.b32.xlu0 %v1512, 120
        %v1835 = vpop.permute.xlu0 %1834
        %1836 = vrot.lane.b32.xlu0 %v1513, 120
        %v1837 = vpop.permute.xlu0 %1836
        %1838 = vrot.lane.b32.xlu0 %v1514, 120
        %v1839 = vpop.permute.xlu0 %1838
        %1840 = vrot.lane.b32.xlu0 %v1515, 120
        %v1841 = vpop.permute.xlu0 %1840
        %1842 = vrot.lane.b32.xlu0 %v1516, 120
        %v1843 = vpop.permute.xlu0 %1842
        %1844 = vrot.lane.b32.xlu0 %v1517, 120
        %v1845 = vpop.permute.xlu0 %1844
        %v1862 = vmul.f32 %v1813, %v1815
        %v1863 = vmul.f32 %v1813, %v1817
        %v1864 = vmul.f32 %v1813, %v1819
        %v1865 = vmul.f32 %v1813, %v1821
        %v1866 = vmul.f32 %v1813, %v1823
        %v1867 = vmul.f32 %v1813, %v1825
        %v1868 = vmul.f32 %v1813, %v1827
        %v1869 = vmul.f32 %v1813, %v1829
        %v1870 = vmul.f32 %v1813, %v1831
        %v1871 = vmul.f32 %v1813, %v1833
        %v1872 = vmul.f32 %v1813, %v1835
        %v1873 = vmul.f32 %v1813, %v1837
        %v1874 = vmul.f32 %v1813, %v1839
        %v1875 = vmul.f32 %v1813, %v1841
        %v1876 = vmul.f32 %v1813, %v1843
        %v1877 = vmul.f32 %v1813, %v1845
        %v1878 = vadd.f32 %v1796, %v1862
        %v1879 = vadd.f32 %v1797, %v1863
        %v1880 = vadd.f32 %v1798, %v1864
        %v1881 = vadd.f32 %v1799, %v1865
        %v1882 = vadd.f32 %v1800, %v1866
        %v1883 = vadd.f32 %v1801, %v1867
        %v1884 = vadd.f32 %v1802, %v1868
        %v1885 = vadd.f32 %v1803, %v1869
        %v1886 = vadd.f32 %v1804, %v1870
        %v1887 = vadd.f32 %v1805, %v1871
        %v1888 = vadd.f32 %v1806, %v1872
        %v1889 = vadd.f32 %v1807, %v1873
        %v1890 = vadd.f32 %v1808, %v1874
        %v1891 = vadd.f32 %v1809, %v1875
        %v1892 = vadd.f32 %v1810, %v1876
        %v1893 = vadd.f32 %v1811, %v1877
        %s1894 = scalar_lea.vmem %s282, 160 [#allocation2]
        %v1895 = vld [vmem:[%s1894] sm:$0xff]
        %s1896 = sadd.s32 %s311, 8
        %s1897 = scalar_lea.vmem %s310, %s1896
        %v1898 = vld [vmem:[%s1897] sm:$0xff]
        %v1899 = vld [vmem:[%s1897 + $0x28] sm:$0xff]
        %v1900 = vld [vmem:[%s1897 + $0x50] sm:$0xff]
        %v1901 = vld [vmem:[%s1897 + $0x78] sm:$0xff]
        %v1902 = vld [vmem:[%s1897 + $0xa0] sm:$0xff]
        %v1903 = vld [vmem:[%s1897 + $0xc8] sm:$0xff]
        %v1904 = vld [vmem:[%s1897 + $0xf0] sm:$0xff]
        %v1905 = vld [vmem:[%s1897 + $0x118] sm:$0xff]
        %v1906 = vld [vmem:[%s1897 + $0x140] sm:$0xff]
        %v1907 = vld [vmem:[%s1897 + $0x168] sm:$0xff]
        %v1908 = vld [vmem:[%s1897 + $0x190] sm:$0xff]
        %v1909 = vld [vmem:[%s1897 + $0x1b8] sm:$0xff]
        %v1910 = vld [vmem:[%s1897 + $0x1e0] sm:$0xff]
        %v1911 = vld [vmem:[%s1897 + $0x208] sm:$0xff]
        %v1912 = vld [vmem:[%s1897 + $0x230] sm:$0xff]
        %v1913 = vld [vmem:[%s1897 + $0x258] sm:$0xff]
        %v1914 = vmul.f32 %v1895, %v1898
        %v1915 = vmul.f32 %v1895, %v1899
        %v1916 = vmul.f32 %v1895, %v1900
        %v1917 = vmul.f32 %v1895, %v1901
        %v1918 = vmul.f32 %v1895, %v1902
        %v1919 = vmul.f32 %v1895, %v1903
        %v1920 = vmul.f32 %v1895, %v1904
        %v1921 = vmul.f32 %v1895, %v1905
        %v1922 = vmul.f32 %v1895, %v1906
        %v1923 = vmul.f32 %v1895, %v1907
        %v1924 = vmul.f32 %v1895, %v1908
        %v1925 = vmul.f32 %v1895, %v1909
        %v1926 = vmul.f32 %v1895, %v1910
        %v1927 = vmul.f32 %v1895, %v1911
        %v1928 = vmul.f32 %v1895, %v1912
        %v1929 = vmul.f32 %v1895, %v1913
        %v1930 = vadd.f32 %v1878, %v1914
        %v1931 = vadd.f32 %v1879, %v1915
        %v1932 = vadd.f32 %v1880, %v1916
        %v1933 = vadd.f32 %v1881, %v1917
        %v1934 = vadd.f32 %v1882, %v1918
        %v1935 = vadd.f32 %v1883, %v1919
        %v1936 = vadd.f32 %v1884, %v1920
        %v1937 = vadd.f32 %v1885, %v1921
        %v1938 = vadd.f32 %v1886, %v1922
        %v1939 = vadd.f32 %v1887, %v1923
        %v1940 = vadd.f32 %v1888, %v1924
        %v1941 = vadd.f32 %v1889, %v1925
        %v1942 = vadd.f32 %v1890, %v1926
        %v1943 = vadd.f32 %v1891, %v1927
        %v1944 = vadd.f32 %v1892, %v1928
        %v1945 = vadd.f32 %v1893, %v1929
        %s1946 = scalar_lea.vmem %s282, 168 [#allocation2]
        %v1947 = vld [vmem:[%s1946] sm:$0xff]
        %1964 = vrot.lane.b32.xlu0 %v1898, 126
        %v1965 = vpop.permute.xlu0 %1964
        %1966 = vrot.lane.b32.xlu0 %v1899, 126
        %v1967 = vpop.permute.xlu0 %1966
        %1968 = vrot.lane.b32.xlu0 %v1900, 126
        %v1969 = vpop.permute.xlu0 %1968
        %1970 = vrot.lane.b32.xlu0 %v1901, 126
        %v1971 = vpop.permute.xlu0 %1970
        %1972 = vrot.lane.b32.xlu0 %v1902, 126
        %v1973 = vpop.permute.xlu0 %1972
        %1974 = vrot.lane.b32.xlu0 %v1903, 126
        %v1975 = vpop.permute.xlu0 %1974
        %1976 = vrot.lane.b32.xlu0 %v1904, 126
        %v1977 = vpop.permute.xlu0 %1976
        %1978 = vrot.lane.b32.xlu0 %v1905, 126
        %v1979 = vpop.permute.xlu0 %1978
        %1980 = vrot.lane.b32.xlu0 %v1906, 126
        %v1981 = vpop.permute.xlu0 %1980
        %1982 = vrot.lane.b32.xlu0 %v1907, 126
        %v1983 = vpop.permute.xlu0 %1982
        %1984 = vrot.lane.b32.xlu0 %v1908, 126
        %v1985 = vpop.permute.xlu0 %1984
        %1986 = vrot.lane.b32.xlu0 %v1909, 126
        %v1987 = vpop.permute.xlu0 %1986
        %1988 = vrot.lane.b32.xlu0 %v1910, 126
        %v1989 = vpop.permute.xlu0 %1988
        %1990 = vrot.lane.b32.xlu0 %v1911, 126
        %v1991 = vpop.permute.xlu0 %1990
        %1992 = vrot.lane.b32.xlu0 %v1912, 126
        %v1993 = vpop.permute.xlu0 %1992
        %1994 = vrot.lane.b32.xlu0 %v1913, 126
        %v1995 = vpop.permute.xlu0 %1994
        %v2012 = vmul.f32 %v1947, %v1965
        %v2013 = vmul.f32 %v1947, %v1967
        %v2014 = vmul.f32 %v1947, %v1969
        %v2015 = vmul.f32 %v1947, %v1971
        %v2016 = vmul.f32 %v1947, %v1973
        %v2017 = vmul.f32 %v1947, %v1975
        %v2018 = vmul.f32 %v1947, %v1977
        %v2019 = vmul.f32 %v1947, %v1979
        %v2020 = vmul.f32 %v1947, %v1981
        %v2021 = vmul.f32 %v1947, %v1983
        %v2022 = vmul.f32 %v1947, %v1985
        %v2023 = vmul.f32 %v1947, %v1987
        %v2024 = vmul.f32 %v1947, %v1989
        %v2025 = vmul.f32 %v1947, %v1991
        %v2026 = vmul.f32 %v1947, %v1993
        %v2027 = vmul.f32 %v1947, %v1995
        %v2028 = vadd.f32 %v1930, %v2012
        %v2029 = vadd.f32 %v1931, %v2013
        %v2030 = vadd.f32 %v1932, %v2014
        %v2031 = vadd.f32 %v1933, %v2015
        %v2032 = vadd.f32 %v1934, %v2016
        %v2033 = vadd.f32 %v1935, %v2017
        %v2034 = vadd.f32 %v1936, %v2018
        %v2035 = vadd.f32 %v1937, %v2019
        %v2036 = vadd.f32 %v1938, %v2020
        %v2037 = vadd.f32 %v1939, %v2021
        %v2038 = vadd.f32 %v1940, %v2022
        %v2039 = vadd.f32 %v1941, %v2023
        %v2040 = vadd.f32 %v1942, %v2024
        %v2041 = vadd.f32 %v1943, %v2025
        %v2042 = vadd.f32 %v1944, %v2026
        %v2043 = vadd.f32 %v1945, %v2027
        %s2044 = scalar_lea.vmem %s282, 176 [#allocation2]
        %v2045 = vld [vmem:[%s2044] sm:$0xff]
        %2046 = vrot.lane.b32.xlu0 %v1898, 124
        %v2047 = vpop.permute.xlu0 %2046
        %2048 = vrot.lane.b32.xlu0 %v1899, 124
        %v2049 = vpop.permute.xlu0 %2048
        %2050 = vrot.lane.b32.xlu0 %v1900, 124
        %v2051 = vpop.permute.xlu0 %2050
        %2052 = vrot.lane.b32.xlu0 %v1901, 124
        %v2053 = vpop.permute.xlu0 %2052
        %2054 = vrot.lane.b32.xlu0 %v1902, 124
        %v2055 = vpop.permute.xlu0 %2054
        %2056 = vrot.lane.b32.xlu0 %v1903, 124
        %v2057 = vpop.permute.xlu0 %2056
        %2058 = vrot.lane.b32.xlu0 %v1904, 124
        %v2059 = vpop.permute.xlu0 %2058
        %2060 = vrot.lane.b32.xlu0 %v1905, 124
        %v2061 = vpop.permute.xlu0 %2060
        %2062 = vrot.lane.b32.xlu0 %v1906, 124
        %v2063 = vpop.permute.xlu0 %2062
        %2064 = vrot.lane.b32.xlu0 %v1907, 124
        %v2065 = vpop.permute.xlu0 %2064
        %2066 = vrot.lane.b32.xlu0 %v1908, 124
        %v2067 = vpop.permute.xlu0 %2066
        %2068 = vrot.lane.b32.xlu0 %v1909, 124
        %v2069 = vpop.permute.xlu0 %2068
        %2070 = vrot.lane.b32.xlu0 %v1910, 124
        %v2071 = vpop.permute.xlu0 %2070
        %2072 = vrot.lane.b32.xlu0 %v1911, 124
        %v2073 = vpop.permute.xlu0 %2072
        %2074 = vrot.lane.b32.xlu0 %v1912, 124
        %v2075 = vpop.permute.xlu0 %2074
        %2076 = vrot.lane.b32.xlu0 %v1913, 124
        %v2077 = vpop.permute.xlu0 %2076
        %v2094 = vmul.f32 %v2045, %v2047
        %v2095 = vmul.f32 %v2045, %v2049
        %v2096 = vmul.f32 %v2045, %v2051
        %v2097 = vmul.f32 %v2045, %v2053
        %v2098 = vmul.f32 %v2045, %v2055
        %v2099 = vmul.f32 %v2045, %v2057
        %v2100 = vmul.f32 %v2045, %v2059
        %v2101 = vmul.f32 %v2045, %v2061
        %v2102 = vmul.f32 %v2045, %v2063
        %v2103 = vmul.f32 %v2045, %v2065
        %v2104 = vmul.f32 %v2045, %v2067
        %v2105 = vmul.f32 %v2045, %v2069
        %v2106 = vmul.f32 %v2045, %v2071
        %v2107 = vmul.f32 %v2045, %v2073
        %v2108 = vmul.f32 %v2045, %v2075
        %v2109 = vmul.f32 %v2045, %v2077
        %v2110 = vadd.f32 %v2028, %v2094
        %v2111 = vadd.f32 %v2029, %v2095
        %v2112 = vadd.f32 %v2030, %v2096
        %v2113 = vadd.f32 %v2031, %v2097
        %v2114 = vadd.f32 %v2032, %v2098
        %v2115 = vadd.f32 %v2033, %v2099
        %v2116 = vadd.f32 %v2034, %v2100
        %v2117 = vadd.f32 %v2035, %v2101
        %v2118 = vadd.f32 %v2036, %v2102
        %v2119 = vadd.f32 %v2037, %v2103
        %v2120 = vadd.f32 %v2038, %v2104
        %v2121 = vadd.f32 %v2039, %v2105
        %v2122 = vadd.f32 %v2040, %v2106
        %v2123 = vadd.f32 %v2041, %v2107
        %v2124 = vadd.f32 %v2042, %v2108
        %v2125 = vadd.f32 %v2043, %v2109
        %s2126 = scalar_lea.vmem %s282, 184 [#allocation2]
        %v2127 = vld [vmem:[%s2126] sm:$0xff]
        %2128 = vrot.lane.b32.xlu0 %v1898, 122
        %v2129 = vpop.permute.xlu0 %2128
        %2130 = vrot.lane.b32.xlu0 %v1899, 122
        %v2131 = vpop.permute.xlu0 %2130
        %2132 = vrot.lane.b32.xlu0 %v1900, 122
        %v2133 = vpop.permute.xlu0 %2132
        %2134 = vrot.lane.b32.xlu0 %v1901, 122
        %v2135 = vpop.permute.xlu0 %2134
        %2136 = vrot.lane.b32.xlu0 %v1902, 122
        %v2137 = vpop.permute.xlu0 %2136
        %2138 = vrot.lane.b32.xlu0 %v1903, 122
        %v2139 = vpop.permute.xlu0 %2138
        %2140 = vrot.lane.b32.xlu0 %v1904, 122
        %v2141 = vpop.permute.xlu0 %2140
        %2142 = vrot.lane.b32.xlu0 %v1905, 122
        %v2143 = vpop.permute.xlu0 %2142
        %2144 = vrot.lane.b32.xlu0 %v1906, 122
        %v2145 = vpop.permute.xlu0 %2144
        %2146 = vrot.lane.b32.xlu0 %v1907, 122
        %v2147 = vpop.permute.xlu0 %2146
        %2148 = vrot.lane.b32.xlu0 %v1908, 122
        %v2149 = vpop.permute.xlu0 %2148
        %2150 = vrot.lane.b32.xlu0 %v1909, 122
        %v2151 = vpop.permute.xlu0 %2150
        %2152 = vrot.lane.b32.xlu0 %v1910, 122
        %v2153 = vpop.permute.xlu0 %2152
        %2154 = vrot.lane.b32.xlu0 %v1911, 122
        %v2155 = vpop.permute.xlu0 %2154
        %2156 = vrot.lane.b32.xlu0 %v1912, 122
        %v2157 = vpop.permute.xlu0 %2156
        %2158 = vrot.lane.b32.xlu0 %v1913, 122
        %v2159 = vpop.permute.xlu0 %2158
        %v2176 = vmul.f32 %v2127, %v2129
        %v2177 = vmul.f32 %v2127, %v2131
        %v2178 = vmul.f32 %v2127, %v2133
        %v2179 = vmul.f32 %v2127, %v2135
        %v2180 = vmul.f32 %v2127, %v2137
        %v2181 = vmul.f32 %v2127, %v2139
        %v2182 = vmul.f32 %v2127, %v2141
        %v2183 = vmul.f32 %v2127, %v2143
        %v2184 = vmul.f32 %v2127, %v2145
        %v2185 = vmul.f32 %v2127, %v2147
        %v2186 = vmul.f32 %v2127, %v2149
        %v2187 = vmul.f32 %v2127, %v2151
        %v2188 = vmul.f32 %v2127, %v2153
        %v2189 = vmul.f32 %v2127, %v2155
        %v2190 = vmul.f32 %v2127, %v2157
        %v2191 = vmul.f32 %v2127, %v2159
        %v2192 = vadd.f32 %v2110, %v2176
        %v2193 = vadd.f32 %v2111, %v2177
        %v2194 = vadd.f32 %v2112, %v2178
        %v2195 = vadd.f32 %v2113, %v2179
        %v2196 = vadd.f32 %v2114, %v2180
        %v2197 = vadd.f32 %v2115, %v2181
        %v2198 = vadd.f32 %v2116, %v2182
        %v2199 = vadd.f32 %v2117, %v2183
        %v2200 = vadd.f32 %v2118, %v2184
        %v2201 = vadd.f32 %v2119, %v2185
        %v2202 = vadd.f32 %v2120, %v2186
        %v2203 = vadd.f32 %v2121, %v2187
        %v2204 = vadd.f32 %v2122, %v2188
        %v2205 = vadd.f32 %v2123, %v2189
        %v2206 = vadd.f32 %v2124, %v2190
        %v2207 = vadd.f32 %v2125, %v2191
        %s2208 = scalar_lea.vmem %s282, 192 [#allocation2]
        %v2209 = vld [vmem:[%s2208] sm:$0xff]
        %2210 = vrot.lane.b32.xlu0 %v1898, 120
        %v2211 = vpop.permute.xlu0 %2210
        %2212 = vrot.lane.b32.xlu0 %v1899, 120
        %v2213 = vpop.permute.xlu0 %2212
        %2214 = vrot.lane.b32.xlu0 %v1900, 120
        %v2215 = vpop.permute.xlu0 %2214
        %2216 = vrot.lane.b32.xlu0 %v1901, 120
        %v2217 = vpop.permute.xlu0 %2216
        %2218 = vrot.lane.b32.xlu0 %v1902, 120
        %v2219 = vpop.permute.xlu0 %2218
        %2220 = vrot.lane.b32.xlu0 %v1903, 120
        %v2221 = vpop.permute.xlu0 %2220
        %2222 = vrot.lane.b32.xlu0 %v1904, 120
        %v2223 = vpop.permute.xlu0 %2222
        %2224 = vrot.lane.b32.xlu0 %v1905, 120
        %v2225 = vpop.permute.xlu0 %2224
        %2226 = vrot.lane.b32.xlu0 %v1906, 120
        %v2227 = vpop.permute.xlu0 %2226
        %2228 = vrot.lane.b32.xlu0 %v1907, 120
        %v2229 = vpop.permute.xlu0 %2228
        %2230 = vrot.lane.b32.xlu0 %v1908, 120
        %v2231 = vpop.permute.xlu0 %2230
        %2232 = vrot.lane.b32.xlu0 %v1909, 120
        %v2233 = vpop.permute.xlu0 %2232
        %2234 = vrot.lane.b32.xlu0 %v1910, 120
        %v2235 = vpop.permute.xlu0 %2234
        %2236 = vrot.lane.b32.xlu0 %v1911, 120
        %v2237 = vpop.permute.xlu0 %2236
        %2238 = vrot.lane.b32.xlu0 %v1912, 120
        %v2239 = vpop.permute.xlu0 %2238
        %2240 = vrot.lane.b32.xlu0 %v1913, 120
        %v2241 = vpop.permute.xlu0 %2240
        %v2258 = vmul.f32 %v2209, %v2211
        %v2259 = vmul.f32 %v2209, %v2213
        %v2260 = vmul.f32 %v2209, %v2215
        %v2261 = vmul.f32 %v2209, %v2217
        %v2262 = vmul.f32 %v2209, %v2219
        %v2263 = vmul.f32 %v2209, %v2221
        %v2264 = vmul.f32 %v2209, %v2223
        %v2265 = vmul.f32 %v2209, %v2225
        %v2266 = vmul.f32 %v2209, %v2227
        %v2267 = vmul.f32 %v2209, %v2229
        %v2268 = vmul.f32 %v2209, %v2231
        %v2269 = vmul.f32 %v2209, %v2233
        %v2270 = vmul.f32 %v2209, %v2235
        %v2271 = vmul.f32 %v2209, %v2237
        %v2272 = vmul.f32 %v2209, %v2239
        %v2273 = vmul.f32 %v2209, %v2241
        %v2274 = vadd.f32 %v2192, %v2258
        %v2275 = vadd.f32 %v2193, %v2259
        %v2276 = vadd.f32 %v2194, %v2260
        %v2277 = vadd.f32 %v2195, %v2261
        %v2278 = vadd.f32 %v2196, %v2262
        %v2279 = vadd.f32 %v2197, %v2263
        %v2280 = vadd.f32 %v2198, %v2264
        %v2281 = vadd.f32 %v2199, %v2265
        %v2282 = vadd.f32 %v2200, %v2266
        %v2283 = vadd.f32 %v2201, %v2267
        %v2284 = vadd.f32 %v2202, %v2268
        %v2285 = vadd.f32 %v2203, %v2269
        %v2286 = vadd.f32 %v2204, %v2270
        %v2287 = vadd.f32 %v2205, %v2271
        %v2288 = vadd.f32 %v2206, %v2272
        %v2289 = vadd.f32 %v2207, %v2273
        %vm2290 = vcmask 261120
        %2291 = vst.msk [vmem:[%s305] sm:$0xff] %vm2290, %v2274
        %2292 = vst.msk [vmem:[%s305 + $0x8] sm:$0xff] %vm2290, %v2275
        %2293 = vst.msk [vmem:[%s305 + $0x10] sm:$0xff] %vm2290, %v2276
        %2294 = vst.msk [vmem:[%s305 + $0x18] sm:$0xff] %vm2290, %v2277
        %2295 = vst.msk [vmem:[%s305 + $0x20] sm:$0xff] %vm2290, %v2278
        %2296 = vst.msk [vmem:[%s305 + $0x28] sm:$0xff] %vm2290, %v2279
        %2297 = vst.msk [vmem:[%s305 + $0x30] sm:$0xff] %vm2290, %v2280
        %2298 = vst.msk [vmem:[%s305 + $0x38] sm:$0xff] %vm2290, %v2281
        %2299 = vst.msk [vmem:[%s305 + $0x40] sm:$0xff] %vm2290, %v2282
        %2300 = vst.msk [vmem:[%s305 + $0x48] sm:$0xff] %vm2290, %v2283
        %2301 = vst.msk [vmem:[%s305 + $0x50] sm:$0xff] %vm2290, %v2284
        %2302 = vst.msk [vmem:[%s305 + $0x58] sm:$0xff] %vm2290, %v2285
        %2303 = vst.msk [vmem:[%s305 + $0x60] sm:$0xff] %vm2290, %v2286
        %2304 = vst.msk [vmem:[%s305 + $0x68] sm:$0xff] %vm2290, %v2287
        %2305 = vst.msk [vmem:[%s305 + $0x70] sm:$0xff] %vm2290, %v2288
        %2306 = vst.msk [vmem:[%s305 + $0x78] sm:$0xff] %vm2290, %v2289
        %s2307 = sand.u32 %s92, 1
        %s2308 = scalar_lea.sflag [#allocation4], %s2307
        %s2309 = sand.u32 %s92, 1
        %s2310 = smul.addr %s2309, 128
        %s2311 = scalar_lea.vmem [#allocation3], %s2310
        // Predicated region
        $region67: #{_lambda_.3} parent=61 // pred_check
          %p2312 = pneg %p102
        $region68: #{_lambda_.3} parent=61 // pred_check_branch
          %2314 = sbr.rel (%p2312) target = $region70
        $region69: #{_lambda_.3} parent=61 // pred_region
          %2316 = vsyncadd %s2308, 0
          %s2317 = smul.addr %s20, 64
          %s2318 = sadd.s32 %s21, %s2317
          %s2319 = smul.addr %s2318, 8
          %s2320 = scalar_lea.hbm %s2, %s2319
          %s2321 = sshll.u32 %s2311, 4
          %s2322 = int_to_ptr.vmem [resolvable:$true] %s2321
          %s2323 = sshll.u32 %s2320, 4
          %s2324 = int_to_ptr.hbm [resolvable:$true] %s2323
          %2329 = dma.vmem_to_hbm [thread:$0]  %s2322, 2048, %s2324, %s2308, 128, 512, 8
        $region70: #{_lambda_.3} parent=61 // pred_fallthru
          _
      $region62: #{_lambda_.3} parent=5 // pred_fallthru
        _
      %p2330 = scmp.le.s32.totalorder 2, %s11
      // Predicated region
      $region71: #{_lambda_.3} parent=5 // pred_check
        %p2331 = pneg %p2330
      $region72: #{_lambda_.3} parent=5 // pred_check_branch
        %2333 = sbr.rel (%p2331) target = $region74
      $region73: #{_lambda_.3} parent=5 // pred_region
        %s2334 = ssub.s32 %s11, 2
        // Predicated region
        $region75: #{_lambda_.3} parent=73 // pred_check
          %p2335 = pneg %p108
        $region76: #{_lambda_.3} parent=73 // pred_check_branch
          %2337 = sbr.rel (%p2335) target = $region78
        $region77: #{_lambda_.3} parent=73 // pred_region
          %s2338 = sand.u32 %s93, 1
          %s2339 = scalar_lea.sflag [#allocation4], %s2338
          %s2340 = sand.u32 %s93, 1
          %s2341 = smul.addr %s2340, 128
          %s2342 = scalar_lea.vmem [#allocation3], %s2341
          %2344 = dma.done %s2339, 2048
        $region78: #{_lambda_.3} parent=73 // pred_fallthru
          _
      $region74: #{_lambda_.3} parent=5 // pred_fallthru
        _
    $region6: #{_lambda_.3} parent=1 // loop_footer
      %s15 = sadd.s32 1, %s11
    $region7: #{_lambda_.3} parent=1 // loop_footer_branch
      %10 = sbr.rel target = $region3
    $region8: #{_lambda_.3} parent=1 // loop_exit
      _
    %2345 = vsyncpa [#allocation4], 1
    %s2346 = scalar_lea.sflag [#allocation4], 1
    %2347 = vsyncpa %s2346, 1

// kernel: _lambda_.2
$region0: #{_lambda_.2}
  #allocation0 [shape = 'u32[]', space=smem, size = 0x4, offset = 0x4, fixed_abs, tag = 'smem constant byte address 0x4 - core index']
  #allocation1 [shape = 'u32[72,128]{1,0:T(1,128)}', space=vmem, size = 0x9000, scoped, tag = 'internal scratch']
  #allocation2 [shape = 'f32[342,64]{1,0:T(8,128)}', space=vmem, size = 0x2b000, scoped, tag = 'scratch operand']
  #allocation3 [shape = 'bf16[288,576]{1,0:T(8,128)(2,1)}', space=vmem, size = 0x5a000, scoped, tag = 'scratch operand']
  #allocation4 [shape = 'f32[16,18,128]{2,1,0:T(8,128)}', space=vmem, size = 0x30000, scoped, tag = 'scratch operand']
  %s0 = inlined_call_operand.vmem [shape: bf16[2,342,16], index: 0, kind: input, shape index: {}]
  %s1 = inlined_call_operand.vmem [shape: bf16[16,64], index: 1, kind: input, shape index: {}]
  %s2 = inlined_call_operand.vmem [shape: bf16[576,128], index: 2, kind: input, shape index: {}]
  %s3 = inlined_call_operand.vmem [shape: f32[2,100,256], index: 3, kind: output, shape index: {}]
  %s4 = sld [smem:[#allocation0]]
  $region45: #{_lambda_.2} parent=0
    _
  %s6 = ssub.s32 1, %s4
  %s7 = scalar_select 0, %s6, %s4
  loop: start=0, step=1, limit=4
  $region2: #{_lambda_.2} parent=0 // loop_pre_header
    _
  $region3: #{_lambda_.2} parent=0 // loop_header
    %s9 = sphi 0, %s13
    %p10 = scmp.ge.s32.totalorder %s9, 4
    %s19 = sphi 0, %s21
    %s22 = sphi 0, %s19
    %s23 = sphi 0, %s22
    %s39 = sphi 0, %s23
    %s43 = sphi 0, %s43
    %s45 = sphi 0, %s43
    %s46 = sphi 0, %s45
    %s60 = sphi 0, %s46
    %s64 = sphi 0, %s64
    %s66 = sphi 0, %s64
    %s67 = sphi 0, %s66
    %s81 = sphi 0, %s67
    %s87 = sphi 0, %s89
    %s90 = sphi 0, %s87
    %s91 = sphi 0, %s90
    %s107 = sphi 0, %s91
  $region4: #{_lambda_.2} parent=0 // loop_header_branch
    %12 = sbr.rel (%p10) target = $region8
  $region5: #{_lambda_.2} parent=0 // loop_body
    %s14 = ssub.s32 %s9, 1
    %s15 = ssub.s32 %s9, 2
    %s16 = sadd.s32 %s9, 1
    %s17 = ssub.s32 %s9, %s16
    %p18 = scmp.eq.s32.totalorder %s17, 0
    %s20 = sadd.s32 %s19, 1
    %s21 = scalar_select %p18, %s19, %s20
    %p24 = pneg %p18
    %p25 = scmp.eq.s32.totalorder %s9, 1
    %p26 = por %p24, %p25
    %p27 = scmp.ne.s32.totalorder %s19, %s22
    %p28 = scmp.eq.s32.totalorder %s9, 0
    %p29 = por %p27, %p28
    %p30 = scmp.ne.s32.totalorder %s19, %s22
    %p31 = scmp.eq.s32.totalorder %s14, 1
    %p32 = por %p30, %p31
    %p33 = scmp.ne.s32.totalorder %s22, %s23
    %p34 = scmp.eq.s32.totalorder %s14, 0
    %p35 = por %p33, %p34
    %p36 = scmp.ne.s32.totalorder %s22, %s23
    %p37 = scmp.eq.s32.totalorder %s15, 1
    %p38 = por %p36, %p37
    %p40 = scmp.ne.s32.totalorder %s23, %s39
    %p41 = scmp.eq.s32.totalorder %s15, 0
    %p42 = por %p40, %p41
    %s44 = sadd.s32 %s43, 1
    %p47 = scmp.eq.s32.totalorder %s9, 1
    %p48 = scmp.ne.s32.totalorder %s43, %s45
    %p49 = scmp.eq.s32.totalorder %s9, 0
    %p50 = por %p48, %p49
    %p51 = scmp.ne.s32.totalorder %s43, %s45
    %p52 = scmp.eq.s32.totalorder %s14, 1
    %p53 = por %p51, %p52
    %p54 = scmp.ne.s32.totalorder %s45, %s46
    %p55 = scmp.eq.s32.totalorder %s14, 0
    %p56 = por %p54, %p55
    %p57 = scmp.ne.s32.totalorder %s45, %s46
    %p58 = scmp.eq.s32.totalorder %s15, 1
    %p59 = por %p57, %p58
    %p61 = scmp.ne.s32.totalorder %s46, %s60
    %p62 = scmp.eq.s32.totalorder %s15, 0
    %p63 = por %p61, %p62
    %s65 = sadd.s32 %s64, 1
    %p68 = scmp.eq.s32.totalorder %s9, 1
    %p69 = scmp.ne.s32.totalorder %s64, %s66
    %p70 = scmp.eq.s32.totalorder %s9, 0
    %p71 = por %p69, %p70
    %p72 = scmp.ne.s32.totalorder %s64, %s66
    %p73 = scmp.eq.s32.totalorder %s14, 1
    %p74 = por %p72, %p73
    %p75 = scmp.ne.s32.totalorder %s66, %s67
    %p76 = scmp.eq.s32.totalorder %s14, 0
    %p77 = por %p75, %p76
    %p78 = scmp.ne.s32.totalorder %s66, %s67
    %p79 = scmp.eq.s32.totalorder %s15, 1
    %p80 = por %p78, %p79
    %p82 = scmp.ne.s32.totalorder %s67, %s81
    %p83 = scmp.eq.s32.totalorder %s15, 0
    %p84 = por %p82, %p83
    %s85 = ssub.s32 %s9, %s16
    %p86 = scmp.eq.s32.totalorder %s85, 0
    %s88 = sadd.s32 %s87, 1
    %s89 = scalar_select %p86, %s87, %s88
    %p92 = pneg %p86
    %p93 = scmp.eq.s32.totalorder %s9, 1
    %p94 = por %p92, %p93
    %p95 = scmp.ne.s32.totalorder %s87, %s90
    %p96 = scmp.eq.s32.totalorder %s9, 0
    %p97 = por %p95, %p96
    %p98 = scmp.ne.s32.totalorder %s87, %s90
    %p99 = scmp.eq.s32.totalorder %s14, 1
    %p100 = por %p98, %p99
    %p101 = scmp.ne.s32.totalorder %s90, %s91
    %p102 = scmp.eq.s32.totalorder %s14, 0
    %p103 = por %p101, %p102
    %p104 = scmp.ne.s32.totalorder %s90, %s91
    %p105 = scmp.eq.s32.totalorder %s15, 1
    %p106 = por %p104, %p105
    %p108 = scmp.ne.s32.totalorder %s91, %s107
    %p109 = scmp.eq.s32.totalorder %s15, 0
    %p110 = por %p108, %p109
    %p111 = scmp.le.s32.totalorder 1, %s9
    %p112 = scmp.lt.s32.totalorder %s9, 3
    %p113 = pnand %p111, %p112
    %p114 = pneg %p113
    // Predicated region
    $region9: #{_lambda_.2} parent=5 // pred_check
      _
    $region10: #{_lambda_.2} parent=5 // pred_check_branch
      %116 = sbr.rel (%p113) target = $region12
    $region11: #{_lambda_.2} parent=5 // pred_region
      %s117 = ssub.s32 %s9, 1
      // Predicated region
      $region13: #{_lambda_.2} parent=11 // pred_check
        %p118 = pneg %p56
      $region14: #{_lambda_.2} parent=11 // pred_check_branch
        %120 = sbr.rel (%p118) target = $region16
      $region15: #{_lambda_.2} parent=11 // pred_region
        _
      $region16: #{_lambda_.2} parent=11 // pred_fallthru
        _
      // Predicated region
      $region17: #{_lambda_.2} parent=11 // pred_check
        %p121 = pneg %p77
      $region18: #{_lambda_.2} parent=11 // pred_check_branch
        %123 = sbr.rel (%p121) target = $region20
      $region19: #{_lambda_.2} parent=11 // pred_region
        _
      $region20: #{_lambda_.2} parent=11 // pred_fallthru
        _
    $region12: #{_lambda_.2} parent=5 // pred_fallthru
      _
    %p124 = scmp.lt.s32.totalorder %s9, 2
    // Predicated region
    $region21: #{_lambda_.2} parent=5 // pred_check
      %p125 = pneg %p124
    $region22: #{_lambda_.2} parent=5 // pred_check_branch
      %127 = sbr.rel (%p125) target = $region24
    $region23: #{_lambda_.2} parent=5 // pred_region
      // Predicated region
      $region25: #{_lambda_.2} parent=23 // pred_check
        %p128 = pneg %p29
      $region26: #{_lambda_.2} parent=23 // pred_check_branch
        %130 = sbr.rel (%p128) target = $region28
      $region27: #{_lambda_.2} parent=23 // pred_region
        %p131 = scmp.lt.s32.totalorder %s9, 1
        %s132 = scalar_select %p131, %s9, 1
        %s133 = smul.addr %s132, 43
        %s134 = smul.addr %s133, 4
        %s135 = scalar_lea.vmem %s0, %s134
      $region28: #{_lambda_.2} parent=23 // pred_fallthru
        _
    $region24: #{_lambda_.2} parent=5 // pred_fallthru
      _
    %p136 = scmp.le.s32.totalorder 1, %s9
    %p137 = scmp.lt.s32.totalorder %s9, 3
    %p138 = pnand %p136, %p137
    %p139 = pneg %p138
    // Predicated region
    $region29: #{_lambda_.2} parent=5 // pred_check
      _
    $region30: #{_lambda_.2} parent=5 // pred_check_branch
      %141 = sbr.rel (%p138) target = $region32
    $region31: #{_lambda_.2} parent=5 // pred_region
      %s142 = ssub.s32 %s9, 1
      %p143 = scmp.lt.s32.totalorder %s14, 1
      %s144 = scalar_select %p143, %s14, 1
      %s145 = smul.addr %s144, 43
      %s146 = smul.addr %s145, 4
      %s147 = scalar_lea.vmem %s0, %s146
      %p148 = pneg %p35
      %p149 = pneg %p32
      %p150 = pneg %p56
      %p151 = pneg %p53
      %p152 = pneg %p77
      %p153 = pneg %p74
      %p154 = pneg %p103
      %p155 = pneg %p100
      %p156 = scmp.lt.s32.totalorder %s14, 1
      %s157 = scalar_select %p156, %s14, 1
      %s158 = smul.addr %s157, 26
      %s159 = smul.addr %s158, 8
      %s160 = scalar_lea.vmem %s3, %s159
      %p161 = scmp.lt.s32.totalorder %s14, 1
      %s162 = scalar_select %p161, %s14, 1
      %s163 = smul.addr %s162, 43
      %s164 = smul.addr %s163, 4
      %s165 = scalar_lea.vmem %s0, %s164
      %p166 = scmp.lt.s32.totalorder %s14, 1
      %s167 = scalar_select %p166, %s14, 1
      %s168 = smul.addr %s167, 26
      %s169 = smul.addr %s168, 8
      %s170 = scalar_lea.vmem %s3, %s169
      %v172 = vld [vmem:[%s165] sm:$0xf]
      %v173 = vld [vmem:[%s165 + $0x4] sm:$0xf]
      %v174 = vld [vmem:[%s165 + $0x8] sm:$0xf]
      %v175 = vld [vmem:[%s165 + $0xc] sm:$0xf]
      %v176 = vld [vmem:[%s165 + $0x10] sm:$0xf]
      %v177 = vld [vmem:[%s165 + $0x14] sm:$0xf]
      %v178 = vld [vmem:[%s165 + $0x18] sm:$0xf]
      %v179 = vld [vmem:[%s165 + $0x1c] sm:$0xf]
      %v180 = vld [vmem:[%s165 + $0x20] sm:$0xf]
      %v181 = vld [vmem:[%s165 + $0x24] sm:$0xf]
      %v182 = vld [vmem:[%s165 + $0x28] sm:$0xf]
      %v183 = vld [vmem:[%s165 + $0x2c] sm:$0xf]
      %v184 = vld [vmem:[%s165 + $0x30] sm:$0xf]
      %v185 = vld [vmem:[%s165 + $0x34] sm:$0xf]
      %v186 = vld [vmem:[%s165 + $0x38] sm:$0xf]
      %v187 = vld [vmem:[%s165 + $0x3c] sm:$0xf]
      %v188 = vld [vmem:[%s165 + $0x40] sm:$0xf]
      %v189 = vld [vmem:[%s165 + $0x44] sm:$0xf]
      %v190 = vld [vmem:[%s165 + $0x48] sm:$0xf]
      %v191 = vld [vmem:[%s165 + $0x4c] sm:$0xf]
      %v192 = vld [vmem:[%s165 + $0x50] sm:$0xf]
      %v193 = vld [vmem:[%s165 + $0x54] sm:$0xf]
      %v194 = vld [vmem:[%s165 + $0x58] sm:$0xf]
      %v195 = vld [vmem:[%s165 + $0x5c] sm:$0xf]
      %v196 = vld [vmem:[%s165 + $0x60] sm:$0xf]
      %v197 = vld [vmem:[%s165 + $0x64] sm:$0xf]
      %v198 = vld [vmem:[%s165 + $0x68] sm:$0xf]
      %v199 = vld [vmem:[%s165 + $0x6c] sm:$0xf]
      %v200 = vld [vmem:[%s165 + $0x70] sm:$0xf]
      %v201 = vld [vmem:[%s165 + $0x74] sm:$0xf]
      %v202 = vld [vmem:[%s165 + $0x78] sm:$0xf]
      %v203 = vld [vmem:[%s165 + $0x7c] sm:$0xf]
      %v204 = vld [vmem:[%s165 + $0x80] sm:$0xf]
      %v205 = vld [vmem:[%s165 + $0x84] sm:$0xf]
      %v206 = vld [vmem:[%s165 + $0x88] sm:$0xf]
      %v207 = vld [vmem:[%s165 + $0x8c] sm:$0xf]
      %v208 = vld [vmem:[%s165 + $0x90] sm:$0xf]
      %v209 = vld [vmem:[%s165 + $0x94] sm:$0xf]
      %v210 = vld [vmem:[%s165 + $0x98] sm:$0xf]
      %v211 = vld [vmem:[%s165 + $0x9c] sm:$0xf]
      %v212 = vld [vmem:[%s165 + $0xa0] sm:$0xf]
      %v213 = vld [vmem:[%s165 + $0xa4] sm:$0xf]
      %v214 = vld [vmem:[%s165 + $0xa8] sm:$0x7]
      %v215 = vld [vmem:[%s1] sm:$0xf]
      %v216 = vld [vmem:[%s1 + $0x4] sm:$0xf]
      %v260 = vunpack.c.l.b16 %v172
      %v261 = vunpack.c.l.b16 %v173
      %v262 = vunpack.c.l.b16 %v174
      %v263 = vunpack.c.l.b16 %v175
      %v264 = vunpack.c.l.b16 %v176
      %v265 = vunpack.c.l.b16 %v177
      %v266 = vunpack.c.l.b16 %v178
      %v267 = vunpack.c.l.b16 %v179
      %v268 = vunpack.c.l.b16 %v180
      %v269 = vunpack.c.l.b16 %v181
      %v270 = vunpack.c.l.b16 %v182
      %v271 = vunpack.c.l.b16 %v183
      %v272 = vunpack.c.l.b16 %v184
      %v273 = vunpack.c.l.b16 %v185
      %v274 = vunpack.c.l.b16 %v186
      %v275 = vunpack.c.l.b16 %v187
      %v276 = vunpack.c.l.b16 %v188
      %v277 = vunpack.c.l.b16 %v189
      %v278 = vunpack.c.l.b16 %v190
      %v279 = vunpack.c.l.b16 %v191
      %v280 = vunpack.c.l.b16 %v192
      %v281 = vunpack.c.l.b16 %v193
      %v282 = vunpack.c.l.b16 %v194
      %v283 = vunpack.c.l.b16 %v195
      %v284 = vunpack.c.l.b16 %v196
      %v285 = vunpack.c.l.b16 %v197
      %v286 = vunpack.c.l.b16 %v198
      %v287 = vunpack.c.l.b16 %v199
      %v288 = vunpack.c.l.b16 %v200
      %v289 = vunpack.c.l.b16 %v201
      %v290 = vunpack.c.l.b16 %v202
      %v291 = vunpack.c.l.b16 %v203
      %v292 = vunpack.c.l.b16 %v204
      %v293 = vunpack.c.l.b16 %v205
      %v294 = vunpack.c.l.b16 %v206
      %v295 = vunpack.c.l.b16 %v207
      %v296 = vunpack.c.l.b16 %v208
      %v297 = vunpack.c.l.b16 %v209
      %v298 = vunpack.c.l.b16 %v210
      %v299 = vunpack.c.l.b16 %v211
      %v300 = vunpack.c.l.b16 %v212
      %v301 = vunpack.c.l.b16 %v213
      %v302 = vunpack.c.l.b16 %v214
      %v303 = vpack.c.b16 %v261, %v260
      %v304 = vpack.c.b16 %v263, %v262
      %v305 = vpack.c.b16 %v265, %v264
      %v306 = vpack.c.b16 %v267, %v266
      %v307 = vpack.c.b16 %v269, %v268
      %v308 = vpack.c.b16 %v271, %v270
      %v309 = vpack.c.b16 %v273, %v272
      %v310 = vpack.c.b16 %v275, %v274
      %v311 = vpack.c.b16 %v277, %v276
      %v312 = vpack.c.b16 %v279, %v278
      %v313 = vpack.c.b16 %v281, %v280
      %v314 = vpack.c.b16 %v283, %v282
      %v315 = vpack.c.b16 %v285, %v284
      %v316 = vpack.c.b16 %v287, %v286
      %v317 = vpack.c.b16 %v289, %v288
      %v318 = vpack.c.b16 %v291, %v290
      %v319 = vpack.c.b16 %v293, %v292
      %v320 = vpack.c.b16 %v295, %v294
      %v321 = vpack.c.b16 %v297, %v296
      %v322 = vpack.c.b16 %v299, %v298
      %v323 = vpack.c.b16 %v301, %v300
      %v324 = vpack.c.b16 %v302, %v302
      %v327 = vunpack.c.l.b16 %v215
      %v328 = vunpack.c.l.b16 %v216
      %v329 = vpack.c.b16 %v328, %v327
      %vm331 = vcmask 130048
      %v333 = vsel %vm331, %v303, 0
      %v336 = vsel %vm331, %v304, 0
      %v339 = vsel %vm331, %v305, 0
      %v342 = vsel %vm331, %v306, 0
      %v345 = vsel %vm331, %v307, 0
      %v348 = vsel %vm331, %v308, 0
      %v351 = vsel %vm331, %v309, 0
      %v354 = vsel %vm331, %v310, 0
      %v357 = vsel %vm331, %v311, 0
      %v360 = vsel %vm331, %v312, 0
      %v363 = vsel %vm331, %v313, 0
      %v366 = vsel %vm331, %v314, 0
      %v369 = vsel %vm331, %v315, 0
      %v372 = vsel %vm331, %v316, 0
      %v375 = vsel %vm331, %v317, 0
      %v378 = vsel %vm331, %v318, 0
      %v381 = vsel %vm331, %v319, 0
      %v384 = vsel %vm331, %v320, 0
      %v387 = vsel %vm331, %v321, 0
      %v390 = vsel %vm331, %v322, 0
      %v393 = vsel %vm331, %v323, 0
      %v396 = vsel %vm331, %v324, 0
      %398 = vmatpush.bf16.msra.mxu0 0
      %399 = vmatpush.bf16.msra.mxu0 0
      %400 = vmatpush.bf16.msra.mxu0 0
      %401 = vmatpush.bf16.msra.mxu0 0
      %402 = vmatpush.bf16.msra.mxu0 0
      %403 = vmatpush.bf16.msra.mxu0 0
      %404 = vmatpush.bf16.msra.mxu0 0
      %405 = vmatpush.bf16.msra.mxu0 %v329
      %406 = vmatmul.bf16.gmra.mxu0 %v333
      %v407 = vpop.f32.mrf.mxu0
      %v408 = vadd.f32 0.0, %v407
      %v409 = vpop.f32.mrf.mxu0
      %v410 = vadd.f32 0.0, %v409
      %411 = vmatmul.bf16.gmra.mxu0 %v336
      %v412 = vpop.f32.mrf.mxu0
      %v413 = vadd.f32 0.0, %v412
      %v414 = vpop.f32.mrf.mxu0
      %v415 = vadd.f32 0.0, %v414
      %416 = vmatmul.bf16.gmra.mxu0 %v339
      %v417 = vpop.f32.mrf.mxu0
      %v418 = vadd.f32 0.0, %v417
      %v419 = vpop.f32.mrf.mxu0
      %v420 = vadd.f32 0.0, %v419
      %421 = vmatmul.bf16.gmra.mxu0 %v342
      %v422 = vpop.f32.mrf.mxu0
      %v423 = vadd.f32 0.0, %v422
      %v424 = vpop.f32.mrf.mxu0
      %v425 = vadd.f32 0.0, %v424
      %426 = vmatmul.bf16.gmra.mxu0 %v345
      %v427 = vpop.f32.mrf.mxu0
      %v428 = vadd.f32 0.0, %v427
      %v429 = vpop.f32.mrf.mxu0
      %v430 = vadd.f32 0.0, %v429
      %431 = vmatmul.bf16.gmra.mxu0 %v348
      %v432 = vpop.f32.mrf.mxu0
      %v433 = vadd.f32 0.0, %v432
      %v434 = vpop.f32.mrf.mxu0
      %v435 = vadd.f32 0.0, %v434
      %436 = vmatmul.bf16.gmra.mxu0 %v351
      %v437 = vpop.f32.mrf.mxu0
      %v438 = vadd.f32 0.0, %v437
      %v439 = vpop.f32.mrf.mxu0
      %v440 = vadd.f32 0.0, %v439
      %441 = vmatmul.bf16.gmra.mxu0 %v354
      %v442 = vpop.f32.mrf.mxu0
      %v443 = vadd.f32 0.0, %v442
      %v444 = vpop.f32.mrf.mxu0
      %v445 = vadd.f32 0.0, %v444
      %446 = vmatmul.bf16.gmra.mxu0 %v357
      %v447 = vpop.f32.mrf.mxu0
      %v448 = vadd.f32 0.0, %v447
      %v449 = vpop.f32.mrf.mxu0
      %v450 = vadd.f32 0.0, %v449
      %451 = vmatmul.bf16.gmra.mxu0 %v360
      %v452 = vpop.f32.mrf.mxu0
      %v453 = vadd.f32 0.0, %v452
      %v454 = vpop.f32.mrf.mxu0
      %v455 = vadd.f32 0.0, %v454
      %456 = vmatmul.bf16.gmra.mxu0 %v363
      %v457 = vpop.f32.mrf.mxu0
      %v458 = vadd.f32 0.0, %v457
      %v459 = vpop.f32.mrf.mxu0
      %v460 = vadd.f32 0.0, %v459
      %461 = vmatmul.bf16.gmra.mxu0 %v366
      %v462 = vpop.f32.mrf.mxu0
      %v463 = vadd.f32 0.0, %v462
      %v464 = vpop.f32.mrf.mxu0
      %v465 = vadd.f32 0.0, %v464
      %466 = vmatmul.bf16.gmra.mxu0 %v369
      %v467 = vpop.f32.mrf.mxu0
      %v468 = vadd.f32 0.0, %v467
      %v469 = vpop.f32.mrf.mxu0
      %v470 = vadd.f32 0.0, %v469
      %471 = vmatmul.bf16.gmra.mxu0 %v372
      %v472 = vpop.f32.mrf.mxu0
      %v473 = vadd.f32 0.0, %v472
      %v474 = vpop.f32.mrf.mxu0
      %v475 = vadd.f32 0.0, %v474
      %476 = vmatmul.bf16.gmra.mxu0 %v375
      %v477 = vpop.f32.mrf.mxu0
      %v478 = vadd.f32 0.0, %v477
      %v479 = vpop.f32.mrf.mxu0
      %v480 = vadd.f32 0.0, %v479
      %481 = vmatmul.bf16.gmra.mxu0 %v378
      %v482 = vpop.f32.mrf.mxu0
      %v483 = vadd.f32 0.0, %v482
      %v484 = vpop.f32.mrf.mxu0
      %v485 = vadd.f32 0.0, %v484
      %486 = vmatmul.bf16.gmra.mxu0 %v381
      %v487 = vpop.f32.mrf.mxu0
      %v488 = vadd.f32 0.0, %v487
      %v489 = vpop.f32.mrf.mxu0
      %v490 = vadd.f32 0.0, %v489
      %491 = vmatmul.bf16.gmra.mxu0 %v384
      %v492 = vpop.f32.mrf.mxu0
      %v493 = vadd.f32 0.0, %v492
      %v494 = vpop.f32.mrf.mxu0
      %v495 = vadd.f32 0.0, %v494
      %496 = vmatmul.bf16.gmra.mxu0 %v387
      %v497 = vpop.f32.mrf.mxu0
      %v498 = vadd.f32 0.0, %v497
      %v499 = vpop.f32.mrf.mxu0
      %v500 = vadd.f32 0.0, %v499
      %501 = vmatmul.bf16.gmra.mxu0 %v390
      %v502 = vpop.f32.mrf.mxu0
      %v503 = vadd.f32 0.0, %v502
      %v504 = vpop.f32.mrf.mxu0
      %v505 = vadd.f32 0.0, %v504
      %506 = vmatmul.bf16.gmra.mxu0 %v393
      %v507 = vpop.f32.mrf.mxu0
      %v508 = vadd.f32 0.0, %v507
      %v509 = vpop.f32.mrf.mxu0
      %v510 = vadd.f32 0.0, %v509
      %511 = vmatmul.bf16.gmra.mxu0 %v396
      %v512 = vpop.f32.mrf.mxu0
      %v513 = vadd.f32 0.0, %v512
      %v514 = vpop.f32.mrf.mxu0
      %515 = vdwg.mxu0
      %v516 = vmax.f32 %v408, 0.0
      %v517 = vmax.f32 %v410, 0.0
      %v518 = vmax.f32 %v413, 0.0
      %v519 = vmax.f32 %v415, 0.0
      %v520 = vmax.f32 %v418, 0.0
      %v521 = vmax.f32 %v420, 0.0
      %v522 = vmax.f32 %v423, 0.0
      %v523 = vmax.f32 %v425, 0.0
      %v524 = vmax.f32 %v428, 0.0
      %v525 = vmax.f32 %v430, 0.0
      %v526 = vmax.f32 %v433, 0.0
      %v527 = vmax.f32 %v435, 0.0
      %v528 = vmax.f32 %v438, 0.0
      %v529 = vmax.f32 %v440, 0.0
      %v530 = vmax.f32 %v443, 0.0
      %v531 = vmax.f32 %v445, 0.0
      %v532 = vmax.f32 %v448, 0.0
      %v533 = vmax.f32 %v450, 0.0
      %v534 = vmax.f32 %v453, 0.0
      %v535 = vmax.f32 %v455, 0.0
      %v536 = vmax.f32 %v458, 0.0
      %v537 = vmax.f32 %v460, 0.0
      %v538 = vmax.f32 %v463, 0.0
      %v539 = vmax.f32 %v465, 0.0
      %v540 = vmax.f32 %v468, 0.0
      %v541 = vmax.f32 %v470, 0.0
      %v542 = vmax.f32 %v473, 0.0
      %v543 = vmax.f32 %v475, 0.0
      %v544 = vmax.f32 %v478, 0.0
      %v545 = vmax.f32 %v480, 0.0
      %v546 = vmax.f32 %v483, 0.0
      %v547 = vmax.f32 %v485, 0.0
      %v548 = vmax.f32 %v488, 0.0
      %v549 = vmax.f32 %v490, 0.0
      %v550 = vmax.f32 %v493, 0.0
      %v551 = vmax.f32 %v495, 0.0
      %v552 = vmax.f32 %v498, 0.0
      %v553 = vmax.f32 %v500, 0.0
      %v554 = vmax.f32 %v503, 0.0
      %v555 = vmax.f32 %v505, 0.0
      %v556 = vmax.f32 %v508, 0.0
      %v557 = vmax.f32 %v510, 0.0
      %v558 = vmax.f32 %v513, 0.0
      %vm559 = vcmask 523264
      %560 = vst.msk [vmem:[#allocation2] sm:$0xff] %vm559, %v516
      %561 = vst.msk [vmem:[#allocation2 + $0x8] sm:$0xff] %vm559, %v517
      %562 = vst.msk [vmem:[#allocation2 + $0x10] sm:$0xff] %vm559, %v518
      %563 = vst.msk [vmem:[#allocation2 + $0x18] sm:$0xff] %vm559, %v519
      %564 = vst.msk [vmem:[#allocation2 + $0x20] sm:$0xff] %vm559, %v520
      %565 = vst.msk [vmem:[#allocation2 + $0x28] sm:$0xff] %vm559, %v521
      %566 = vst.msk [vmem:[#allocation2 + $0x30] sm:$0xff] %vm559, %v522
      %567 = vst.msk [vmem:[#allocation2 + $0x38] sm:$0xff] %vm559, %v523
      %568 = vst.msk [vmem:[#allocation2 + $0x40] sm:$0xff] %vm559, %v524
      %569 = vst.msk [vmem:[#allocation2 + $0x48] sm:$0xff] %vm559, %v525
      %570 = vst.msk [vmem:[#allocation2 + $0x50] sm:$0xff] %vm559, %v526
      %571 = vst.msk [vmem:[#allocation2 + $0x58] sm:$0xff] %vm559, %v527
      %572 = vst.msk [vmem:[#allocation2 + $0x60] sm:$0xff] %vm559, %v528
      %573 = vst.msk [vmem:[#allocation2 + $0x68] sm:$0xff] %vm559, %v529
      %574 = vst.msk [vmem:[#allocation2 + $0x70] sm:$0xff] %vm559, %v530
      %575 = vst.msk [vmem:[#allocation2 + $0x78] sm:$0xff] %vm559, %v531
      %576 = vst.msk [vmem:[#allocation2 + $0x80] sm:$0xff] %vm559, %v532
      %577 = vst.msk [vmem:[#allocation2 + $0x88] sm:$0xff] %vm559, %v533
      %578 = vst.msk [vmem:[#allocation2 + $0x90] sm:$0xff] %vm559, %v534
      %579 = vst.msk [vmem:[#allocation2 + $0x98] sm:$0xff] %vm559, %v535
      %580 = vst.msk [vmem:[#allocation2 + $0xa0] sm:$0xff] %vm559, %v536
      %581 = vst.msk [vmem:[#allocation2 + $0xa8] sm:$0xff] %vm559, %v537
      %582 = vst.msk [vmem:[#allocation2 + $0xb0] sm:$0xff] %vm559, %v538
      %583 = vst.msk [vmem:[#allocation2 + $0xb8] sm:$0xff] %vm559, %v539
      %584 = vst.msk [vmem:[#allocation2 + $0xc0] sm:$0xff] %vm559, %v540
      %585 = vst.msk [vmem:[#allocation2 + $0xc8] sm:$0xff] %vm559, %v541
      %586 = vst.msk [vmem:[#allocation2 + $0xd0] sm:$0xff] %vm559, %v542
      %587 = vst.msk [vmem:[#allocation2 + $0xd8] sm:$0xff] %vm559, %v543
      %588 = vst.msk [vmem:[#allocation2 + $0xe0] sm:$0xff] %vm559, %v544
      %589 = vst.msk [vmem:[#allocation2 + $0xe8] sm:$0xff] %vm559, %v545
      %590 = vst.msk [vmem:[#allocation2 + $0xf0] sm:$0xff] %vm559, %v546
      %591 = vst.msk [vmem:[#allocation2 + $0xf8] sm:$0xff] %vm559, %v547
      %592 = vst.msk [vmem:[#allocation2 + $0x100] sm:$0xff] %vm559, %v548
      %593 = vst.msk [vmem:[#allocation2 + $0x108] sm:$0xff] %vm559, %v549
      %594 = vst.msk [vmem:[#allocation2 + $0x110] sm:$0xff] %vm559, %v550
      %595 = vst.msk [vmem:[#allocation2 + $0x118] sm:$0xff] %vm559, %v551
      %596 = vst.msk [vmem:[#allocation2 + $0x120] sm:$0xff] %vm559, %v552
      %597 = vst.msk [vmem:[#allocation2 + $0x128] sm:$0xff] %vm559, %v553
      %598 = vst.msk [vmem:[#allocation2 + $0x130] sm:$0xff] %vm559, %v554
      %599 = vst.msk [vmem:[#allocation2 + $0x138] sm:$0xff] %vm559, %v555
      %600 = vst.msk [vmem:[#allocation2 + $0x140] sm:$0xff] %vm559, %v556
      %601 = vst.msk [vmem:[#allocation2 + $0x148] sm:$0xff] %vm559, %v557
      %vm602 = vcmask 521216
      %603 = vst.msk [vmem:[#allocation2 + $0x150] sm:$0x3f] %vm602, %v558
      %v604 = vld [vmem:[#allocation2] sm:$0xff]
      %v605 = vld [vmem:[#allocation2 + $0x8] sm:$0xff]
      %v606 = vld [vmem:[#allocation2 + $0x10] sm:$0xff]
      %v607 = vld [vmem:[#allocation2 + $0x18] sm:$0xff]
      %v608 = vld [vmem:[#allocation2 + $0x20] sm:$0xff]
      %v609 = vld [vmem:[#allocation2 + $0x28] sm:$0xff]
      %v610 = vld [vmem:[#allocation2 + $0x30] sm:$0xff]
      %v611 = vld [vmem:[#allocation2 + $0x38] sm:$0xff]
      %v612 = vld [vmem:[#allocation2 + $0x40] sm:$0xff]
      %v613 = vld [vmem:[#allocation2 + $0x48] sm:$0xff]
      %v614 = vld [vmem:[#allocation2 + $0x50] sm:$0xff]
      %v615 = vld [vmem:[#allocation2 + $0x58] sm:$0xff]
      %v616 = vld [vmem:[#allocation2 + $0x60] sm:$0xff]
      %v617 = vld [vmem:[#allocation2 + $0x68] sm:$0xff]
      %v618 = vld [vmem:[#allocation2 + $0x70] sm:$0xff]
      %v619 = vld [vmem:[#allocation2 + $0x78] sm:$0xff]
      %v620 = vld [vmem:[#allocation2 + $0x80] sm:$0xff]
      %v621 = vld [vmem:[#allocation2 + $0x88] sm:$0xff]
      %v622 = vld [vmem:[#allocation2 + $0x90] sm:$0xff]
      %v623 = vld [vmem:[#allocation2 + $0x98] sm:$0xff]
      %v624 = vld [vmem:[#allocation2 + $0xa0] sm:$0xff]
      %v625 = vld [vmem:[#allocation2 + $0xa8] sm:$0xff]
      %v626 = vld [vmem:[#allocation2 + $0xb0] sm:$0xff]
      %v627 = vld [vmem:[#allocation2 + $0xb8] sm:$0xff]
      %v628 = vld [vmem:[#allocation2 + $0xc0] sm:$0xff]
      %v629 = vld [vmem:[#allocation2 + $0xc8] sm:$0xff]
      %v630 = vld [vmem:[#allocation2 + $0xd0] sm:$0xff]
      %v631 = vld [vmem:[#allocation2 + $0xd8] sm:$0xff]
      %v632 = vld [vmem:[#allocation2 + $0xe0] sm:$0xff]
      %v633 = vld [vmem:[#allocation2 + $0xe8] sm:$0xff]
      %v634 = vld [vmem:[#allocation2 + $0xf0] sm:$0xff]
      %v635 = vld [vmem:[#allocation2 + $0xf8] sm:$0xff]
      %v636 = vld [vmem:[#allocation2 + $0x100] sm:$0xff]
      %v637 = vld [vmem:[#allocation2 + $0x108] sm:$0xff]
      %v638 = vld [vmem:[#allocation2 + $0x110] sm:$0xff]
      %v639 = vld [vmem:[#allocation2 + $0x118] sm:$0xff]
      %v640 = vpack.c.bf16 %v604, %v604
      %v641 = vpack.c.bf16 %v605, %v605
      %v642 = vpack.c.bf16 %v606, %v606
      %v643 = vpack.c.bf16 %v607, %v607
      %v644 = vpack.c.bf16 %v608, %v608
      %v645 = vpack.c.bf16 %v609, %v609
      %v646 = vpack.c.bf16 %v610, %v610
      %v647 = vpack.c.bf16 %v611, %v611
      %v648 = vpack.c.bf16 %v612, %v612
      %v649 = vpack.c.bf16 %v613, %v613
      %v650 = vpack.c.bf16 %v614, %v614
      %v651 = vpack.c.bf16 %v615, %v615
      %v652 = vpack.c.bf16 %v616, %v616
      %v653 = vpack.c.bf16 %v617, %v617
      %v654 = vpack.c.bf16 %v618, %v618
      %v655 = vpack.c.bf16 %v619, %v619
      %v656 = vpack.c.bf16 %v620, %v620
      %v657 = vpack.c.bf16 %v621, %v621
      %v658 = vpack.c.bf16 %v622, %v622
      %v659 = vpack.c.bf16 %v623, %v623
      %v660 = vpack.c.bf16 %v624, %v624
      %v661 = vpack.c.bf16 %v625, %v625
      %v662 = vpack.c.bf16 %v626, %v626
      %v663 = vpack.c.bf16 %v627, %v627
      %v664 = vpack.c.bf16 %v628, %v628
      %v665 = vpack.c.bf16 %v629, %v629
      %v666 = vpack.c.bf16 %v630, %v630
      %v667 = vpack.c.bf16 %v631, %v631
      %v668 = vpack.c.bf16 %v632, %v632
      %v669 = vpack.c.bf16 %v633, %v633
      %v670 = vpack.c.bf16 %v634, %v634
      %v671 = vpack.c.bf16 %v635, %v635
      %v672 = vpack.c.bf16 %v636, %v636
      %v673 = vpack.c.bf16 %v637, %v637
      %v674 = vpack.c.bf16 %v638, %v638
      %v675 = vpack.c.bf16 %v639, %v639
      %vm676 = vcmask 519168
      %677 = vst.msk [vmem:[#allocation3] sm:$0xf] %vm676, %v640
      %678 = vst.msk [vmem:[#allocation3 + $0x14] sm:$0xf] %vm676, %v641
      %679 = vst.msk [vmem:[#allocation3 + $0x28] sm:$0xf] %vm676, %v642
      %680 = vst.msk [vmem:[#allocation3 + $0x3c] sm:$0xf] %vm676, %v643
      %681 = vst.msk [vmem:[#allocation3 + $0x50] sm:$0xf] %vm676, %v644
      %682 = vst.msk [vmem:[#allocation3 + $0x64] sm:$0xf] %vm676, %v645
      %683 = vst.msk [vmem:[#allocation3 + $0x78] sm:$0xf] %vm676, %v646
      %684 = vst.msk [vmem:[#allocation3 + $0x8c] sm:$0xf] %vm676, %v647
      %685 = vst.msk [vmem:[#allocation3 + $0xa0] sm:$0xf] %vm676, %v648
      %686 = vst.msk [vmem:[#allocation3 + $0xb4] sm:$0xf] %vm676, %v649
      %687 = vst.msk [vmem:[#allocation3 + $0xc8] sm:$0xf] %vm676, %v650
      %688 = vst.msk [vmem:[#allocation3 + $0xdc] sm:$0xf] %vm676, %v651
      %689 = vst.msk [vmem:[#allocation3 + $0xf0] sm:$0xf] %vm676, %v652
      %690 = vst.msk [vmem:[#allocation3 + $0x104] sm:$0xf] %vm676, %v653
      %691 = vst.msk [vmem:[#allocation3 + $0x118] sm:$0xf] %vm676, %v654
      %692 = vst.msk [vmem:[#allocation3 + $0x12c] sm:$0xf] %vm676, %v655
      %693 = vst.msk [vmem:[#allocation3 + $0x140] sm:$0xf] %vm676, %v656
      %694 = vst.msk [vmem:[#allocation3 + $0x154] sm:$0xf] %vm676, %v657
      %695 = vst.msk [vmem:[#allocation3 + $0x168] sm:$0xf] %vm676, %v658
      %696 = vst.msk [vmem:[#allocation3 + $0x17c] sm:$0xf] %vm676, %v659
      %697 = vst.msk [vmem:[#allocation3 + $0x190] sm:$0xf] %vm676, %v660
      %698 = vst.msk [vmem:[#allocation3 + $0x1a4] sm:$0xf] %vm676, %v661
      %699 = vst.msk [vmem:[#allocation3 + $0x1b8] sm:$0xf] %vm676, %v662
      %700 = vst.msk [vmem:[#allocation3 + $0x1cc] sm:$0xf] %vm676, %v663
      %701 = vst.msk [vmem:[#allocation3 + $0x1e0] sm:$0xf] %vm676, %v664
      %702 = vst.msk [vmem:[#allocation3 + $0x1f4] sm:$0xf] %vm676, %v665
      %703 = vst.msk [vmem:[#allocation3 + $0x208] sm:$0xf] %vm676, %v666
      %704 = vst.msk [vmem:[#allocation3 + $0x21c] sm:$0xf] %vm676, %v667
      %705 = vst.msk [vmem:[#allocation3 + $0x230] sm:$0xf] %vm676, %v668
      %706 = vst.msk [vmem:[#allocation3 + $0x244] sm:$0xf] %vm676, %v669
      %707 = vst.msk [vmem:[#allocation3 + $0x258] sm:$0xf] %vm676, %v670
      %708 = vst.msk [vmem:[#allocation3 + $0x26c] sm:$0xf] %vm676, %v671
      %709 = vst.msk [vmem:[#allocation3 + $0x280] sm:$0xf] %vm676, %v672
      %710 = vst.msk [vmem:[#allocation3 + $0x294] sm:$0xf] %vm676, %v673
      %711 = vst.msk [vmem:[#allocation3 + $0x2a8] sm:$0xf] %vm676, %v674
      %712 = vst.msk [vmem:[#allocation3 + $0x2bc] sm:$0xf] %vm676, %v675
      %v713 = vld [vmem:[#allocation2 + $0x1] sm:$0xff]
      %v714 = vld [vmem:[#allocation2 + $0x9] sm:$0xff]
      %v715 = vld [vmem:[#allocation2 + $0x11] sm:$0xff]
      %v716 = vld [vmem:[#allocation2 + $0x19] sm:$0xff]
      %v717 = vld [vmem:[#allocation2 + $0x21] sm:$0xff]
      %v718 = vld [vmem:[#allocation2 + $0x29] sm:$0xff]
      %v719 = vld [vmem:[#allocation2 + $0x31] sm:$0xff]
      %v720 = vld [vmem:[#allocation2 + $0x39] sm:$0xff]
      %v721 = vld [vmem:[#allocation2 + $0x41] sm:$0xff]
      %v722 = vld [vmem:[#allocation2 + $0x49] sm:$0xff]
      %v723 = vld [vmem:[#allocation2 + $0x51] sm:$0xff]
      %v724 = vld [vmem:[#allocation2 + $0x59] sm:$0xff]
      %v725 = vld [vmem:[#allocation2 + $0x61] sm:$0xff]
      %v726 = vld [vmem:[#allocation2 + $0x69] sm:$0xff]
      %v727 = vld [vmem:[#allocation2 + $0x71] sm:$0xff]
      %v728 = vld [vmem:[#allocation2 + $0x79] sm:$0xff]
      %v729 = vld [vmem:[#allocation2 + $0x81] sm:$0xff]
      %v730 = vld [vmem:[#allocation2 + $0x89] sm:$0xff]
      %v731 = vld [vmem:[#allocation2 + $0x91] sm:$0xff]
      %v732 = vld [vmem:[#allocation2 + $0x99] sm:$0xff]
      %v733 = vld [vmem:[#allocation2 + $0xa1] sm:$0xff]
      %v734 = vld [vmem:[#allocation2 + $0xa9] sm:$0xff]
      %v735 = vld [vmem:[#allocation2 + $0xb1] sm:$0xff]
      %v736 = vld [vmem:[#allocation2 + $0xb9] sm:$0xff]
      %v737 = vld [vmem:[#allocation2 + $0xc1] sm:$0xff]
      %v738 = vld [vmem:[#allocation2 + $0xc9] sm:$0xff]
      %v739 = vld [vmem:[#allocation2 + $0xd1] sm:$0xff]
      %v740 = vld [vmem:[#allocation2 + $0xd9] sm:$0xff]
      %v741 = vld [vmem:[#allocation2 + $0xe1] sm:$0xff]
      %v742 = vld [vmem:[#allocation2 + $0xe9] sm:$0xff]
      %v743 = vld [vmem:[#allocation2 + $0xf1] sm:$0xff]
      %v744 = vld [vmem:[#allocation2 + $0xf9] sm:$0xff]
      %v745 = vld [vmem:[#allocation2 + $0x101] sm:$0xff]
      %v746 = vld [vmem:[#allocation2 + $0x109] sm:$0xff]
      %v747 = vld [vmem:[#allocation2 + $0x111] sm:$0xff]
      %v748 = vld [vmem:[#allocation2 + $0x119] sm:$0xff]
      %v749 = vpack.c.bf16 %v713, %v713
      %v750 = vpack.c.bf16 %v714, %v714
      %v751 = vpack.c.bf16 %v715, %v715
      %v752 = vpack.c.bf16 %v716, %v716
      %v753 = vpack.c.bf16 %v717, %v717
      %v754 = vpack.c.bf16 %v718, %v718
      %v755 = vpack.c.bf16 %v719, %v719
      %v756 = vpack.c.bf16 %v720, %v720
      %v757 = vpack.c.bf16 %v721, %v721
      %v758 = vpack.c.bf16 %v722, %v722
      %v759 = vpack.c.bf16 %v723, %v723
      %v760 = vpack.c.bf16 %v724, %v724
      %v761 = vpack.c.bf16 %v725, %v725
      %v762 = vpack.c.bf16 %v726, %v726
      %v763 = vpack.c.bf16 %v727, %v727
      %v764 = vpack.c.bf16 %v728, %v728
      %v765 = vpack.c.bf16 %v729, %v729
      %v766 = vpack.c.bf16 %v730, %v730
      %v767 = vpack.c.bf16 %v731, %v731
      %v768 = vpack.c.bf16 %v732, %v732
      %v769 = vpack.c.bf16 %v733, %v733
      %v770 = vpack.c.bf16 %v734, %v734
      %v771 = vpack.c.bf16 %v735, %v735
      %v772 = vpack.c.bf16 %v736, %v736
      %v773 = vpack.c.bf16 %v737, %v737
      %v774 = vpack.c.bf16 %v738, %v738
      %v775 = vpack.c.bf16 %v739, %v739
      %v776 = vpack.c.bf16 %v740, %v740
      %v777 = vpack.c.bf16 %v741, %v741
      %v778 = vpack.c.bf16 %v742, %v742
      %v779 = vpack.c.bf16 %v743, %v743
      %v780 = vpack.c.bf16 %v744, %v744
      %v781 = vpack.c.bf16 %v745, %v745
      %v782 = vpack.c.bf16 %v746, %v746
      %v783 = vpack.c.bf16 %v747, %v747
      %v784 = vpack.c.bf16 %v748, %v748
      %821 = vrot.lane.b32.xlu0 %v749, 64
      %v822 = vpop.permute.xlu0 %821
      %823 = vrot.lane.b32.xlu0 %v750, 64
      %v824 = vpop.permute.xlu0 %823
      %825 = vrot.lane.b32.xlu0 %v751, 64
      %v826 = vpop.permute.xlu0 %825
      %827 = vrot.lane.b32.xlu0 %v752, 64
      %v828 = vpop.permute.xlu0 %827
      %829 = vrot.lane.b32.xlu0 %v753, 64
      %v830 = vpop.permute.xlu0 %829
      %831 = vrot.lane.b32.xlu0 %v754, 64
      %v832 = vpop.permute.xlu0 %831
      %833 = vrot.lane.b32.xlu0 %v755, 64
      %v834 = vpop.permute.xlu0 %833
      %835 = vrot.lane.b32.xlu0 %v756, 64
      %v836 = vpop.permute.xlu0 %835
      %837 = vrot.lane.b32.xlu0 %v757, 64
      %v838 = vpop.permute.xlu0 %837
      %839 = vrot.lane.b32.xlu0 %v758, 64
      %v840 = vpop.permute.xlu0 %839
      %841 = vrot.lane.b32.xlu0 %v759, 64
      %v842 = vpop.permute.xlu0 %841
      %843 = vrot.lane.b32.xlu0 %v760, 64
      %v844 = vpop.permute.xlu0 %843
      %845 = vrot.lane.b32.xlu0 %v761, 64
      %v846 = vpop.permute.xlu0 %845
      %847 = vrot.lane.b32.xlu0 %v762, 64
      %v848 = vpop.permute.xlu0 %847
      %849 = vrot.lane.b32.xlu0 %v763, 64
      %v850 = vpop.permute.xlu0 %849
      %851 = vrot.lane.b32.xlu0 %v764, 64
      %v852 = vpop.permute.xlu0 %851
      %853 = vrot.lane.b32.xlu0 %v765, 64
      %v854 = vpop.permute.xlu0 %853
      %855 = vrot.lane.b32.xlu0 %v766, 64
      %v856 = vpop.permute.xlu0 %855
      %857 = vrot.lane.b32.xlu0 %v767, 64
      %v858 = vpop.permute.xlu0 %857
      %859 = vrot.lane.b32.xlu0 %v768, 64
      %v860 = vpop.permute.xlu0 %859
      %861 = vrot.lane.b32.xlu0 %v769, 64
      %v862 = vpop.permute.xlu0 %861
      %863 = vrot.lane.b32.xlu0 %v770, 64
      %v864 = vpop.permute.xlu0 %863
      %865 = vrot.lane.b32.xlu0 %v771, 64
      %v866 = vpop.permute.xlu0 %865
      %867 = vrot.lane.b32.xlu0 %v772, 64
      %v868 = vpop.permute.xlu0 %867
      %869 = vrot.lane.b32.xlu0 %v773, 64
      %v870 = vpop.permute.xlu0 %869
      %871 = vrot.lane.b32.xlu0 %v774, 64
      %v872 = vpop.permute.xlu0 %871
      %873 = vrot.lane.b32.xlu0 %v775, 64
      %v874 = vpop.permute.xlu0 %873
      %875 = vrot.lane.b32.xlu0 %v776, 64
      %v876 = vpop.permute.xlu0 %875
      %877 = vrot.lane.b32.xlu0 %v777, 64
      %v878 = vpop.permute.xlu0 %877
      %879 = vrot.lane.b32.xlu0 %v778, 64
      %v880 = vpop.permute.xlu0 %879
      %881 = vrot.lane.b32.xlu0 %v779, 64
      %v882 = vpop.permute.xlu0 %881
      %883 = vrot.lane.b32.xlu0 %v780, 64
      %v884 = vpop.permute.xlu0 %883
      %885 = vrot.lane.b32.xlu0 %v781, 64
      %v886 = vpop.permute.xlu0 %885
      %887 = vrot.lane.b32.xlu0 %v782, 64
      %v888 = vpop.permute.xlu0 %887
      %889 = vrot.lane.b32.xlu0 %v783, 64
      %v890 = vpop.permute.xlu0 %889
      %891 = vrot.lane.b32.xlu0 %v784, 64
      %v892 = vpop.permute.xlu0 %891
      %vm929 = vcmask 1043968
      %930 = vst.msk [vmem:[#allocation3] sm:$0xf] %vm929, %v822
      %931 = vst.msk [vmem:[#allocation3 + $0x14] sm:$0xf] %vm929, %v824
      %932 = vst.msk [vmem:[#allocation3 + $0x28] sm:$0xf] %vm929, %v826
      %933 = vst.msk [vmem:[#allocation3 + $0x3c] sm:$0xf] %vm929, %v828
      %934 = vst.msk [vmem:[#allocation3 + $0x50] sm:$0xf] %vm929, %v830
      %935 = vst.msk [vmem:[#allocation3 + $0x64] sm:$0xf] %vm929, %v832
      %936 = vst.msk [vmem:[#allocation3 + $0x78] sm:$0xf] %vm929, %v834
      %937 = vst.msk [vmem:[#allocation3 + $0x8c] sm:$0xf] %vm929, %v836
      %938 = vst.msk [vmem:[#allocation3 + $0xa0] sm:$0xf] %vm929, %v838
      %939 = vst.msk [vmem:[#allocation3 + $0xb4] sm:$0xf] %vm929, %v840
      %940 = vst.msk [vmem:[#allocation3 + $0xc8] sm:$0xf] %vm929, %v842
      %941 = vst.msk [vmem:[#allocation3 + $0xdc] sm:$0xf] %vm929, %v844
      %942 = vst.msk [vmem:[#allocation3 + $0xf0] sm:$0xf] %vm929, %v846
      %943 = vst.msk [vmem:[#allocation3 + $0x104] sm:$0xf] %vm929, %v848
      %944 = vst.msk [vmem:[#allocation3 + $0x118] sm:$0xf] %vm929, %v850
      %945 = vst.msk [vmem:[#allocation3 + $0x12c] sm:$0xf] %vm929, %v852
      %946 = vst.msk [vmem:[#allocation3 + $0x140] sm:$0xf] %vm929, %v854
      %947 = vst.msk [vmem:[#allocation3 + $0x154] sm:$0xf] %vm929, %v856
      %948 = vst.msk [vmem:[#allocation3 + $0x168] sm:$0xf] %vm929, %v858
      %949 = vst.msk [vmem:[#allocation3 + $0x17c] sm:$0xf] %vm929, %v860
      %950 = vst.msk [vmem:[#allocation3 + $0x190] sm:$0xf] %vm929, %v862
      %951 = vst.msk [vmem:[#allocation3 + $0x1a4] sm:$0xf] %vm929, %v864
      %952 = vst.msk [vmem:[#allocation3 + $0x1b8] sm:$0xf] %vm929, %v866
      %953 = vst.msk [vmem:[#allocation3 + $0x1cc] sm:$0xf] %vm929, %v868
      %954 = vst.msk [vmem:[#allocation3 + $0x1e0] sm:$0xf] %vm929, %v870
      %955 = vst.msk [vmem:[#allocation3 + $0x1f4] sm:$0xf] %vm929, %v872
      %956 = vst.msk [vmem:[#allocation3 + $0x208] sm:$0xf] %vm929, %v874
      %957 = vst.msk [vmem:[#allocation3 + $0x21c] sm:$0xf] %vm929, %v876
      %958 = vst.msk [vmem:[#allocation3 + $0x230] sm:$0xf] %vm929, %v878
      %959 = vst.msk [vmem:[#allocation3 + $0x244] sm:$0xf] %vm929, %v880
      %960 = vst.msk [vmem:[#allocation3 + $0x258] sm:$0xf] %vm929, %v882
      %961 = vst.msk [vmem:[#allocation3 + $0x26c] sm:$0xf] %vm929, %v884
      %962 = vst.msk [vmem:[#allocation3 + $0x280] sm:$0xf] %vm929, %v886
      %963 = vst.msk [vmem:[#allocation3 + $0x294] sm:$0xf] %vm929, %v888
      %964 = vst.msk [vmem:[#allocation3 + $0x2a8] sm:$0xf] %vm929, %v890
      %965 = vst.msk [vmem:[#allocation3 + $0x2bc] sm:$0xf] %vm929, %v892
      %v966 = vld [vmem:[#allocation2 + $0x2] sm:$0xff]
      %v967 = vld [vmem:[#allocation2 + $0xa] sm:$0xff]
      %v968 = vld [vmem:[#allocation2 + $0x12] sm:$0xff]
      %v969 = vld [vmem:[#allocation2 + $0x1a] sm:$0xff]
      %v970 = vld [vmem:[#allocation2 + $0x22] sm:$0xff]
      %v971 = vld [vmem:[#allocation2 + $0x2a] sm:$0xff]
      %v972 = vld [vmem:[#allocation2 + $0x32] sm:$0xff]
      %v973 = vld [vmem:[#allocation2 + $0x3a] sm:$0xff]
      %v974 = vld [vmem:[#allocation2 + $0x42] sm:$0xff]
      %v975 = vld [vmem:[#allocation2 + $0x4a] sm:$0xff]
      %v976 = vld [vmem:[#allocation2 + $0x52] sm:$0xff]
      %v977 = vld [vmem:[#allocation2 + $0x5a] sm:$0xff]
      %v978 = vld [vmem:[#allocation2 + $0x62] sm:$0xff]
      %v979 = vld [vmem:[#allocation2 + $0x6a] sm:$0xff]
      %v980 = vld [vmem:[#allocation2 + $0x72] sm:$0xff]
      %v981 = vld [vmem:[#allocation2 + $0x7a] sm:$0xff]
      %v982 = vld [vmem:[#allocation2 + $0x82] sm:$0xff]
      %v983 = vld [vmem:[#allocation2 + $0x8a] sm:$0xff]
      %v984 = vld [vmem:[#allocation2 + $0x92] sm:$0xff]
      %v985 = vld [vmem:[#allocation2 + $0x9a] sm:$0xff]
      %v986 = vld [vmem:[#allocation2 + $0xa2] sm:$0xff]
      %v987 = vld [vmem:[#allocation2 + $0xaa] sm:$0xff]
      %v988 = vld [vmem:[#allocation2 + $0xb2] sm:$0xff]
      %v989 = vld [vmem:[#allocation2 + $0xba] sm:$0xff]
      %v990 = vld [vmem:[#allocation2 + $0xc2] sm:$0xff]
      %v991 = vld [vmem:[#allocation2 + $0xca] sm:$0xff]
      %v992 = vld [vmem:[#allocation2 + $0xd2] sm:$0xff]
      %v993 = vld [vmem:[#allocation2 + $0xda] sm:$0xff]
      %v994 = vld [vmem:[#allocation2 + $0xe2] sm:$0xff]
      %v995 = vld [vmem:[#allocation2 + $0xea] sm:$0xff]
      %v996 = vld [vmem:[#allocation2 + $0xf2] sm:$0xff]
      %v997 = vld [vmem:[#allocation2 + $0xfa] sm:$0xff]
      %v998 = vld [vmem:[#allocation2 + $0x102] sm:$0xff]
      %v999 = vld [vmem:[#allocation2 + $0x10a] sm:$0xff]
      %v1000 = vld [vmem:[#allocation2 + $0x112] sm:$0xff]
      %v1001 = vld [vmem:[#allocation2 + $0x11a] sm:$0xff]
      %v1002 = vpack.c.bf16 %v966, %v966
      %v1003 = vpack.c.bf16 %v967, %v967
      %v1004 = vpack.c.bf16 %v968, %v968
      %v1005 = vpack.c.bf16 %v969, %v969
      %v1006 = vpack.c.bf16 %v970, %v970
      %v1007 = vpack.c.bf16 %v971, %v971
      %v1008 = vpack.c.bf16 %v972, %v972
      %v1009 = vpack.c.bf16 %v973, %v973
      %v1010 = vpack.c.bf16 %v974, %v974
      %v1011 = vpack.c.bf16 %v975, %v975
      %v1012 = vpack.c.bf16 %v976, %v976
      %v1013 = vpack.c.bf16 %v977, %v977
      %v1014 = vpack.c.bf16 %v978, %v978
      %v1015 = vpack.c.bf16 %v979, %v979
      %v1016 = vpack.c.bf16 %v980, %v980
      %v1017 = vpack.c.bf16 %v981, %v981
      %v1018 = vpack.c.bf16 %v982, %v982
      %v1019 = vpack.c.bf16 %v983, %v983
      %v1020 = vpack.c.bf16 %v984, %v984
      %v1021 = vpack.c.bf16 %v985, %v985
      %v1022 = vpack.c.bf16 %v986, %v986
      %v1023 = vpack.c.bf16 %v987, %v987
      %v1024 = vpack.c.bf16 %v988, %v988
      %v1025 = vpack.c.bf16 %v989, %v989
      %v1026 = vpack.c.bf16 %v990, %v990
      %v1027 = vpack.c.bf16 %v991, %v991
      %v1028 = vpack.c.bf16 %v992, %v992
      %v1029 = vpack.c.bf16 %v993, %v993
      %v1030 = vpack.c.bf16 %v994, %v994
      %v1031 = vpack.c.bf16 %v995, %v995
      %v1032 = vpack.c.bf16 %v996, %v996
      %v1033 = vpack.c.bf16 %v997, %v997
      %v1034 = vpack.c.bf16 %v998, %v998
      %v1035 = vpack.c.bf16 %v999, %v999
      %v1036 = vpack.c.bf16 %v1000, %v1000
      %v1037 = vpack.c.bf16 %v1001, %v1001
      %1038 = vst.msk [vmem:[#allocation3 + $0x4] sm:$0xf] %vm676, %v1002
      %1039 = vst.msk [vmem:[#allocation3 + $0x18] sm:$0xf] %vm676, %v1003
      %1040 = vst.msk [vmem:[#allocation3 + $0x2c] sm:$0xf] %vm676, %v1004
      %1041 = vst.msk [vmem:[#allocation3 + $0x40] sm:$0xf] %vm676, %v1005
      %1042 = vst.msk [vmem:[#allocation3 + $0x54] sm:$0xf] %vm676, %v1006
      %1043 = vst.msk [vmem:[#allocation3 + $0x68] sm:$0xf] %vm676, %v1007
      %1044 = vst.msk [vmem:[#allocation3 + $0x7c] sm:$0xf] %vm676, %v1008
      %1045 = vst.msk [vmem:[#allocation3 + $0x90] sm:$0xf] %vm676, %v1009
      %1046 = vst.msk [vmem:[#allocation3 + $0xa4] sm:$0xf] %vm676, %v1010
      %1047 = vst.msk [vmem:[#allocation3 + $0xb8] sm:$0xf] %vm676, %v1011
      %1048 = vst.msk [vmem:[#allocation3 + $0xcc] sm:$0xf] %vm676, %v1012
      %1049 = vst.msk [vmem:[#allocation3 + $0xe0] sm:$0xf] %vm676, %v1013
      %1050 = vst.msk [vmem:[#allocation3 + $0xf4] sm:$0xf] %vm676, %v1014
      %1051 = vst.msk [vmem:[#allocation3 + $0x108] sm:$0xf] %vm676, %v1015
      %1052 = vst.msk [vmem:[#allocation3 + $0x11c] sm:$0xf] %vm676, %v1016
      %1053 = vst.msk [vmem:[#allocation3 + $0x130] sm:$0xf] %vm676, %v1017
      %1054 = vst.msk [vmem:[#allocation3 + $0x144] sm:$0xf] %vm676, %v1018
      %1055 = vst.msk [vmem:[#allocation3 + $0x158] sm:$0xf] %vm676, %v1019
      %1056 = vst.msk [vmem:[#allocation3 + $0x16c] sm:$0xf] %vm676, %v1020
      %1057 = vst.msk [vmem:[#allocation3 + $0x180] sm:$0xf] %vm676, %v1021
      %1058 = vst.msk [vmem:[#allocation3 + $0x194] sm:$0xf] %vm676, %v1022
      %1059 = vst.msk [vmem:[#allocation3 + $0x1a8] sm:$0xf] %vm676, %v1023
      %1060 = vst.msk [vmem:[#allocation3 + $0x1bc] sm:$0xf] %vm676, %v1024
      %1061 = vst.msk [vmem:[#allocation3 + $0x1d0] sm:$0xf] %vm676, %v1025
      %1062 = vst.msk [vmem:[#allocation3 + $0x1e4] sm:$0xf] %vm676, %v1026
      %1063 = vst.msk [vmem:[#allocation3 + $0x1f8] sm:$0xf] %vm676, %v1027
      %1064 = vst.msk [vmem:[#allocation3 + $0x20c] sm:$0xf] %vm676, %v1028
      %1065 = vst.msk [vmem:[#allocation3 + $0x220] sm:$0xf] %vm676, %v1029
      %1066 = vst.msk [vmem:[#allocation3 + $0x234] sm:$0xf] %vm676, %v1030
      %1067 = vst.msk [vmem:[#allocation3 + $0x248] sm:$0xf] %vm676, %v1031
      %1068 = vst.msk [vmem:[#allocation3 + $0x25c] sm:$0xf] %vm676, %v1032
      %1069 = vst.msk [vmem:[#allocation3 + $0x270] sm:$0xf] %vm676, %v1033
      %1070 = vst.msk [vmem:[#allocation3 + $0x284] sm:$0xf] %vm676, %v1034
      %1071 = vst.msk [vmem:[#allocation3 + $0x298] sm:$0xf] %vm676, %v1035
      %1072 = vst.msk [vmem:[#allocation3 + $0x2ac] sm:$0xf] %vm676, %v1036
      %1073 = vst.msk [vmem:[#allocation3 + $0x2c0] sm:$0xf] %vm676, %v1037
      %v1074 = vld [vmem:[#allocation2 + $0x12] sm:$0xff]
      %v1075 = vld [vmem:[#allocation2 + $0x1a] sm:$0xff]
      %v1076 = vld [vmem:[#allocation2 + $0x22] sm:$0xff]
      %v1077 = vld [vmem:[#allocation2 + $0x2a] sm:$0xff]
      %v1078 = vld [vmem:[#allocation2 + $0x32] sm:$0xff]
      %v1079 = vld [vmem:[#allocation2 + $0x3a] sm:$0xff]
      %v1080 = vld [vmem:[#allocation2 + $0x42] sm:$0xff]
      %v1081 = vld [vmem:[#allocation2 + $0x4a] sm:$0xff]
      %v1082 = vld [vmem:[#allocation2 + $0x52] sm:$0xff]
      %v1083 = vld [vmem:[#allocation2 + $0x5a] sm:$0xff]
      %v1084 = vld [vmem:[#allocation2 + $0x62] sm:$0xff]
      %v1085 = vld [vmem:[#allocation2 + $0x6a] sm:$0xff]
      %v1086 = vld [vmem:[#allocation2 + $0x72] sm:$0xff]
      %v1087 = vld [vmem:[#allocation2 + $0x7a] sm:$0xff]
      %v1088 = vld [vmem:[#allocation2 + $0x82] sm:$0xff]
      %v1089 = vld [vmem:[#allocation2 + $0x8a] sm:$0xff]
      %v1090 = vld [vmem:[#allocation2 + $0x92] sm:$0xff]
      %v1091 = vld [vmem:[#allocation2 + $0x9a] sm:$0xff]
      %v1092 = vld [vmem:[#allocation2 + $0xa2] sm:$0xff]
      %v1093 = vld [vmem:[#allocation2 + $0xaa] sm:$0xff]
      %v1094 = vld [vmem:[#allocation2 + $0xb2] sm:$0xff]
      %v1095 = vld [vmem:[#allocation2 + $0xba] sm:$0xff]
      %v1096 = vld [vmem:[#allocation2 + $0xc2] sm:$0xff]
      %v1097 = vld [vmem:[#allocation2 + $0xca] sm:$0xff]
      %v1098 = vld [vmem:[#allocation2 + $0xd2] sm:$0xff]
      %v1099 = vld [vmem:[#allocation2 + $0xda] sm:$0xff]
      %v1100 = vld [vmem:[#allocation2 + $0xe2] sm:$0xff]
      %v1101 = vld [vmem:[#allocation2 + $0xea] sm:$0xff]
      %v1102 = vld [vmem:[#allocation2 + $0xf2] sm:$0xff]
      %v1103 = vld [vmem:[#allocation2 + $0xfa] sm:$0xff]
      %v1104 = vld [vmem:[#allocation2 + $0x102] sm:$0xff]
      %v1105 = vld [vmem:[#allocation2 + $0x10a] sm:$0xff]
      %v1106 = vld [vmem:[#allocation2 + $0x112] sm:$0xff]
      %v1107 = vld [vmem:[#allocation2 + $0x11a] sm:$0xff]
      %v1108 = vld [vmem:[#allocation2 + $0x122] sm:$0xff]
      %v1109 = vld [vmem:[#allocation2 + $0x12a] sm:$0xff]
      %v1110 = vpack.c.bf16 %v1074, %v1074
      %v1111 = vpack.c.bf16 %v1075, %v1075
      %v1112 = vpack.c.bf16 %v1076, %v1076
      %v1113 = vpack.c.bf16 %v1077, %v1077
      %v1114 = vpack.c.bf16 %v1078, %v1078
      %v1115 = vpack.c.bf16 %v1079, %v1079
      %v1116 = vpack.c.bf16 %v1080, %v1080
      %v1117 = vpack.c.bf16 %v1081, %v1081
      %v1118 = vpack.c.bf16 %v1082, %v1082
      %v1119 = vpack.c.bf16 %v1083, %v1083
      %v1120 = vpack.c.bf16 %v1084, %v1084
      %v1121 = vpack.c.bf16 %v1085, %v1085
      %v1122 = vpack.c.bf16 %v1086, %v1086
      %v1123 = vpack.c.bf16 %v1087, %v1087
      %v1124 = vpack.c.bf16 %v1088, %v1088
      %v1125 = vpack.c.bf16 %v1089, %v1089
      %v1126 = vpack.c.bf16 %v1090, %v1090
      %v1127 = vpack.c.bf16 %v1091, %v1091
      %v1128 = vpack.c.bf16 %v1092, %v1092
      %v1129 = vpack.c.bf16 %v1093, %v1093
      %v1130 = vpack.c.bf16 %v1094, %v1094
      %v1131 = vpack.c.bf16 %v1095, %v1095
      %v1132 = vpack.c.bf16 %v1096, %v1096
      %v1133 = vpack.c.bf16 %v1097, %v1097
      %v1134 = vpack.c.bf16 %v1098, %v1098
      %v1135 = vpack.c.bf16 %v1099, %v1099
      %v1136 = vpack.c.bf16 %v1100, %v1100
      %v1137 = vpack.c.bf16 %v1101, %v1101
      %v1138 = vpack.c.bf16 %v1102, %v1102
      %v1139 = vpack.c.bf16 %v1103, %v1103
      %v1140 = vpack.c.bf16 %v1104, %v1104
      %v1141 = vpack.c.bf16 %v1105, %v1105
      %v1142 = vpack.c.bf16 %v1106, %v1106
      %v1143 = vpack.c.bf16 %v1107, %v1107
      %v1144 = vpack.c.bf16 %v1108, %v1108
      %v1145 = vpack.c.bf16 %v1109, %v1109
      %1182 = vrot.lane.b32.xlu0 %v1110, 64
      %v1183 = vpop.permute.xlu0 %1182
      %1184 = vrot.lane.b32.xlu0 %v1111, 64
      %v1185 = vpop.permute.xlu0 %1184
      %1186 = vrot.lane.b32.xlu0 %v1112, 64
      %v1187 = vpop.permute.xlu0 %1186
      %1188 = vrot.lane.b32.xlu0 %v1113, 64
      %v1189 = vpop.permute.xlu0 %1188
      %1190 = vrot.lane.b32.xlu0 %v1114, 64
      %v1191 = vpop.permute.xlu0 %1190
      %1192 = vrot.lane.b32.xlu0 %v1115, 64
      %v1193 = vpop.permute.xlu0 %1192
      %1194 = vrot.lane.b32.xlu0 %v1116, 64
      %v1195 = vpop.permute.xlu0 %1194
      %1196 = vrot.lane.b32.xlu0 %v1117, 64
      %v1197 = vpop.permute.xlu0 %1196
      %1198 = vrot.lane.b32.xlu0 %v1118, 64
      %v1199 = vpop.permute.xlu0 %1198
      %1200 = vrot.lane.b32.xlu0 %v1119, 64
      %v1201 = vpop.permute.xlu0 %1200
      %1202 = vrot.lane.b32.xlu0 %v1120, 64
      %v1203 = vpop.permute.xlu0 %1202
      %1204 = vrot.lane.b32.xlu0 %v1121, 64
      %v1205 = vpop.permute.xlu0 %1204
      %1206 = vrot.lane.b32.xlu0 %v1122, 64
      %v1207 = vpop.permute.xlu0 %1206
      %1208 = vrot.lane.b32.xlu0 %v1123, 64
      %v1209 = vpop.permute.xlu0 %1208
      %1210 = vrot.lane.b32.xlu0 %v1124, 64
      %v1211 = vpop.permute.xlu0 %1210
      %1212 = vrot.lane.b32.xlu0 %v1125, 64
      %v1213 = vpop.permute.xlu0 %1212
      %1214 = vrot.lane.b32.xlu0 %v1126, 64
      %v1215 = vpop.permute.xlu0 %1214
      %1216 = vrot.lane.b32.xlu0 %v1127, 64
      %v1217 = vpop.permute.xlu0 %1216
      %1218 = vrot.lane.b32.xlu0 %v1128, 64
      %v1219 = vpop.permute.xlu0 %1218
      %1220 = vrot.lane.b32.xlu0 %v1129, 64
      %v1221 = vpop.permute.xlu0 %1220
      %1222 = vrot.lane.b32.xlu0 %v1130, 64
      %v1223 = vpop.permute.xlu0 %1222
      %1224 = vrot.lane.b32.xlu0 %v1131, 64
      %v1225 = vpop.permute.xlu0 %1224
      %1226 = vrot.lane.b32.xlu0 %v1132, 64
      %v1227 = vpop.permute.xlu0 %1226
      %1228 = vrot.lane.b32.xlu0 %v1133, 64
      %v1229 = vpop.permute.xlu0 %1228
      %1230 = vrot.lane.b32.xlu0 %v1134, 64
      %v1231 = vpop.permute.xlu0 %1230
      %1232 = vrot.lane.b32.xlu0 %v1135, 64
      %v1233 = vpop.permute.xlu0 %1232
      %1234 = vrot.lane.b32.xlu0 %v1136, 64
      %v1235 = vpop.permute.xlu0 %1234
      %1236 = vrot.lane.b32.xlu0 %v1137, 64
      %v1237 = vpop.permute.xlu0 %1236
      %1238 = vrot.lane.b32.xlu0 %v1138, 64
      %v1239 = vpop.permute.xlu0 %1238
      %1240 = vrot.lane.b32.xlu0 %v1139, 64
      %v1241 = vpop.permute.xlu0 %1240
      %1242 = vrot.lane.b32.xlu0 %v1140, 64
      %v1243 = vpop.permute.xlu0 %1242
      %1244 = vrot.lane.b32.xlu0 %v1141, 64
      %v1245 = vpop.permute.xlu0 %1244
      %1246 = vrot.lane.b32.xlu0 %v1142, 64
      %v1247 = vpop.permute.xlu0 %1246
      %1248 = vrot.lane.b32.xlu0 %v1143, 64
      %v1249 = vpop.permute.xlu0 %1248
      %1250 = vrot.lane.b32.xlu0 %v1144, 64
      %v1251 = vpop.permute.xlu0 %1250
      %1252 = vrot.lane.b32.xlu0 %v1145, 64
      %v1253 = vpop.permute.xlu0 %1252
      %1290 = vst.msk [vmem:[#allocation3 + $0x4] sm:$0xf] %vm929, %v1183
      %1291 = vst.msk [vmem:[#allocation3 + $0x18] sm:$0xf] %vm929, %v1185
      %1292 = vst.msk [vmem:[#allocation3 + $0x2c] sm:$0xf] %vm929, %v1187
      %1293 = vst.msk [vmem:[#allocation3 + $0x40] sm:$0xf] %vm929, %v1189
      %1294 = vst.msk [vmem:[#allocation3 + $0x54] sm:$0xf] %vm929, %v1191
      %1295 = vst.msk [vmem:[#allocation3 + $0x68] sm:$0xf] %vm929, %v1193
      %1296 = vst.msk [vmem:[#allocation3 + $0x7c] sm:$0xf] %vm929, %v1195
      %1297 = vst.msk [vmem:[#allocation3 + $0x90] sm:$0xf] %vm929, %v1197
      %1298 = vst.msk [vmem:[#allocation3 + $0xa4] sm:$0xf] %vm929, %v1199
      %1299 = vst.msk [vmem:[#allocation3 + $0xb8] sm:$0xf] %vm929, %v1201
      %1300 = vst.msk [vmem:[#allocation3 + $0xcc] sm:$0xf] %vm929, %v1203
      %1301 = vst.msk [vmem:[#allocation3 + $0xe0] sm:$0xf] %vm929, %v1205
      %1302 = vst.msk [vmem:[#allocation3 + $0xf4] sm:$0xf] %vm929, %v1207
      %1303 = vst.msk [vmem:[#allocation3 + $0x108] sm:$0xf] %vm929, %v1209
      %1304 = vst.msk [vmem:[#allocation3 + $0x11c] sm:$0xf] %vm929, %v1211
      %1305 = vst.msk [vmem:[#allocation3 + $0x130] sm:$0xf] %vm929, %v1213
      %1306 = vst.msk [vmem:[#allocation3 + $0x144] sm:$0xf] %vm929, %v1215
      %1307 = vst.msk [vmem:[#allocation3 + $0x158] sm:$0xf] %vm929, %v1217
      %1308 = vst.msk [vmem:[#allocation3 + $0x16c] sm:$0xf] %vm929, %v1219
      %1309 = vst.msk [vmem:[#allocation3 + $0x180] sm:$0xf] %vm929, %v1221
      %1310 = vst.msk [vmem:[#allocation3 + $0x194] sm:$0xf] %vm929, %v1223
      %1311 = vst.msk [vmem:[#allocation3 + $0x1a8] sm:$0xf] %vm929, %v1225
      %1312 = vst.msk [vmem:[#allocation3 + $0x1bc] sm:$0xf] %vm929, %v1227
      %1313 = vst.msk [vmem:[#allocation3 + $0x1d0] sm:$0xf] %vm929, %v1229
      %1314 = vst.msk [vmem:[#allocation3 + $0x1e4] sm:$0xf] %vm929, %v1231
      %1315 = vst.msk [vmem:[#allocation3 + $0x1f8] sm:$0xf] %vm929, %v1233
      %1316 = vst.msk [vmem:[#allocation3 + $0x20c] sm:$0xf] %vm929, %v1235
      %1317 = vst.msk [vmem:[#allocation3 + $0x220] sm:$0xf] %vm929, %v1237
      %1318 = vst.msk [vmem:[#allocation3 + $0x234] sm:$0xf] %vm929, %v1239
      %1319 = vst.msk [vmem:[#allocation3 + $0x248] sm:$0xf] %vm929, %v1241
      %1320 = vst.msk [vmem:[#allocation3 + $0x25c] sm:$0xf] %vm929, %v1243
      %1321 = vst.msk [vmem:[#allocation3 + $0x270] sm:$0xf] %vm929, %v1245
      %1322 = vst.msk [vmem:[#allocation3 + $0x284] sm:$0xf] %vm929, %v1247
      %1323 = vst.msk [vmem:[#allocation3 + $0x298] sm:$0xf] %vm929, %v1249
      %1324 = vst.msk [vmem:[#allocation3 + $0x2ac] sm:$0xf] %vm929, %v1251
      %1325 = vst.msk [vmem:[#allocation3 + $0x2c0] sm:$0xf] %vm929, %v1253
      %v1326 = vld [vmem:[#allocation2 + $0x13] sm:$0xff]
      %v1327 = vld [vmem:[#allocation2 + $0x1b] sm:$0xff]
      %v1328 = vld [vmem:[#allocation2 + $0x23] sm:$0xff]
      %v1329 = vld [vmem:[#allocation2 + $0x2b] sm:$0xff]
      %v1330 = vld [vmem:[#allocation2 + $0x33] sm:$0xff]
      %v1331 = vld [vmem:[#allocation2 + $0x3b] sm:$0xff]
      %v1332 = vld [vmem:[#allocation2 + $0x43] sm:$0xff]
      %v1333 = vld [vmem:[#allocation2 + $0x4b] sm:$0xff]
      %v1334 = vld [vmem:[#allocation2 + $0x53] sm:$0xff]
      %v1335 = vld [vmem:[#allocation2 + $0x5b] sm:$0xff]
      %v1336 = vld [vmem:[#allocation2 + $0x63] sm:$0xff]
      %v1337 = vld [vmem:[#allocation2 + $0x6b] sm:$0xff]
      %v1338 = vld [vmem:[#allocation2 + $0x73] sm:$0xff]
      %v1339 = vld [vmem:[#allocation2 + $0x7b] sm:$0xff]
      %v1340 = vld [vmem:[#allocation2 + $0x83] sm:$0xff]
      %v1341 = vld [vmem:[#allocation2 + $0x8b] sm:$0xff]
      %v1342 = vld [vmem:[#allocation2 + $0x93] sm:$0xff]
      %v1343 = vld [vmem:[#allocation2 + $0x9b] sm:$0xff]
      %v1344 = vld [vmem:[#allocation2 + $0xa3] sm:$0xff]
      %v1345 = vld [vmem:[#allocation2 + $0xab] sm:$0xff]
      %v1346 = vld [vmem:[#allocation2 + $0xb3] sm:$0xff]
      %v1347 = vld [vmem:[#allocation2 + $0xbb] sm:$0xff]
      %v1348 = vld [vmem:[#allocation2 + $0xc3] sm:$0xff]
      %v1349 = vld [vmem:[#allocation2 + $0xcb] sm:$0xff]
      %v1350 = vld [vmem:[#allocation2 + $0xd3] sm:$0xff]
      %v1351 = vld [vmem:[#allocation2 + $0xdb] sm:$0xff]
      %v1352 = vld [vmem:[#allocation2 + $0xe3] sm:$0xff]
      %v1353 = vld [vmem:[#allocation2 + $0xeb] sm:$0xff]
      %v1354 = vld [vmem:[#allocation2 + $0xf3] sm:$0xff]
      %v1355 = vld [vmem:[#allocation2 + $0xfb] sm:$0xff]
      %v1356 = vld [vmem:[#allocation2 + $0x103] sm:$0xff]
      %v1357 = vld [vmem:[#allocation2 + $0x10b] sm:$0xff]
      %v1358 = vld [vmem:[#allocation2 + $0x113] sm:$0xff]
      %v1359 = vld [vmem:[#allocation2 + $0x11b] sm:$0xff]
      %v1360 = vld [vmem:[#allocation2 + $0x123] sm:$0xff]
      %v1361 = vld [vmem:[#allocation2 + $0x12b] sm:$0xff]
      %v1362 = vpack.c.bf16 %v1326, %v1326
      %v1363 = vpack.c.bf16 %v1327, %v1327
      %v1364 = vpack.c.bf16 %v1328, %v1328
      %v1365 = vpack.c.bf16 %v1329, %v1329
      %v1366 = vpack.c.bf16 %v1330, %v1330
      %v1367 = vpack.c.bf16 %v1331, %v1331
      %v1368 = vpack.c.bf16 %v1332, %v1332
      %v1369 = vpack.c.bf16 %v1333, %v1333
      %v1370 = vpack.c.bf16 %v1334, %v1334
      %v1371 = vpack.c.bf16 %v1335, %v1335
      %v1372 = vpack.c.bf16 %v1336, %v1336
      %v1373 = vpack.c.bf16 %v1337, %v1337
      %v1374 = vpack.c.bf16 %v1338, %v1338
      %v1375 = vpack.c.bf16 %v1339, %v1339
      %v1376 = vpack.c.bf16 %v1340, %v1340
      %v1377 = vpack.c.bf16 %v1341, %v1341
      %v1378 = vpack.c.bf16 %v1342, %v1342
      %v1379 = vpack.c.bf16 %v1343, %v1343
      %v1380 = vpack.c.bf16 %v1344, %v1344
      %v1381 = vpack.c.bf16 %v1345, %v1345
      %v1382 = vpack.c.bf16 %v1346, %v1346
      %v1383 = vpack.c.bf16 %v1347, %v1347
      %v1384 = vpack.c.bf16 %v1348, %v1348
      %v1385 = vpack.c.bf16 %v1349, %v1349
      %v1386 = vpack.c.bf16 %v1350, %v1350
      %v1387 = vpack.c.bf16 %v1351, %v1351
      %v1388 = vpack.c.bf16 %v1352, %v1352
      %v1389 = vpack.c.bf16 %v1353, %v1353
      %v1390 = vpack.c.bf16 %v1354, %v1354
      %v1391 = vpack.c.bf16 %v1355, %v1355
      %v1392 = vpack.c.bf16 %v1356, %v1356
      %v1393 = vpack.c.bf16 %v1357, %v1357
      %v1394 = vpack.c.bf16 %v1358, %v1358
      %v1395 = vpack.c.bf16 %v1359, %v1359
      %v1396 = vpack.c.bf16 %v1360, %v1360
      %v1397 = vpack.c.bf16 %v1361, %v1361
      %1398 = vst.msk [vmem:[#allocation3 + $0x8] sm:$0xf] %vm676, %v1362
      %1399 = vst.msk [vmem:[#allocation3 + $0x1c] sm:$0xf] %vm676, %v1363
      %1400 = vst.msk [vmem:[#allocation3 + $0x30] sm:$0xf] %vm676, %v1364
      %1401 = vst.msk [vmem:[#allocation3 + $0x44] sm:$0xf] %vm676, %v1365
      %1402 = vst.msk [vmem:[#allocation3 + $0x58] sm:$0xf] %vm676, %v1366
      %1403 = vst.msk [vmem:[#allocation3 + $0x6c] sm:$0xf] %vm676, %v1367
      %1404 = vst.msk [vmem:[#allocation3 + $0x80] sm:$0xf] %vm676, %v1368
      %1405 = vst.msk [vmem:[#allocation3 + $0x94] sm:$0xf] %vm676, %v1369
      %1406 = vst.msk [vmem:[#allocation3 + $0xa8] sm:$0xf] %vm676, %v1370
      %1407 = vst.msk [vmem:[#allocation3 + $0xbc] sm:$0xf] %vm676, %v1371
      %1408 = vst.msk [vmem:[#allocation3 + $0xd0] sm:$0xf] %vm676, %v1372
      %1409 = vst.msk [vmem:[#allocation3 + $0xe4] sm:$0xf] %vm676, %v1373
      %1410 = vst.msk [vmem:[#allocation3 + $0xf8] sm:$0xf] %vm676, %v1374
      %1411 = vst.msk [vmem:[#allocation3 + $0x10c] sm:$0xf] %vm676, %v1375
      %1412 = vst.msk [vmem:[#allocation3 + $0x120] sm:$0xf] %vm676, %v1376
      %1413 = vst.msk [vmem:[#allocation3 + $0x134] sm:$0xf] %vm676, %v1377
      %1414 = vst.msk [vmem:[#allocation3 + $0x148] sm:$0xf] %vm676, %v1378
      %1415 = vst.msk [vmem:[#allocation3 + $0x15c] sm:$0xf] %vm676, %v1379
      %1416 = vst.msk [vmem:[#allocation3 + $0x170] sm:$0xf] %vm676, %v1380
      %1417 = vst.msk [vmem:[#allocation3 + $0x184] sm:$0xf] %vm676, %v1381
      %1418 = vst.msk [vmem:[#allocation3 + $0x198] sm:$0xf] %vm676, %v1382
      %1419 = vst.msk [vmem:[#allocation3 + $0x1ac] sm:$0xf] %vm676, %v1383
      %1420 = vst.msk [vmem:[#allocation3 + $0x1c0] sm:$0xf] %vm676, %v1384
      %1421 = vst.msk [vmem:[#allocation3 + $0x1d4] sm:$0xf] %vm676, %v1385
      %1422 = vst.msk [vmem:[#allocation3 + $0x1e8] sm:$0xf] %vm676, %v1386
      %1423 = vst.msk [vmem:[#allocation3 + $0x1fc] sm:$0xf] %vm676, %v1387
      %1424 = vst.msk [vmem:[#allocation3 + $0x210] sm:$0xf] %vm676, %v1388
      %1425 = vst.msk [vmem:[#allocation3 + $0x224] sm:$0xf] %vm676, %v1389
      %1426 = vst.msk [vmem:[#allocation3 + $0x238] sm:$0xf] %vm676, %v1390
      %1427 = vst.msk [vmem:[#allocation3 + $0x24c] sm:$0xf] %vm676, %v1391
      %1428 = vst.msk [vmem:[#allocation3 + $0x260] sm:$0xf] %vm676, %v1392
      %1429 = vst.msk [vmem:[#allocation3 + $0x274] sm:$0xf] %vm676, %v1393
      %1430 = vst.msk [vmem:[#allocation3 + $0x288] sm:$0xf] %vm676, %v1394
      %1431 = vst.msk [vmem:[#allocation3 + $0x29c] sm:$0xf] %vm676, %v1395
      %1432 = vst.msk [vmem:[#allocation3 + $0x2b0] sm:$0xf] %vm676, %v1396
      %1433 = vst.msk [vmem:[#allocation3 + $0x2c4] sm:$0xf] %vm676, %v1397
      %v1434 = vld [vmem:[#allocation2 + $0x14] sm:$0xff]
      %v1435 = vld [vmem:[#allocation2 + $0x1c] sm:$0xff]
      %v1436 = vld [vmem:[#allocation2 + $0x24] sm:$0xff]
      %v1437 = vld [vmem:[#allocation2 + $0x2c] sm:$0xff]
      %v1438 = vld [vmem:[#allocation2 + $0x34] sm:$0xff]
      %v1439 = vld [vmem:[#allocation2 + $0x3c] sm:$0xff]
      %v1440 = vld [vmem:[#allocation2 + $0x44] sm:$0xff]
      %v1441 = vld [vmem:[#allocation2 + $0x4c] sm:$0xff]
      %v1442 = vld [vmem:[#allocation2 + $0x54] sm:$0xff]
      %v1443 = vld [vmem:[#allocation2 + $0x5c] sm:$0xff]
      %v1444 = vld [vmem:[#allocation2 + $0x64] sm:$0xff]
      %v1445 = vld [vmem:[#allocation2 + $0x6c] sm:$0xff]
      %v1446 = vld [vmem:[#allocation2 + $0x74] sm:$0xff]
      %v1447 = vld [vmem:[#allocation2 + $0x7c] sm:$0xff]
      %v1448 = vld [vmem:[#allocation2 + $0x84] sm:$0xff]
      %v1449 = vld [vmem:[#allocation2 + $0x8c] sm:$0xff]
      %v1450 = vld [vmem:[#allocation2 + $0x94] sm:$0xff]
      %v1451 = vld [vmem:[#allocation2 + $0x9c] sm:$0xff]
      %v1452 = vld [vmem:[#allocation2 + $0xa4] sm:$0xff]
      %v1453 = vld [vmem:[#allocation2 + $0xac] sm:$0xff]
      %v1454 = vld [vmem:[#allocation2 + $0xb4] sm:$0xff]
      %v1455 = vld [vmem:[#allocation2 + $0xbc] sm:$0xff]
      %v1456 = vld [vmem:[#allocation2 + $0xc4] sm:$0xff]
      %v1457 = vld [vmem:[#allocation2 + $0xcc] sm:$0xff]
      %v1458 = vld [vmem:[#allocation2 + $0xd4] sm:$0xff]
      %v1459 = vld [vmem:[#allocation2 + $0xdc] sm:$0xff]
      %v1460 = vld [vmem:[#allocation2 + $0xe4] sm:$0xff]
      %v1461 = vld [vmem:[#allocation2 + $0xec] sm:$0xff]
      %v1462 = vld [vmem:[#allocation2 + $0xf4] sm:$0xff]
      %v1463 = vld [vmem:[#allocation2 + $0xfc] sm:$0xff]
      %v1464 = vld [vmem:[#allocation2 + $0x104] sm:$0xff]
      %v1465 = vld [vmem:[#allocation2 + $0x10c] sm:$0xff]
      %v1466 = vld [vmem:[#allocation2 + $0x114] sm:$0xff]
      %v1467 = vld [vmem:[#allocation2 + $0x11c] sm:$0xff]
      %v1468 = vld [vmem:[#allocation2 + $0x124] sm:$0xff]
      %v1469 = vld [vmem:[#allocation2 + $0x12c] sm:$0xff]
      %v1470 = vpack.c.bf16 %v1434, %v1434
      %v1471 = vpack.c.bf16 %v1435, %v1435
      %v1472 = vpack.c.bf16 %v1436, %v1436
      %v1473 = vpack.c.bf16 %v1437, %v1437
      %v1474 = vpack.c.bf16 %v1438, %v1438
      %v1475 = vpack.c.bf16 %v1439, %v1439
      %v1476 = vpack.c.bf16 %v1440, %v1440
      %v1477 = vpack.c.bf16 %v1441, %v1441
      %v1478 = vpack.c.bf16 %v1442, %v1442
      %v1479 = vpack.c.bf16 %v1443, %v1443
      %v1480 = vpack.c.bf16 %v1444, %v1444
      %v1481 = vpack.c.bf16 %v1445, %v1445
      %v1482 = vpack.c.bf16 %v1446, %v1446
      %v1483 = vpack.c.bf16 %v1447, %v1447
      %v1484 = vpack.c.bf16 %v1448, %v1448
      %v1485 = vpack.c.bf16 %v1449, %v1449
      %v1486 = vpack.c.bf16 %v1450, %v1450
      %v1487 = vpack.c.bf16 %v1451, %v1451
      %v1488 = vpack.c.bf16 %v1452, %v1452
      %v1489 = vpack.c.bf16 %v1453, %v1453
      %v1490 = vpack.c.bf16 %v1454, %v1454
      %v1491 = vpack.c.bf16 %v1455, %v1455
      %v1492 = vpack.c.bf16 %v1456, %v1456
      %v1493 = vpack.c.bf16 %v1457, %v1457
      %v1494 = vpack.c.bf16 %v1458, %v1458
      %v1495 = vpack.c.bf16 %v1459, %v1459
      %v1496 = vpack.c.bf16 %v1460, %v1460
      %v1497 = vpack.c.bf16 %v1461, %v1461
      %v1498 = vpack.c.bf16 %v1462, %v1462
      %v1499 = vpack.c.bf16 %v1463, %v1463
      %v1500 = vpack.c.bf16 %v1464, %v1464
      %v1501 = vpack.c.bf16 %v1465, %v1465
      %v1502 = vpack.c.bf16 %v1466, %v1466
      %v1503 = vpack.c.bf16 %v1467, %v1467
      %v1504 = vpack.c.bf16 %v1468, %v1468
      %v1505 = vpack.c.bf16 %v1469, %v1469
      %1542 = vrot.lane.b32.xlu0 %v1470, 64
      %v1543 = vpop.permute.xlu0 %1542
      %1544 = vrot.lane.b32.xlu0 %v1471, 64
      %v1545 = vpop.permute.xlu0 %1544
      %1546 = vrot.lane.b32.xlu0 %v1472, 64
      %v1547 = vpop.permute.xlu0 %1546
      %1548 = vrot.lane.b32.xlu0 %v1473, 64
      %v1549 = vpop.permute.xlu0 %1548
      %1550 = vrot.lane.b32.xlu0 %v1474, 64
      %v1551 = vpop.permute.xlu0 %1550
      %1552 = vrot.lane.b32.xlu0 %v1475, 64
      %v1553 = vpop.permute.xlu0 %1552
      %1554 = vrot.lane.b32.xlu0 %v1476, 64
      %v1555 = vpop.permute.xlu0 %1554
      %1556 = vrot.lane.b32.xlu0 %v1477, 64
      %v1557 = vpop.permute.xlu0 %1556
      %1558 = vrot.lane.b32.xlu0 %v1478, 64
      %v1559 = vpop.permute.xlu0 %1558
      %1560 = vrot.lane.b32.xlu0 %v1479, 64
      %v1561 = vpop.permute.xlu0 %1560
      %1562 = vrot.lane.b32.xlu0 %v1480, 64
      %v1563 = vpop.permute.xlu0 %1562
      %1564 = vrot.lane.b32.xlu0 %v1481, 64
      %v1565 = vpop.permute.xlu0 %1564
      %1566 = vrot.lane.b32.xlu0 %v1482, 64
      %v1567 = vpop.permute.xlu0 %1566
      %1568 = vrot.lane.b32.xlu0 %v1483, 64
      %v1569 = vpop.permute.xlu0 %1568
      %1570 = vrot.lane.b32.xlu0 %v1484, 64
      %v1571 = vpop.permute.xlu0 %1570
      %1572 = vrot.lane.b32.xlu0 %v1485, 64
      %v1573 = vpop.permute.xlu0 %1572
      %1574 = vrot.lane.b32.xlu0 %v1486, 64
      %v1575 = vpop.permute.xlu0 %1574
      %1576 = vrot.lane.b32.xlu0 %v1487, 64
      %v1577 = vpop.permute.xlu0 %1576
      %1578 = vrot.lane.b32.xlu0 %v1488, 64
      %v1579 = vpop.permute.xlu0 %1578
      %1580 = vrot.lane.b32.xlu0 %v1489, 64
      %v1581 = vpop.permute.xlu0 %1580
      %1582 = vrot.lane.b32.xlu0 %v1490, 64
      %v1583 = vpop.permute.xlu0 %1582
      %1584 = vrot.lane.b32.xlu0 %v1491, 64
      %v1585 = vpop.permute.xlu0 %1584
      %1586 = vrot.lane.b32.xlu0 %v1492, 64
      %v1587 = vpop.permute.xlu0 %1586
      %1588 = vrot.lane.b32.xlu0 %v1493, 64
      %v1589 = vpop.permute.xlu0 %1588
      %1590 = vrot.lane.b32.xlu0 %v1494, 64
      %v1591 = vpop.permute.xlu0 %1590
      %1592 = vrot.lane.b32.xlu0 %v1495, 64
      %v1593 = vpop.permute.xlu0 %1592
      %1594 = vrot.lane.b32.xlu0 %v1496, 64
      %v1595 = vpop.permute.xlu0 %1594
      %1596 = vrot.lane.b32.xlu0 %v1497, 64
      %v1597 = vpop.permute.xlu0 %1596
      %1598 = vrot.lane.b32.xlu0 %v1498, 64
      %v1599 = vpop.permute.xlu0 %1598
      %1600 = vrot.lane.b32.xlu0 %v1499, 64
      %v1601 = vpop.permute.xlu0 %1600
      %1602 = vrot.lane.b32.xlu0 %v1500, 64
      %v1603 = vpop.permute.xlu0 %1602
      %1604 = vrot.lane.b32.xlu0 %v1501, 64
      %v1605 = vpop.permute.xlu0 %1604
      %1606 = vrot.lane.b32.xlu0 %v1502, 64
      %v1607 = vpop.permute.xlu0 %1606
      %1608 = vrot.lane.b32.xlu0 %v1503, 64
      %v1609 = vpop.permute.xlu0 %1608
      %1610 = vrot.lane.b32.xlu0 %v1504, 64
      %v1611 = vpop.permute.xlu0 %1610
      %1612 = vrot.lane.b32.xlu0 %v1505, 64
      %v1613 = vpop.permute.xlu0 %1612
      %1650 = vst.msk [vmem:[#allocation3 + $0x8] sm:$0xf] %vm929, %v1543
      %1651 = vst.msk [vmem:[#allocation3 + $0x1c] sm:$0xf] %vm929, %v1545
      %1652 = vst.msk [vmem:[#allocation3 + $0x30] sm:$0xf] %vm929, %v1547
      %1653 = vst.msk [vmem:[#allocation3 + $0x44] sm:$0xf] %vm929, %v1549
      %1654 = vst.msk [vmem:[#allocation3 + $0x58] sm:$0xf] %vm929, %v1551
      %1655 = vst.msk [vmem:[#allocation3 + $0x6c] sm:$0xf] %vm929, %v1553
      %1656 = vst.msk [vmem:[#allocation3 + $0x80] sm:$0xf] %vm929, %v1555
      %1657 = vst.msk [vmem:[#allocation3 + $0x94] sm:$0xf] %vm929, %v1557
      %1658 = vst.msk [vmem:[#allocation3 + $0xa8] sm:$0xf] %vm929, %v1559
      %1659 = vst.msk [vmem:[#allocation3 + $0xbc] sm:$0xf] %vm929, %v1561
      %1660 = vst.msk [vmem:[#allocation3 + $0xd0] sm:$0xf] %vm929, %v1563
      %1661 = vst.msk [vmem:[#allocation3 + $0xe4] sm:$0xf] %vm929, %v1565
      %1662 = vst.msk [vmem:[#allocation3 + $0xf8] sm:$0xf] %vm929, %v1567
      %1663 = vst.msk [vmem:[#allocation3 + $0x10c] sm:$0xf] %vm929, %v1569
      %1664 = vst.msk [vmem:[#allocation3 + $0x120] sm:$0xf] %vm929, %v1571
      %1665 = vst.msk [vmem:[#allocation3 + $0x134] sm:$0xf] %vm929, %v1573
      %1666 = vst.msk [vmem:[#allocation3 + $0x148] sm:$0xf] %vm929, %v1575
      %1667 = vst.msk [vmem:[#allocation3 + $0x15c] sm:$0xf] %vm929, %v1577
      %1668 = vst.msk [vmem:[#allocation3 + $0x170] sm:$0xf] %vm929, %v1579
      %1669 = vst.msk [vmem:[#allocation3 + $0x184] sm:$0xf] %vm929, %v1581
      %1670 = vst.msk [vmem:[#allocation3 + $0x198] sm:$0xf] %vm929, %v1583
      %1671 = vst.msk [vmem:[#allocation3 + $0x1ac] sm:$0xf] %vm929, %v1585
      %1672 = vst.msk [vmem:[#allocation3 + $0x1c0] sm:$0xf] %vm929, %v1587
      %1673 = vst.msk [vmem:[#allocation3 + $0x1d4] sm:$0xf] %vm929, %v1589
      %1674 = vst.msk [vmem:[#allocation3 + $0x1e8] sm:$0xf] %vm929, %v1591
      %1675 = vst.msk [vmem:[#allocation3 + $0x1fc] sm:$0xf] %vm929, %v1593
      %1676 = vst.msk [vmem:[#allocation3 + $0x210] sm:$0xf] %vm929, %v1595
      %1677 = vst.msk [vmem:[#allocation3 + $0x224] sm:$0xf] %vm929, %v1597
      %1678 = vst.msk [vmem:[#allocation3 + $0x238] sm:$0xf] %vm929, %v1599
      %1679 = vst.msk [vmem:[#allocation3 + $0x24c] sm:$0xf] %vm929, %v1601
      %1680 = vst.msk [vmem:[#allocation3 + $0x260] sm:$0xf] %vm929, %v1603
      %1681 = vst.msk [vmem:[#allocation3 + $0x274] sm:$0xf] %vm929, %v1605
      %1682 = vst.msk [vmem:[#allocation3 + $0x288] sm:$0xf] %vm929, %v1607
      %1683 = vst.msk [vmem:[#allocation3 + $0x29c] sm:$0xf] %vm929, %v1609
      %1684 = vst.msk [vmem:[#allocation3 + $0x2b0] sm:$0xf] %vm929, %v1611
      %1685 = vst.msk [vmem:[#allocation3 + $0x2c4] sm:$0xf] %vm929, %v1613
      %v1686 = vld [vmem:[#allocation2 + $0x24] sm:$0xff]
      %v1687 = vld [vmem:[#allocation2 + $0x2c] sm:$0xff]
      %v1688 = vld [vmem:[#allocation2 + $0x34] sm:$0xff]
      %v1689 = vld [vmem:[#allocation2 + $0x3c] sm:$0xff]
      %v1690 = vld [vmem:[#allocation2 + $0x44] sm:$0xff]
      %v1691 = vld [vmem:[#allocation2 + $0x4c] sm:$0xff]
      %v1692 = vld [vmem:[#allocation2 + $0x54] sm:$0xff]
      %v1693 = vld [vmem:[#allocation2 + $0x5c] sm:$0xff]
      %v1694 = vld [vmem:[#allocation2 + $0x64] sm:$0xff]
      %v1695 = vld [vmem:[#allocation2 + $0x6c] sm:$0xff]
      %v1696 = vld [vmem:[#allocation2 + $0x74] sm:$0xff]
      %v1697 = vld [vmem:[#allocation2 + $0x7c] sm:$0xff]
      %v1698 = vld [vmem:[#allocation2 + $0x84] sm:$0xff]
      %v1699 = vld [vmem:[#allocation2 + $0x8c] sm:$0xff]
      %v1700 = vld [vmem:[#allocation2 + $0x94] sm:$0xff]
      %v1701 = vld [vmem:[#allocation2 + $0x9c] sm:$0xff]
      %v1702 = vld [vmem:[#allocation2 + $0xa4] sm:$0xff]
      %v1703 = vld [vmem:[#allocation2 + $0xac] sm:$0xff]
      %v1704 = vld [vmem:[#allocation2 + $0xb4] sm:$0xff]
      %v1705 = vld [vmem:[#allocation2 + $0xbc] sm:$0xff]
      %v1706 = vld [vmem:[#allocation2 + $0xc4] sm:$0xff]
      %v1707 = vld [vmem:[#allocation2 + $0xcc] sm:$0xff]
      %v1708 = vld [vmem:[#allocation2 + $0xd4] sm:$0xff]
      %v1709 = vld [vmem:[#allocation2 + $0xdc] sm:$0xff]
      %v1710 = vld [vmem:[#allocation2 + $0xe4] sm:$0xff]
      %v1711 = vld [vmem:[#allocation2 + $0xec] sm:$0xff]
      %v1712 = vld [vmem:[#allocation2 + $0xf4] sm:$0xff]
      %v1713 = vld [vmem:[#allocation2 + $0xfc] sm:$0xff]
      %v1714 = vld [vmem:[#allocation2 + $0x104] sm:$0xff]
      %v1715 = vld [vmem:[#allocation2 + $0x10c] sm:$0xff]
      %v1716 = vld [vmem:[#allocation2 + $0x114] sm:$0xff]
      %v1717 = vld [vmem:[#allocation2 + $0x11c] sm:$0xff]
      %v1718 = vld [vmem:[#allocation2 + $0x124] sm:$0xff]
      %v1719 = vld [vmem:[#allocation2 + $0x12c] sm:$0xff]
      %v1720 = vld [vmem:[#allocation2 + $0x134] sm:$0xff]
      %v1721 = vld [vmem:[#allocation2 + $0x13c] sm:$0xff]
      %v1722 = vpack.c.bf16 %v1686, %v1686
      %v1723 = vpack.c.bf16 %v1687, %v1687
      %v1724 = vpack.c.bf16 %v1688, %v1688
      %v1725 = vpack.c.bf16 %v1689, %v1689
      %v1726 = vpack.c.bf16 %v1690, %v1690
      %v1727 = vpack.c.bf16 %v1691, %v1691
      %v1728 = vpack.c.bf16 %v1692, %v1692
      %v1729 = vpack.c.bf16 %v1693, %v1693
      %v1730 = vpack.c.bf16 %v1694, %v1694
      %v1731 = vpack.c.bf16 %v1695, %v1695
      %v1732 = vpack.c.bf16 %v1696, %v1696
      %v1733 = vpack.c.bf16 %v1697, %v1697
      %v1734 = vpack.c.bf16 %v1698, %v1698
      %v1735 = vpack.c.bf16 %v1699, %v1699
      %v1736 = vpack.c.bf16 %v1700, %v1700
      %v1737 = vpack.c.bf16 %v1701, %v1701
      %v1738 = vpack.c.bf16 %v1702, %v1702
      %v1739 = vpack.c.bf16 %v1703, %v1703
      %v1740 = vpack.c.bf16 %v1704, %v1704
      %v1741 = vpack.c.bf16 %v1705, %v1705
      %v1742 = vpack.c.bf16 %v1706, %v1706
      %v1743 = vpack.c.bf16 %v1707, %v1707
      %v1744 = vpack.c.bf16 %v1708, %v1708
      %v1745 = vpack.c.bf16 %v1709, %v1709
      %v1746 = vpack.c.bf16 %v1710, %v1710
      %v1747 = vpack.c.bf16 %v1711, %v1711
      %v1748 = vpack.c.bf16 %v1712, %v1712
      %v1749 = vpack.c.bf16 %v1713, %v1713
      %v1750 = vpack.c.bf16 %v1714, %v1714
      %v1751 = vpack.c.bf16 %v1715, %v1715
      %v1752 = vpack.c.bf16 %v1716, %v1716
      %v1753 = vpack.c.bf16 %v1717, %v1717
      %v1754 = vpack.c.bf16 %v1718, %v1718
      %v1755 = vpack.c.bf16 %v1719, %v1719
      %v1756 = vpack.c.bf16 %v1720, %v1720
      %v1757 = vpack.c.bf16 %v1721, %v1721
      %1758 = vst.msk [vmem:[#allocation3 + $0xc] sm:$0xf] %vm676, %v1722
      %1759 = vst.msk [vmem:[#allocation3 + $0x20] sm:$0xf] %vm676, %v1723
      %1760 = vst.msk [vmem:[#allocation3 + $0x34] sm:$0xf] %vm676, %v1724
      %1761 = vst.msk [vmem:[#allocation3 + $0x48] sm:$0xf] %vm676, %v1725
      %1762 = vst.msk [vmem:[#allocation3 + $0x5c] sm:$0xf] %vm676, %v1726
      %1763 = vst.msk [vmem:[#allocation3 + $0x70] sm:$0xf] %vm676, %v1727
      %1764 = vst.msk [vmem:[#allocation3 + $0x84] sm:$0xf] %vm676, %v1728
      %1765 = vst.msk [vmem:[#allocation3 + $0x98] sm:$0xf] %vm676, %v1729
      %1766 = vst.msk [vmem:[#allocation3 + $0xac] sm:$0xf] %vm676, %v1730
      %1767 = vst.msk [vmem:[#allocation3 + $0xc0] sm:$0xf] %vm676, %v1731
      %1768 = vst.msk [vmem:[#allocation3 + $0xd4] sm:$0xf] %vm676, %v1732
      %1769 = vst.msk [vmem:[#allocation3 + $0xe8] sm:$0xf] %vm676, %v1733
      %1770 = vst.msk [vmem:[#allocation3 + $0xfc] sm:$0xf] %vm676, %v1734
      %1771 = vst.msk [vmem:[#allocation3 + $0x110] sm:$0xf] %vm676, %v1735
      %1772 = vst.msk [vmem:[#allocation3 + $0x124] sm:$0xf] %vm676, %v1736
      %1773 = vst.msk [vmem:[#allocation3 + $0x138] sm:$0xf] %vm676, %v1737
      %1774 = vst.msk [vmem:[#allocation3 + $0x14c] sm:$0xf] %vm676, %v1738
      %1775 = vst.msk [vmem:[#allocation3 + $0x160] sm:$0xf] %vm676, %v1739
      %1776 = vst.msk [vmem:[#allocation3 + $0x174] sm:$0xf] %vm676, %v1740
      %1777 = vst.msk [vmem:[#allocation3 + $0x188] sm:$0xf] %vm676, %v1741
      %1778 = vst.msk [vmem:[#allocation3 + $0x19c] sm:$0xf] %vm676, %v1742
      %1779 = vst.msk [vmem:[#allocation3 + $0x1b0] sm:$0xf] %vm676, %v1743
      %1780 = vst.msk [vmem:[#allocation3 + $0x1c4] sm:$0xf] %vm676, %v1744
      %1781 = vst.msk [vmem:[#allocation3 + $0x1d8] sm:$0xf] %vm676, %v1745
      %1782 = vst.msk [vmem:[#allocation3 + $0x1ec] sm:$0xf] %vm676, %v1746
      %1783 = vst.msk [vmem:[#allocation3 + $0x200] sm:$0xf] %vm676, %v1747
      %1784 = vst.msk [vmem:[#allocation3 + $0x214] sm:$0xf] %vm676, %v1748
      %1785 = vst.msk [vmem:[#allocation3 + $0x228] sm:$0xf] %vm676, %v1749
      %1786 = vst.msk [vmem:[#allocation3 + $0x23c] sm:$0xf] %vm676, %v1750
      %1787 = vst.msk [vmem:[#allocation3 + $0x250] sm:$0xf] %vm676, %v1751
      %1788 = vst.msk [vmem:[#allocation3 + $0x264] sm:$0xf] %vm676, %v1752
      %1789 = vst.msk [vmem:[#allocation3 + $0x278] sm:$0xf] %vm676, %v1753
      %1790 = vst.msk [vmem:[#allocation3 + $0x28c] sm:$0xf] %vm676, %v1754
      %1791 = vst.msk [vmem:[#allocation3 + $0x2a0] sm:$0xf] %vm676, %v1755
      %1792 = vst.msk [vmem:[#allocation3 + $0x2b4] sm:$0xf] %vm676, %v1756
      %1793 = vst.msk [vmem:[#allocation3 + $0x2c8] sm:$0xf] %vm676, %v1757
      %v1794 = vld [vmem:[#allocation2 + $0x25] sm:$0xff]
      %v1795 = vld [vmem:[#allocation2 + $0x2d] sm:$0xff]
      %v1796 = vld [vmem:[#allocation2 + $0x35] sm:$0xff]
      %v1797 = vld [vmem:[#allocation2 + $0x3d] sm:$0xff]
      %v1798 = vld [vmem:[#allocation2 + $0x45] sm:$0xff]
      %v1799 = vld [vmem:[#allocation2 + $0x4d] sm:$0xff]
      %v1800 = vld [vmem:[#allocation2 + $0x55] sm:$0xff]
      %v1801 = vld [vmem:[#allocation2 + $0x5d] sm:$0xff]
      %v1802 = vld [vmem:[#allocation2 + $0x65] sm:$0xff]
      %v1803 = vld [vmem:[#allocation2 + $0x6d] sm:$0xff]
      %v1804 = vld [vmem:[#allocation2 + $0x75] sm:$0xff]
      %v1805 = vld [vmem:[#allocation2 + $0x7d] sm:$0xff]
      %v1806 = vld [vmem:[#allocation2 + $0x85] sm:$0xff]
      %v1807 = vld [vmem:[#allocation2 + $0x8d] sm:$0xff]
      %v1808 = vld [vmem:[#allocation2 + $0x95] sm:$0xff]
      %v1809 = vld [vmem:[#allocation2 + $0x9d] sm:$0xff]
      %v1810 = vld [vmem:[#allocation2 + $0xa5] sm:$0xff]
      %v1811 = vld [vmem:[#allocation2 + $0xad] sm:$0xff]
      %v1812 = vld [vmem:[#allocation2 + $0xb5] sm:$0xff]
      %v1813 = vld [vmem:[#allocation2 + $0xbd] sm:$0xff]
      %v1814 = vld [vmem:[#allocation2 + $0xc5] sm:$0xff]
      %v1815 = vld [vmem:[#allocation2 + $0xcd] sm:$0xff]
      %v1816 = vld [vmem:[#allocation2 + $0xd5] sm:$0xff]
      %v1817 = vld [vmem:[#allocation2 + $0xdd] sm:$0xff]
      %v1818 = vld [vmem:[#allocation2 + $0xe5] sm:$0xff]
      %v1819 = vld [vmem:[#allocation2 + $0xed] sm:$0xff]
      %v1820 = vld [vmem:[#allocation2 + $0xf5] sm:$0xff]
      %v1821 = vld [vmem:[#allocation2 + $0xfd] sm:$0xff]
      %v1822 = vld [vmem:[#allocation2 + $0x105] sm:$0xff]
      %v1823 = vld [vmem:[#allocation2 + $0x10d] sm:$0xff]
      %v1824 = vld [vmem:[#allocation2 + $0x115] sm:$0xff]
      %v1825 = vld [vmem:[#allocation2 + $0x11d] sm:$0xff]
      %v1826 = vld [vmem:[#allocation2 + $0x125] sm:$0xff]
      %v1827 = vld [vmem:[#allocation2 + $0x12d] sm:$0xff]
      %v1828 = vld [vmem:[#allocation2 + $0x135] sm:$0xff]
      %v1829 = vld [vmem:[#allocation2 + $0x13d] sm:$0xff]
      %v1830 = vpack.c.bf16 %v1794, %v1794
      %v1831 = vpack.c.bf16 %v1795, %v1795
      %v1832 = vpack.c.bf16 %v1796, %v1796
      %v1833 = vpack.c.bf16 %v1797, %v1797
      %v1834 = vpack.c.bf16 %v1798, %v1798
      %v1835 = vpack.c.bf16 %v1799, %v1799
      %v1836 = vpack.c.bf16 %v1800, %v1800
      %v1837 = vpack.c.bf16 %v1801, %v1801
      %v1838 = vpack.c.bf16 %v1802, %v1802
      %v1839 = vpack.c.bf16 %v1803, %v1803
      %v1840 = vpack.c.bf16 %v1804, %v1804
      %v1841 = vpack.c.bf16 %v1805, %v1805
      %v1842 = vpack.c.bf16 %v1806, %v1806
      %v1843 = vpack.c.bf16 %v1807, %v1807
      %v1844 = vpack.c.bf16 %v1808, %v1808
      %v1845 = vpack.c.bf16 %v1809, %v1809
      %v1846 = vpack.c.bf16 %v1810, %v1810
      %v1847 = vpack.c.bf16 %v1811, %v1811
      %v1848 = vpack.c.bf16 %v1812, %v1812
      %v1849 = vpack.c.bf16 %v1813, %v1813
      %v1850 = vpack.c.bf16 %v1814, %v1814
      %v1851 = vpack.c.bf16 %v1815, %v1815
      %v1852 = vpack.c.bf16 %v1816, %v1816
      %v1853 = vpack.c.bf16 %v1817, %v1817
      %v1854 = vpack.c.bf16 %v1818, %v1818
      %v1855 = vpack.c.bf16 %v1819, %v1819
      %v1856 = vpack.c.bf16 %v1820, %v1820
      %v1857 = vpack.c.bf16 %v1821, %v1821
      %v1858 = vpack.c.bf16 %v1822, %v1822
      %v1859 = vpack.c.bf16 %v1823, %v1823
      %v1860 = vpack.c.bf16 %v1824, %v1824
      %v1861 = vpack.c.bf16 %v1825, %v1825
      %v1862 = vpack.c.bf16 %v1826, %v1826
      %v1863 = vpack.c.bf16 %v1827, %v1827
      %v1864 = vpack.c.bf16 %v1828, %v1828
      %v1865 = vpack.c.bf16 %v1829, %v1829
      %1902 = vrot.lane.b32.xlu0 %v1830, 64
      %v1903 = vpop.permute.xlu0 %1902
      %1904 = vrot.lane.b32.xlu0 %v1831, 64
      %v1905 = vpop.permute.xlu0 %1904
      %1906 = vrot.lane.b32.xlu0 %v1832, 64
      %v1907 = vpop.permute.xlu0 %1906
      %1908 = vrot.lane.b32.xlu0 %v1833, 64
      %v1909 = vpop.permute.xlu0 %1908
      %1910 = vrot.lane.b32.xlu0 %v1834, 64
      %v1911 = vpop.permute.xlu0 %1910
      %1912 = vrot.lane.b32.xlu0 %v1835, 64
      %v1913 = vpop.permute.xlu0 %1912
      %1914 = vrot.lane.b32.xlu0 %v1836, 64
      %v1915 = vpop.permute.xlu0 %1914
      %1916 = vrot.lane.b32.xlu0 %v1837, 64
      %v1917 = vpop.permute.xlu0 %1916
      %1918 = vrot.lane.b32.xlu0 %v1838, 64
      %v1919 = vpop.permute.xlu0 %1918
      %1920 = vrot.lane.b32.xlu0 %v1839, 64
      %v1921 = vpop.permute.xlu0 %1920
      %1922 = vrot.lane.b32.xlu0 %v1840, 64
      %v1923 = vpop.permute.xlu0 %1922
      %1924 = vrot.lane.b32.xlu0 %v1841, 64
      %v1925 = vpop.permute.xlu0 %1924
      %1926 = vrot.lane.b32.xlu0 %v1842, 64
      %v1927 = vpop.permute.xlu0 %1926
      %1928 = vrot.lane.b32.xlu0 %v1843, 64
      %v1929 = vpop.permute.xlu0 %1928
      %1930 = vrot.lane.b32.xlu0 %v1844, 64
      %v1931 = vpop.permute.xlu0 %1930
      %1932 = vrot.lane.b32.xlu0 %v1845, 64
      %v1933 = vpop.permute.xlu0 %1932
      %1934 = vrot.lane.b32.xlu0 %v1846, 64
      %v1935 = vpop.permute.xlu0 %1934
      %1936 = vrot.lane.b32.xlu0 %v1847, 64
      %v1937 = vpop.permute.xlu0 %1936
      %1938 = vrot.lane.b32.xlu0 %v1848, 64
      %v1939 = vpop.permute.xlu0 %1938
      %1940 = vrot.lane.b32.xlu0 %v1849, 64
      %v1941 = vpop.permute.xlu0 %1940
      %1942 = vrot.lane.b32.xlu0 %v1850, 64
      %v1943 = vpop.permute.xlu0 %1942
      %1944 = vrot.lane.b32.xlu0 %v1851, 64
      %v1945 = vpop.permute.xlu0 %1944
      %1946 = vrot.lane.b32.xlu0 %v1852, 64
      %v1947 = vpop.permute.xlu0 %1946
      %1948 = vrot.lane.b32.xlu0 %v1853, 64
      %v1949 = vpop.permute.xlu0 %1948
      %1950 = vrot.lane.b32.xlu0 %v1854, 64
      %v1951 = vpop.permute.xlu0 %1950
      %1952 = vrot.lane.b32.xlu0 %v1855, 64
      %v1953 = vpop.permute.xlu0 %1952
      %1954 = vrot.lane.b32.xlu0 %v1856, 64
      %v1955 = vpop.permute.xlu0 %1954
      %1956 = vrot.lane.b32.xlu0 %v1857, 64
      %v1957 = vpop.permute.xlu0 %1956
      %1958 = vrot.lane.b32.xlu0 %v1858, 64
      %v1959 = vpop.permute.xlu0 %1958
      %1960 = vrot.lane.b32.xlu0 %v1859, 64
      %v1961 = vpop.permute.xlu0 %1960
      %1962 = vrot.lane.b32.xlu0 %v1860, 64
      %v1963 = vpop.permute.xlu0 %1962
      %1964 = vrot.lane.b32.xlu0 %v1861, 64
      %v1965 = vpop.permute.xlu0 %1964
      %1966 = vrot.lane.b32.xlu0 %v1862, 64
      %v1967 = vpop.permute.xlu0 %1966
      %1968 = vrot.lane.b32.xlu0 %v1863, 64
      %v1969 = vpop.permute.xlu0 %1968
      %1970 = vrot.lane.b32.xlu0 %v1864, 64
      %v1971 = vpop.permute.xlu0 %1970
      %1972 = vrot.lane.b32.xlu0 %v1865, 64
      %v1973 = vpop.permute.xlu0 %1972
      %2010 = vst.msk [vmem:[#allocation3 + $0xc] sm:$0xf] %vm929, %v1903
      %2011 = vst.msk [vmem:[#allocation3 + $0x20] sm:$0xf] %vm929, %v1905
      %2012 = vst.msk [vmem:[#allocation3 + $0x34] sm:$0xf] %vm929, %v1907
      %2013 = vst.msk [vmem:[#allocation3 + $0x48] sm:$0xf] %vm929, %v1909
      %2014 = vst.msk [vmem:[#allocation3 + $0x5c] sm:$0xf] %vm929, %v1911
      %2015 = vst.msk [vmem:[#allocation3 + $0x70] sm:$0xf] %vm929, %v1913
      %2016 = vst.msk [vmem:[#allocation3 + $0x84] sm:$0xf] %vm929, %v1915
      %2017 = vst.msk [vmem:[#allocation3 + $0x98] sm:$0xf] %vm929, %v1917
      %2018 = vst.msk [vmem:[#allocation3 + $0xac] sm:$0xf] %vm929, %v1919
      %2019 = vst.msk [vmem:[#allocation3 + $0xc0] sm:$0xf] %vm929, %v1921
      %2020 = vst.msk [vmem:[#allocation3 + $0xd4] sm:$0xf] %vm929, %v1923
      %2021 = vst.msk [vmem:[#allocation3 + $0xe8] sm:$0xf] %vm929, %v1925
      %2022 = vst.msk [vmem:[#allocation3 + $0xfc] sm:$0xf] %vm929, %v1927
      %2023 = vst.msk [vmem:[#allocation3 + $0x110] sm:$0xf] %vm929, %v1929
      %2024 = vst.msk [vmem:[#allocation3 + $0x124] sm:$0xf] %vm929, %v1931
      %2025 = vst.msk [vmem:[#allocation3 + $0x138] sm:$0xf] %vm929, %v1933
      %2026 = vst.msk [vmem:[#allocation3 + $0x14c] sm:$0xf] %vm929, %v1935
      %2027 = vst.msk [vmem:[#allocation3 + $0x160] sm:$0xf] %vm929, %v1937
      %2028 = vst.msk [vmem:[#allocation3 + $0x174] sm:$0xf] %vm929, %v1939
      %2029 = vst.msk [vmem:[#allocation3 + $0x188] sm:$0xf] %vm929, %v1941
      %2030 = vst.msk [vmem:[#allocation3 + $0x19c] sm:$0xf] %vm929, %v1943
      %2031 = vst.msk [vmem:[#allocation3 + $0x1b0] sm:$0xf] %vm929, %v1945
      %2032 = vst.msk [vmem:[#allocation3 + $0x1c4] sm:$0xf] %vm929, %v1947
      %2033 = vst.msk [vmem:[#allocation3 + $0x1d8] sm:$0xf] %vm929, %v1949
      %2034 = vst.msk [vmem:[#allocation3 + $0x1ec] sm:$0xf] %vm929, %v1951
      %2035 = vst.msk [vmem:[#allocation3 + $0x200] sm:$0xf] %vm929, %v1953
      %2036 = vst.msk [vmem:[#allocation3 + $0x214] sm:$0xf] %vm929, %v1955
      %2037 = vst.msk [vmem:[#allocation3 + $0x228] sm:$0xf] %vm929, %v1957
      %2038 = vst.msk [vmem:[#allocation3 + $0x23c] sm:$0xf] %vm929, %v1959
      %2039 = vst.msk [vmem:[#allocation3 + $0x250] sm:$0xf] %vm929, %v1961
      %2040 = vst.msk [vmem:[#allocation3 + $0x264] sm:$0xf] %vm929, %v1963
      %2041 = vst.msk [vmem:[#allocation3 + $0x278] sm:$0xf] %vm929, %v1965
      %2042 = vst.msk [vmem:[#allocation3 + $0x28c] sm:$0xf] %vm929, %v1967
      %2043 = vst.msk [vmem:[#allocation3 + $0x2a0] sm:$0xf] %vm929, %v1969
      %2044 = vst.msk [vmem:[#allocation3 + $0x2b4] sm:$0xf] %vm929, %v1971
      %2045 = vst.msk [vmem:[#allocation3 + $0x2c8] sm:$0xf] %vm929, %v1973
      %v2046 = vld [vmem:[#allocation2 + $0x26] sm:$0xff]
      %v2047 = vld [vmem:[#allocation2 + $0x2e] sm:$0xff]
      %v2048 = vld [vmem:[#allocation2 + $0x36] sm:$0xff]
      %v2049 = vld [vmem:[#allocation2 + $0x3e] sm:$0xff]
      %v2050 = vld [vmem:[#allocation2 + $0x46] sm:$0xff]
      %v2051 = vld [vmem:[#allocation2 + $0x4e] sm:$0xff]
      %v2052 = vld [vmem:[#allocation2 + $0x56] sm:$0xff]
      %v2053 = vld [vmem:[#allocation2 + $0x5e] sm:$0xff]
      %v2054 = vld [vmem:[#allocation2 + $0x66] sm:$0xff]
      %v2055 = vld [vmem:[#allocation2 + $0x6e] sm:$0xff]
      %v2056 = vld [vmem:[#allocation2 + $0x76] sm:$0xff]
      %v2057 = vld [vmem:[#allocation2 + $0x7e] sm:$0xff]
      %v2058 = vld [vmem:[#allocation2 + $0x86] sm:$0xff]
      %v2059 = vld [vmem:[#allocation2 + $0x8e] sm:$0xff]
      %v2060 = vld [vmem:[#allocation2 + $0x96] sm:$0xff]
      %v2061 = vld [vmem:[#allocation2 + $0x9e] sm:$0xff]
      %v2062 = vld [vmem:[#allocation2 + $0xa6] sm:$0xff]
      %v2063 = vld [vmem:[#allocation2 + $0xae] sm:$0xff]
      %v2064 = vld [vmem:[#allocation2 + $0xb6] sm:$0xff]
      %v2065 = vld [vmem:[#allocation2 + $0xbe] sm:$0xff]
      %v2066 = vld [vmem:[#allocation2 + $0xc6] sm:$0xff]
      %v2067 = vld [vmem:[#allocation2 + $0xce] sm:$0xff]
      %v2068 = vld [vmem:[#allocation2 + $0xd6] sm:$0xff]
      %v2069 = vld [vmem:[#allocation2 + $0xde] sm:$0xff]
      %v2070 = vld [vmem:[#allocation2 + $0xe6] sm:$0xff]
      %v2071 = vld [vmem:[#allocation2 + $0xee] sm:$0xff]
      %v2072 = vld [vmem:[#allocation2 + $0xf6] sm:$0xff]
      %v2073 = vld [vmem:[#allocation2 + $0xfe] sm:$0xff]
      %v2074 = vld [vmem:[#allocation2 + $0x106] sm:$0xff]
      %v2075 = vld [vmem:[#allocation2 + $0x10e] sm:$0xff]
      %v2076 = vld [vmem:[#allocation2 + $0x116] sm:$0xff]
      %v2077 = vld [vmem:[#allocation2 + $0x11e] sm:$0xff]
      %v2078 = vld [vmem:[#allocation2 + $0x126] sm:$0xff]
      %v2079 = vld [vmem:[#allocation2 + $0x12e] sm:$0xff]
      %v2080 = vld [vmem:[#allocation2 + $0x136] sm:$0xff]
      %v2081 = vld [vmem:[#allocation2 + $0x13e] sm:$0xff]
      %v2082 = vpack.c.bf16 %v2046, %v2046
      %v2083 = vpack.c.bf16 %v2047, %v2047
      %v2084 = vpack.c.bf16 %v2048, %v2048
      %v2085 = vpack.c.bf16 %v2049, %v2049
      %v2086 = vpack.c.bf16 %v2050, %v2050
      %v2087 = vpack.c.bf16 %v2051, %v2051
      %v2088 = vpack.c.bf16 %v2052, %v2052
      %v2089 = vpack.c.bf16 %v2053, %v2053
      %v2090 = vpack.c.bf16 %v2054, %v2054
      %v2091 = vpack.c.bf16 %v2055, %v2055
      %v2092 = vpack.c.bf16 %v2056, %v2056
      %v2093 = vpack.c.bf16 %v2057, %v2057
      %v2094 = vpack.c.bf16 %v2058, %v2058
      %v2095 = vpack.c.bf16 %v2059, %v2059
      %v2096 = vpack.c.bf16 %v2060, %v2060
      %v2097 = vpack.c.bf16 %v2061, %v2061
      %v2098 = vpack.c.bf16 %v2062, %v2062
      %v2099 = vpack.c.bf16 %v2063, %v2063
      %v2100 = vpack.c.bf16 %v2064, %v2064
      %v2101 = vpack.c.bf16 %v2065, %v2065
      %v2102 = vpack.c.bf16 %v2066, %v2066
      %v2103 = vpack.c.bf16 %v2067, %v2067
      %v2104 = vpack.c.bf16 %v2068, %v2068
      %v2105 = vpack.c.bf16 %v2069, %v2069
      %v2106 = vpack.c.bf16 %v2070, %v2070
      %v2107 = vpack.c.bf16 %v2071, %v2071
      %v2108 = vpack.c.bf16 %v2072, %v2072
      %v2109 = vpack.c.bf16 %v2073, %v2073
      %v2110 = vpack.c.bf16 %v2074, %v2074
      %v2111 = vpack.c.bf16 %v2075, %v2075
      %v2112 = vpack.c.bf16 %v2076, %v2076
      %v2113 = vpack.c.bf16 %v2077, %v2077
      %v2114 = vpack.c.bf16 %v2078, %v2078
      %v2115 = vpack.c.bf16 %v2079, %v2079
      %v2116 = vpack.c.bf16 %v2080, %v2080
      %v2117 = vpack.c.bf16 %v2081, %v2081
      %2118 = vst.msk [vmem:[#allocation3 + $0x10] sm:$0xf] %vm676, %v2082
      %2119 = vst.msk [vmem:[#allocation3 + $0x24] sm:$0xf] %vm676, %v2083
      %2120 = vst.msk [vmem:[#allocation3 + $0x38] sm:$0xf] %vm676, %v2084
      %2121 = vst.msk [vmem:[#allocation3 + $0x4c] sm:$0xf] %vm676, %v2085
      %2122 = vst.msk [vmem:[#allocation3 + $0x60] sm:$0xf] %vm676, %v2086
      %2123 = vst.msk [vmem:[#allocation3 + $0x74] sm:$0xf] %vm676, %v2087
      %2124 = vst.msk [vmem:[#allocation3 + $0x88] sm:$0xf] %vm676, %v2088
      %2125 = vst.msk [vmem:[#allocation3 + $0x9c] sm:$0xf] %vm676, %v2089
      %2126 = vst.msk [vmem:[#allocation3 + $0xb0] sm:$0xf] %vm676, %v2090
      %2127 = vst.msk [vmem:[#allocation3 + $0xc4] sm:$0xf] %vm676, %v2091
      %2128 = vst.msk [vmem:[#allocation3 + $0xd8] sm:$0xf] %vm676, %v2092
      %2129 = vst.msk [vmem:[#allocation3 + $0xec] sm:$0xf] %vm676, %v2093
      %2130 = vst.msk [vmem:[#allocation3 + $0x100] sm:$0xf] %vm676, %v2094
      %2131 = vst.msk [vmem:[#allocation3 + $0x114] sm:$0xf] %vm676, %v2095
      %2132 = vst.msk [vmem:[#allocation3 + $0x128] sm:$0xf] %vm676, %v2096
      %2133 = vst.msk [vmem:[#allocation3 + $0x13c] sm:$0xf] %vm676, %v2097
      %2134 = vst.msk [vmem:[#allocation3 + $0x150] sm:$0xf] %vm676, %v2098
      %2135 = vst.msk [vmem:[#allocation3 + $0x164] sm:$0xf] %vm676, %v2099
      %2136 = vst.msk [vmem:[#allocation3 + $0x178] sm:$0xf] %vm676, %v2100
      %2137 = vst.msk [vmem:[#allocation3 + $0x18c] sm:$0xf] %vm676, %v2101
      %2138 = vst.msk [vmem:[#allocation3 + $0x1a0] sm:$0xf] %vm676, %v2102
      %2139 = vst.msk [vmem:[#allocation3 + $0x1b4] sm:$0xf] %vm676, %v2103
      %2140 = vst.msk [vmem:[#allocation3 + $0x1c8] sm:$0xf] %vm676, %v2104
      %2141 = vst.msk [vmem:[#allocation3 + $0x1dc] sm:$0xf] %vm676, %v2105
      %2142 = vst.msk [vmem:[#allocation3 + $0x1f0] sm:$0xf] %vm676, %v2106
      %2143 = vst.msk [vmem:[#allocation3 + $0x204] sm:$0xf] %vm676, %v2107
      %2144 = vst.msk [vmem:[#allocation3 + $0x218] sm:$0xf] %vm676, %v2108
      %2145 = vst.msk [vmem:[#allocation3 + $0x22c] sm:$0xf] %vm676, %v2109
      %2146 = vst.msk [vmem:[#allocation3 + $0x240] sm:$0xf] %vm676, %v2110
      %2147 = vst.msk [vmem:[#allocation3 + $0x254] sm:$0xf] %vm676, %v2111
      %2148 = vst.msk [vmem:[#allocation3 + $0x268] sm:$0xf] %vm676, %v2112
      %2149 = vst.msk [vmem:[#allocation3 + $0x27c] sm:$0xf] %vm676, %v2113
      %2150 = vst.msk [vmem:[#allocation3 + $0x290] sm:$0xf] %vm676, %v2114
      %2151 = vst.msk [vmem:[#allocation3 + $0x2a4] sm:$0xf] %vm676, %v2115
      %2152 = vst.msk [vmem:[#allocation3 + $0x2b8] sm:$0xf] %vm676, %v2116
      %2153 = vst.msk [vmem:[#allocation3 + $0x2cc] sm:$0xf] %vm676, %v2117
      %v2154 = vld [vmem:[#allocation3] sm:$0xff]
      %v2155 = vld [vmem:[#allocation3 + $0x8] sm:$0xff]
      %v2156 = vld [vmem:[#allocation3 + $0x10] sm:$0xf]
      %v2157 = vld [vmem:[#allocation3 + $0x14] sm:$0xff]
      %v2158 = vld [vmem:[#allocation3 + $0x1c] sm:$0xff]
      %v2159 = vld [vmem:[#allocation3 + $0x24] sm:$0xf]
      %v2160 = vld [vmem:[#allocation3 + $0x28] sm:$0xff]
      %v2161 = vld [vmem:[#allocation3 + $0x30] sm:$0xff]
      %v2162 = vld [vmem:[#allocation3 + $0x38] sm:$0xf]
      %v2163 = vld [vmem:[#allocation3 + $0x3c] sm:$0xff]
      %v2164 = vld [vmem:[#allocation3 + $0x44] sm:$0xff]
      %v2165 = vld [vmem:[#allocation3 + $0x4c] sm:$0xf]
      %v2166 = vld [vmem:[#allocation3 + $0x50] sm:$0xff]
      %v2167 = vld [vmem:[#allocation3 + $0x58] sm:$0xff]
      %v2168 = vld [vmem:[#allocation3 + $0x60] sm:$0xf]
      %v2169 = vld [vmem:[#allocation3 + $0x64] sm:$0xff]
      %v2170 = vld [vmem:[#allocation3 + $0x6c] sm:$0xff]
      %v2171 = vld [vmem:[#allocation3 + $0x74] sm:$0xf]
      %v2172 = vld [vmem:[#allocation3 + $0x78] sm:$0xff]
      %v2173 = vld [vmem:[#allocation3 + $0x80] sm:$0xff]
      %v2174 = vld [vmem:[#allocation3 + $0x88] sm:$0xf]
      %v2175 = vld [vmem:[#allocation3 + $0x8c] sm:$0xff]
      %v2176 = vld [vmem:[#allocation3 + $0x94] sm:$0xff]
      %v2177 = vld [vmem:[#allocation3 + $0x9c] sm:$0xf]
      %v2178 = vld [vmem:[#allocation3 + $0xa0] sm:$0xff]
      %v2179 = vld [vmem:[#allocation3 + $0xa8] sm:$0xff]
      %v2180 = vld [vmem:[#allocation3 + $0xb0] sm:$0xf]
      %v2181 = vld [vmem:[#allocation3 + $0xb4] sm:$0xff]
      %v2182 = vld [vmem:[#allocation3 + $0xbc] sm:$0xff]
      %v2183 = vld [vmem:[#allocation3 + $0xc4] sm:$0xf]
      %v2184 = vld [vmem:[#allocation3 + $0xc8] sm:$0xff]
      %v2185 = vld [vmem:[#allocation3 + $0xd0] sm:$0xff]
      %v2186 = vld [vmem:[#allocation3 + $0xd8] sm:$0xf]
      %v2187 = vld [vmem:[#allocation3 + $0xdc] sm:$0xff]
      %v2188 = vld [vmem:[#allocation3 + $0xe4] sm:$0xff]
      %v2189 = vld [vmem:[#allocation3 + $0xec] sm:$0xf]
      %v2190 = vld [vmem:[#allocation3 + $0xf0] sm:$0xff]
      %v2191 = vld [vmem:[#allocation3 + $0xf8] sm:$0xff]
      %v2192 = vld [vmem:[#allocation3 + $0x100] sm:$0xf]
      %v2193 = vld [vmem:[#allocation3 + $0x104] sm:$0xff]
      %v2194 = vld [vmem:[#allocation3 + $0x10c] sm:$0xff]
      %v2195 = vld [vmem:[#allocation3 + $0x114] sm:$0xf]
      %v2196 = vld [vmem:[#allocation3 + $0x118] sm:$0xff]
      %v2197 = vld [vmem:[#allocation3 + $0x120] sm:$0xff]
      %v2198 = vld [vmem:[#allocation3 + $0x128] sm:$0xf]
      %v2199 = vld [vmem:[#allocation3 + $0x12c] sm:$0xff]
      %v2200 = vld [vmem:[#allocation3 + $0x134] sm:$0xff]
      %v2201 = vld [vmem:[#allocation3 + $0x13c] sm:$0xf]
      %v2202 = vld [vmem:[#allocation3 + $0x140] sm:$0xff]
      %v2203 = vld [vmem:[#allocation3 + $0x148] sm:$0xff]
      %v2204 = vld [vmem:[#allocation3 + $0x150] sm:$0xf]
      %v2205 = vld [vmem:[#allocation3 + $0x154] sm:$0xff]
      %v2206 = vld [vmem:[#allocation3 + $0x15c] sm:$0xff]
      %v2207 = vld [vmem:[#allocation3 + $0x164] sm:$0xf]
      %v2208 = vld [vmem:[#allocation3 + $0x168] sm:$0xff]
      %v2209 = vld [vmem:[#allocation3 + $0x170] sm:$0xff]
      %v2210 = vld [vmem:[#allocation3 + $0x178] sm:$0xf]
      %v2211 = vld [vmem:[#allocation3 + $0x17c] sm:$0xff]
      %v2212 = vld [vmem:[#allocation3 + $0x184] sm:$0xff]
      %v2213 = vld [vmem:[#allocation3 + $0x18c] sm:$0xf]
      %v2214 = vld [vmem:[#allocation3 + $0x190] sm:$0xff]
      %v2215 = vld [vmem:[#allocation3 + $0x198] sm:$0xff]
      %v2216 = vld [vmem:[#allocation3 + $0x1a0] sm:$0xf]
      %v2217 = vld [vmem:[#allocation3 + $0x1a4] sm:$0xff]
      %v2218 = vld [vmem:[#allocation3 + $0x1ac] sm:$0xff]
      %v2219 = vld [vmem:[#allocation3 + $0x1b4] sm:$0xf]
      %v2220 = vld [vmem:[#allocation3 + $0x1b8] sm:$0xff]
      %v2221 = vld [vmem:[#allocation3 + $0x1c0] sm:$0xff]
      %v2222 = vld [vmem:[#allocation3 + $0x1c8] sm:$0xf]
      %v2223 = vld [vmem:[#allocation3 + $0x1cc] sm:$0xff]
      %v2224 = vld [vmem:[#allocation3 + $0x1d4] sm:$0xff]
      %v2225 = vld [vmem:[#allocation3 + $0x1dc] sm:$0xf]
      %v2226 = vld [vmem:[#allocation3 + $0x1e0] sm:$0xff]
      %v2227 = vld [vmem:[#allocation3 + $0x1e8] sm:$0xff]
      %v2228 = vld [vmem:[#allocation3 + $0x1f0] sm:$0xf]
      %v2229 = vld [vmem:[#allocation3 + $0x1f4] sm:$0xff]
      %v2230 = vld [vmem:[#allocation3 + $0x1fc] sm:$0xff]
      %v2231 = vld [vmem:[#allocation3 + $0x204] sm:$0xf]
      %v2232 = vld [vmem:[#allocation3 + $0x208] sm:$0xff]
      %v2233 = vld [vmem:[#allocation3 + $0x210] sm:$0xff]
      %v2234 = vld [vmem:[#allocation3 + $0x218] sm:$0xf]
      %v2235 = vld [vmem:[#allocation3 + $0x21c] sm:$0xff]
      %v2236 = vld [vmem:[#allocation3 + $0x224] sm:$0xff]
      %v2237 = vld [vmem:[#allocation3 + $0x22c] sm:$0xf]
      %v2238 = vld [vmem:[#allocation3 + $0x230] sm:$0xff]
      %v2239 = vld [vmem:[#allocation3 + $0x238] sm:$0xff]
      %v2240 = vld [vmem:[#allocation3 + $0x240] sm:$0xf]
      %v2241 = vld [vmem:[#allocation3 + $0x244] sm:$0xff]
      %v2242 = vld [vmem:[#allocation3 + $0x24c] sm:$0xff]
      %v2243 = vld [vmem:[#allocation3 + $0x254] sm:$0xf]
      %v2244 = vld [vmem:[#allocation3 + $0x258] sm:$0xff]
      %v2245 = vld [vmem:[#allocation3 + $0x260] sm:$0xff]
      %v2246 = vld [vmem:[#allocation3 + $0x268] sm:$0xf]
      %v2247 = vld [vmem:[#allocation3 + $0x26c] sm:$0xff]
      %v2248 = vld [vmem:[#allocation3 + $0x274] sm:$0xff]
      %v2249 = vld [vmem:[#allocation3 + $0x27c] sm:$0xf]
      %v2250 = vld [vmem:[#allocation3 + $0x280] sm:$0xff]
      %v2251 = vld [vmem:[#allocation3 + $0x288] sm:$0xff]
      %v2252 = vld [vmem:[#allocation3 + $0x290] sm:$0xf]
      %v2253 = vld [vmem:[#allocation3 + $0x294] sm:$0xff]
      %v2254 = vld [vmem:[#allocation3 + $0x29c] sm:$0xff]
      %v2255 = vld [vmem:[#allocation3 + $0x2a4] sm:$0xf]
      %v2256 = vld [vmem:[#allocation3 + $0x2a8] sm:$0xff]
      %v2257 = vld [vmem:[#allocation3 + $0x2b0] sm:$0xff]
      %v2258 = vld [vmem:[#allocation3 + $0x2b8] sm:$0xf]
      %v2259 = vld [vmem:[#allocation3 + $0x2bc] sm:$0xff]
      %v2260 = vld [vmem:[#allocation3 + $0x2c4] sm:$0xff]
      %v2261 = vld [vmem:[#allocation3 + $0x2cc] sm:$0xf]
      %v2262 = vld [vmem:[%s2] sm:$0xf]
      %v2263 = vld [vmem:[%s2 + $0x4] sm:$0xf]
      %v2264 = vld [vmem:[%s2 + $0x8] sm:$0xf]
      %v2265 = vld [vmem:[%s2 + $0xc] sm:$0xf]
      %v2266 = vld [vmem:[%s2 + $0x10] sm:$0xf]
      %v2267 = vld [vmem:[%s2 + $0x14] sm:$0xf]
      %v2268 = vld [vmem:[%s2 + $0x18] sm:$0xf]
      %v2269 = vld [vmem:[%s2 + $0x1c] sm:$0xf]
      %v2270 = vld [vmem:[%s2 + $0x20] sm:$0xf]
      %v2271 = vld [vmem:[%s2 + $0x24] sm:$0xf]
      %v2272 = vld [vmem:[%s2 + $0x28] sm:$0xf]
      %v2273 = vld [vmem:[%s2 + $0x2c] sm:$0xf]
      %v2274 = vld [vmem:[%s2 + $0x30] sm:$0xf]
      %v2275 = vld [vmem:[%s2 + $0x34] sm:$0xf]
      %v2276 = vld [vmem:[%s2 + $0x38] sm:$0xf]
      %v2277 = vld [vmem:[%s2 + $0x3c] sm:$0xf]
      %v2278 = vld [vmem:[%s2 + $0x40] sm:$0xf]
      %v2279 = vld [vmem:[%s2 + $0x44] sm:$0xf]
      %v2280 = vld [vmem:[%s2 + $0x48] sm:$0xf]
      %v2281 = vld [vmem:[%s2 + $0x4c] sm:$0xf]
      %v2282 = vld [vmem:[%s2 + $0x50] sm:$0xf]
      %v2283 = vld [vmem:[%s2 + $0x54] sm:$0xf]
      %v2284 = vld [vmem:[%s2 + $0x58] sm:$0xf]
      %v2285 = vld [vmem:[%s2 + $0x5c] sm:$0xf]
      %v2286 = vld [vmem:[%s2 + $0x60] sm:$0xf]
      %v2287 = vld [vmem:[%s2 + $0x64] sm:$0xf]
      %v2288 = vld [vmem:[%s2 + $0x68] sm:$0xf]
      %v2289 = vld [vmem:[%s2 + $0x6c] sm:$0xf]
      %v2290 = vld [vmem:[%s2 + $0x70] sm:$0xf]
      %v2291 = vld [vmem:[%s2 + $0x74] sm:$0xf]
      %v2292 = vld [vmem:[%s2 + $0x78] sm:$0xf]
      %v2293 = vld [vmem:[%s2 + $0x7c] sm:$0xf]
      %v2294 = vld [vmem:[%s2 + $0x80] sm:$0xf]
      %v2295 = vld [vmem:[%s2 + $0x84] sm:$0xf]
      %v2296 = vld [vmem:[%s2 + $0x88] sm:$0xf]
      %v2297 = vld [vmem:[%s2 + $0x8c] sm:$0xf]
      %v2298 = vld [vmem:[%s2 + $0x90] sm:$0xf]
      %v2299 = vld [vmem:[%s2 + $0x94] sm:$0xf]
      %v2300 = vld [vmem:[%s2 + $0x98] sm:$0xf]
      %v2301 = vld [vmem:[%s2 + $0x9c] sm:$0xf]
      %v2302 = vld [vmem:[%s2 + $0xa0] sm:$0xf]
      %v2303 = vld [vmem:[%s2 + $0xa4] sm:$0xf]
      %v2304 = vld [vmem:[%s2 + $0xa8] sm:$0xf]
      %v2305 = vld [vmem:[%s2 + $0xac] sm:$0xf]
      %v2306 = vld [vmem:[%s2 + $0xb0] sm:$0xf]
      %v2307 = vld [vmem:[%s2 + $0xb4] sm:$0xf]
      %v2308 = vld [vmem:[%s2 + $0xb8] sm:$0xf]
      %v2309 = vld [vmem:[%s2 + $0xbc] sm:$0xf]
      %v2310 = vld [vmem:[%s2 + $0xc0] sm:$0xf]
      %v2311 = vld [vmem:[%s2 + $0xc4] sm:$0xf]
      %v2312 = vld [vmem:[%s2 + $0xc8] sm:$0xf]
      %v2313 = vld [vmem:[%s2 + $0xcc] sm:$0xf]
      %v2314 = vld [vmem:[%s2 + $0xd0] sm:$0xf]
      %v2315 = vld [vmem:[%s2 + $0xd4] sm:$0xf]
      %v2316 = vld [vmem:[%s2 + $0xd8] sm:$0xf]
      %v2317 = vld [vmem:[%s2 + $0xdc] sm:$0xf]
      %v2318 = vld [vmem:[%s2 + $0xe0] sm:$0xf]
      %v2319 = vld [vmem:[%s2 + $0xe4] sm:$0xf]
      %v2320 = vld [vmem:[%s2 + $0xe8] sm:$0xf]
      %v2321 = vld [vmem:[%s2 + $0xec] sm:$0xf]
      %v2322 = vld [vmem:[%s2 + $0xf0] sm:$0xf]
      %v2323 = vld [vmem:[%s2 + $0xf4] sm:$0xf]
      %v2324 = vld [vmem:[%s2 + $0xf8] sm:$0xf]
      %v2325 = vld [vmem:[%s2 + $0xfc] sm:$0xf]
      %v2326 = vld [vmem:[%s2 + $0x100] sm:$0xf]
      %v2327 = vld [vmem:[%s2 + $0x104] sm:$0xf]
      %v2328 = vld [vmem:[%s2 + $0x108] sm:$0xf]
      %v2329 = vld [vmem:[%s2 + $0x10c] sm:$0xf]
      %v2330 = vld [vmem:[%s2 + $0x110] sm:$0xf]
      %v2331 = vld [vmem:[%s2 + $0x114] sm:$0xf]
      %v2332 = vld [vmem:[%s2 + $0x118] sm:$0xf]
      %v2333 = vld [vmem:[%s2 + $0x11c] sm:$0xf]
      %v2442 = vunpack.c.l.b16 %v2154
      %v2443 = vunpack.c.h.b16 %v2154
      %v2444 = vunpack.c.l.b16 %v2155
      %v2445 = vunpack.c.h.b16 %v2155
      %v2446 = vunpack.c.l.b16 %v2156
      %v2447 = vunpack.c.l.b16 %v2157
      %v2448 = vunpack.c.h.b16 %v2157
      %v2449 = vunpack.c.l.b16 %v2158
      %v2450 = vunpack.c.h.b16 %v2158
      %v2451 = vunpack.c.l.b16 %v2159
      %v2452 = vunpack.c.l.b16 %v2160
      %v2453 = vunpack.c.h.b16 %v2160
      %v2454 = vunpack.c.l.b16 %v2161
      %v2455 = vunpack.c.h.b16 %v2161
      %v2456 = vunpack.c.l.b16 %v2162
      %v2457 = vunpack.c.l.b16 %v2163
      %v2458 = vunpack.c.h.b16 %v2163
      %v2459 = vunpack.c.l.b16 %v2164
      %v2460 = vunpack.c.h.b16 %v2164
      %v2461 = vunpack.c.l.b16 %v2165
      %v2462 = vunpack.c.l.b16 %v2166
      %v2463 = vunpack.c.h.b16 %v2166
      %v2464 = vunpack.c.l.b16 %v2167
      %v2465 = vunpack.c.h.b16 %v2167
      %v2466 = vunpack.c.l.b16 %v2168
      %v2467 = vunpack.c.l.b16 %v2169
      %v2468 = vunpack.c.h.b16 %v2169
      %v2469 = vunpack.c.l.b16 %v2170
      %v2470 = vunpack.c.h.b16 %v2170
      %v2471 = vunpack.c.l.b16 %v2171
      %v2472 = vunpack.c.l.b16 %v2172
      %v2473 = vunpack.c.h.b16 %v2172
      %v2474 = vunpack.c.l.b16 %v2173
      %v2475 = vunpack.c.h.b16 %v2173
      %v2476 = vunpack.c.l.b16 %v2174
      %v2477 = vunpack.c.l.b16 %v2175
      %v2478 = vunpack.c.h.b16 %v2175
      %v2479 = vunpack.c.l.b16 %v2176
      %v2480 = vunpack.c.h.b16 %v2176
      %v2481 = vunpack.c.l.b16 %v2177
      %v2482 = vunpack.c.l.b16 %v2178
      %v2483 = vunpack.c.h.b16 %v2178
      %v2484 = vunpack.c.l.b16 %v2179
      %v2485 = vunpack.c.h.b16 %v2179
      %v2486 = vunpack.c.l.b16 %v2180
      %v2487 = vunpack.c.l.b16 %v2181
      %v2488 = vunpack.c.h.b16 %v2181
      %v2489 = vunpack.c.l.b16 %v2182
      %v2490 = vunpack.c.h.b16 %v2182
      %v2491 = vunpack.c.l.b16 %v2183
      %v2492 = vunpack.c.l.b16 %v2184
      %v2493 = vunpack.c.h.b16 %v2184
      %v2494 = vunpack.c.l.b16 %v2185
      %v2495 = vunpack.c.h.b16 %v2185
      %v2496 = vunpack.c.l.b16 %v2186
      %v2497 = vunpack.c.l.b16 %v2187
      %v2498 = vunpack.c.h.b16 %v2187
      %v2499 = vunpack.c.l.b16 %v2188
      %v2500 = vunpack.c.h.b16 %v2188
      %v2501 = vunpack.c.l.b16 %v2189
      %v2502 = vunpack.c.l.b16 %v2190
      %v2503 = vunpack.c.h.b16 %v2190
      %v2504 = vunpack.c.l.b16 %v2191
      %v2505 = vunpack.c.h.b16 %v2191
      %v2506 = vunpack.c.l.b16 %v2192
      %v2507 = vunpack.c.l.b16 %v2193
      %v2508 = vunpack.c.h.b16 %v2193
      %v2509 = vunpack.c.l.b16 %v2194
      %v2510 = vunpack.c.h.b16 %v2194
      %v2511 = vunpack.c.l.b16 %v2195
      %v2512 = vunpack.c.l.b16 %v2196
      %v2513 = vunpack.c.h.b16 %v2196
      %v2514 = vunpack.c.l.b16 %v2197
      %v2515 = vunpack.c.h.b16 %v2197
      %v2516 = vunpack.c.l.b16 %v2198
      %v2517 = vunpack.c.l.b16 %v2199
      %v2518 = vunpack.c.h.b16 %v2199
      %v2519 = vunpack.c.l.b16 %v2200
      %v2520 = vunpack.c.h.b16 %v2200
      %v2521 = vunpack.c.l.b16 %v2201
      %v2522 = vunpack.c.l.b16 %v2202
      %v2523 = vunpack.c.h.b16 %v2202
      %v2524 = vunpack.c.l.b16 %v2203
      %v2525 = vunpack.c.h.b16 %v2203
      %v2526 = vunpack.c.l.b16 %v2204
      %v2527 = vunpack.c.l.b16 %v2205
      %v2528 = vunpack.c.h.b16 %v2205
      %v2529 = vunpack.c.l.b16 %v2206
      %v2530 = vunpack.c.h.b16 %v2206
      %v2531 = vunpack.c.l.b16 %v2207
      %v2532 = vunpack.c.l.b16 %v2208
      %v2533 = vunpack.c.h.b16 %v2208
      %v2534 = vunpack.c.l.b16 %v2209
      %v2535 = vunpack.c.h.b16 %v2209
      %v2536 = vunpack.c.l.b16 %v2210
      %v2537 = vunpack.c.l.b16 %v2211
      %v2538 = vunpack.c.h.b16 %v2211
      %v2539 = vunpack.c.l.b16 %v2212
      %v2540 = vunpack.c.h.b16 %v2212
      %v2541 = vunpack.c.l.b16 %v2213
      %v2542 = vunpack.c.l.b16 %v2214
      %v2543 = vunpack.c.h.b16 %v2214
      %v2544 = vunpack.c.l.b16 %v2215
      %v2545 = vunpack.c.h.b16 %v2215
      %v2546 = vunpack.c.l.b16 %v2216
      %v2547 = vunpack.c.l.b16 %v2217
      %v2548 = vunpack.c.h.b16 %v2217
      %v2549 = vunpack.c.l.b16 %v2218
      %v2550 = vunpack.c.h.b16 %v2218
      %v2551 = vunpack.c.l.b16 %v2219
      %v2552 = vunpack.c.l.b16 %v2220
      %v2553 = vunpack.c.h.b16 %v2220
      %v2554 = vunpack.c.l.b16 %v2221
      %v2555 = vunpack.c.h.b16 %v2221
      %v2556 = vunpack.c.l.b16 %v2222
      %v2557 = vunpack.c.l.b16 %v2223
      %v2558 = vunpack.c.h.b16 %v2223
      %v2559 = vunpack.c.l.b16 %v2224
      %v2560 = vunpack.c.h.b16 %v2224
      %v2561 = vunpack.c.l.b16 %v2225
      %v2562 = vunpack.c.l.b16 %v2226
      %v2563 = vunpack.c.h.b16 %v2226
      %v2564 = vunpack.c.l.b16 %v2227
      %v2565 = vunpack.c.h.b16 %v2227
      %v2566 = vunpack.c.l.b16 %v2228
      %v2567 = vunpack.c.l.b16 %v2229
      %v2568 = vunpack.c.h.b16 %v2229
      %v2569 = vunpack.c.l.b16 %v2230
      %v2570 = vunpack.c.h.b16 %v2230
      %v2571 = vunpack.c.l.b16 %v2231
      %v2572 = vunpack.c.l.b16 %v2232
      %v2573 = vunpack.c.h.b16 %v2232
      %v2574 = vunpack.c.l.b16 %v2233
      %v2575 = vunpack.c.h.b16 %v2233
      %v2576 = vunpack.c.l.b16 %v2234
      %v2577 = vunpack.c.l.b16 %v2235
      %v2578 = vunpack.c.h.b16 %v2235
      %v2579 = vunpack.c.l.b16 %v2236
      %v2580 = vunpack.c.h.b16 %v2236
      %v2581 = vunpack.c.l.b16 %v2237
      %v2582 = vunpack.c.l.b16 %v2238
      %v2583 = vunpack.c.h.b16 %v2238
      %v2584 = vunpack.c.l.b16 %v2239
      %v2585 = vunpack.c.h.b16 %v2239
      %v2586 = vunpack.c.l.b16 %v2240
      %v2587 = vunpack.c.l.b16 %v2241
      %v2588 = vunpack.c.h.b16 %v2241
      %v2589 = vunpack.c.l.b16 %v2242
      %v2590 = vunpack.c.h.b16 %v2242
      %v2591 = vunpack.c.l.b16 %v2243
      %v2592 = vunpack.c.l.b16 %v2244
      %v2593 = vunpack.c.h.b16 %v2244
      %v2594 = vunpack.c.l.b16 %v2245
      %v2595 = vunpack.c.h.b16 %v2245
      %v2596 = vunpack.c.l.b16 %v2246
      %v2597 = vunpack.c.l.b16 %v2247
      %v2598 = vunpack.c.h.b16 %v2247
      %v2599 = vunpack.c.l.b16 %v2248
      %v2600 = vunpack.c.h.b16 %v2248
      %v2601 = vunpack.c.l.b16 %v2249
      %v2602 = vunpack.c.l.b16 %v2250
      %v2603 = vunpack.c.h.b16 %v2250
      %v2604 = vunpack.c.l.b16 %v2251
      %v2605 = vunpack.c.h.b16 %v2251
      %v2606 = vunpack.c.l.b16 %v2252
      %v2607 = vunpack.c.l.b16 %v2253
      %v2608 = vunpack.c.h.b16 %v2253
      %v2609 = vunpack.c.l.b16 %v2254
      %v2610 = vunpack.c.h.b16 %v2254
      %v2611 = vunpack.c.l.b16 %v2255
      %v2612 = vunpack.c.l.b16 %v2256
      %v2613 = vunpack.c.h.b16 %v2256
      %v2614 = vunpack.c.l.b16 %v2257
      %v2615 = vunpack.c.h.b16 %v2257
      %v2616 = vunpack.c.l.b16 %v2258
      %v2617 = vunpack.c.l.b16 %v2259
      %v2618 = vunpack.c.h.b16 %v2259
      %v2619 = vunpack.c.l.b16 %v2260
      %v2620 = vunpack.c.h.b16 %v2260
      %v2621 = vunpack.c.l.b16 %v2261
      %v2622 = vpack.c.b16 %v2447, %v2442
      %v2623 = vpack.c.b16 %v2448, %v2443
      %v2624 = vpack.c.b16 %v2449, %v2444
      %v2625 = vpack.c.b16 %v2450, %v2445
      %v2626 = vpack.c.b16 %v2451, %v2446
      %v2627 = vpack.c.b16 %v2457, %v2452
      %v2628 = vpack.c.b16 %v2458, %v2453
      %v2629 = vpack.c.b16 %v2459, %v2454
      %v2630 = vpack.c.b16 %v2460, %v2455
      %v2631 = vpack.c.b16 %v2461, %v2456
      %v2632 = vpack.c.b16 %v2467, %v2462
      %v2633 = vpack.c.b16 %v2468, %v2463
      %v2634 = vpack.c.b16 %v2469, %v2464
      %v2635 = vpack.c.b16 %v2470, %v2465
      %v2636 = vpack.c.b16 %v2471, %v2466
      %v2637 = vpack.c.b16 %v2477, %v2472
      %v2638 = vpack.c.b16 %v2478, %v2473
      %v2639 = vpack.c.b16 %v2479, %v2474
      %v2640 = vpack.c.b16 %v2480, %v2475
      %v2641 = vpack.c.b16 %v2481, %v2476
      %v2642 = vpack.c.b16 %v2487, %v2482
      %v2643 = vpack.c.b16 %v2488, %v2483
      %v2644 = vpack.c.b16 %v2489, %v2484
      %v2645 = vpack.c.b16 %v2490, %v2485
      %v2646 = vpack.c.b16 %v2491, %v2486
      %v2647 = vpack.c.b16 %v2497, %v2492
      %v2648 = vpack.c.b16 %v2498, %v2493
      %v2649 = vpack.c.b16 %v2499, %v2494
      %v2650 = vpack.c.b16 %v2500, %v2495
      %v2651 = vpack.c.b16 %v2501, %v2496
      %v2652 = vpack.c.b16 %v2507, %v2502
      %v2653 = vpack.c.b16 %v2508, %v2503
      %v2654 = vpack.c.b16 %v2509, %v2504
      %v2655 = vpack.c.b16 %v2510, %v2505
      %v2656 = vpack.c.b16 %v2511, %v2506
      %v2657 = vpack.c.b16 %v2517, %v2512
      %v2658 = vpack.c.b16 %v2518, %v2513
      %v2659 = vpack.c.b16 %v2519, %v2514
      %v2660 = vpack.c.b16 %v2520, %v2515
      %v2661 = vpack.c.b16 %v2521, %v2516
      %v2662 = vpack.c.b16 %v2527, %v2522
      %v2663 = vpack.c.b16 %v2528, %v2523
      %v2664 = vpack.c.b16 %v2529, %v2524
      %v2665 = vpack.c.b16 %v2530, %v2525
      %v2666 = vpack.c.b16 %v2531, %v2526
      %v2667 = vpack.c.b16 %v2537, %v2532
      %v2668 = vpack.c.b16 %v2538, %v2533
      %v2669 = vpack.c.b16 %v2539, %v2534
      %v2670 = vpack.c.b16 %v2540, %v2535
      %v2671 = vpack.c.b16 %v2541, %v2536
      %v2672 = vpack.c.b16 %v2547, %v2542
      %v2673 = vpack.c.b16 %v2548, %v2543
      %v2674 = vpack.c.b16 %v2549, %v2544
      %v2675 = vpack.c.b16 %v2550, %v2545
      %v2676 = vpack.c.b16 %v2551, %v2546
      %v2677 = vpack.c.b16 %v2557, %v2552
      %v2678 = vpack.c.b16 %v2558, %v2553
      %v2679 = vpack.c.b16 %v2559, %v2554
      %v2680 = vpack.c.b16 %v2560, %v2555
      %v2681 = vpack.c.b16 %v2561, %v2556
      %v2682 = vpack.c.b16 %v2567, %v2562
      %v2683 = vpack.c.b16 %v2568, %v2563
      %v2684 = vpack.c.b16 %v2569, %v2564
      %v2685 = vpack.c.b16 %v2570, %v2565
      %v2686 = vpack.c.b16 %v2571, %v2566
      %v2687 = vpack.c.b16 %v2577, %v2572
      %v2688 = vpack.c.b16 %v2578, %v2573
      %v2689 = vpack.c.b16 %v2579, %v2574
      %v2690 = vpack.c.b16 %v2580, %v2575
      %v2691 = vpack.c.b16 %v2581, %v2576
      %v2692 = vpack.c.b16 %v2587, %v2582
      %v2693 = vpack.c.b16 %v2588, %v2583
      %v2694 = vpack.c.b16 %v2589, %v2584
      %v2695 = vpack.c.b16 %v2590, %v2585
      %v2696 = vpack.c.b16 %v2591, %v2586
      %v2697 = vpack.c.b16 %v2597, %v2592
      %v2698 = vpack.c.b16 %v2598, %v2593
      %v2699 = vpack.c.b16 %v2599, %v2594
      %v2700 = vpack.c.b16 %v2600, %v2595
      %v2701 = vpack.c.b16 %v2601, %v2596
      %v2702 = vpack.c.b16 %v2607, %v2602
      %v2703 = vpack.c.b16 %v2608, %v2603
      %v2704 = vpack.c.b16 %v2609, %v2604
      %v2705 = vpack.c.b16 %v2610, %v2605
      %v2706 = vpack.c.b16 %v2611, %v2606
      %v2707 = vpack.c.b16 %v2617, %v2612
      %v2708 = vpack.c.b16 %v2618, %v2613
      %v2709 = vpack.c.b16 %v2619, %v2614
      %v2710 = vpack.c.b16 %v2620, %v2615
      %v2711 = vpack.c.b16 %v2621, %v2616
      %v2856 = vunpack.c.l.b16 %v2262
      %v2857 = vunpack.c.l.b16 %v2263
      %v2858 = vunpack.c.l.b16 %v2264
      %v2859 = vunpack.c.l.b16 %v2265
      %v2860 = vunpack.c.l.b16 %v2266
      %v2861 = vunpack.c.l.b16 %v2267
      %v2862 = vunpack.c.l.b16 %v2268
      %v2863 = vunpack.c.l.b16 %v2269
      %v2864 = vunpack.c.l.b16 %v2270
      %v2865 = vunpack.c.l.b16 %v2271
      %v2866 = vunpack.c.l.b16 %v2272
      %v2867 = vunpack.c.l.b16 %v2273
      %v2868 = vunpack.c.l.b16 %v2274
      %v2869 = vunpack.c.l.b16 %v2275
      %v2870 = vunpack.c.l.b16 %v2276
      %v2871 = vunpack.c.l.b16 %v2277
      %v2872 = vunpack.c.l.b16 %v2278
      %v2873 = vunpack.c.l.b16 %v2279
      %v2874 = vunpack.c.l.b16 %v2280
      %v2875 = vunpack.c.l.b16 %v2281
      %v2876 = vunpack.c.l.b16 %v2282
      %v2877 = vunpack.c.l.b16 %v2283
      %v2878 = vunpack.c.l.b16 %v2284
      %v2879 = vunpack.c.l.b16 %v2285
      %v2880 = vunpack.c.l.b16 %v2286
      %v2881 = vunpack.c.l.b16 %v2287
      %v2882 = vunpack.c.l.b16 %v2288
      %v2883 = vunpack.c.l.b16 %v2289
      %v2884 = vunpack.c.l.b16 %v2290
      %v2885 = vunpack.c.l.b16 %v2291
      %v2886 = vunpack.c.l.b16 %v2292
      %v2887 = vunpack.c.l.b16 %v2293
      %v2888 = vunpack.c.l.b16 %v2294
      %v2889 = vunpack.c.l.b16 %v2295
      %v2890 = vunpack.c.l.b16 %v2296
      %v2891 = vunpack.c.l.b16 %v2297
      %v2892 = vunpack.c.l.b16 %v2298
      %v2893 = vunpack.c.l.b16 %v2299
      %v2894 = vunpack.c.l.b16 %v2300
      %v2895 = vunpack.c.l.b16 %v2301
      %v2896 = vunpack.c.l.b16 %v2302
      %v2897 = vunpack.c.l.b16 %v2303
      %v2898 = vunpack.c.l.b16 %v2304
      %v2899 = vunpack.c.l.b16 %v2305
      %v2900 = vunpack.c.l.b16 %v2306
      %v2901 = vunpack.c.l.b16 %v2307
      %v2902 = vunpack.c.l.b16 %v2308
      %v2903 = vunpack.c.l.b16 %v2309
      %v2904 = vunpack.c.l.b16 %v2310
      %v2905 = vunpack.c.l.b16 %v2311
      %v2906 = vunpack.c.l.b16 %v2312
      %v2907 = vunpack.c.l.b16 %v2313
      %v2908 = vunpack.c.l.b16 %v2314
      %v2909 = vunpack.c.l.b16 %v2315
      %v2910 = vunpack.c.l.b16 %v2316
      %v2911 = vunpack.c.l.b16 %v2317
      %v2912 = vunpack.c.l.b16 %v2318
      %v2913 = vunpack.c.l.b16 %v2319
      %v2914 = vunpack.c.l.b16 %v2320
      %v2915 = vunpack.c.l.b16 %v2321
      %v2916 = vunpack.c.l.b16 %v2322
      %v2917 = vunpack.c.l.b16 %v2323
      %v2918 = vunpack.c.l.b16 %v2324
      %v2919 = vunpack.c.l.b16 %v2325
      %v2920 = vunpack.c.l.b16 %v2326
      %v2921 = vunpack.c.l.b16 %v2327
      %v2922 = vunpack.c.l.b16 %v2328
      %v2923 = vunpack.c.l.b16 %v2329
      %v2924 = vunpack.c.l.b16 %v2330
      %v2925 = vunpack.c.l.b16 %v2331
      %v2926 = vunpack.c.l.b16 %v2332
      %v2927 = vunpack.c.l.b16 %v2333
      %v2928 = vpack.c.b16 %v2857, %v2856
      %v2929 = vpack.c.b16 %v2859, %v2858
      %v2930 = vpack.c.b16 %v2861, %v2860
      %v2931 = vpack.c.b16 %v2863, %v2862
      %v2932 = vpack.c.b16 %v2865, %v2864
      %v2933 = vpack.c.b16 %v2867, %v2866
      %v2934 = vpack.c.b16 %v2869, %v2868
      %v2935 = vpack.c.b16 %v2871, %v2870
      %v2936 = vpack.c.b16 %v2873, %v2872
      %v2937 = vpack.c.b16 %v2875, %v2874
      %v2938 = vpack.c.b16 %v2877, %v2876
      %v2939 = vpack.c.b16 %v2879, %v2878
      %v2940 = vpack.c.b16 %v2881, %v2880
      %v2941 = vpack.c.b16 %v2883, %v2882
      %v2942 = vpack.c.b16 %v2885, %v2884
      %v2943 = vpack.c.b16 %v2887, %v2886
      %v2944 = vpack.c.b16 %v2889, %v2888
      %v2945 = vpack.c.b16 %v2891, %v2890
      %v2946 = vpack.c.b16 %v2893, %v2892
      %v2947 = vpack.c.b16 %v2895, %v2894
      %v2948 = vpack.c.b16 %v2897, %v2896
      %v2949 = vpack.c.b16 %v2899, %v2898
      %v2950 = vpack.c.b16 %v2901, %v2900
      %v2951 = vpack.c.b16 %v2903, %v2902
      %v2952 = vpack.c.b16 %v2905, %v2904
      %v2953 = vpack.c.b16 %v2907, %v2906
      %v2954 = vpack.c.b16 %v2909, %v2908
      %v2955 = vpack.c.b16 %v2911, %v2910
      %v2956 = vpack.c.b16 %v2913, %v2912
      %v2957 = vpack.c.b16 %v2915, %v2914
      %v2958 = vpack.c.b16 %v2917, %v2916
      %v2959 = vpack.c.b16 %v2919, %v2918
      %v2960 = vpack.c.b16 %v2921, %v2920
      %v2961 = vpack.c.b16 %v2923, %v2922
      %v2962 = vpack.c.b16 %v2925, %v2924
      %v2963 = vpack.c.b16 %v2927, %v2926
      %v3001 = vsel %vm559, %v2626, 0
      %v3004 = vsel %vm559, %v2631, 0
      %v3007 = vsel %vm559, %v2636, 0
      %v3010 = vsel %vm559, %v2641, 0
      %v3013 = vsel %vm559, %v2646, 0
      %v3016 = vsel %vm559, %v2651, 0
      %v3019 = vsel %vm559, %v2656, 0
      %v3022 = vsel %vm559, %v2661, 0
      %v3025 = vsel %vm559, %v2666, 0
      %v3028 = vsel %vm559, %v2671, 0
      %v3031 = vsel %vm559, %v2676, 0
      %v3034 = vsel %vm559, %v2681, 0
      %v3037 = vsel %vm559, %v2686, 0
      %v3040 = vsel %vm559, %v2691, 0
      %v3043 = vsel %vm559, %v2696, 0
      %v3046 = vsel %vm559, %v2701, 0
      %v3049 = vsel %vm559, %v2706, 0
      %v3052 = vsel %vm559, %v2711, 0
      %3054 = vmatpush.bf16.msra.mxu0 %v2935
      %3055 = vmatpush.bf16.msra.mxu0 %v2934
      %3056 = vmatpush.bf16.msra.mxu0 %v2933
      %3057 = vmatpush.bf16.msra.mxu0 %v2932
      %3058 = vmatpush.bf16.msra.mxu0 %v2931
      %3059 = vmatpush.bf16.msra.mxu0 %v2930
      %3060 = vmatpush.bf16.msra.mxu0 %v2929
      %3061 = vmatpush.bf16.msra.mxu0 %v2928
      %3062 = vmatmul.bf16.gmra.mxu0 %v2622
      %v3063 = vpop.f32.mrf.mxu0
      %v3064 = vadd.f32 0.0, %v3063
      %v3065 = vpop.f32.mrf.mxu0
      %v3066 = vadd.f32 0.0, %v3065
      %3067 = vmatmul.bf16.gmra.mxu0 %v2627
      %v3068 = vpop.f32.mrf.mxu0
      %v3069 = vadd.f32 0.0, %v3068
      %v3070 = vpop.f32.mrf.mxu0
      %v3071 = vadd.f32 0.0, %v3070
      %3072 = vmatmul.bf16.gmra.mxu0 %v2632
      %v3073 = vpop.f32.mrf.mxu0
      %v3074 = vadd.f32 0.0, %v3073
      %v3075 = vpop.f32.mrf.mxu0
      %v3076 = vadd.f32 0.0, %v3075
      %3077 = vmatmul.bf16.gmra.mxu0 %v2637
      %v3078 = vpop.f32.mrf.mxu0
      %v3079 = vadd.f32 0.0, %v3078
      %v3080 = vpop.f32.mrf.mxu0
      %v3081 = vadd.f32 0.0, %v3080
      %3082 = vmatmul.bf16.gmra.mxu0 %v2642
      %v3083 = vpop.f32.mrf.mxu0
      %v3084 = vadd.f32 0.0, %v3083
      %v3085 = vpop.f32.mrf.mxu0
      %v3086 = vadd.f32 0.0, %v3085
      %3087 = vmatmul.bf16.gmra.mxu0 %v2647
      %v3088 = vpop.f32.mrf.mxu0
      %v3089 = vadd.f32 0.0, %v3088
      %v3090 = vpop.f32.mrf.mxu0
      %v3091 = vadd.f32 0.0, %v3090
      %3092 = vmatmul.bf16.gmra.mxu0 %v2652
      %v3093 = vpop.f32.mrf.mxu0
      %v3094 = vadd.f32 0.0, %v3093
      %v3095 = vpop.f32.mrf.mxu0
      %v3096 = vadd.f32 0.0, %v3095
      %3097 = vmatmul.bf16.gmra.mxu0 %v2657
      %v3098 = vpop.f32.mrf.mxu0
      %v3099 = vadd.f32 0.0, %v3098
      %v3100 = vpop.f32.mrf.mxu0
      %v3101 = vadd.f32 0.0, %v3100
      %3102 = vmatmul.bf16.gmra.mxu0 %v2662
      %v3103 = vpop.f32.mrf.mxu0
      %v3104 = vadd.f32 0.0, %v3103
      %v3105 = vpop.f32.mrf.mxu0
      %v3106 = vadd.f32 0.0, %v3105
      %3107 = vmatmul.bf16.gmra.mxu0 %v2667
      %v3108 = vpop.f32.mrf.mxu0
      %v3109 = vadd.f32 0.0, %v3108
      %v3110 = vpop.f32.mrf.mxu0
      %v3111 = vadd.f32 0.0, %v3110
      %3112 = vmatmul.bf16.gmra.mxu0 %v2672
      %v3113 = vpop.f32.mrf.mxu0
      %v3114 = vadd.f32 0.0, %v3113
      %v3115 = vpop.f32.mrf.mxu0
      %v3116 = vadd.f32 0.0, %v3115
      %3117 = vmatmul.bf16.gmra.mxu0 %v2677
      %v3118 = vpop.f32.mrf.mxu0
      %v3119 = vadd.f32 0.0, %v3118
      %v3120 = vpop.f32.mrf.mxu0
      %v3121 = vadd.f32 0.0, %v3120
      %3122 = vmatmul.bf16.gmra.mxu0 %v2682
      %v3123 = vpop.f32.mrf.mxu0
      %v3124 = vadd.f32 0.0, %v3123
      %v3125 = vpop.f32.mrf.mxu0
      %v3126 = vadd.f32 0.0, %v3125
      %3127 = vmatmul.bf16.gmra.mxu0 %v2687
      %v3128 = vpop.f32.mrf.mxu0
      %v3129 = vadd.f32 0.0, %v3128
      %v3130 = vpop.f32.mrf.mxu0
      %v3131 = vadd.f32 0.0, %v3130
      %3132 = vmatmul.bf16.gmra.mxu0 %v2692
      %v3133 = vpop.f32.mrf.mxu0
      %v3134 = vadd.f32 0.0, %v3133
      %v3135 = vpop.f32.mrf.mxu0
      %v3136 = vadd.f32 0.0, %v3135
      %3137 = vmatmul.bf16.gmra.mxu0 %v2697
      %v3138 = vpop.f32.mrf.mxu0
      %v3139 = vadd.f32 0.0, %v3138
      %v3140 = vpop.f32.mrf.mxu0
      %v3141 = vadd.f32 0.0, %v3140
      %3142 = vmatmul.bf16.gmra.mxu0 %v2702
      %v3143 = vpop.f32.mrf.mxu0
      %v3144 = vadd.f32 0.0, %v3143
      %v3145 = vpop.f32.mrf.mxu0
      %v3146 = vadd.f32 0.0, %v3145
      %3147 = vmatmul.bf16.gmra.mxu0 %v2707
      %v3148 = vpop.f32.mrf.mxu0
      %v3149 = vadd.f32 0.0, %v3148
      %v3150 = vpop.f32.mrf.mxu0
      %v3151 = vadd.f32 0.0, %v3150
      %3152 = vdwg.mxu0
      %3153 = vmatpush.bf16.msra.mxu0 %v2943
      %3154 = vmatpush.bf16.msra.mxu0 %v2942
      %3155 = vmatpush.bf16.msra.mxu0 %v2941
      %3156 = vmatpush.bf16.msra.mxu0 %v2940
      %3157 = vmatpush.bf16.msra.mxu0 %v2939
      %3158 = vmatpush.bf16.msra.mxu0 %v2938
      %3159 = vmatpush.bf16.msra.mxu0 %v2937
      %3160 = vmatpush.bf16.msra.mxu0 %v2936
      %3161 = vmatmul.bf16.gmra.mxu0 %v2623
      %v3162 = vpop.f32.mrf.mxu0
      %v3163 = vadd.f32 %v3064, %v3162
      %v3164 = vpop.f32.mrf.mxu0
      %v3165 = vadd.f32 %v3066, %v3164
      %3166 = vmatmul.bf16.gmra.mxu0 %v2628
      %v3167 = vpop.f32.mrf.mxu0
      %v3168 = vadd.f32 %v3069, %v3167
      %v3169 = vpop.f32.mrf.mxu0
      %v3170 = vadd.f32 %v3071, %v3169
      %3171 = vmatmul.bf16.gmra.mxu0 %v2633
      %v3172 = vpop.f32.mrf.mxu0
      %v3173 = vadd.f32 %v3074, %v3172
      %v3174 = vpop.f32.mrf.mxu0
      %v3175 = vadd.f32 %v3076, %v3174
      %3176 = vmatmul.bf16.gmra.mxu0 %v2638
      %v3177 = vpop.f32.mrf.mxu0
      %v3178 = vadd.f32 %v3079, %v3177
      %v3179 = vpop.f32.mrf.mxu0
      %v3180 = vadd.f32 %v3081, %v3179
      %3181 = vmatmul.bf16.gmra.mxu0 %v2643
      %v3182 = vpop.f32.mrf.mxu0
      %v3183 = vadd.f32 %v3084, %v3182
      %v3184 = vpop.f32.mrf.mxu0
      %v3185 = vadd.f32 %v3086, %v3184
      %3186 = vmatmul.bf16.gmra.mxu0 %v2648
      %v3187 = vpop.f32.mrf.mxu0
      %v3188 = vadd.f32 %v3089, %v3187
      %v3189 = vpop.f32.mrf.mxu0
      %v3190 = vadd.f32 %v3091, %v3189
      %3191 = vmatmul.bf16.gmra.mxu0 %v2653
      %v3192 = vpop.f32.mrf.mxu0
      %v3193 = vadd.f32 %v3094, %v3192
      %v3194 = vpop.f32.mrf.mxu0
      %v3195 = vadd.f32 %v3096, %v3194
      %3196 = vmatmul.bf16.gmra.mxu0 %v2658
      %v3197 = vpop.f32.mrf.mxu0
      %v3198 = vadd.f32 %v3099, %v3197
      %v3199 = vpop.f32.mrf.mxu0
      %v3200 = vadd.f32 %v3101, %v3199
      %3201 = vmatmul.bf16.gmra.mxu0 %v2663
      %v3202 = vpop.f32.mrf.mxu0
      %v3203 = vadd.f32 %v3104, %v3202
      %v3204 = vpop.f32.mrf.mxu0
      %v3205 = vadd.f32 %v3106, %v3204
      %3206 = vmatmul.bf16.gmra.mxu0 %v2668
      %v3207 = vpop.f32.mrf.mxu0
      %v3208 = vadd.f32 %v3109, %v3207
      %v3209 = vpop.f32.mrf.mxu0
      %v3210 = vadd.f32 %v3111, %v3209
      %3211 = vmatmul.bf16.gmra.mxu0 %v2673
      %v3212 = vpop.f32.mrf.mxu0
      %v3213 = vadd.f32 %v3114, %v3212
      %v3214 = vpop.f32.mrf.mxu0
      %v3215 = vadd.f32 %v3116, %v3214
      %3216 = vmatmul.bf16.gmra.mxu0 %v2678
      %v3217 = vpop.f32.mrf.mxu0
      %v3218 = vadd.f32 %v3119, %v3217
      %v3219 = vpop.f32.mrf.mxu0
      %v3220 = vadd.f32 %v3121, %v3219
      %3221 = vmatmul.bf16.gmra.mxu0 %v2683
      %v3222 = vpop.f32.mrf.mxu0
      %v3223 = vadd.f32 %v3124, %v3222
      %v3224 = vpop.f32.mrf.mxu0
      %v3225 = vadd.f32 %v3126, %v3224
      %3226 = vmatmul.bf16.gmra.mxu0 %v2688
      %v3227 = vpop.f32.mrf.mxu0
      %v3228 = vadd.f32 %v3129, %v3227
      %v3229 = vpop.f32.mrf.mxu0
      %v3230 = vadd.f32 %v3131, %v3229
      %3231 = vmatmul.bf16.gmra.mxu0 %v2693
      %v3232 = vpop.f32.mrf.mxu0
      %v3233 = vadd.f32 %v3134, %v3232
      %v3234 = vpop.f32.mrf.mxu0
      %v3235 = vadd.f32 %v3136, %v3234
      %3236 = vmatmul.bf16.gmra.mxu0 %v2698
      %v3237 = vpop.f32.mrf.mxu0
      %v3238 = vadd.f32 %v3139, %v3237
      %v3239 = vpop.f32.mrf.mxu0
      %v3240 = vadd.f32 %v3141, %v3239
      %3241 = vmatmul.bf16.gmra.mxu0 %v2703
      %v3242 = vpop.f32.mrf.mxu0
      %v3243 = vadd.f32 %v3144, %v3242
      %v3244 = vpop.f32.mrf.mxu0
      %v3245 = vadd.f32 %v3146, %v3244
      %3246 = vmatmul.bf16.gmra.mxu0 %v2708
      %v3247 = vpop.f32.mrf.mxu0
      %v3248 = vadd.f32 %v3149, %v3247
      %v3249 = vpop.f32.mrf.mxu0
      %v3250 = vadd.f32 %v3151, %v3249
      %3251 = vdwg.mxu0
      %3252 = vmatpush.bf16.msra.mxu0 %v2951
      %3253 = vmatpush.bf16.msra.mxu0 %v2950
      %3254 = vmatpush.bf16.msra.mxu0 %v2949
      %3255 = vmatpush.bf16.msra.mxu0 %v2948
      %3256 = vmatpush.bf16.msra.mxu0 %v2947
      %3257 = vmatpush.bf16.msra.mxu0 %v2946
      %3258 = vmatpush.bf16.msra.mxu0 %v2945
      %3259 = vmatpush.bf16.msra.mxu0 %v2944
      %3260 = vmatmul.bf16.gmra.mxu0 %v2624
      %v3261 = vpop.f32.mrf.mxu0
      %v3262 = vadd.f32 %v3163, %v3261
      %v3263 = vpop.f32.mrf.mxu0
      %v3264 = vadd.f32 %v3165, %v3263
      %3265 = vmatmul.bf16.gmra.mxu0 %v2629
      %v3266 = vpop.f32.mrf.mxu0
      %v3267 = vadd.f32 %v3168, %v3266
      %v3268 = vpop.f32.mrf.mxu0
      %v3269 = vadd.f32 %v3170, %v3268
      %3270 = vmatmul.bf16.gmra.mxu0 %v2634
      %v3271 = vpop.f32.mrf.mxu0
      %v3272 = vadd.f32 %v3173, %v3271
      %v3273 = vpop.f32.mrf.mxu0
      %v3274 = vadd.f32 %v3175, %v3273
      %3275 = vmatmul.bf16.gmra.mxu0 %v2639
      %v3276 = vpop.f32.mrf.mxu0
      %v3277 = vadd.f32 %v3178, %v3276
      %v3278 = vpop.f32.mrf.mxu0
      %v3279 = vadd.f32 %v3180, %v3278
      %3280 = vmatmul.bf16.gmra.mxu0 %v2644
      %v3281 = vpop.f32.mrf.mxu0
      %v3282 = vadd.f32 %v3183, %v3281
      %v3283 = vpop.f32.mrf.mxu0
      %v3284 = vadd.f32 %v3185, %v3283
      %3285 = vmatmul.bf16.gmra.mxu0 %v2649
      %v3286 = vpop.f32.mrf.mxu0
      %v3287 = vadd.f32 %v3188, %v3286
      %v3288 = vpop.f32.mrf.mxu0
      %v3289 = vadd.f32 %v3190, %v3288
      %3290 = vmatmul.bf16.gmra.mxu0 %v2654
      %v3291 = vpop.f32.mrf.mxu0
      %v3292 = vadd.f32 %v3193, %v3291
      %v3293 = vpop.f32.mrf.mxu0
      %v3294 = vadd.f32 %v3195, %v3293
      %3295 = vmatmul.bf16.gmra.mxu0 %v2659
      %v3296 = vpop.f32.mrf.mxu0
      %v3297 = vadd.f32 %v3198, %v3296
      %v3298 = vpop.f32.mrf.mxu0
      %v3299 = vadd.f32 %v3200, %v3298
      %3300 = vmatmul.bf16.gmra.mxu0 %v2664
      %v3301 = vpop.f32.mrf.mxu0
      %v3302 = vadd.f32 %v3203, %v3301
      %v3303 = vpop.f32.mrf.mxu0
      %v3304 = vadd.f32 %v3205, %v3303
      %3305 = vmatmul.bf16.gmra.mxu0 %v2669
      %v3306 = vpop.f32.mrf.mxu0
      %v3307 = vadd.f32 %v3208, %v3306
      %v3308 = vpop.f32.mrf.mxu0
      %v3309 = vadd.f32 %v3210, %v3308
      %3310 = vmatmul.bf16.gmra.mxu0 %v2674
      %v3311 = vpop.f32.mrf.mxu0
      %v3312 = vadd.f32 %v3213, %v3311
      %v3313 = vpop.f32.mrf.mxu0
      %v3314 = vadd.f32 %v3215, %v3313
      %3315 = vmatmul.bf16.gmra.mxu0 %v2679
      %v3316 = vpop.f32.mrf.mxu0
      %v3317 = vadd.f32 %v3218, %v3316
      %v3318 = vpop.f32.mrf.mxu0
      %v3319 = vadd.f32 %v3220, %v3318
      %3320 = vmatmul.bf16.gmra.mxu0 %v2684
      %v3321 = vpop.f32.mrf.mxu0
      %v3322 = vadd.f32 %v3223, %v3321
      %v3323 = vpop.f32.mrf.mxu0
      %v3324 = vadd.f32 %v3225, %v3323
      %3325 = vmatmul.bf16.gmra.mxu0 %v2689
      %v3326 = vpop.f32.mrf.mxu0
      %v3327 = vadd.f32 %v3228, %v3326
      %v3328 = vpop.f32.mrf.mxu0
      %v3329 = vadd.f32 %v3230, %v3328
      %3330 = vmatmul.bf16.gmra.mxu0 %v2694
      %v3331 = vpop.f32.mrf.mxu0
      %v3332 = vadd.f32 %v3233, %v3331
      %v3333 = vpop.f32.mrf.mxu0
      %v3334 = vadd.f32 %v3235, %v3333
      %3335 = vmatmul.bf16.gmra.mxu0 %v2699
      %v3336 = vpop.f32.mrf.mxu0
      %v3337 = vadd.f32 %v3238, %v3336
      %v3338 = vpop.f32.mrf.mxu0
      %v3339 = vadd.f32 %v3240, %v3338
      %3340 = vmatmul.bf16.gmra.mxu0 %v2704
      %v3341 = vpop.f32.mrf.mxu0
      %v3342 = vadd.f32 %v3243, %v3341
      %v3343 = vpop.f32.mrf.mxu0
      %v3344 = vadd.f32 %v3245, %v3343
      %3345 = vmatmul.bf16.gmra.mxu0 %v2709
      %v3346 = vpop.f32.mrf.mxu0
      %v3347 = vadd.f32 %v3248, %v3346
      %v3348 = vpop.f32.mrf.mxu0
      %v3349 = vadd.f32 %v3250, %v3348
      %3350 = vdwg.mxu0
      %3351 = vmatpush.bf16.msra.mxu0 %v2959
      %3352 = vmatpush.bf16.msra.mxu0 %v2958
      %3353 = vmatpush.bf16.msra.mxu0 %v2957
      %3354 = vmatpush.bf16.msra.mxu0 %v2956
      %3355 = vmatpush.bf16.msra.mxu0 %v2955
      %3356 = vmatpush.bf16.msra.mxu0 %v2954
      %3357 = vmatpush.bf16.msra.mxu0 %v2953
      %3358 = vmatpush.bf16.msra.mxu0 %v2952
      %3359 = vmatmul.bf16.gmra.mxu0 %v2625
      %v3360 = vpop.f32.mrf.mxu0
      %v3361 = vadd.f32 %v3262, %v3360
      %v3362 = vpop.f32.mrf.mxu0
      %v3363 = vadd.f32 %v3264, %v3362
      %3364 = vmatmul.bf16.gmra.mxu0 %v2630
      %v3365 = vpop.f32.mrf.mxu0
      %v3366 = vadd.f32 %v3267, %v3365
      %v3367 = vpop.f32.mrf.mxu0
      %v3368 = vadd.f32 %v3269, %v3367
      %3369 = vmatmul.bf16.gmra.mxu0 %v2635
      %v3370 = vpop.f32.mrf.mxu0
      %v3371 = vadd.f32 %v3272, %v3370
      %v3372 = vpop.f32.mrf.mxu0
      %v3373 = vadd.f32 %v3274, %v3372
      %3374 = vmatmul.bf16.gmra.mxu0 %v2640
      %v3375 = vpop.f32.mrf.mxu0
      %v3376 = vadd.f32 %v3277, %v3375
      %v3377 = vpop.f32.mrf.mxu0
      %v3378 = vadd.f32 %v3279, %v3377
      %3379 = vmatmul.bf16.gmra.mxu0 %v2645
      %v3380 = vpop.f32.mrf.mxu0
      %v3381 = vadd.f32 %v3282, %v3380
      %v3382 = vpop.f32.mrf.mxu0
      %v3383 = vadd.f32 %v3284, %v3382
      %3384 = vmatmul.bf16.gmra.mxu0 %v2650
      %v3385 = vpop.f32.mrf.mxu0
      %v3386 = vadd.f32 %v3287, %v3385
      %v3387 = vpop.f32.mrf.mxu0
      %v3388 = vadd.f32 %v3289, %v3387
      %3389 = vmatmul.bf16.gmra.mxu0 %v2655
      %v3390 = vpop.f32.mrf.mxu0
      %v3391 = vadd.f32 %v3292, %v3390
      %v3392 = vpop.f32.mrf.mxu0
      %v3393 = vadd.f32 %v3294, %v3392
      %3394 = vmatmul.bf16.gmra.mxu0 %v2660
      %v3395 = vpop.f32.mrf.mxu0
      %v3396 = vadd.f32 %v3297, %v3395
      %v3397 = vpop.f32.mrf.mxu0
      %v3398 = vadd.f32 %v3299, %v3397
      %3399 = vmatmul.bf16.gmra.mxu0 %v2665
      %v3400 = vpop.f32.mrf.mxu0
      %v3401 = vadd.f32 %v3302, %v3400
      %v3402 = vpop.f32.mrf.mxu0
      %v3403 = vadd.f32 %v3304, %v3402
      %3404 = vmatmul.bf16.gmra.mxu0 %v2670
      %v3405 = vpop.f32.mrf.mxu0
      %v3406 = vadd.f32 %v3307, %v3405
      %v3407 = vpop.f32.mrf.mxu0
      %v3408 = vadd.f32 %v3309, %v3407
      %3409 = vmatmul.bf16.gmra.mxu0 %v2675
      %v3410 = vpop.f32.mrf.mxu0
      %v3411 = vadd.f32 %v3312, %v3410
      %v3412 = vpop.f32.mrf.mxu0
      %v3413 = vadd.f32 %v3314, %v3412
      %3414 = vmatmul.bf16.gmra.mxu0 %v2680
      %v3415 = vpop.f32.mrf.mxu0
      %v3416 = vadd.f32 %v3317, %v3415
      %v3417 = vpop.f32.mrf.mxu0
      %v3418 = vadd.f32 %v3319, %v3417
      %3419 = vmatmul.bf16.gmra.mxu0 %v2685
      %v3420 = vpop.f32.mrf.mxu0
      %v3421 = vadd.f32 %v3322, %v3420
      %v3422 = vpop.f32.mrf.mxu0
      %v3423 = vadd.f32 %v3324, %v3422
      %3424 = vmatmul.bf16.gmra.mxu0 %v2690
      %v3425 = vpop.f32.mrf.mxu0
      %v3426 = vadd.f32 %v3327, %v3425
      %v3427 = vpop.f32.mrf.mxu0
      %v3428 = vadd.f32 %v3329, %v3427
      %3429 = vmatmul.bf16.gmra.mxu0 %v2695
      %v3430 = vpop.f32.mrf.mxu0
      %v3431 = vadd.f32 %v3332, %v3430
      %v3432 = vpop.f32.mrf.mxu0
      %v3433 = vadd.f32 %v3334, %v3432
      %3434 = vmatmul.bf16.gmra.mxu0 %v2700
      %v3435 = vpop.f32.mrf.mxu0
      %v3436 = vadd.f32 %v3337, %v3435
      %v3437 = vpop.f32.mrf.mxu0
      %v3438 = vadd.f32 %v3339, %v3437
      %3439 = vmatmul.bf16.gmra.mxu0 %v2705
      %v3440 = vpop.f32.mrf.mxu0
      %v3441 = vadd.f32 %v3342, %v3440
      %v3442 = vpop.f32.mrf.mxu0
      %v3443 = vadd.f32 %v3344, %v3442
      %3444 = vmatmul.bf16.gmra.mxu0 %v2710
      %v3445 = vpop.f32.mrf.mxu0
      %v3446 = vadd.f32 %v3347, %v3445
      %v3447 = vpop.f32.mrf.mxu0
      %v3448 = vadd.f32 %v3349, %v3447
      %3449 = vdwg.mxu0
      %3450 = vmatpush.bf16.msra.mxu0 0
      %3451 = vmatpush.bf16.msra.mxu0 0
      %3452 = vmatpush.bf16.msra.mxu0 0
      %3453 = vmatpush.bf16.msra.mxu0 0
      %3454 = vmatpush.bf16.msra.mxu0 %v2963
      %3455 = vmatpush.bf16.msra.mxu0 %v2962
      %3456 = vmatpush.bf16.msra.mxu0 %v2961
      %3457 = vmatpush.bf16.msra.mxu0 %v2960
      %3458 = vmatmul.bf16.gmra.mxu0 %v3001
      %v3459 = vpop.f32.mrf.mxu0
      %v3460 = vadd.f32 %v3361, %v3459
      %v3461 = vpop.f32.mrf.mxu0
      %v3462 = vadd.f32 %v3363, %v3461
      %3463 = vmatmul.bf16.gmra.mxu0 %v3004
      %v3464 = vpop.f32.mrf.mxu0
      %v3465 = vadd.f32 %v3366, %v3464
      %v3466 = vpop.f32.mrf.mxu0
      %v3467 = vadd.f32 %v3368, %v3466
      %3468 = vmatmul.bf16.gmra.mxu0 %v3007
      %v3469 = vpop.f32.mrf.mxu0
      %v3470 = vadd.f32 %v3371, %v3469
      %v3471 = vpop.f32.mrf.mxu0
      %v3472 = vadd.f32 %v3373, %v3471
      %3473 = vmatmul.bf16.gmra.mxu0 %v3010
      %v3474 = vpop.f32.mrf.mxu0
      %v3475 = vadd.f32 %v3376, %v3474
      %v3476 = vpop.f32.mrf.mxu0
      %v3477 = vadd.f32 %v3378, %v3476
      %3478 = vmatmul.bf16.gmra.mxu0 %v3013
      %v3479 = vpop.f32.mrf.mxu0
      %v3480 = vadd.f32 %v3381, %v3479
      %v3481 = vpop.f32.mrf.mxu0
      %v3482 = vadd.f32 %v3383, %v3481
      %3483 = vmatmul.bf16.gmra.mxu0 %v3016
      %v3484 = vpop.f32.mrf.mxu0
      %v3485 = vadd.f32 %v3386, %v3484
      %v3486 = vpop.f32.mrf.mxu0
      %v3487 = vadd.f32 %v3388, %v3486
      %3488 = vmatmul.bf16.gmra.mxu0 %v3019
      %v3489 = vpop.f32.mrf.mxu0
      %v3490 = vadd.f32 %v3391, %v3489
      %v3491 = vpop.f32.mrf.mxu0
      %v3492 = vadd.f32 %v3393, %v3491
      %3493 = vmatmul.bf16.gmra.mxu0 %v3022
      %v3494 = vpop.f32.mrf.mxu0
      %v3495 = vadd.f32 %v3396, %v3494
      %v3496 = vpop.f32.mrf.mxu0
      %v3497 = vadd.f32 %v3398, %v3496
      %3498 = vmatmul.bf16.gmra.mxu0 %v3025
      %v3499 = vpop.f32.mrf.mxu0
      %v3500 = vadd.f32 %v3401, %v3499
      %v3501 = vpop.f32.mrf.mxu0
      %v3502 = vadd.f32 %v3403, %v3501
      %3503 = vmatmul.bf16.gmra.mxu0 %v3028
      %v3504 = vpop.f32.mrf.mxu0
      %v3505 = vadd.f32 %v3406, %v3504
      %v3506 = vpop.f32.mrf.mxu0
      %v3507 = vadd.f32 %v3408, %v3506
      %3508 = vmatmul.bf16.gmra.mxu0 %v3031
      %v3509 = vpop.f32.mrf.mxu0
      %v3510 = vadd.f32 %v3411, %v3509
      %v3511 = vpop.f32.mrf.mxu0
      %v3512 = vadd.f32 %v3413, %v3511
      %3513 = vmatmul.bf16.gmra.mxu0 %v3034
      %v3514 = vpop.f32.mrf.mxu0
      %v3515 = vadd.f32 %v3416, %v3514
      %v3516 = vpop.f32.mrf.mxu0
      %v3517 = vadd.f32 %v3418, %v3516
      %3518 = vmatmul.bf16.gmra.mxu0 %v3037
      %v3519 = vpop.f32.mrf.mxu0
      %v3520 = vadd.f32 %v3421, %v3519
      %v3521 = vpop.f32.mrf.mxu0
      %v3522 = vadd.f32 %v3423, %v3521
      %3523 = vmatmul.bf16.gmra.mxu0 %v3040
      %v3524 = vpop.f32.mrf.mxu0
      %v3525 = vadd.f32 %v3426, %v3524
      %v3526 = vpop.f32.mrf.mxu0
      %v3527 = vadd.f32 %v3428, %v3526
      %3528 = vmatmul.bf16.gmra.mxu0 %v3043
      %v3529 = vpop.f32.mrf.mxu0
      %v3530 = vadd.f32 %v3431, %v3529
      %v3531 = vpop.f32.mrf.mxu0
      %v3532 = vadd.f32 %v3433, %v3531
      %3533 = vmatmul.bf16.gmra.mxu0 %v3046
      %v3534 = vpop.f32.mrf.mxu0
      %v3535 = vadd.f32 %v3436, %v3534
      %v3536 = vpop.f32.mrf.mxu0
      %v3537 = vadd.f32 %v3438, %v3536
      %3538 = vmatmul.bf16.gmra.mxu0 %v3049
      %v3539 = vpop.f32.mrf.mxu0
      %v3540 = vadd.f32 %v3441, %v3539
      %v3541 = vpop.f32.mrf.mxu0
      %v3542 = vadd.f32 %v3443, %v3541
      %3543 = vmatmul.bf16.gmra.mxu0 %v3052
      %v3544 = vpop.f32.mrf.mxu0
      %v3545 = vadd.f32 %v3446, %v3544
      %v3546 = vpop.f32.mrf.mxu0
      %v3547 = vadd.f32 %v3448, %v3546
      %3548 = vdwg.mxu0
      %v3549 = vmax.f32 %v3460, 0.0
      %v3550 = vmax.f32 %v3462, 0.0
      %v3551 = vmax.f32 %v3465, 0.0
      %v3552 = vmax.f32 %v3467, 0.0
      %v3553 = vmax.f32 %v3470, 0.0
      %v3554 = vmax.f32 %v3472, 0.0
      %v3555 = vmax.f32 %v3475, 0.0
      %v3556 = vmax.f32 %v3477, 0.0
      %v3557 = vmax.f32 %v3480, 0.0
      %v3558 = vmax.f32 %v3482, 0.0
      %v3559 = vmax.f32 %v3485, 0.0
      %v3560 = vmax.f32 %v3487, 0.0
      %v3561 = vmax.f32 %v3490, 0.0
      %v3562 = vmax.f32 %v3492, 0.0
      %v3563 = vmax.f32 %v3495, 0.0
      %v3564 = vmax.f32 %v3497, 0.0
      %v3565 = vmax.f32 %v3500, 0.0
      %v3566 = vmax.f32 %v3502, 0.0
      %v3567 = vmax.f32 %v3505, 0.0
      %v3568 = vmax.f32 %v3507, 0.0
      %v3569 = vmax.f32 %v3510, 0.0
      %v3570 = vmax.f32 %v3512, 0.0
      %v3571 = vmax.f32 %v3515, 0.0
      %v3572 = vmax.f32 %v3517, 0.0
      %v3573 = vmax.f32 %v3520, 0.0
      %v3574 = vmax.f32 %v3522, 0.0
      %v3575 = vmax.f32 %v3525, 0.0
      %v3576 = vmax.f32 %v3527, 0.0
      %v3577 = vmax.f32 %v3530, 0.0
      %v3578 = vmax.f32 %v3532, 0.0
      %v3579 = vmax.f32 %v3535, 0.0
      %v3580 = vmax.f32 %v3537, 0.0
      %v3581 = vmax.f32 %v3540, 0.0
      %v3582 = vmax.f32 %v3542, 0.0
      %v3583 = vmax.f32 %v3545, 0.0
      %v3584 = vmax.f32 %v3547, 0.0
      %v3621 = vrot.slane %v3549, 2
      %v3622 = vrot.slane %v3549, 4
      %v3623 = vrot.slane %v3549, 6
      %v3624 = vrot.slane %v3550, 2
      %v3625 = vrot.slane %v3550, 4
      %v3626 = vrot.slane %v3550, 6
      %v3627 = vrot.slane %v3551, 2
      %v3628 = vrot.slane %v3551, 4
      %v3629 = vrot.slane %v3551, 6
      %v3630 = vrot.slane %v3552, 2
      %v3631 = vrot.slane %v3552, 4
      %v3632 = vrot.slane %v3552, 6
      %v3633 = vrot.slane %v3553, 2
      %v3634 = vrot.slane %v3553, 4
      %v3635 = vrot.slane %v3553, 6
      %v3636 = vrot.slane %v3554, 2
      %v3637 = vrot.slane %v3554, 4
      %v3638 = vrot.slane %v3554, 6
      %v3639 = vrot.slane %v3555, 2
      %v3640 = vrot.slane %v3555, 4
      %v3641 = vrot.slane %v3555, 6
      %v3642 = vrot.slane %v3556, 2
      %v3643 = vrot.slane %v3556, 4
      %v3644 = vrot.slane %v3556, 6
      %v3645 = vrot.slane %v3557, 2
      %v3646 = vrot.slane %v3557, 4
      %v3647 = vrot.slane %v3557, 6
      %v3648 = vrot.slane %v3558, 2
      %v3649 = vrot.slane %v3558, 4
      %v3650 = vrot.slane %v3558, 6
      %v3651 = vrot.slane %v3559, 2
      %v3652 = vrot.slane %v3559, 4
      %v3653 = vrot.slane %v3559, 6
      %v3654 = vrot.slane %v3560, 2
      %v3655 = vrot.slane %v3560, 4
      %v3656 = vrot.slane %v3560, 6
      %v3657 = vrot.slane %v3561, 2
      %v3658 = vrot.slane %v3561, 4
      %v3659 = vrot.slane %v3561, 6
      %v3660 = vrot.slane %v3562, 2
      %v3661 = vrot.slane %v3562, 4
      %v3662 = vrot.slane %v3562, 6
      %v3663 = vrot.slane %v3563, 2
      %v3664 = vrot.slane %v3563, 4
      %v3665 = vrot.slane %v3563, 6
      %v3666 = vrot.slane %v3564, 2
      %v3667 = vrot.slane %v3564, 4
      %v3668 = vrot.slane %v3564, 6
      %v3669 = vrot.slane %v3565, 2
      %v3670 = vrot.slane %v3565, 4
      %v3671 = vrot.slane %v3565, 6
      %v3672 = vrot.slane %v3566, 2
      %v3673 = vrot.slane %v3566, 4
      %v3674 = vrot.slane %v3566, 6
      %v3675 = vrot.slane %v3567, 2
      %v3676 = vrot.slane %v3567, 4
      %v3677 = vrot.slane %v3567, 6
      %v3678 = vrot.slane %v3568, 2
      %v3679 = vrot.slane %v3568, 4
      %v3680 = vrot.slane %v3568, 6
      %v3681 = vrot.slane %v3569, 2
      %v3682 = vrot.slane %v3569, 4
      %v3683 = vrot.slane %v3569, 6
      %v3684 = vrot.slane %v3570, 2
      %v3685 = vrot.slane %v3570, 4
      %v3686 = vrot.slane %v3570, 6
      %v3687 = vrot.slane %v3571, 2
      %v3688 = vrot.slane %v3571, 4
      %v3689 = vrot.slane %v3571, 6
      %v3690 = vrot.slane %v3572, 2
      %v3691 = vrot.slane %v3572, 4
      %v3692 = vrot.slane %v3572, 6
      %v3693 = vrot.slane %v3573, 2
      %v3694 = vrot.slane %v3573, 4
      %v3695 = vrot.slane %v3573, 6
      %v3696 = vrot.slane %v3574, 2
      %v3697 = vrot.slane %v3574, 4
      %v3698 = vrot.slane %v3574, 6
      %v3699 = vrot.slane %v3575, 2
      %v3700 = vrot.slane %v3575, 4
      %v3701 = vrot.slane %v3575, 6
      %v3702 = vrot.slane %v3576, 2
      %v3703 = vrot.slane %v3576, 4
      %v3704 = vrot.slane %v3576, 6
      %v3705 = vrot.slane %v3577, 2
      %v3706 = vrot.slane %v3577, 4
      %v3707 = vrot.slane %v3577, 6
      %v3708 = vrot.slane %v3578, 2
      %v3709 = vrot.slane %v3578, 4
      %v3710 = vrot.slane %v3578, 6
      %v3711 = vrot.slane %v3579, 2
      %v3712 = vrot.slane %v3579, 4
      %v3713 = vrot.slane %v3579, 6
      %v3714 = vrot.slane %v3580, 2
      %v3715 = vrot.slane %v3580, 4
      %v3716 = vrot.slane %v3580, 6
      %v3717 = vrot.slane %v3581, 2
      %v3718 = vrot.slane %v3581, 4
      %v3719 = vrot.slane %v3581, 6
      %v3720 = vrot.slane %v3582, 2
      %v3721 = vrot.slane %v3582, 4
      %v3722 = vrot.slane %v3582, 6
      %v3723 = vrot.slane %v3583, 2
      %v3724 = vrot.slane %v3583, 4
      %v3725 = vrot.slane %v3583, 6
      %v3726 = vrot.slane %v3584, 2
      %v3727 = vrot.slane %v3584, 4
      %v3728 = vrot.slane %v3584, 6
      %3729 = vst [vmem:[#allocation1] ss:$4 sm:$0xff] %v3549
      %s3730 = scalar_lea.vmem [#allocation1], 1
      %3731 = vst [vmem:[%s3730] ss:$4 sm:$0xff] %v3621
      %s3732 = scalar_lea.vmem [#allocation1], 2
      %3733 = vst [vmem:[%s3732] ss:$4 sm:$0xff] %v3622
      %s3734 = scalar_lea.vmem [#allocation1], 3
      %3735 = vst [vmem:[%s3734] ss:$4 sm:$0xff] %v3623
      %s3736 = scalar_lea.vmem [#allocation1], 32
      %3737 = vst [vmem:[%s3736] ss:$4 sm:$0xff] %v3550
      %s3738 = scalar_lea.vmem [#allocation1], 33
      %3739 = vst [vmem:[%s3738] ss:$4 sm:$0xff] %v3624
      %s3740 = scalar_lea.vmem [#allocation1], 34
      %3741 = vst [vmem:[%s3740] ss:$4 sm:$0xff] %v3625
      %s3742 = scalar_lea.vmem [#allocation1], 35
      %3743 = vst [vmem:[%s3742] ss:$4 sm:$0xff] %v3626
      %v3744 = vld.sshfl [vmem:[#allocation1] sm:$0xff pattern:$0x73625140]
      %v3745 = vld.sshfl [vmem:[#allocation1 + $0x20] sm:$0xff pattern:$0x73625140]
      %3746 = vst [vmem:[#allocation1] ss:$4 sm:$0xff] %v3551
      %v3747 = vld.sshfl [vmem:[#allocation1] sm:$0xff pattern:$0x73625140]
      %3748 = vst [vmem:[%s3736] ss:$4 sm:$0xff] %v3627
      %3749 = vst [vmem:[%s3738] ss:$4 sm:$0xff] %v3628
      %3750 = vst [vmem:[%s3740] ss:$4 sm:$0xff] %v3629
      %3751 = vst [vmem:[%s3742] ss:$4 sm:$0xff] %v3552
      %v3752 = vld.sshfl [vmem:[#allocation1 + $0x20] sm:$0xff pattern:$0x73625140]
      %3753 = vst [vmem:[#allocation1] ss:$4 sm:$0xff] %v3630
      %3754 = vst [vmem:[%s3730] ss:$4 sm:$0xff] %v3631
      %3755 = vst [vmem:[%s3732] ss:$4 sm:$0xff] %v3632
      %3756 = vst [vmem:[%s3734] ss:$4 sm:$0xff] %v3553
      %3757 = vst [vmem:[%s3736] ss:$4 sm:$0xff] %v3633
      %v3758 = vld.sshfl [vmem:[#allocation1] sm:$0xff pattern:$0x73625140]
      %v3759 = vld.sshfl [vmem:[#allocation1 + $0x20] sm:$0xff pattern:$0x73625140]
      %3760 = vst [vmem:[#allocation1] ss:$4 sm:$0xff] %v3634
      %3761 = vst [vmem:[%s3730] ss:$4 sm:$0xff] %v3635
      %3762 = vst [vmem:[%s3732] ss:$4 sm:$0xff] %v3554
      %3763 = vst [vmem:[%s3734] ss:$4 sm:$0xff] %v3636
      %3764 = vst [vmem:[%s3736] ss:$4 sm:$0xff] %v3637
      %3765 = vst [vmem:[%s3738] ss:$4 sm:$0xff] %v3638
      %3766 = vst [vmem:[%s3740] ss:$4 sm:$0xff] %v3555
      %3767 = vst [vmem:[%s3742] ss:$4 sm:$0xff] %v3639
      %v3768 = vld.sshfl [vmem:[#allocation1] sm:$0xff pattern:$0x73625140]
      %v3769 = vld.sshfl [vmem:[#allocation1 + $0x20] sm:$0xff pattern:$0x73625140]
      %3770 = vst [vmem:[#allocation1] ss:$4 sm:$0xff] %v3640
      %v3771 = vld.sshfl [vmem:[#allocation1] sm:$0xff pattern:$0x73625140]
      %3772 = vst [vmem:[%s3736] ss:$4 sm:$0xff] %v3641
      %3773 = vst [vmem:[%s3738] ss:$4 sm:$0xff] %v3556
      %3774 = vst [vmem:[%s3740] ss:$4 sm:$0xff] %v3642
      %3775 = vst [vmem:[%s3742] ss:$4 sm:$0xff] %v3643
      %v3776 = vld.sshfl [vmem:[#allocation1 + $0x20] sm:$0xff pattern:$0x73625140]
      %3777 = vst [vmem:[#allocation1] ss:$4 sm:$0xff] %v3644
      %3778 = vst [vmem:[%s3730] ss:$4 sm:$0xff] %v3557
      %3779 = vst [vmem:[%s3732] ss:$4 sm:$0xff] %v3645
      %3780 = vst [vmem:[%s3734] ss:$4 sm:$0xff] %v3646
      %3781 = vst [vmem:[%s3736] ss:$4 sm:$0xff] %v3647
      %v3782 = vld.sshfl [vmem:[#allocation1] sm:$0xff pattern:$0x73625140]
      %v3783 = vld.sshfl [vmem:[#allocation1 + $0x20] sm:$0xff pattern:$0x73625140]
      %3784 = vst [vmem:[#allocation1] ss:$4 sm:$0xff] %v3558
      %3785 = vst [vmem:[%s3730] ss:$4 sm:$0xff] %v3648
      %3786 = vst [vmem:[%s3732] ss:$4 sm:$0xff] %v3649
      %3787 = vst [vmem:[%s3734] ss:$4 sm:$0xff] %v3650
      %3788 = vst [vmem:[%s3736] ss:$4 sm:$0xff] %v3559
      %3789 = vst [vmem:[%s3738] ss:$4 sm:$0xff] %v3651
      %3790 = vst [vmem:[%s3740] ss:$4 sm:$0xff] %v3652
      %3791 = vst [vmem:[%s3742] ss:$4 sm:$0xff] %v3653
      %v3792 = vld.sshfl [vmem:[#allocation1] sm:$0xff pattern:$0x73625140]
      %v3793 = vld.sshfl [vmem:[#allocation1 + $0x20] sm:$0xff pattern:$0x73625140]
      %3794 = vst [vmem:[#allocation1] ss:$4 sm:$0xff] %v3560
      %v3795 = vld.sshfl [vmem:[#allocation1] sm:$0xff pattern:$0x73625140]
      %3796 = vst [vmem:[%s3736] ss:$4 sm:$0xff] %v3654
      %3797 = vst [vmem:[%s3738] ss:$4 sm:$0xff] %v3655
      %3798 = vst [vmem:[%s3740] ss:$4 sm:$0xff] %v3656
      %3799 = vst [vmem:[%s3742] ss:$4 sm:$0xff] %v3561
      %v3800 = vld.sshfl [vmem:[#allocation1 + $0x20] sm:$0xff pattern:$0x73625140]
      %3801 = vst [vmem:[#allocation1] ss:$4 sm:$0xff] %v3657
      %3802 = vst [vmem:[%s3730] ss:$4 sm:$0xff] %v3658
      %3803 = vst [vmem:[%s3732] ss:$4 sm:$0xff] %v3659
      %3804 = vst [vmem:[%s3734] ss:$4 sm:$0xff] %v3562
      %3805 = vst [vmem:[%s3736] ss:$4 sm:$0xff] %v3660
      %v3806 = vld.sshfl [vmem:[#allocation1] sm:$0xff pattern:$0x73625140]
      %v3807 = vld.sshfl [vmem:[#allocation1 + $0x20] sm:$0xff pattern:$0x73625140]
      %3808 = vst [vmem:[#allocation1] ss:$4 sm:$0xff] %v3661
      %3809 = vst [vmem:[%s3730] ss:$4 sm:$0xff] %v3662
      %3810 = vst [vmem:[%s3732] ss:$4 sm:$0xff] %v3563
      %3811 = vst [vmem:[%s3734] ss:$4 sm:$0xff] %v3663
      %3812 = vst [vmem:[%s3736] ss:$4 sm:$0xff] %v3664
      %3813 = vst [vmem:[%s3738] ss:$4 sm:$0xff] %v3665
      %3814 = vst [vmem:[%s3740] ss:$4 sm:$0xff] %v3564
      %3815 = vst [vmem:[%s3742] ss:$4 sm:$0xff] %v3666
      %v3816 = vld.sshfl [vmem:[#allocation1] sm:$0xff pattern:$0x73625140]
      %v3817 = vld.sshfl [vmem:[#allocation1 + $0x20] sm:$0xff pattern:$0x73625140]
      %3818 = vst [vmem:[#allocation1] ss:$4 sm:$0xff] %v3667
      %v3819 = vld.sshfl [vmem:[#allocation1] sm:$0xff pattern:$0x73625140]
      %3820 = vst [vmem:[%s3736] ss:$4 sm:$0xff] %v3668
      %3821 = vst [vmem:[%s3738] ss:$4 sm:$0xff] %v3565
      %3822 = vst [vmem:[%s3740] ss:$4 sm:$0xff] %v3669
      %3823 = vst [vmem:[%s3742] ss:$4 sm:$0xff] %v3670
      %v3824 = vld.sshfl [vmem:[#allocation1 + $0x20] sm:$0xff pattern:$0x73625140]
      %3825 = vst [vmem:[#allocation1] ss:$4 sm:$0xff] %v3671
      %3826 = vst [vmem:[%s3730] ss:$4 sm:$0xff] %v3566
      %3827 = vst [vmem:[%s3732] ss:$4 sm:$0xff] %v3672
      %3828 = vst [vmem:[%s3734] ss:$4 sm:$0xff] %v3673
      %3829 = vst [vmem:[%s3736] ss:$4 sm:$0xff] %v3674
      %v3830 = vld.sshfl [vmem:[#allocation1] sm:$0xff pattern:$0x73625140]
      %v3831 = vld.sshfl [vmem:[#allocation1 + $0x20] sm:$0xff pattern:$0x73625140]
      %3832 = vst [vmem:[#allocation1] ss:$4 sm:$0xff] %v3567
      %3833 = vst [vmem:[%s3730] ss:$4 sm:$0xff] %v3675
      %3834 = vst [vmem:[%s3732] ss:$4 sm:$0xff] %v3676
      %3835 = vst [vmem:[%s3734] ss:$4 sm:$0xff] %v3677
      %3836 = vst [vmem:[%s3736] ss:$4 sm:$0xff] %v3568
      %3837 = vst [vmem:[%s3738] ss:$4 sm:$0xff] %v3678
      %3838 = vst [vmem:[%s3740] ss:$4 sm:$0xff] %v3679
      %3839 = vst [vmem:[%s3742] ss:$4 sm:$0xff] %v3680
      %v3840 = vld.sshfl [vmem:[#allocation1] sm:$0xff pattern:$0x73625140]
      %v3841 = vld.sshfl [vmem:[#allocation1 + $0x20] sm:$0xff pattern:$0x73625140]
      %3842 = vst [vmem:[#allocation1] ss:$4 sm:$0xff] %v3569
      %v3843 = vld.sshfl [vmem:[#allocation1] sm:$0xff pattern:$0x73625140]
      %3844 = vst [vmem:[%s3736] ss:$4 sm:$0xff] %v3681
      %3845 = vst [vmem:[%s3738] ss:$4 sm:$0xff] %v3682
      %3846 = vst [vmem:[%s3740] ss:$4 sm:$0xff] %v3683
      %3847 = vst [vmem:[%s3742] ss:$4 sm:$0xff] %v3570
      %v3848 = vld.sshfl [vmem:[#allocation1 + $0x20] sm:$0xff pattern:$0x73625140]
      %3849 = vst [vmem:[#allocation1] ss:$4 sm:$0xff] %v3684
      %3850 = vst [vmem:[%s3730] ss:$4 sm:$0xff] %v3685
      %3851 = vst [vmem:[%s3732] ss:$4 sm:$0xff] %v3686
      %3852 = vst [vmem:[%s3734] ss:$4 sm:$0xff] %v3571
      %3853 = vst [vmem:[%s3736] ss:$4 sm:$0xff] %v3687
      %v3854 = vld.sshfl [vmem:[#allocation1] sm:$0xff pattern:$0x73625140]
      %v3855 = vld.sshfl [vmem:[#allocation1 + $0x20] sm:$0xff pattern:$0x73625140]
      %3856 = vst [vmem:[#allocation1] ss:$4 sm:$0xff] %v3688
      %3857 = vst [vmem:[%s3730] ss:$4 sm:$0xff] %v3689
      %3858 = vst [vmem:[%s3732] ss:$4 sm:$0xff] %v3572
      %3859 = vst [vmem:[%s3734] ss:$4 sm:$0xff] %v3690
      %3860 = vst [vmem:[%s3736] ss:$4 sm:$0xff] %v3691
      %3861 = vst [vmem:[%s3738] ss:$4 sm:$0xff] %v3692
      %3862 = vst [vmem:[%s3740] ss:$4 sm:$0xff] %v3573
      %3863 = vst [vmem:[%s3742] ss:$4 sm:$0xff] %v3693
      %v3864 = vld.sshfl [vmem:[#allocation1] sm:$0xff pattern:$0x73625140]
      %v3865 = vld.sshfl [vmem:[#allocation1 + $0x20] sm:$0xff pattern:$0x73625140]
      %3866 = vst [vmem:[#allocation1] ss:$4 sm:$0xff] %v3694
      %v3867 = vld.sshfl [vmem:[#allocation1] sm:$0xff pattern:$0x73625140]
      %3868 = vst [vmem:[%s3736] ss:$4 sm:$0xff] %v3695
      %3869 = vst [vmem:[%s3738] ss:$4 sm:$0xff] %v3574
      %3870 = vst [vmem:[%s3740] ss:$4 sm:$0xff] %v3696
      %3871 = vst [vmem:[%s3742] ss:$4 sm:$0xff] %v3697
      %v3872 = vld.sshfl [vmem:[#allocation1 + $0x20] sm:$0xff pattern:$0x73625140]
      %3873 = vst [vmem:[#allocation1] ss:$4 sm:$0xff] %v3698
      %3874 = vst [vmem:[%s3730] ss:$4 sm:$0xff] %v3575
      %3875 = vst [vmem:[%s3732] ss:$4 sm:$0xff] %v3699
      %3876 = vst [vmem:[%s3734] ss:$4 sm:$0xff] %v3700
      %3877 = vst [vmem:[%s3736] ss:$4 sm:$0xff] %v3701
      %v3878 = vld.sshfl [vmem:[#allocation1] sm:$0xff pattern:$0x73625140]
      %v3879 = vld.sshfl [vmem:[#allocation1 + $0x20] sm:$0xff pattern:$0x73625140]
      %3880 = vst [vmem:[#allocation1] ss:$4 sm:$0xff] %v3576
      %3881 = vst [vmem:[%s3730] ss:$4 sm:$0xff] %v3702
      %3882 = vst [vmem:[%s3732] ss:$4 sm:$0xff] %v3703
      %3883 = vst [vmem:[%s3734] ss:$4 sm:$0xff] %v3704
      %3884 = vst [vmem:[%s3736] ss:$4 sm:$0xff] %v3577
      %3885 = vst [vmem:[%s3738] ss:$4 sm:$0xff] %v3705
      %3886 = vst [vmem:[%s3740] ss:$4 sm:$0xff] %v3706
      %3887 = vst [vmem:[%s3742] ss:$4 sm:$0xff] %v3707
      %v3888 = vld.sshfl [vmem:[#allocation1] sm:$0xff pattern:$0x73625140]
      %v3889 = vld.sshfl [vmem:[#allocation1 + $0x20] sm:$0xff pattern:$0x73625140]
      %3890 = vst [vmem:[#allocation1] ss:$4 sm:$0xff] %v3578
      %v3891 = vld.sshfl [vmem:[#allocation1] sm:$0xff pattern:$0x73625140]
      %3892 = vst [vmem:[%s3736] ss:$4 sm:$0xff] %v3708
      %3893 = vst [vmem:[%s3738] ss:$4 sm:$0xff] %v3709
      %3894 = vst [vmem:[%s3740] ss:$4 sm:$0xff] %v3710
      %3895 = vst [vmem:[%s3742] ss:$4 sm:$0xff] %v3579
      %v3896 = vld.sshfl [vmem:[#allocation1 + $0x20] sm:$0xff pattern:$0x73625140]
      %3897 = vst [vmem:[#allocation1] ss:$4 sm:$0xff] %v3711
      %3898 = vst [vmem:[%s3730] ss:$4 sm:$0xff] %v3712
      %3899 = vst [vmem:[%s3732] ss:$4 sm:$0xff] %v3713
      %3900 = vst [vmem:[%s3734] ss:$4 sm:$0xff] %v3580
      %3901 = vst [vmem:[%s3736] ss:$4 sm:$0xff] %v3714
      %v3902 = vld.sshfl [vmem:[#allocation1] sm:$0xff pattern:$0x73625140]
      %v3903 = vld.sshfl [vmem:[#allocation1 + $0x20] sm:$0xff pattern:$0x73625140]
      %3904 = vst [vmem:[#allocation1] ss:$4 sm:$0xff] %v3715
      %3905 = vst [vmem:[%s3730] ss:$4 sm:$0xff] %v3716
      %3906 = vst [vmem:[%s3732] ss:$4 sm:$0xff] %v3581
      %3907 = vst [vmem:[%s3734] ss:$4 sm:$0xff] %v3717
      %3908 = vst [vmem:[%s3736] ss:$4 sm:$0xff] %v3718
      %3909 = vst [vmem:[%s3738] ss:$4 sm:$0xff] %v3719
      %3910 = vst [vmem:[%s3740] ss:$4 sm:$0xff] %v3582
      %3911 = vst [vmem:[%s3742] ss:$4 sm:$0xff] %v3720
      %v3912 = vld.sshfl [vmem:[#allocation1] sm:$0xff pattern:$0x73625140]
      %v3913 = vld.sshfl [vmem:[#allocation1 + $0x20] sm:$0xff pattern:$0x73625140]
      %3914 = vst [vmem:[#allocation1] ss:$4 sm:$0xff] %v3721
      %v3915 = vld.sshfl [vmem:[#allocation1] sm:$0xff pattern:$0x73625140]
      %3916 = vst [vmem:[%s3736] ss:$4 sm:$0xff] %v3722
      %3917 = vst [vmem:[%s3738] ss:$4 sm:$0xff] %v3583
      %3918 = vst [vmem:[%s3740] ss:$4 sm:$0xff] %v3723
      %3919 = vst [vmem:[%s3742] ss:$4 sm:$0xff] %v3724
      %v3920 = vld.sshfl [vmem:[#allocation1 + $0x20] sm:$0xff pattern:$0x73625140]
      %3921 = vst [vmem:[#allocation1] ss:$4 sm:$0xff] %v3725
      %3922 = vst [vmem:[%s3730] ss:$4 sm:$0xff] %v3584
      %3923 = vst [vmem:[%s3732] ss:$4 sm:$0xff] %v3726
      %3924 = vst [vmem:[%s3734] ss:$4 sm:$0xff] %v3727
      %3925 = vst [vmem:[%s3736] ss:$4 sm:$0xff] %v3728
      %v3926 = vld.sshfl [vmem:[#allocation1] sm:$0xff pattern:$0x73625140]
      %v3927 = vld.sshfl [vmem:[#allocation1 + $0x20] sm:$0xff pattern:$0x73625140]
      %3976 = vst [vmem:[#allocation4] sm:$0xff] %v3744
      %3977 = vst [vmem:[#allocation4 + $0x8] sm:$0xff] %v3745
      %3978 = vst [vmem:[#allocation4 + $0x10] sm:$0x3] %v3747
      %3979 = vst [vmem:[#allocation4 + $0x18] sm:$0xff] %v3752
      %3980 = vst [vmem:[#allocation4 + $0x20] sm:$0xff] %v3758
      %3981 = vst [vmem:[#allocation4 + $0x28] sm:$0x3] %v3759
      %3982 = vst [vmem:[#allocation4 + $0x30] sm:$0xff] %v3768
      %3983 = vst [vmem:[#allocation4 + $0x38] sm:$0xff] %v3769
      %3984 = vst [vmem:[#allocation4 + $0x40] sm:$0x3] %v3771
      %3985 = vst [vmem:[#allocation4 + $0x48] sm:$0xff] %v3776
      %3986 = vst [vmem:[#allocation4 + $0x50] sm:$0xff] %v3782
      %3987 = vst [vmem:[#allocation4 + $0x58] sm:$0x3] %v3783
      %3988 = vst [vmem:[#allocation4 + $0x60] sm:$0xff] %v3792
      %3989 = vst [vmem:[#allocation4 + $0x68] sm:$0xff] %v3793
      %3990 = vst [vmem:[#allocation4 + $0x70] sm:$0x3] %v3795
      %3991 = vst [vmem:[#allocation4 + $0x78] sm:$0xff] %v3800
      %3992 = vst [vmem:[#allocation4 + $0x80] sm:$0xff] %v3806
      %3993 = vst [vmem:[#allocation4 + $0x88] sm:$0x3] %v3807
      %3994 = vst [vmem:[#allocation4 + $0x90] sm:$0xff] %v3816
      %3995 = vst [vmem:[#allocation4 + $0x98] sm:$0xff] %v3817
      %3996 = vst [vmem:[#allocation4 + $0xa0] sm:$0x3] %v3819
      %3997 = vst [vmem:[#allocation4 + $0xa8] sm:$0xff] %v3824
      %3998 = vst [vmem:[#allocation4 + $0xb0] sm:$0xff] %v3830
      %3999 = vst [vmem:[#allocation4 + $0xb8] sm:$0x3] %v3831
      %4000 = vst [vmem:[#allocation4 + $0xc0] sm:$0xff] %v3840
      %4001 = vst [vmem:[#allocation4 + $0xc8] sm:$0xff] %v3841
      %4002 = vst [vmem:[#allocation4 + $0xd0] sm:$0x3] %v3843
      %4003 = vst [vmem:[#allocation4 + $0xd8] sm:$0xff] %v3848
      %4004 = vst [vmem:[#allocation4 + $0xe0] sm:$0xff] %v3854
      %4005 = vst [vmem:[#allocation4 + $0xe8] sm:$0x3] %v3855
      %4006 = vst [vmem:[#allocation4 + $0xf0] sm:$0xff] %v3864
      %4007 = vst [vmem:[#allocation4 + $0xf8] sm:$0xff] %v3865
      %4008 = vst [vmem:[#allocation4 + $0x100] sm:$0x3] %v3867
      %4009 = vst [vmem:[#allocation4 + $0x108] sm:$0xff] %v3872
      %4010 = vst [vmem:[#allocation4 + $0x110] sm:$0xff] %v3878
      %4011 = vst [vmem:[#allocation4 + $0x118] sm:$0x3] %v3879
      %4012 = vst [vmem:[#allocation4 + $0x120] sm:$0xff] %v3888
      %4013 = vst [vmem:[#allocation4 + $0x128] sm:$0xff] %v3889
      %4014 = vst [vmem:[#allocation4 + $0x130] sm:$0x3] %v3891
      %4015 = vst [vmem:[#allocation4 + $0x138] sm:$0xff] %v3896
      %4016 = vst [vmem:[#allocation4 + $0x140] sm:$0xff] %v3902
      %4017 = vst [vmem:[#allocation4 + $0x148] sm:$0x3] %v3903
      %4018 = vst [vmem:[#allocation4 + $0x150] sm:$0xff] %v3912
      %4019 = vst [vmem:[#allocation4 + $0x158] sm:$0xff] %v3913
      %4020 = vst [vmem:[#allocation4 + $0x160] sm:$0x3] %v3915
      %4021 = vst [vmem:[#allocation4 + $0x168] sm:$0xff] %v3920
      %4022 = vst [vmem:[#allocation4 + $0x170] sm:$0xff] %v3926
      %4023 = vst [vmem:[#allocation4 + $0x178] sm:$0x3] %v3927
      %v4024 = vld [vmem:[#allocation4] sm:$0xff]
      %v4025 = vld [vmem:[#allocation4 + $0x8] sm:$0xff]
      %v4026 = vld [vmem:[#allocation4 + $0x18] sm:$0xff]
      %v4027 = vld [vmem:[#allocation4 + $0x20] sm:$0xff]
      %v4028 = vld [vmem:[#allocation4 + $0x30] sm:$0xff]
      %v4029 = vld [vmem:[#allocation4 + $0x38] sm:$0xff]
      %v4030 = vld [vmem:[#allocation4 + $0x48] sm:$0xff]
      %v4031 = vld [vmem:[#allocation4 + $0x50] sm:$0xff]
      %v4032 = vld [vmem:[#allocation4 + $0x60] sm:$0xff]
      %v4033 = vld [vmem:[#allocation4 + $0x68] sm:$0xff]
      %v4034 = vld [vmem:[#allocation4 + $0x78] sm:$0xff]
      %v4035 = vld [vmem:[#allocation4 + $0x80] sm:$0xff]
      %v4036 = vld [vmem:[#allocation4 + $0x90] sm:$0xff]
      %v4037 = vld [vmem:[#allocation4 + $0x98] sm:$0xff]
      %v4038 = vld [vmem:[#allocation4 + $0xa8] sm:$0xff]
      %v4039 = vld [vmem:[#allocation4 + $0xb0] sm:$0xff]
      %v4040 = vld [vmem:[#allocation4 + $0xc0] sm:$0xff]
      %v4041 = vld [vmem:[#allocation4 + $0xc8] sm:$0xff]
      %v4042 = vld [vmem:[#allocation4 + $0xd8] sm:$0xff]
      %v4043 = vld [vmem:[#allocation4 + $0xe0] sm:$0xff]
      %v4044 = vld [vmem:[#allocation4 + $0xf0] sm:$0xff]
      %v4045 = vld [vmem:[#allocation4 + $0xf8] sm:$0xff]
      %v4046 = vld [vmem:[#allocation4 + $0x108] sm:$0xff]
      %v4047 = vld [vmem:[#allocation4 + $0x110] sm:$0xff]
      %v4048 = vld [vmem:[#allocation4 + $0x120] sm:$0xff]
      %v4049 = vld [vmem:[#allocation4 + $0x128] sm:$0xff]
      %v4050 = vld [vmem:[#allocation4 + $0x138] sm:$0xff]
      %v4051 = vld [vmem:[#allocation4 + $0x140] sm:$0xff]
      %v4052 = vld [vmem:[#allocation4 + $0x150] sm:$0xff]
      %v4053 = vld [vmem:[#allocation4 + $0x158] sm:$0xff]
      %v4054 = vld [vmem:[#allocation4 + $0x168] sm:$0xff]
      %v4055 = vld [vmem:[#allocation4 + $0x170] sm:$0xff]
      %v4056 = vmax.f32 %v4024, %v4025
      %v4057 = vmax.f32 %v4056, %v4026
      %v4058 = vmax.f32 %v4057, %v4027
      %v4059 = vrot.slane %v4058, 4
      %v4060 = vmax.f32 %v4058, %v4059
      %v4061 = vrot.slane %v4060, 2
      %v4062 = vmax.f32 %v4060, %v4061
      %v4063 = vrot.slane %v4062, 1
      %v4064 = vmax.f32 %v4062, %v4063
      %v4065 = vmax.f32 %v4028, %v4029
      %v4066 = vmax.f32 %v4065, %v4030
      %v4067 = vmax.f32 %v4066, %v4031
      %v4068 = vrot.slane %v4067, 4
      %v4069 = vmax.f32 %v4067, %v4068
      %v4070 = vrot.slane %v4069, 2
      %v4071 = vmax.f32 %v4069, %v4070
      %v4072 = vrot.slane %v4071, 1
      %v4073 = vmax.f32 %v4071, %v4072
      %v4074 = vmax.f32 %v4032, %v4033
      %v4075 = vmax.f32 %v4074, %v4034
      %v4076 = vmax.f32 %v4075, %v4035
      %v4077 = vrot.slane %v4076, 4
      %v4078 = vmax.f32 %v4076, %v4077
      %v4079 = vrot.slane %v4078, 2
      %v4080 = vmax.f32 %v4078, %v4079
      %v4081 = vrot.slane %v4080, 1
      %v4082 = vmax.f32 %v4080, %v4081
      %v4083 = vmax.f32 %v4036, %v4037
      %v4084 = vmax.f32 %v4083, %v4038
      %v4085 = vmax.f32 %v4084, %v4039
      %v4086 = vrot.slane %v4085, 4
      %v4087 = vmax.f32 %v4085, %v4086
      %v4088 = vrot.slane %v4087, 2
      %v4089 = vmax.f32 %v4087, %v4088
      %v4090 = vrot.slane %v4089, 1
      %v4091 = vmax.f32 %v4089, %v4090
      %v4092 = vmax.f32 %v4040, %v4041
      %v4093 = vmax.f32 %v4092, %v4042
      %v4094 = vmax.f32 %v4093, %v4043
      %v4095 = vrot.slane %v4094, 4
      %v4096 = vmax.f32 %v4094, %v4095
      %v4097 = vrot.slane %v4096, 2
      %v4098 = vmax.f32 %v4096, %v4097
      %v4099 = vrot.slane %v4098, 1
      %v4100 = vmax.f32 %v4098, %v4099
      %v4101 = vmax.f32 %v4044, %v4045
      %v4102 = vmax.f32 %v4101, %v4046
      %v4103 = vmax.f32 %v4102, %v4047
      %v4104 = vrot.slane %v4103, 4
      %v4105 = vmax.f32 %v4103, %v4104
      %v4106 = vrot.slane %v4105, 2
      %v4107 = vmax.f32 %v4105, %v4106
      %v4108 = vrot.slane %v4107, 1
      %v4109 = vmax.f32 %v4107, %v4108
      %v4110 = vmax.f32 %v4048, %v4049
      %v4111 = vmax.f32 %v4110, %v4050
      %v4112 = vmax.f32 %v4111, %v4051
      %v4113 = vrot.slane %v4112, 4
      %v4114 = vmax.f32 %v4112, %v4113
      %v4115 = vrot.slane %v4114, 2
      %v4116 = vmax.f32 %v4114, %v4115
      %v4117 = vrot.slane %v4116, 1
      %v4118 = vmax.f32 %v4116, %v4117
      %v4119 = vmax.f32 %v4052, %v4053
      %v4120 = vmax.f32 %v4119, %v4054
      %v4121 = vmax.f32 %v4120, %v4055
      %v4122 = vrot.slane %v4121, 4
      %v4123 = vmax.f32 %v4121, %v4122
      %v4124 = vrot.slane %v4123, 2
      %v4125 = vmax.f32 %v4123, %v4124
      %v4126 = vrot.slane %v4125, 1
      %v4127 = vmax.f32 %v4125, %v4126
      %v4128 = vsub.f32 %v4024, %v4064
      %v4129 = vsub.f32 %v4025, %v4064
      %v4130 = vsub.f32 %v4026, %v4064
      %v4131 = vsub.f32 %v4027, %v4064
      %v4132 = vsub.f32 %v4028, %v4073
      %v4133 = vsub.f32 %v4029, %v4073
      %v4134 = vsub.f32 %v4030, %v4073
      %v4135 = vsub.f32 %v4031, %v4073
      %v4136 = vsub.f32 %v4032, %v4082
      %v4137 = vsub.f32 %v4033, %v4082
      %v4138 = vsub.f32 %v4034, %v4082
      %v4139 = vsub.f32 %v4035, %v4082
      %v4140 = vsub.f32 %v4036, %v4091
      %v4141 = vsub.f32 %v4037, %v4091
      %v4142 = vsub.f32 %v4038, %v4091
      %v4143 = vsub.f32 %v4039, %v4091
      %v4144 = vsub.f32 %v4040, %v4100
      %v4145 = vsub.f32 %v4041, %v4100
      %v4146 = vsub.f32 %v4042, %v4100
      %v4147 = vsub.f32 %v4043, %v4100
      %v4148 = vsub.f32 %v4044, %v4109
      %v4149 = vsub.f32 %v4045, %v4109
      %v4150 = vsub.f32 %v4046, %v4109
      %v4151 = vsub.f32 %v4047, %v4109
      %v4152 = vsub.f32 %v4048, %v4118
      %v4153 = vsub.f32 %v4049, %v4118
      %v4154 = vsub.f32 %v4050, %v4118
      %v4155 = vsub.f32 %v4051, %v4118
      %v4156 = vsub.f32 %v4052, %v4127
      %v4157 = vsub.f32 %v4053, %v4127
      %v4158 = vsub.f32 %v4054, %v4127
      %v4159 = vsub.f32 %v4055, %v4127
      %v4160 = vmul.f32 %v4128, 1.442695
      %v4161 = vpow.pop %v4160
      %v4162 = vmul.f32 %v4129, 1.442695
      %v4163 = vpow.pop %v4162
      %v4164 = vmul.f32 %v4130, 1.442695
      %v4165 = vpow.pop %v4164
      %v4166 = vmul.f32 %v4131, 1.442695
      %v4167 = vpow.pop %v4166
      %v4168 = vmul.f32 %v4132, 1.442695
      %v4169 = vpow.pop %v4168
      %v4170 = vmul.f32 %v4133, 1.442695
      %v4171 = vpow.pop %v4170
      %v4172 = vmul.f32 %v4134, 1.442695
      %v4173 = vpow.pop %v4172
      %v4174 = vmul.f32 %v4135, 1.442695
      %v4175 = vpow.pop %v4174
      %v4176 = vmul.f32 %v4136, 1.442695
      %v4177 = vpow.pop %v4176
      %v4178 = vmul.f32 %v4137, 1.442695
      %v4179 = vpow.pop %v4178
      %v4180 = vmul.f32 %v4138, 1.442695
      %v4181 = vpow.pop %v4180
      %v4182 = vmul.f32 %v4139, 1.442695
      %v4183 = vpow.pop %v4182
      %v4184 = vmul.f32 %v4140, 1.442695
      %v4185 = vpow.pop %v4184
      %v4186 = vmul.f32 %v4141, 1.442695
      %v4187 = vpow.pop %v4186
      %v4188 = vmul.f32 %v4142, 1.442695
      %v4189 = vpow.pop %v4188
      %v4190 = vmul.f32 %v4143, 1.442695
      %v4191 = vpow.pop %v4190
      %v4192 = vmul.f32 %v4144, 1.442695
      %v4193 = vpow.pop %v4192
      %v4194 = vmul.f32 %v4145, 1.442695
      %v4195 = vpow.pop %v4194
      %v4196 = vmul.f32 %v4146, 1.442695
      %v4197 = vpow.pop %v4196
      %v4198 = vmul.f32 %v4147, 1.442695
      %v4199 = vpow.pop %v4198
      %v4200 = vmul.f32 %v4148, 1.442695
      %v4201 = vpow.pop %v4200
      %v4202 = vmul.f32 %v4149, 1.442695
      %v4203 = vpow.pop %v4202
      %v4204 = vmul.f32 %v4150, 1.442695
      %v4205 = vpow.pop %v4204
      %v4206 = vmul.f32 %v4151, 1.442695
      %v4207 = vpow.pop %v4206
      %v4208 = vmul.f32 %v4152, 1.442695
      %v4209 = vpow.pop %v4208
      %v4210 = vmul.f32 %v4153, 1.442695
      %v4211 = vpow.pop %v4210
      %v4212 = vmul.f32 %v4154, 1.442695
      %v4213 = vpow.pop %v4212
      %v4214 = vmul.f32 %v4155, 1.442695
      %v4215 = vpow.pop %v4214
      %v4216 = vmul.f32 %v4156, 1.442695
      %v4217 = vpow.pop %v4216
      %v4218 = vmul.f32 %v4157, 1.442695
      %v4219 = vpow.pop %v4218
      %v4220 = vmul.f32 %v4158, 1.442695
      %v4221 = vpow.pop %v4220
      %v4222 = vmul.f32 %v4159, 1.442695
      %v4223 = vpow.pop %v4222
      %v4224 = vadd.f32 %v4161, %v4163
      %v4225 = vadd.f32 %v4224, %v4165
      %v4226 = vadd.f32 %v4225, %v4167
      %v4227 = vrot.slane %v4226, 4
      %v4228 = vadd.f32 %v4226, %v4227
      %v4229 = vrot.slane %v4228, 2
      %v4230 = vadd.f32 %v4228, %v4229
      %v4231 = vrot.slane %v4230, 1
      %v4232 = vadd.f32 %v4230, %v4231
      %v4233 = vadd.f32 %v4169, %v4171
      %v4234 = vadd.f32 %v4233, %v4173
      %v4235 = vadd.f32 %v4234, %v4175
      %v4236 = vrot.slane %v4235, 4
      %v4237 = vadd.f32 %v4235, %v4236
      %v4238 = vrot.slane %v4237, 2
      %v4239 = vadd.f32 %v4237, %v4238
      %v4240 = vrot.slane %v4239, 1
      %v4241 = vadd.f32 %v4239, %v4240
      %v4242 = vadd.f32 %v4177, %v4179
      %v4243 = vadd.f32 %v4242, %v4181
      %v4244 = vadd.f32 %v4243, %v4183
      %v4245 = vrot.slane %v4244, 4
      %v4246 = vadd.f32 %v4244, %v4245
      %v4247 = vrot.slane %v4246, 2
      %v4248 = vadd.f32 %v4246, %v4247
      %v4249 = vrot.slane %v4248, 1
      %v4250 = vadd.f32 %v4248, %v4249
      %v4251 = vadd.f32 %v4185, %v4187
      %v4252 = vadd.f32 %v4251, %v4189
      %v4253 = vadd.f32 %v4252, %v4191
      %v4254 = vrot.slane %v4253, 4
      %v4255 = vadd.f32 %v4253, %v4254
      %v4256 = vrot.slane %v4255, 2
      %v4257 = vadd.f32 %v4255, %v4256
      %v4258 = vrot.slane %v4257, 1
      %v4259 = vadd.f32 %v4257, %v4258
      %v4260 = vadd.f32 %v4193, %v4195
      %v4261 = vadd.f32 %v4260, %v4197
      %v4262 = vadd.f32 %v4261, %v4199
      %v4263 = vrot.slane %v4262, 4
      %v4264 = vadd.f32 %v4262, %v4263
      %v4265 = vrot.slane %v4264, 2
      %v4266 = vadd.f32 %v4264, %v4265
      %v4267 = vrot.slane %v4266, 1
      %v4268 = vadd.f32 %v4266, %v4267
      %v4269 = vadd.f32 %v4201, %v4203
      %v4270 = vadd.f32 %v4269, %v4205
      %v4271 = vadd.f32 %v4270, %v4207
      %v4272 = vrot.slane %v4271, 4
      %v4273 = vadd.f32 %v4271, %v4272
      %v4274 = vrot.slane %v4273, 2
      %v4275 = vadd.f32 %v4273, %v4274
      %v4276 = vrot.slane %v4275, 1
      %v4277 = vadd.f32 %v4275, %v4276
      %v4278 = vadd.f32 %v4209, %v4211
      %v4279 = vadd.f32 %v4278, %v4213
      %v4280 = vadd.f32 %v4279, %v4215
      %v4281 = vrot.slane %v4280, 4
      %v4282 = vadd.f32 %v4280, %v4281
      %v4283 = vrot.slane %v4282, 2
      %v4284 = vadd.f32 %v4282, %v4283
      %v4285 = vrot.slane %v4284, 1
      %v4286 = vadd.f32 %v4284, %v4285
      %v4287 = vadd.f32 %v4217, %v4219
      %v4288 = vadd.f32 %v4287, %v4221
      %v4289 = vadd.f32 %v4288, %v4223
      %v4290 = vrot.slane %v4289, 4
      %v4291 = vadd.f32 %v4289, %v4290
      %v4292 = vrot.slane %v4291, 2
      %v4293 = vadd.f32 %v4291, %v4292
      %v4294 = vrot.slane %v4293, 1
      %v4295 = vadd.f32 %v4293, %v4294
      %v4296 = vrcp.pop %v4232
      %v4297 = vrcp.pop %v4241
      %v4298 = vrcp.pop %v4250
      %v4299 = vrcp.pop %v4259
      %v4300 = vrcp.pop %v4268
      %v4301 = vrcp.pop %v4277
      %v4302 = vrcp.pop %v4286
      %v4303 = vrcp.pop %v4295
      %v4304 = vmul.f32 %v4161, %v4296
      %v4305 = vmul.f32 %v4163, %v4296
      %v4306 = vmul.f32 %v4165, %v4296
      %v4307 = vmul.f32 %v4167, %v4296
      %v4308 = vmul.f32 %v4169, %v4297
      %v4309 = vmul.f32 %v4171, %v4297
      %v4310 = vmul.f32 %v4173, %v4297
      %v4311 = vmul.f32 %v4175, %v4297
      %v4312 = vmul.f32 %v4177, %v4298
      %v4313 = vmul.f32 %v4179, %v4298
      %v4314 = vmul.f32 %v4181, %v4298
      %v4315 = vmul.f32 %v4183, %v4298
      %v4316 = vmul.f32 %v4185, %v4299
      %v4317 = vmul.f32 %v4187, %v4299
      %v4318 = vmul.f32 %v4189, %v4299
      %v4319 = vmul.f32 %v4191, %v4299
      %v4320 = vmul.f32 %v4193, %v4300
      %v4321 = vmul.f32 %v4195, %v4300
      %v4322 = vmul.f32 %v4197, %v4300
      %v4323 = vmul.f32 %v4199, %v4300
      %v4324 = vmul.f32 %v4201, %v4301
      %v4325 = vmul.f32 %v4203, %v4301
      %v4326 = vmul.f32 %v4205, %v4301
      %v4327 = vmul.f32 %v4207, %v4301
      %v4328 = vmul.f32 %v4209, %v4302
      %v4329 = vmul.f32 %v4211, %v4302
      %v4330 = vmul.f32 %v4213, %v4302
      %v4331 = vmul.f32 %v4215, %v4302
      %v4332 = vmul.f32 %v4217, %v4303
      %v4333 = vmul.f32 %v4219, %v4303
      %v4334 = vmul.f32 %v4221, %v4303
      %v4335 = vmul.f32 %v4223, %v4303
      %4336 = vxpose.xlu0.b32.start [1/16] %v4304, 128
      %4337 = vxpose.xlu0.b32.cont [2/16] %v4305, 128
      %4338 = vxpose.xlu0.b32.cont [3/16] %v4306, 128
      %4339 = vxpose.xlu0.b32.cont [4/16] %v4307, 128
      %4340 = vxpose.xlu0.b32.cont [5/16] %v4308, 128
      %4341 = vxpose.xlu0.b32.cont [6/16] %v4309, 128
      %4342 = vxpose.xlu0.b32.cont [7/16] %v4310, 128
      %4343 = vxpose.xlu0.b32.cont [8/16] %v4311, 128
      %4344 = vxpose.xlu0.b32.cont [9/16] %v4312, 128
      %4345 = vxpose.xlu0.b32.cont [10/16] %v4313, 128
      %4346 = vxpose.xlu0.b32.cont [11/16] %v4314, 128
      %4347 = vxpose.xlu0.b32.cont [12/16] %v4315, 128
      %4348 = vxpose.xlu0.b32.cont [13/16] %v4316, 128
      %4349 = vxpose.xlu0.b32.cont [14/16] %v4317, 128
      %4350 = vxpose.xlu0.b32.cont [15/16] %v4318, 128
      %4351 = vxpose.xlu0.b32.end [16/16] %v4319, 128
      %v4352 = vpop.trf.xlu0
      %v4353 = vpop.trf.xlu0
      %v4354 = vpop.trf.xlu0
      %v4355 = vpop.trf.xlu0
      %v4356 = vpop.trf.xlu0
      %v4357 = vpop.trf.xlu0
      %v4358 = vpop.trf.xlu0
      %v4359 = vpop.trf.xlu0
      %v4360 = vpop.trf.xlu0
      %v4361 = vpop.trf.xlu0
      %v4362 = vpop.trf.xlu0
      %v4363 = vpop.trf.xlu0
      %v4364 = vpop.trf.xlu0
      %v4365 = vpop.trf.xlu0
      %v4366 = vpop.trf.xlu0
      %v4367 = vpop.trf.xlu0
      %4368 = vxpose.xlu0.b32.start [1/16] %v4320, 128
      %4369 = vxpose.xlu0.b32.cont [2/16] %v4321, 128
      %4370 = vxpose.xlu0.b32.cont [3/16] %v4322, 128
      %4371 = vxpose.xlu0.b32.cont [4/16] %v4323, 128
      %4372 = vxpose.xlu0.b32.cont [5/16] %v4324, 128
      %4373 = vxpose.xlu0.b32.cont [6/16] %v4325, 128
      %4374 = vxpose.xlu0.b32.cont [7/16] %v4326, 128
      %4375 = vxpose.xlu0.b32.cont [8/16] %v4327, 128
      %4376 = vxpose.xlu0.b32.cont [9/16] %v4328, 128
      %4377 = vxpose.xlu0.b32.cont [10/16] %v4329, 128
      %4378 = vxpose.xlu0.b32.cont [11/16] %v4330, 128
      %4379 = vxpose.xlu0.b32.cont [12/16] %v4331, 128
      %4380 = vxpose.xlu0.b32.cont [13/16] %v4332, 128
      %4381 = vxpose.xlu0.b32.cont [14/16] %v4333, 128
      %4382 = vxpose.xlu0.b32.cont [15/16] %v4334, 128
      %4383 = vxpose.xlu0.b32.end [16/16] %v4335, 128
      %v4384 = vpop.trf.xlu0
      %v4385 = vpop.trf.xlu0
      %v4386 = vpop.trf.xlu0
      %v4387 = vpop.trf.xlu0
      %v4388 = vpop.trf.xlu0
      %v4389 = vpop.trf.xlu0
      %v4390 = vpop.trf.xlu0
      %v4391 = vpop.trf.xlu0
      %v4392 = vpop.trf.xlu0
      %v4393 = vpop.trf.xlu0
      %v4394 = vpop.trf.xlu0
      %v4395 = vpop.trf.xlu0
      %v4396 = vpop.trf.xlu0
      %v4397 = vpop.trf.xlu0
      %v4398 = vpop.trf.xlu0
      %v4399 = vpop.trf.xlu0
      %4400 = vst [vmem:[%s170] sm:$0xff] %v4352
      %4401 = vst [vmem:[%s170 + $0x8] sm:$0xff] %v4384
      %4402 = vst [vmem:[%s170 + $0x10] sm:$0xff] %v4353
      %4403 = vst [vmem:[%s170 + $0x18] sm:$0xff] %v4385
      %4404 = vst [vmem:[%s170 + $0x20] sm:$0xff] %v4354
      %4405 = vst [vmem:[%s170 + $0x28] sm:$0xff] %v4386
      %4406 = vst [vmem:[%s170 + $0x30] sm:$0xff] %v4355
      %4407 = vst [vmem:[%s170 + $0x38] sm:$0xff] %v4387
      %4408 = vst [vmem:[%s170 + $0x40] sm:$0xff] %v4356
      %4409 = vst [vmem:[%s170 + $0x48] sm:$0xff] %v4388
      %4410 = vst [vmem:[%s170 + $0x50] sm:$0xff] %v4357
      %4411 = vst [vmem:[%s170 + $0x58] sm:$0xff] %v4389
      %4412 = vst [vmem:[%s170 + $0x60] sm:$0xff] %v4358
      %4413 = vst [vmem:[%s170 + $0x68] sm:$0xff] %v4390
      %4414 = vst [vmem:[%s170 + $0x70] sm:$0xff] %v4359
      %4415 = vst [vmem:[%s170 + $0x78] sm:$0xff] %v4391
      %4416 = vst [vmem:[%s170 + $0x80] sm:$0xff] %v4360
      %4417 = vst [vmem:[%s170 + $0x88] sm:$0xff] %v4392
      %4418 = vst [vmem:[%s170 + $0x90] sm:$0xff] %v4361
      %4419 = vst [vmem:[%s170 + $0x98] sm:$0xff] %v4393
      %4420 = vst [vmem:[%s170 + $0xa0] sm:$0xff] %v4362
      %4421 = vst [vmem:[%s170 + $0xa8] sm:$0xff] %v4394
      %4422 = vst [vmem:[%s170 + $0xb0] sm:$0xff] %v4363
      %4423 = vst [vmem:[%s170 + $0xb8] sm:$0xff] %v4395
      %4424 = vst [vmem:[%s170 + $0xc0] sm:$0xf] %v4364
      %4425 = vst [vmem:[%s170 + $0xc8] sm:$0xf] %v4396
      %p4426 = scmp.lt.s32.totalorder %s14, 1
      %s4427 = scalar_select %p4426, %s14, 1
      %s4428 = smul.addr %s4427, 26
      %s4429 = smul.addr %s4428, 8
      %s4430 = scalar_lea.vmem %s3, %s4429
      // Predicated region
      $region33: #{_lambda_.2} parent=31 // pred_check
        %p4431 = pneg %p100
      $region34: #{_lambda_.2} parent=31 // pred_check_branch
        %4433 = sbr.rel (%p4431) target = $region36
      $region35: #{_lambda_.2} parent=31 // pred_region
        _
      $region36: #{_lambda_.2} parent=31 // pred_fallthru
        _
    $region32: #{_lambda_.2} parent=5 // pred_fallthru
      _
    %p4434 = scmp.le.s32.totalorder 2, %s9
    // Predicated region
    $region37: #{_lambda_.2} parent=5 // pred_check
      %p4435 = pneg %p4434
    $region38: #{_lambda_.2} parent=5 // pred_check_branch
      %4437 = sbr.rel (%p4435) target = $region40
    $region39: #{_lambda_.2} parent=5 // pred_region
      %s4438 = ssub.s32 %s9, 2
      // Predicated region
      $region41: #{_lambda_.2} parent=39 // pred_check
        %p4439 = pneg %p106
      $region42: #{_lambda_.2} parent=39 // pred_check_branch
        %4441 = sbr.rel (%p4439) target = $region44
      $region43: #{_lambda_.2} parent=39 // pred_region
        %p4442 = scmp.lt.s32.totalorder %s15, 1
        %s4443 = scalar_select %p4442, %s15, 1
        %s4444 = smul.addr %s4443, 26
        %s4445 = smul.addr %s4444, 8
        %s4446 = scalar_lea.vmem %s3, %s4445
      $region44: #{_lambda_.2} parent=39 // pred_fallthru
        _
    $region40: #{_lambda_.2} parent=5 // pred_fallthru
      _
  $region6: #{_lambda_.2} parent=0 // loop_footer
    %s13 = sadd.s32 1, %s9
  $region7: #{_lambda_.2} parent=0 // loop_footer_branch
    %8 = sbr.rel target = $region3
  $region8: #{_lambda_.2} parent=0 // loop_exit
    _

</llo_original>
